<compile_context>
chip_gen: v5e
topology: v5e:2x2
jax: 0.10.0
libtpu: 0.0.40
codegen_flags: <defaults>
</compile_context>

<pallas_src>
import numpy as np

import jax
import jax.numpy as jnp
from jax import lax
from jax.experimental import pallas as pl
from jax.experimental.pallas import tpu as pltpu


# ----------------------------------------------------------------------------
# Raster geometry (specialized for 1x28x28 inputs, as required by the FC layer)
# ----------------------------------------------------------------------------
_W1 = 32            # conv1 padded raster width  (28 + 2*2)
_L1 = 33 * _W1      # conv1 padded raster length (+1 zero tail row so every
                    #   shifted 5x5 slab stays in bounds)
_M1 = 28 * _W1      # conv1 output raster rows   (28 output rows on a 32-wide raster)
_W2 = 18            # conv2 padded raster width  (14 + 2*2)
_L2 = 19 * _W2      # conv2 padded raster length (+1 zero tail row)
_M2 = 14 * _W2      # conv2 output raster rows
_NP = 128           # FC output padded to a full lane width (true out dim = 10)


# ----------------------------------------------------------------------------
# The fused per-image kernel (grid = batch)
# ----------------------------------------------------------------------------
def _cnn_kernel(x_ref, w1_ref, b1_ref, t1_ref, w2_ref, b2_ref, t2_ref,
                wfc_ref, bfc_ref, out_ref):
    f32, bf16 = jnp.float32, jnp.bfloat16

    # ---- conv1 (1 -> 16, 5x5, pad 2): in-VMEM im2col + one bf16 GEMM ---------
    xr = x_ref[0]                                                  # (1, L1) f32
    p1 = jnp.concatenate(
        [xr[:, kh * _W1 + kw: kh * _W1 + kw + _M1]
         for kh in range(5) for kw in range(5)], axis=0)           # (25, M1)
    a1 = jnp.dot(w1_ref[...], p1.astype(bf16),
                 preferred_element_type=f32)                       # (16, M1)
    a1 = jnp.maximum(a1 + b1_ref[...], 0.0).astype(bf16)           # bias + ReLU

    # ---- fused 2x2 max-pool + zero-pad placement onto conv2's raster ---------
    # max over the four pooling-window corners; each corner is a constant 0/1
    # gather matrix applied on the MXU.  Result already carries conv2's zero
    # padding ring (all-zero selector columns).
    x2 = jnp.dot(a1, t1_ref[0], preferred_element_type=f32)        # (16, L2)
    for c in range(1, 4):
        x2 = jnp.maximum(x2, jnp.dot(a1, t1_ref[c], preferred_element_type=f32))

    # ---- conv2 (16 -> 32, 5x5, pad 2): in-VMEM im2col + one bf16 GEMM --------
    p2 = jnp.concatenate(
        [x2[:, kh * _W2 + kw: kh * _W2 + kw + _M2]
         for kh in range(5) for kw in range(5)], axis=0)           # (400, M2)
    a2 = jnp.dot(w2_ref[...], p2.astype(bf16),
                 preferred_element_type=f32)                       # (32, M2)
    a2 = jnp.maximum(a2 + b2_ref[...], 0.0).astype(bf16)

    # ---- fused 2x2 max-pool -> (32, 49) = torch's (C, H, W) flatten order ----
    pf = jnp.dot(a2, t2_ref[0], preferred_element_type=f32)        # (32, 49)
    for c in range(1, 4):
        pf = jnp.maximum(pf, jnp.dot(a2, t2_ref[c], preferred_element_type=f32))

    # ---- Linear(1568, 10) with output padded to 128 (lane-dense store) -------
    acc = bfc_ref[...]                                             # (1, 128) f32
    for c in range(32):
        acc = acc + jnp.dot(pf[c:c + 1, :].astype(bf16), wfc_ref[c],
                            preferred_element_type=f32)
    out_ref[0] = acc


# ----------------------------------------------------------------------------
# One-time parameter repacking (torch layout -> kernel-ready constants)
# ----------------------------------------------------------------------------
def _build_pool_selectors():
    """0/1 'corner gather' matrices: 2x2 max-pool (and, for conv1, zero-pad
    placement onto conv2's padded input raster) expressed as matmuls."""
    t1 = np.zeros((4, _M1, _L2), np.float32)
    t2 = np.zeros((4, _M2, 49), np.float32)
    for c, (dh, dw) in enumerate(((0, 0), (0, 1), (1, 0), (1, 1))):
        for ho in range(14):
            for wo in range(14):
                src = (2 * ho + dh) * _W1 + (2 * wo + dw)
                dst = (ho + 2) * _W2 + (wo + 2)          # +2 = conv2 zero pad
                t1[c, src, dst] = 1.0
        for ho in range(7):
            for wo in range(7):
                src = (2 * ho + dh) * _W2 + (2 * wo + dw)
                t2[c, src, ho * 7 + wo] = 1.0
    return jnp.asarray(t1, jnp.bfloat16), jnp.asarray(t2, jnp.bfloat16)


def prepare_params(params):
    """Repack torch-layout parameters once (bf16 weights, transposed conv
    weights, pool selectors, FC weight pre-permuted to the kernel layout)."""
    t1, t2 = _build_pool_selectors()
    return {
        "w1t": jnp.asarray(params["w1"].reshape(25, 16).T, jnp.bfloat16),   # (16, 25)
        "b1": params["b1"].reshape(16, 1).astype(jnp.float32),
        "w2t": jnp.asarray(params["w2"].reshape(400, 32).T, jnp.bfloat16),  # (32, 400)
        "b2": params["b2"].reshape(32, 1).astype(jnp.float32),
        "t1": t1,                                                           # (4, 896, 342)
        "t2": t2,                                                           # (4, 252, 49)
        # FC weight in the kernel's pooled (C, H*W) layout, cols padded 10->128.
        "wfc": jnp.asarray(
            jnp.pad(params["wfc"], ((0, 0), (0, _NP - 10))).reshape(32, 49, _NP),
            jnp.bfloat16),
        "bfc": jnp.pad(params["bfc"], (0, _NP - 10)).reshape(1, _NP).astype(jnp.float32),
    }


# ----------------------------------------------------------------------------
# Forward pass: one pallas_call, gridded over the batch
# ----------------------------------------------------------------------------
@jax.jit
def cnn_forward(x_nchw, kp):
    B, C, H, W = x_nchw.shape
    assert (C, H, W) == (1, 28, 28), "kernel is specialized for 1x28x28 inputs"

    # Zero-pad to the 32-wide conv1 raster (+1 zero tail row) and flatten.
    xr = jnp.pad(x_nchw[:, 0], ((0, 0), (2, 3), (2, 2))).reshape(B, 1, _L1)

    out = pl.pallas_call(
        _cnn_kernel,
        out_shape=jax.ShapeDtypeStruct((B, 1, _NP), jnp.float32),
        grid=(B,),
        in_specs=[
            pl.BlockSpec((1, 1, _L1), lambda b: (b, 0, 0)),      # image raster
            pl.BlockSpec((16, 25), lambda b: (0, 0)),            # conv1 weight^T
            pl.BlockSpec((16, 1), lambda b: (0, 0)),             # conv1 bias
            pl.BlockSpec((4, _M1, _L2), lambda b: (0, 0, 0)),    # pool1 selectors
            pl.BlockSpec((32, 400), lambda b: (0, 0)),           # conv2 weight^T
            pl.BlockSpec((32, 1), lambda b: (0, 0)),             # conv2 bias
            pl.BlockSpec((4, _M2, 49), lambda b: (0, 0, 0)),     # pool2 selectors
            pl.BlockSpec((32, 49, _NP), lambda b: (0, 0, 0)),    # FC weight
            pl.BlockSpec((1, _NP), lambda b: (0, 0)),            # FC bias (padded)
        ],
        out_specs=pl.BlockSpec((1, 1, _NP), lambda b: (b, 0, 0)),
        compiler_params=pltpu.CompilerParams(
            dimension_semantics=("parallel",),
            vmem_limit_bytes=32 * 1024 * 1024),
    )(xr, kp["w1t"], kp["b1"], kp["t1"], kp["w2t"], kp["b2"], kp["t2"],
      kp["wfc"], kp["bfc"])
    return out[:, 0, :10]


# ----------------------------------------------------------------------------
# Pure-JAX reference (mimics the kernel's bf16 operand quantization points)
# ----------------------------------------------------------------------------
def ref_forward(x_nchw, params):
    q = lambda a: a.astype(jnp.bfloat16).astype(jnp.float32)

    def conv_relu_pool(x, w_hwio, b):
        w_oihw = jnp.transpose(w_hwio, (3, 2, 0, 1))
        y = lax.conv_general_dilated(
            q(x), q(w_oihw), (1, 1), ((2, 2), (2, 2)),
            dimension_numbers=("NCHW", "OIHW", "NCHW"),
            precision=lax.Precision.HIGHEST)
        y = jnp.maximum(y + b.reshape(1, -1, 1, 1), 0.0)
        return lax.reduce_window(y, -jnp.inf, lax.max,
                                 (1, 1, 2, 2), (1, 1, 2, 2), "VALID")

    y = conv_relu_pool(x_nchw, params["w1"], params["b1"])
    y = conv_relu_pool(y, params["w2"], params["b2"])
    flat = y.reshape(y.shape[0], -1)                 # torch (C, H, W) flatten
    return jnp.dot(q(flat), q(params["wfc"]),
                   precision=lax.Precision.HIGHEST) + params["bfc"]


# ----------------------------------------------------------------------------
# Deterministic parameter init (shapes interchangeable with the torch module)
# ----------------------------------------------------------------------------
def init_params(key):
    k1, k2, k3 = jax.random.split(key, 3)
    return {
        # HWIO: (kh, kw, cin, cout)  ==  torch (cout, cin, kh, kw) permuted
        "w1": 0.1 * jax.random.normal(k1, (5, 5, 1, 16), jnp.float32),
        "b1": jnp.zeros((16,), jnp.float32),
        "w2": 0.1 * jax.random.normal(k2, (5, 5, 16, 32), jnp.float32),
        "b2": jnp.zeros((32,), jnp.float32),
        # (in_features, out_features); rows ordered (C, H, W) like torch flatten
        "wfc": 0.05 * jax.random.normal(k3, (32 * 7 * 7, 10), jnp.float32),
        "bfc": jnp.zeros((10,), jnp.float32),
    }


if __name__ == "__main__":
    key = jax.random.PRNGKey(0)
    kx, kp_key = jax.random.split(key)

    # MNIST-style input: batch=2, 1 channel, 28x28 (required by Linear(32*7*7, 10))
    x = jax.random.normal(kx, (2, 1, 28, 28), jnp.float32)
    params = init_params(kp_key)
    kparams = prepare_params(params)

    out = jax.block_until_ready(cnn_forward(x, kparams))
    assert out.shape == (2, 10) and out.dtype == jnp.float32

    ref = jax.block_until_ready(ref_forward(x, params))
    assert jnp.allclose(out, ref, rtol=2e-3, atol=2e-3), "mismatch vs JAX reference"

    print("KERNEL_OK")
</pallas_src>

<mosaic_0001>
module attributes {stable_mosaic.version = 11 : i64} {
  func.func @_cnn_kernel(%arg0: i32, %arg1: memref<1x1x1056xf32, #tpu.memory_space<vmem>>, %arg2: memref<16x25xbf16, #tpu.memory_space<vmem>>, %arg3: memref<16x1xf32, #tpu.memory_space<vmem>>, %arg4: memref<4x896x342xbf16, #tpu.memory_space<vmem>>, %arg5: memref<32x400xbf16, #tpu.memory_space<vmem>>, %arg6: memref<32x1xf32, #tpu.memory_space<vmem>>, %arg7: memref<4x252x49xbf16, #tpu.memory_space<vmem>>, %arg8: memref<32x49x128xbf16, #tpu.memory_space<vmem>>, %arg9: memref<1x128xf32, #tpu.memory_space<vmem>>, %arg10: memref<1x1x128xf32, #tpu.memory_space<vmem>>) attributes {dimension_semantics = [#tpu.dimension_semantics<parallel>], iteration_bounds = array<i64: 2>, scalar_prefetch = 0 : i64, scratch_operands = 0 : i64, tpu.core_type = #tpu.core_type<tc>, window_params = [{transform_indices = @transform_0, window_bounds = array<i64: 1, 1, 1056>}, {pipeline_mode = #tpu.pipeline_mode<synchronous>, transform_indices = @transform_1, window_bounds = array<i64: 16, 25>}, {pipeline_mode = #tpu.pipeline_mode<synchronous>, transform_indices = @transform_2, window_bounds = array<i64: 16, 1>}, {pipeline_mode = #tpu.pipeline_mode<synchronous>, transform_indices = @transform_3, window_bounds = array<i64: 4, 896, 342>}, {pipeline_mode = #tpu.pipeline_mode<synchronous>, transform_indices = @transform_4, window_bounds = array<i64: 32, 400>}, {pipeline_mode = #tpu.pipeline_mode<synchronous>, transform_indices = @transform_5, window_bounds = array<i64: 32, 1>}, {pipeline_mode = #tpu.pipeline_mode<synchronous>, transform_indices = @transform_6, window_bounds = array<i64: 4, 252, 49>}, {pipeline_mode = #tpu.pipeline_mode<synchronous>, transform_indices = @transform_7, window_bounds = array<i64: 32, 49, 128>}, {pipeline_mode = #tpu.pipeline_mode<synchronous>, transform_indices = @transform_8, window_bounds = array<i64: 1, 128>}, {transform_indices = @transform_9, window_bounds = array<i64: 1, 1, 128>}]} {
    %c0 = arith.constant 0 : index
    %c0_0 = arith.constant 0 : index
    %c0_1 = arith.constant 0 : index
    %0 = vector.load %arg1[%c0, %c0_0, %c0_1] : memref<1x1x1056xf32, #tpu.memory_space<vmem>>, vector<1x1x1056xf32>
    %1 = vector.shape_cast %0 : vector<1x1x1056xf32> to vector<1x1056xf32>
    %2 = vector.extract_strided_slice %1 {offsets = [0, 0], sizes = [1, 896], strides = [1, 1]} : vector<1x1056xf32> to vector<1x896xf32>
    %3 = vector.extract_strided_slice %1 {offsets = [0, 1], sizes = [1, 896], strides = [1, 1]} : vector<1x1056xf32> to vector<1x896xf32>
    %4 = vector.extract_strided_slice %1 {offsets = [0, 2], sizes = [1, 896], strides = [1, 1]} : vector<1x1056xf32> to vector<1x896xf32>
    %5 = vector.extract_strided_slice %1 {offsets = [0, 3], sizes = [1, 896], strides = [1, 1]} : vector<1x1056xf32> to vector<1x896xf32>
    %6 = vector.extract_strided_slice %1 {offsets = [0, 4], sizes = [1, 896], strides = [1, 1]} : vector<1x1056xf32> to vector<1x896xf32>
    %7 = vector.extract_strided_slice %1 {offsets = [0, 32], sizes = [1, 896], strides = [1, 1]} : vector<1x1056xf32> to vector<1x896xf32>
    %8 = vector.extract_strided_slice %1 {offsets = [0, 33], sizes = [1, 896], strides = [1, 1]} : vector<1x1056xf32> to vector<1x896xf32>
    %9 = vector.extract_strided_slice %1 {offsets = [0, 34], sizes = [1, 896], strides = [1, 1]} : vector<1x1056xf32> to vector<1x896xf32>
    %10 = vector.extract_strided_slice %1 {offsets = [0, 35], sizes = [1, 896], strides = [1, 1]} : vector<1x1056xf32> to vector<1x896xf32>
    %11 = vector.extract_strided_slice %1 {offsets = [0, 36], sizes = [1, 896], strides = [1, 1]} : vector<1x1056xf32> to vector<1x896xf32>
    %12 = vector.extract_strided_slice %1 {offsets = [0, 64], sizes = [1, 896], strides = [1, 1]} : vector<1x1056xf32> to vector<1x896xf32>
    %13 = vector.extract_strided_slice %1 {offsets = [0, 65], sizes = [1, 896], strides = [1, 1]} : vector<1x1056xf32> to vector<1x896xf32>
    %14 = vector.extract_strided_slice %1 {offsets = [0, 66], sizes = [1, 896], strides = [1, 1]} : vector<1x1056xf32> to vector<1x896xf32>
    %15 = vector.extract_strided_slice %1 {offsets = [0, 67], sizes = [1, 896], strides = [1, 1]} : vector<1x1056xf32> to vector<1x896xf32>
    %16 = vector.extract_strided_slice %1 {offsets = [0, 68], sizes = [1, 896], strides = [1, 1]} : vector<1x1056xf32> to vector<1x896xf32>
    %17 = vector.extract_strided_slice %1 {offsets = [0, 96], sizes = [1, 896], strides = [1, 1]} : vector<1x1056xf32> to vector<1x896xf32>
    %18 = vector.extract_strided_slice %1 {offsets = [0, 97], sizes = [1, 896], strides = [1, 1]} : vector<1x1056xf32> to vector<1x896xf32>
    %19 = vector.extract_strided_slice %1 {offsets = [0, 98], sizes = [1, 896], strides = [1, 1]} : vector<1x1056xf32> to vector<1x896xf32>
    %20 = vector.extract_strided_slice %1 {offsets = [0, 99], sizes = [1, 896], strides = [1, 1]} : vector<1x1056xf32> to vector<1x896xf32>
    %21 = vector.extract_strided_slice %1 {offsets = [0, 100], sizes = [1, 896], strides = [1, 1]} : vector<1x1056xf32> to vector<1x896xf32>
    %22 = vector.extract_strided_slice %1 {offsets = [0, 128], sizes = [1, 896], strides = [1, 1]} : vector<1x1056xf32> to vector<1x896xf32>
    %23 = vector.extract_strided_slice %1 {offsets = [0, 129], sizes = [1, 896], strides = [1, 1]} : vector<1x1056xf32> to vector<1x896xf32>
    %24 = vector.extract_strided_slice %1 {offsets = [0, 130], sizes = [1, 896], strides = [1, 1]} : vector<1x1056xf32> to vector<1x896xf32>
    %25 = vector.extract_strided_slice %1 {offsets = [0, 131], sizes = [1, 896], strides = [1, 1]} : vector<1x1056xf32> to vector<1x896xf32>
    %26 = vector.extract_strided_slice %1 {offsets = [0, 132], sizes = [1, 896], strides = [1, 1]} : vector<1x1056xf32> to vector<1x896xf32>
    %27 = tpu.concatenate %2, %3, %4, %5, %6, %7, %8, %9, %10, %11, %12, %13, %14, %15, %16, %17 in 0 : vector<1x896xf32>, vector<1x896xf32>, vector<1x896xf32>, vector<1x896xf32>, vector<1x896xf32>, vector<1x896xf32>, vector<1x896xf32>, vector<1x896xf32>, vector<1x896xf32>, vector<1x896xf32>, vector<1x896xf32>, vector<1x896xf32>, vector<1x896xf32>, vector<1x896xf32>, vector<1x896xf32>, vector<1x896xf32> -> vector<16x896xf32>
    %28 = tpu.concatenate %18, %19, %20, %21, %22, %23, %24, %25, %26 in 0 : vector<1x896xf32>, vector<1x896xf32>, vector<1x896xf32>, vector<1x896xf32>, vector<1x896xf32>, vector<1x896xf32>, vector<1x896xf32>, vector<1x896xf32>, vector<1x896xf32> -> vector<9x896xf32>
    %29 = tpu.concatenate %27, %28 in 0 : vector<16x896xf32>, vector<9x896xf32> -> vector<25x896xf32>
    %c0_2 = arith.constant 0 : index
    %c0_3 = arith.constant 0 : index
    %30 = vector.load %arg2[%c0_2, %c0_3] : memref<16x25xbf16, #tpu.memory_space<vmem>>, vector<16x25xbf16>
    %31 = arith.truncf %29 : vector<25x896xf32> to vector<25x896xbf16>
    %cst = arith.constant dense<0.000000e+00> : vector<16x896xf32>
    %32 = tpu.matmul %30, %31, %cst {dimension_numbers = #tpu.dot_dimension_numbers<[1], [0], [0], [1], [0, 0, 1, 1], [], []>} : vector<16x25xbf16>, vector<25x896xbf16>, vector<16x896xf32> -> vector<16x896xf32>
    %c0_4 = arith.constant 0 : index
    %c0_5 = arith.constant 0 : index
    %33 = vector.load %arg3[%c0_4, %c0_5] : memref<16x1xf32, #tpu.memory_space<vmem>>, vector<16x1xf32>
    %34 = vector.broadcast %33 : vector<16x1xf32> to vector<16x896xf32>
    %35 = arith.addf %32, %34 : vector<16x896xf32>
    %cst_6 = arith.constant 0.000000e+00 : f32
    %36 = vector.broadcast %cst_6 : f32 to vector<16x896xf32>
    %37 = arith.maximumf %35, %36 : vector<16x896xf32>
    %38 = arith.truncf %37 : vector<16x896xf32> to vector<16x896xbf16>
    %c0_7 = arith.constant 0 : index
    %c0_8 = arith.constant 0 : index
    %c0_9 = arith.constant 0 : index
    %39 = vector.load %arg4[%c0_7, %c0_8, %c0_9] : memref<4x896x342xbf16, #tpu.memory_space<vmem>>, vector<1x896x342xbf16>
    %40 = vector.shape_cast %39 : vector<1x896x342xbf16> to vector<896x342xbf16>
    %cst_10 = arith.constant dense<0.000000e+00> : vector<16x342xf32>
    %41 = tpu.matmul %38, %40, %cst_10 {dimension_numbers = #tpu.dot_dimension_numbers<[1], [0], [0], [1], [0, 0, 1, 1], [], []>} : vector<16x896xbf16>, vector<896x342xbf16>, vector<16x342xf32> -> vector<16x342xf32>
    %c1 = arith.constant 1 : index
    %c0_11 = arith.constant 0 : index
    %c0_12 = arith.constant 0 : index
    %42 = vector.load %arg4[%c1, %c0_11, %c0_12] : memref<4x896x342xbf16, #tpu.memory_space<vmem>>, vector<1x896x342xbf16>
    %43 = vector.shape_cast %42 : vector<1x896x342xbf16> to vector<896x342xbf16>
    %cst_13 = arith.constant dense<0.000000e+00> : vector<16x342xf32>
    %44 = tpu.matmul %38, %43, %cst_13 {dimension_numbers = #tpu.dot_dimension_numbers<[1], [0], [0], [1], [0, 0, 1, 1], [], []>} : vector<16x896xbf16>, vector<896x342xbf16>, vector<16x342xf32> -> vector<16x342xf32>
    %45 = arith.maximumf %41, %44 : vector<16x342xf32>
    %c2 = arith.constant 2 : index
    %c0_14 = arith.constant 0 : index
    %c0_15 = arith.constant 0 : index
    %46 = vector.load %arg4[%c2, %c0_14, %c0_15] : memref<4x896x342xbf16, #tpu.memory_space<vmem>>, vector<1x896x342xbf16>
    %47 = vector.shape_cast %46 : vector<1x896x342xbf16> to vector<896x342xbf16>
    %cst_16 = arith.constant dense<0.000000e+00> : vector<16x342xf32>
    %48 = tpu.matmul %38, %47, %cst_16 {dimension_numbers = #tpu.dot_dimension_numbers<[1], [0], [0], [1], [0, 0, 1, 1], [], []>} : vector<16x896xbf16>, vector<896x342xbf16>, vector<16x342xf32> -> vector<16x342xf32>
    %49 = arith.maximumf %45, %48 : vector<16x342xf32>
    %c3 = arith.constant 3 : index
    %c0_17 = arith.constant 0 : index
    %c0_18 = arith.constant 0 : index
    %50 = vector.load %arg4[%c3, %c0_17, %c0_18] : memref<4x896x342xbf16, #tpu.memory_space<vmem>>, vector<1x896x342xbf16>
    %51 = vector.shape_cast %50 : vector<1x896x342xbf16> to vector<896x342xbf16>
    %cst_19 = arith.constant dense<0.000000e+00> : vector<16x342xf32>
    %52 = tpu.matmul %38, %51, %cst_19 {dimension_numbers = #tpu.dot_dimension_numbers<[1], [0], [0], [1], [0, 0, 1, 1], [], []>} : vector<16x896xbf16>, vector<896x342xbf16>, vector<16x342xf32> -> vector<16x342xf32>
    %53 = arith.maximumf %49, %52 : vector<16x342xf32>
    %54 = vector.extract_strided_slice %53 {offsets = [0, 0], sizes = [16, 252], strides = [1, 1]} : vector<16x342xf32> to vector<16x252xf32>
    %55 = vector.extract_strided_slice %53 {offsets = [0, 1], sizes = [16, 252], strides = [1, 1]} : vector<16x342xf32> to vector<16x252xf32>
    %56 = vector.extract_strided_slice %53 {offsets = [0, 2], sizes = [16, 252], strides = [1, 1]} : vector<16x342xf32> to vector<16x252xf32>
    %57 = vector.extract_strided_slice %53 {offsets = [0, 3], sizes = [16, 252], strides = [1, 1]} : vector<16x342xf32> to vector<16x252xf32>
    %58 = vector.extract_strided_slice %53 {offsets = [0, 4], sizes = [16, 252], strides = [1, 1]} : vector<16x342xf32> to vector<16x252xf32>
    %59 = vector.extract_strided_slice %53 {offsets = [0, 18], sizes = [16, 252], strides = [1, 1]} : vector<16x342xf32> to vector<16x252xf32>
    %60 = vector.extract_strided_slice %53 {offsets = [0, 19], sizes = [16, 252], strides = [1, 1]} : vector<16x342xf32> to vector<16x252xf32>
    %61 = vector.extract_strided_slice %53 {offsets = [0, 20], sizes = [16, 252], strides = [1, 1]} : vector<16x342xf32> to vector<16x252xf32>
    %62 = vector.extract_strided_slice %53 {offsets = [0, 21], sizes = [16, 252], strides = [1, 1]} : vector<16x342xf32> to vector<16x252xf32>
    %63 = vector.extract_strided_slice %53 {offsets = [0, 22], sizes = [16, 252], strides = [1, 1]} : vector<16x342xf32> to vector<16x252xf32>
    %64 = vector.extract_strided_slice %53 {offsets = [0, 36], sizes = [16, 252], strides = [1, 1]} : vector<16x342xf32> to vector<16x252xf32>
    %65 = vector.extract_strided_slice %53 {offsets = [0, 37], sizes = [16, 252], strides = [1, 1]} : vector<16x342xf32> to vector<16x252xf32>
    %66 = vector.extract_strided_slice %53 {offsets = [0, 38], sizes = [16, 252], strides = [1, 1]} : vector<16x342xf32> to vector<16x252xf32>
    %67 = vector.extract_strided_slice %53 {offsets = [0, 39], sizes = [16, 252], strides = [1, 1]} : vector<16x342xf32> to vector<16x252xf32>
    %68 = vector.extract_strided_slice %53 {offsets = [0, 40], sizes = [16, 252], strides = [1, 1]} : vector<16x342xf32> to vector<16x252xf32>
    %69 = vector.extract_strided_slice %53 {offsets = [0, 54], sizes = [16, 252], strides = [1, 1]} : vector<16x342xf32> to vector<16x252xf32>
    %70 = vector.extract_strided_slice %53 {offsets = [0, 55], sizes = [16, 252], strides = [1, 1]} : vector<16x342xf32> to vector<16x252xf32>
    %71 = vector.extract_strided_slice %53 {offsets = [0, 56], sizes = [16, 252], strides = [1, 1]} : vector<16x342xf32> to vector<16x252xf32>
    %72 = vector.extract_strided_slice %53 {offsets = [0, 57], sizes = [16, 252], strides = [1, 1]} : vector<16x342xf32> to vector<16x252xf32>
    %73 = vector.extract_strided_slice %53 {offsets = [0, 58], sizes = [16, 252], strides = [1, 1]} : vector<16x342xf32> to vector<16x252xf32>
    %74 = vector.extract_strided_slice %53 {offsets = [0, 72], sizes = [16, 252], strides = [1, 1]} : vector<16x342xf32> to vector<16x252xf32>
    %75 = vector.extract_strided_slice %53 {offsets = [0, 73], sizes = [16, 252], strides = [1, 1]} : vector<16x342xf32> to vector<16x252xf32>
    %76 = vector.extract_strided_slice %53 {offsets = [0, 74], sizes = [16, 252], strides = [1, 1]} : vector<16x342xf32> to vector<16x252xf32>
    %77 = vector.extract_strided_slice %53 {offsets = [0, 75], sizes = [16, 252], strides = [1, 1]} : vector<16x342xf32> to vector<16x252xf32>
    %78 = vector.extract_strided_slice %53 {offsets = [0, 76], sizes = [16, 252], strides = [1, 1]} : vector<16x342xf32> to vector<16x252xf32>
    %79 = tpu.concatenate %54, %55, %56, %57, %58, %59, %60, %61, %62, %63, %64, %65, %66, %67, %68, %69 in 0 : vector<16x252xf32>, vector<16x252xf32>, vector<16x252xf32>, vector<16x252xf32>, vector<16x252xf32>, vector<16x252xf32>, vector<16x252xf32>, vector<16x252xf32>, vector<16x252xf32>, vector<16x252xf32>, vector<16x252xf32>, vector<16x252xf32>, vector<16x252xf32>, vector<16x252xf32>, vector<16x252xf32>, vector<16x252xf32> -> vector<256x252xf32>
    %80 = tpu.concatenate %70, %71, %72, %73, %74, %75, %76, %77, %78 in 0 : vector<16x252xf32>, vector<16x252xf32>, vector<16x252xf32>, vector<16x252xf32>, vector<16x252xf32>, vector<16x252xf32>, vector<16x252xf32>, vector<16x252xf32>, vector<16x252xf32> -> vector<144x252xf32>
    %81 = tpu.concatenate %79, %80 in 0 : vector<256x252xf32>, vector<144x252xf32> -> vector<400x252xf32>
    %c0_20 = arith.constant 0 : index
    %c0_21 = arith.constant 0 : index
    %82 = vector.load %arg5[%c0_20, %c0_21] : memref<32x400xbf16, #tpu.memory_space<vmem>>, vector<32x400xbf16>
    %83 = arith.truncf %81 : vector<400x252xf32> to vector<400x252xbf16>
    %cst_22 = arith.constant dense<0.000000e+00> : vector<32x252xf32>
    %84 = tpu.matmul %82, %83, %cst_22 {dimension_numbers = #tpu.dot_dimension_numbers<[1], [0], [0], [1], [0, 0, 1, 1], [], []>} : vector<32x400xbf16>, vector<400x252xbf16>, vector<32x252xf32> -> vector<32x252xf32>
    %c0_23 = arith.constant 0 : index
    %c0_24 = arith.constant 0 : index
    %85 = vector.load %arg6[%c0_23, %c0_24] : memref<32x1xf32, #tpu.memory_space<vmem>>, vector<32x1xf32>
    %86 = vector.broadcast %85 : vector<32x1xf32> to vector<32x252xf32>
    %87 = arith.addf %84, %86 : vector<32x252xf32>
    %cst_25 = arith.constant 0.000000e+00 : f32
    %88 = vector.broadcast %cst_25 : f32 to vector<32x252xf32>
    %89 = arith.maximumf %87, %88 : vector<32x252xf32>
    %90 = arith.truncf %89 : vector<32x252xf32> to vector<32x252xbf16>
    %c0_26 = arith.constant 0 : index
    %c0_27 = arith.constant 0 : index
    %c0_28 = arith.constant 0 : index
    %91 = vector.load %arg7[%c0_26, %c0_27, %c0_28] : memref<4x252x49xbf16, #tpu.memory_space<vmem>>, vector<1x252x49xbf16>
    %92 = vector.shape_cast %91 : vector<1x252x49xbf16> to vector<252x49xbf16>
    %cst_29 = arith.constant dense<0.000000e+00> : vector<32x49xf32>
    %93 = tpu.matmul %90, %92, %cst_29 {dimension_numbers = #tpu.dot_dimension_numbers<[1], [0], [0], [1], [0, 0, 1, 1], [], []>} : vector<32x252xbf16>, vector<252x49xbf16>, vector<32x49xf32> -> vector<32x49xf32>
    %c1_30 = arith.constant 1 : index
    %c0_31 = arith.constant 0 : index
    %c0_32 = arith.constant 0 : index
    %94 = vector.load %arg7[%c1_30, %c0_31, %c0_32] : memref<4x252x49xbf16, #tpu.memory_space<vmem>>, vector<1x252x49xbf16>
    %95 = vector.shape_cast %94 : vector<1x252x49xbf16> to vector<252x49xbf16>
    %cst_33 = arith.constant dense<0.000000e+00> : vector<32x49xf32>
    %96 = tpu.matmul %90, %95, %cst_33 {dimension_numbers = #tpu.dot_dimension_numbers<[1], [0], [0], [1], [0, 0, 1, 1], [], []>} : vector<32x252xbf16>, vector<252x49xbf16>, vector<32x49xf32> -> vector<32x49xf32>
    %97 = arith.maximumf %93, %96 : vector<32x49xf32>
    %c2_34 = arith.constant 2 : index
    %c0_35 = arith.constant 0 : index
    %c0_36 = arith.constant 0 : index
    %98 = vector.load %arg7[%c2_34, %c0_35, %c0_36] : memref<4x252x49xbf16, #tpu.memory_space<vmem>>, vector<1x252x49xbf16>
    %99 = vector.shape_cast %98 : vector<1x252x49xbf16> to vector<252x49xbf16>
    %cst_37 = arith.constant dense<0.000000e+00> : vector<32x49xf32>
    %100 = tpu.matmul %90, %99, %cst_37 {dimension_numbers = #tpu.dot_dimension_numbers<[1], [0], [0], [1], [0, 0, 1, 1], [], []>} : vector<32x252xbf16>, vector<252x49xbf16>, vector<32x49xf32> -> vector<32x49xf32>
    %101 = arith.maximumf %97, %100 : vector<32x49xf32>
    %c3_38 = arith.constant 3 : index
    %c0_39 = arith.constant 0 : index
    %c0_40 = arith.constant 0 : index
    %102 = vector.load %arg7[%c3_38, %c0_39, %c0_40] : memref<4x252x49xbf16, #tpu.memory_space<vmem>>, vector<1x252x49xbf16>
    %103 = vector.shape_cast %102 : vector<1x252x49xbf16> to vector<252x49xbf16>
    %cst_41 = arith.constant dense<0.000000e+00> : vector<32x49xf32>
    %104 = tpu.matmul %90, %103, %cst_41 {dimension_numbers = #tpu.dot_dimension_numbers<[1], [0], [0], [1], [0, 0, 1, 1], [], []>} : vector<32x252xbf16>, vector<252x49xbf16>, vector<32x49xf32> -> vector<32x49xf32>
    %105 = arith.maximumf %101, %104 : vector<32x49xf32>
    %c0_42 = arith.constant 0 : index
    %c0_43 = arith.constant 0 : index
    %106 = vector.load %arg9[%c0_42, %c0_43] : memref<1x128xf32, #tpu.memory_space<vmem>>, vector<1x128xf32>
    %107 = vector.extract_strided_slice %105 {offsets = [0, 0], sizes = [1, 49], strides = [1, 1]} : vector<32x49xf32> to vector<1x49xf32>
    %108 = arith.truncf %107 : vector<1x49xf32> to vector<1x49xbf16>
    %c0_44 = arith.constant 0 : index
    %c0_45 = arith.constant 0 : index
    %c0_46 = arith.constant 0 : index
    %109 = vector.load %arg8[%c0_44, %c0_45, %c0_46] : memref<32x49x128xbf16, #tpu.memory_space<vmem>>, vector<1x49x128xbf16>
    %110 = vector.shape_cast %109 : vector<1x49x128xbf16> to vector<49x128xbf16>
    %cst_47 = arith.constant dense<0.000000e+00> : vector<1x128xf32>
    %111 = tpu.matmul %108, %110, %cst_47 {dimension_numbers = #tpu.dot_dimension_numbers<[1], [0], [0], [1], [0, 0, 1, 1], [], []>} : vector<1x49xbf16>, vector<49x128xbf16>, vector<1x128xf32> -> vector<1x128xf32>
    %112 = arith.addf %106, %111 : vector<1x128xf32>
    %113 = vector.extract_strided_slice %105 {offsets = [1, 0], sizes = [1, 49], strides = [1, 1]} : vector<32x49xf32> to vector<1x49xf32>
    %114 = arith.truncf %113 : vector<1x49xf32> to vector<1x49xbf16>
    %c1_48 = arith.constant 1 : index
    %c0_49 = arith.constant 0 : index
    %c0_50 = arith.constant 0 : index
    %115 = vector.load %arg8[%c1_48, %c0_49, %c0_50] : memref<32x49x128xbf16, #tpu.memory_space<vmem>>, vector<1x49x128xbf16>
    %116 = vector.shape_cast %115 : vector<1x49x128xbf16> to vector<49x128xbf16>
    %cst_51 = arith.constant dense<0.000000e+00> : vector<1x128xf32>
    %117 = tpu.matmul %114, %116, %cst_51 {dimension_numbers = #tpu.dot_dimension_numbers<[1], [0], [0], [1], [0, 0, 1, 1], [], []>} : vector<1x49xbf16>, vector<49x128xbf16>, vector<1x128xf32> -> vector<1x128xf32>
    %118 = arith.addf %112, %117 : vector<1x128xf32>
    %119 = vector.extract_strided_slice %105 {offsets = [2, 0], sizes = [1, 49], strides = [1, 1]} : vector<32x49xf32> to vector<1x49xf32>
    %120 = arith.truncf %119 : vector<1x49xf32> to vector<1x49xbf16>
    %c2_52 = arith.constant 2 : index
    %c0_53 = arith.constant 0 : index
    %c0_54 = arith.constant 0 : index
    %121 = vector.load %arg8[%c2_52, %c0_53, %c0_54] : memref<32x49x128xbf16, #tpu.memory_space<vmem>>, vector<1x49x128xbf16>
    %122 = vector.shape_cast %121 : vector<1x49x128xbf16> to vector<49x128xbf16>
    %cst_55 = arith.constant dense<0.000000e+00> : vector<1x128xf32>
    %123 = tpu.matmul %120, %122, %cst_55 {dimension_numbers = #tpu.dot_dimension_numbers<[1], [0], [0], [1], [0, 0, 1, 1], [], []>} : vector<1x49xbf16>, vector<49x128xbf16>, vector<1x128xf32> -> vector<1x128xf32>
    %124 = arith.addf %118, %123 : vector<1x128xf32>
    %125 = vector.extract_strided_slice %105 {offsets = [3, 0], sizes = [1, 49], strides = [1, 1]} : vector<32x49xf32> to vector<1x49xf32>
    %126 = arith.truncf %125 : vector<1x49xf32> to vector<1x49xbf16>
    %c3_56 = arith.constant 3 : index
    %c0_57 = arith.constant 0 : index
    %c0_58 = arith.constant 0 : index
    %127 = vector.load %arg8[%c3_56, %c0_57, %c0_58] : memref<32x49x128xbf16, #tpu.memory_space<vmem>>, vector<1x49x128xbf16>
    %128 = vector.shape_cast %127 : vector<1x49x128xbf16> to vector<49x128xbf16>
    %cst_59 = arith.constant dense<0.000000e+00> : vector<1x128xf32>
    %129 = tpu.matmul %126, %128, %cst_59 {dimension_numbers = #tpu.dot_dimension_numbers<[1], [0], [0], [1], [0, 0, 1, 1], [], []>} : vector<1x49xbf16>, vector<49x128xbf16>, vector<1x128xf32> -> vector<1x128xf32>
    %130 = arith.addf %124, %129 : vector<1x128xf32>
    %131 = vector.extract_strided_slice %105 {offsets = [4, 0], sizes = [1, 49], strides = [1, 1]} : vector<32x49xf32> to vector<1x49xf32>
    %132 = arith.truncf %131 : vector<1x49xf32> to vector<1x49xbf16>
    %c4 = arith.constant 4 : index
    %c0_60 = arith.constant 0 : index
    %c0_61 = arith.constant 0 : index
    %133 = vector.load %arg8[%c4, %c0_60, %c0_61] : memref<32x49x128xbf16, #tpu.memory_space<vmem>>, vector<1x49x128xbf16>
    %134 = vector.shape_cast %133 : vector<1x49x128xbf16> to vector<49x128xbf16>
    %cst_62 = arith.constant dense<0.000000e+00> : vector<1x128xf32>
    %135 = tpu.matmul %132, %134, %cst_62 {dimension_numbers = #tpu.dot_dimension_numbers<[1], [0], [0], [1], [0, 0, 1, 1], [], []>} : vector<1x49xbf16>, vector<49x128xbf16>, vector<1x128xf32> -> vector<1x128xf32>
    %136 = arith.addf %130, %135 : vector<1x128xf32>
    %137 = vector.extract_strided_slice %105 {offsets = [5, 0], sizes = [1, 49], strides = [1, 1]} : vector<32x49xf32> to vector<1x49xf32>
    %138 = arith.truncf %137 : vector<1x49xf32> to vector<1x49xbf16>
    %c5 = arith.constant 5 : index
    %c0_63 = arith.constant 0 : index
    %c0_64 = arith.constant 0 : index
    %139 = vector.load %arg8[%c5, %c0_63, %c0_64] : memref<32x49x128xbf16, #tpu.memory_space<vmem>>, vector<1x49x128xbf16>
    %140 = vector.shape_cast %139 : vector<1x49x128xbf16> to vector<49x128xbf16>
    %cst_65 = arith.constant dense<0.000000e+00> : vector<1x128xf32>
    %141 = tpu.matmul %138, %140, %cst_65 {dimension_numbers = #tpu.dot_dimension_numbers<[1], [0], [0], [1], [0, 0, 1, 1], [], []>} : vector<1x49xbf16>, vector<49x128xbf16>, vector<1x128xf32> -> vector<1x128xf32>
    %142 = arith.addf %136, %141 : vector<1x128xf32>
    %143 = vector.extract_strided_slice %105 {offsets = [6, 0], sizes = [1, 49], strides = [1, 1]} : vector<32x49xf32> to vector<1x49xf32>
    %144 = arith.truncf %143 : vector<1x49xf32> to vector<1x49xbf16>
    %c6 = arith.constant 6 : index
    %c0_66 = arith.constant 0 : index
    %c0_67 = arith.constant 0 : index
    %145 = vector.load %arg8[%c6, %c0_66, %c0_67] : memref<32x49x128xbf16, #tpu.memory_space<vmem>>, vector<1x49x128xbf16>
    %146 = vector.shape_cast %145 : vector<1x49x128xbf16> to vector<49x128xbf16>
    %cst_68 = arith.constant dense<0.000000e+00> : vector<1x128xf32>
    %147 = tpu.matmul %144, %146, %cst_68 {dimension_numbers = #tpu.dot_dimension_numbers<[1], [0], [0], [1], [0, 0, 1, 1], [], []>} : vector<1x49xbf16>, vector<49x128xbf16>, vector<1x128xf32> -> vector<1x128xf32>
    %148 = arith.addf %142, %147 : vector<1x128xf32>
    %149 = vector.extract_strided_slice %105 {offsets = [7, 0], sizes = [1, 49], strides = [1, 1]} : vector<32x49xf32> to vector<1x49xf32>
    %150 = arith.truncf %149 : vector<1x49xf32> to vector<1x49xbf16>
    %c7 = arith.constant 7 : index
    %c0_69 = arith.constant 0 : index
    %c0_70 = arith.constant 0 : index
    %151 = vector.load %arg8[%c7, %c0_69, %c0_70] : memref<32x49x128xbf16, #tpu.memory_space<vmem>>, vector<1x49x128xbf16>
    %152 = vector.shape_cast %151 : vector<1x49x128xbf16> to vector<49x128xbf16>
    %cst_71 = arith.constant dense<0.000000e+00> : vector<1x128xf32>
    %153 = tpu.matmul %150, %152, %cst_71 {dimension_numbers = #tpu.dot_dimension_numbers<[1], [0], [0], [1], [0, 0, 1, 1], [], []>} : vector<1x49xbf16>, vector<49x128xbf16>, vector<1x128xf32> -> vector<1x128xf32>
    %154 = arith.addf %148, %153 : vector<1x128xf32>
    %155 = vector.extract_strided_slice %105 {offsets = [8, 0], sizes = [1, 49], strides = [1, 1]} : vector<32x49xf32> to vector<1x49xf32>
    %156 = arith.truncf %155 : vector<1x49xf32> to vector<1x49xbf16>
    %c8 = arith.constant 8 : index
    %c0_72 = arith.constant 0 : index
    %c0_73 = arith.constant 0 : index
    %157 = vector.load %arg8[%c8, %c0_72, %c0_73] : memref<32x49x128xbf16, #tpu.memory_space<vmem>>, vector<1x49x128xbf16>
    %158 = vector.shape_cast %157 : vector<1x49x128xbf16> to vector<49x128xbf16>
    %cst_74 = arith.constant dense<0.000000e+00> : vector<1x128xf32>
    %159 = tpu.matmul %156, %158, %cst_74 {dimension_numbers = #tpu.dot_dimension_numbers<[1], [0], [0], [1], [0, 0, 1, 1], [], []>} : vector<1x49xbf16>, vector<49x128xbf16>, vector<1x128xf32> -> vector<1x128xf32>
    %160 = arith.addf %154, %159 : vector<1x128xf32>
    %161 = vector.extract_strided_slice %105 {offsets = [9, 0], sizes = [1, 49], strides = [1, 1]} : vector<32x49xf32> to vector<1x49xf32>
    %162 = arith.truncf %161 : vector<1x49xf32> to vector<1x49xbf16>
    %c9 = arith.constant 9 : index
    %c0_75 = arith.constant 0 : index
    %c0_76 = arith.constant 0 : index
    %163 = vector.load %arg8[%c9, %c0_75, %c0_76] : memref<32x49x128xbf16, #tpu.memory_space<vmem>>, vector<1x49x128xbf16>
    %164 = vector.shape_cast %163 : vector<1x49x128xbf16> to vector<49x128xbf16>
    %cst_77 = arith.constant dense<0.000000e+00> : vector<1x128xf32>
    %165 = tpu.matmul %162, %164, %cst_77 {dimension_numbers = #tpu.dot_dimension_numbers<[1], [0], [0], [1], [0, 0, 1, 1], [], []>} : vector<1x49xbf16>, vector<49x128xbf16>, vector<1x128xf32> -> vector<1x128xf32>
    %166 = arith.addf %160, %165 : vector<1x128xf32>
    %167 = vector.extract_strided_slice %105 {offsets = [10, 0], sizes = [1, 49], strides = [1, 1]} : vector<32x49xf32> to vector<1x49xf32>
    %168 = arith.truncf %167 : vector<1x49xf32> to vector<1x49xbf16>
    %c10 = arith.constant 10 : index
    %c0_78 = arith.constant 0 : index
    %c0_79 = arith.constant 0 : index
    %169 = vector.load %arg8[%c10, %c0_78, %c0_79] : memref<32x49x128xbf16, #tpu.memory_space<vmem>>, vector<1x49x128xbf16>
    %170 = vector.shape_cast %169 : vector<1x49x128xbf16> to vector<49x128xbf16>
    %cst_80 = arith.constant dense<0.000000e+00> : vector<1x128xf32>
    %171 = tpu.matmul %168, %170, %cst_80 {dimension_numbers = #tpu.dot_dimension_numbers<[1], [0], [0], [1], [0, 0, 1, 1], [], []>} : vector<1x49xbf16>, vector<49x128xbf16>, vector<1x128xf32> -> vector<1x128xf32>
    %172 = arith.addf %166, %171 : vector<1x128xf32>
    %173 = vector.extract_strided_slice %105 {offsets = [11, 0], sizes = [1, 49], strides = [1, 1]} : vector<32x49xf32> to vector<1x49xf32>
    %174 = arith.truncf %173 : vector<1x49xf32> to vector<1x49xbf16>
    %c11 = arith.constant 11 : index
    %c0_81 = arith.constant 0 : index
    %c0_82 = arith.constant 0 : index
    %175 = vector.load %arg8[%c11, %c0_81, %c0_82] : memref<32x49x128xbf16, #tpu.memory_space<vmem>>, vector<1x49x128xbf16>
    %176 = vector.shape_cast %175 : vector<1x49x128xbf16> to vector<49x128xbf16>
    %cst_83 = arith.constant dense<0.000000e+00> : vector<1x128xf32>
    %177 = tpu.matmul %174, %176, %cst_83 {dimension_numbers = #tpu.dot_dimension_numbers<[1], [0], [0], [1], [0, 0, 1, 1], [], []>} : vector<1x49xbf16>, vector<49x128xbf16>, vector<1x128xf32> -> vector<1x128xf32>
    %178 = arith.addf %172, %177 : vector<1x128xf32>
    %179 = vector.extract_strided_slice %105 {offsets = [12, 0], sizes = [1, 49], strides = [1, 1]} : vector<32x49xf32> to vector<1x49xf32>
    %180 = arith.truncf %179 : vector<1x49xf32> to vector<1x49xbf16>
    %c12 = arith.constant 12 : index
    %c0_84 = arith.constant 0 : index
    %c0_85 = arith.constant 0 : index
    %181 = vector.load %arg8[%c12, %c0_84, %c0_85] : memref<32x49x128xbf16, #tpu.memory_space<vmem>>, vector<1x49x128xbf16>
    %182 = vector.shape_cast %181 : vector<1x49x128xbf16> to vector<49x128xbf16>
    %cst_86 = arith.constant dense<0.000000e+00> : vector<1x128xf32>
    %183 = tpu.matmul %180, %182, %cst_86 {dimension_numbers = #tpu.dot_dimension_numbers<[1], [0], [0], [1], [0, 0, 1, 1], [], []>} : vector<1x49xbf16>, vector<49x128xbf16>, vector<1x128xf32> -> vector<1x128xf32>
    %184 = arith.addf %178, %183 : vector<1x128xf32>
    %185 = vector.extract_strided_slice %105 {offsets = [13, 0], sizes = [1, 49], strides = [1, 1]} : vector<32x49xf32> to vector<1x49xf32>
    %186 = arith.truncf %185 : vector<1x49xf32> to vector<1x49xbf16>
    %c13 = arith.constant 13 : index
    %c0_87 = arith.constant 0 : index
    %c0_88 = arith.constant 0 : index
    %187 = vector.load %arg8[%c13, %c0_87, %c0_88] : memref<32x49x128xbf16, #tpu.memory_space<vmem>>, vector<1x49x128xbf16>
    %188 = vector.shape_cast %187 : vector<1x49x128xbf16> to vector<49x128xbf16>
    %cst_89 = arith.constant dense<0.000000e+00> : vector<1x128xf32>
    %189 = tpu.matmul %186, %188, %cst_89 {dimension_numbers = #tpu.dot_dimension_numbers<[1], [0], [0], [1], [0, 0, 1, 1], [], []>} : vector<1x49xbf16>, vector<49x128xbf16>, vector<1x128xf32> -> vector<1x128xf32>
    %190 = arith.addf %184, %189 : vector<1x128xf32>
    %191 = vector.extract_strided_slice %105 {offsets = [14, 0], sizes = [1, 49], strides = [1, 1]} : vector<32x49xf32> to vector<1x49xf32>
    %192 = arith.truncf %191 : vector<1x49xf32> to vector<1x49xbf16>
    %c14 = arith.constant 14 : index
    %c0_90 = arith.constant 0 : index
    %c0_91 = arith.constant 0 : index
    %193 = vector.load %arg8[%c14, %c0_90, %c0_91] : memref<32x49x128xbf16, #tpu.memory_space<vmem>>, vector<1x49x128xbf16>
    %194 = vector.shape_cast %193 : vector<1x49x128xbf16> to vector<49x128xbf16>
    %cst_92 = arith.constant dense<0.000000e+00> : vector<1x128xf32>
    %195 = tpu.matmul %192, %194, %cst_92 {dimension_numbers = #tpu.dot_dimension_numbers<[1], [0], [0], [1], [0, 0, 1, 1], [], []>} : vector<1x49xbf16>, vector<49x128xbf16>, vector<1x128xf32> -> vector<1x128xf32>
    %196 = arith.addf %190, %195 : vector<1x128xf32>
    %197 = vector.extract_strided_slice %105 {offsets = [15, 0], sizes = [1, 49], strides = [1, 1]} : vector<32x49xf32> to vector<1x49xf32>
    %198 = arith.truncf %197 : vector<1x49xf32> to vector<1x49xbf16>
    %c15 = arith.constant 15 : index
    %c0_93 = arith.constant 0 : index
    %c0_94 = arith.constant 0 : index
    %199 = vector.load %arg8[%c15, %c0_93, %c0_94] : memref<32x49x128xbf16, #tpu.memory_space<vmem>>, vector<1x49x128xbf16>
    %200 = vector.shape_cast %199 : vector<1x49x128xbf16> to vector<49x128xbf16>
    %cst_95 = arith.constant dense<0.000000e+00> : vector<1x128xf32>
    %201 = tpu.matmul %198, %200, %cst_95 {dimension_numbers = #tpu.dot_dimension_numbers<[1], [0], [0], [1], [0, 0, 1, 1], [], []>} : vector<1x49xbf16>, vector<49x128xbf16>, vector<1x128xf32> -> vector<1x128xf32>
    %202 = arith.addf %196, %201 : vector<1x128xf32>
    %203 = vector.extract_strided_slice %105 {offsets = [16, 0], sizes = [1, 49], strides = [1, 1]} : vector<32x49xf32> to vector<1x49xf32>
    %204 = arith.truncf %203 : vector<1x49xf32> to vector<1x49xbf16>
    %c16 = arith.constant 16 : index
    %c0_96 = arith.constant 0 : index
    %c0_97 = arith.constant 0 : index
    %205 = vector.load %arg8[%c16, %c0_96, %c0_97] : memref<32x49x128xbf16, #tpu.memory_space<vmem>>, vector<1x49x128xbf16>
    %206 = vector.shape_cast %205 : vector<1x49x128xbf16> to vector<49x128xbf16>
    %cst_98 = arith.constant dense<0.000000e+00> : vector<1x128xf32>
    %207 = tpu.matmul %204, %206, %cst_98 {dimension_numbers = #tpu.dot_dimension_numbers<[1], [0], [0], [1], [0, 0, 1, 1], [], []>} : vector<1x49xbf16>, vector<49x128xbf16>, vector<1x128xf32> -> vector<1x128xf32>
    %208 = arith.addf %202, %207 : vector<1x128xf32>
    %209 = vector.extract_strided_slice %105 {offsets = [17, 0], sizes = [1, 49], strides = [1, 1]} : vector<32x49xf32> to vector<1x49xf32>
    %210 = arith.truncf %209 : vector<1x49xf32> to vector<1x49xbf16>
    %c17 = arith.constant 17 : index
    %c0_99 = arith.constant 0 : index
    %c0_100 = arith.constant 0 : index
    %211 = vector.load %arg8[%c17, %c0_99, %c0_100] : memref<32x49x128xbf16, #tpu.memory_space<vmem>>, vector<1x49x128xbf16>
    %212 = vector.shape_cast %211 : vector<1x49x128xbf16> to vector<49x128xbf16>
    %cst_101 = arith.constant dense<0.000000e+00> : vector<1x128xf32>
    %213 = tpu.matmul %210, %212, %cst_101 {dimension_numbers = #tpu.dot_dimension_numbers<[1], [0], [0], [1], [0, 0, 1, 1], [], []>} : vector<1x49xbf16>, vector<49x128xbf16>, vector<1x128xf32> -> vector<1x128xf32>
    %214 = arith.addf %208, %213 : vector<1x128xf32>
    %215 = vector.extract_strided_slice %105 {offsets = [18, 0], sizes = [1, 49], strides = [1, 1]} : vector<32x49xf32> to vector<1x49xf32>
    %216 = arith.truncf %215 : vector<1x49xf32> to vector<1x49xbf16>
    %c18 = arith.constant 18 : index
    %c0_102 = arith.constant 0 : index
    %c0_103 = arith.constant 0 : index
    %217 = vector.load %arg8[%c18, %c0_102, %c0_103] : memref<32x49x128xbf16, #tpu.memory_space<vmem>>, vector<1x49x128xbf16>
    %218 = vector.shape_cast %217 : vector<1x49x128xbf16> to vector<49x128xbf16>
    %cst_104 = arith.constant dense<0.000000e+00> : vector<1x128xf32>
    %219 = tpu.matmul %216, %218, %cst_104 {dimension_numbers = #tpu.dot_dimension_numbers<[1], [0], [0], [1], [0, 0, 1, 1], [], []>} : vector<1x49xbf16>, vector<49x128xbf16>, vector<1x128xf32> -> vector<1x128xf32>
    %220 = arith.addf %214, %219 : vector<1x128xf32>
    %221 = vector.extract_strided_slice %105 {offsets = [19, 0], sizes = [1, 49], strides = [1, 1]} : vector<32x49xf32> to vector<1x49xf32>
    %222 = arith.truncf %221 : vector<1x49xf32> to vector<1x49xbf16>
    %c19 = arith.constant 19 : index
    %c0_105 = arith.constant 0 : index
    %c0_106 = arith.constant 0 : index
    %223 = vector.load %arg8[%c19, %c0_105, %c0_106] : memref<32x49x128xbf16, #tpu.memory_space<vmem>>, vector<1x49x128xbf16>
    %224 = vector.shape_cast %223 : vector<1x49x128xbf16> to vector<49x128xbf16>
    %cst_107 = arith.constant dense<0.000000e+00> : vector<1x128xf32>
    %225 = tpu.matmul %222, %224, %cst_107 {dimension_numbers = #tpu.dot_dimension_numbers<[1], [0], [0], [1], [0, 0, 1, 1], [], []>} : vector<1x49xbf16>, vector<49x128xbf16>, vector<1x128xf32> -> vector<1x128xf32>
    %226 = arith.addf %220, %225 : vector<1x128xf32>
    %227 = vector.extract_strided_slice %105 {offsets = [20, 0], sizes = [1, 49], strides = [1, 1]} : vector<32x49xf32> to vector<1x49xf32>
    %228 = arith.truncf %227 : vector<1x49xf32> to vector<1x49xbf16>
    %c20 = arith.constant 20 : index
    %c0_108 = arith.constant 0 : index
    %c0_109 = arith.constant 0 : index
    %229 = vector.load %arg8[%c20, %c0_108, %c0_109] : memref<32x49x128xbf16, #tpu.memory_space<vmem>>, vector<1x49x128xbf16>
    %230 = vector.shape_cast %229 : vector<1x49x128xbf16> to vector<49x128xbf16>
    %cst_110 = arith.constant dense<0.000000e+00> : vector<1x128xf32>
    %231 = tpu.matmul %228, %230, %cst_110 {dimension_numbers = #tpu.dot_dimension_numbers<[1], [0], [0], [1], [0, 0, 1, 1], [], []>} : vector<1x49xbf16>, vector<49x128xbf16>, vector<1x128xf32> -> vector<1x128xf32>
    %232 = arith.addf %226, %231 : vector<1x128xf32>
    %233 = vector.extract_strided_slice %105 {offsets = [21, 0], sizes = [1, 49], strides = [1, 1]} : vector<32x49xf32> to vector<1x49xf32>
    %234 = arith.truncf %233 : vector<1x49xf32> to vector<1x49xbf16>
    %c21 = arith.constant 21 : index
    %c0_111 = arith.constant 0 : index
    %c0_112 = arith.constant 0 : index
    %235 = vector.load %arg8[%c21, %c0_111, %c0_112] : memref<32x49x128xbf16, #tpu.memory_space<vmem>>, vector<1x49x128xbf16>
    %236 = vector.shape_cast %235 : vector<1x49x128xbf16> to vector<49x128xbf16>
    %cst_113 = arith.constant dense<0.000000e+00> : vector<1x128xf32>
    %237 = tpu.matmul %234, %236, %cst_113 {dimension_numbers = #tpu.dot_dimension_numbers<[1], [0], [0], [1], [0, 0, 1, 1], [], []>} : vector<1x49xbf16>, vector<49x128xbf16>, vector<1x128xf32> -> vector<1x128xf32>
    %238 = arith.addf %232, %237 : vector<1x128xf32>
    %239 = vector.extract_strided_slice %105 {offsets = [22, 0], sizes = [1, 49], strides = [1, 1]} : vector<32x49xf32> to vector<1x49xf32>
    %240 = arith.truncf %239 : vector<1x49xf32> to vector<1x49xbf16>
    %c22 = arith.constant 22 : index
    %c0_114 = arith.constant 0 : index
    %c0_115 = arith.constant 0 : index
    %241 = vector.load %arg8[%c22, %c0_114, %c0_115] : memref<32x49x128xbf16, #tpu.memory_space<vmem>>, vector<1x49x128xbf16>
    %242 = vector.shape_cast %241 : vector<1x49x128xbf16> to vector<49x128xbf16>
    %cst_116 = arith.constant dense<0.000000e+00> : vector<1x128xf32>
    %243 = tpu.matmul %240, %242, %cst_116 {dimension_numbers = #tpu.dot_dimension_numbers<[1], [0], [0], [1], [0, 0, 1, 1], [], []>} : vector<1x49xbf16>, vector<49x128xbf16>, vector<1x128xf32> -> vector<1x128xf32>
    %244 = arith.addf %238, %243 : vector<1x128xf32>
    %245 = vector.extract_strided_slice %105 {offsets = [23, 0], sizes = [1, 49], strides = [1, 1]} : vector<32x49xf32> to vector<1x49xf32>
    %246 = arith.truncf %245 : vector<1x49xf32> to vector<1x49xbf16>
    %c23 = arith.constant 23 : index
    %c0_117 = arith.constant 0 : index
    %c0_118 = arith.constant 0 : index
    %247 = vector.load %arg8[%c23, %c0_117, %c0_118] : memref<32x49x128xbf16, #tpu.memory_space<vmem>>, vector<1x49x128xbf16>
    %248 = vector.shape_cast %247 : vector<1x49x128xbf16> to vector<49x128xbf16>
    %cst_119 = arith.constant dense<0.000000e+00> : vector<1x128xf32>
    %249 = tpu.matmul %246, %248, %cst_119 {dimension_numbers = #tpu.dot_dimension_numbers<[1], [0], [0], [1], [0, 0, 1, 1], [], []>} : vector<1x49xbf16>, vector<49x128xbf16>, vector<1x128xf32> -> vector<1x128xf32>
    %250 = arith.addf %244, %249 : vector<1x128xf32>
    %251 = vector.extract_strided_slice %105 {offsets = [24, 0], sizes = [1, 49], strides = [1, 1]} : vector<32x49xf32> to vector<1x49xf32>
    %252 = arith.truncf %251 : vector<1x49xf32> to vector<1x49xbf16>
    %c24 = arith.constant 24 : index
    %c0_120 = arith.constant 0 : index
    %c0_121 = arith.constant 0 : index
    %253 = vector.load %arg8[%c24, %c0_120, %c0_121] : memref<32x49x128xbf16, #tpu.memory_space<vmem>>, vector<1x49x128xbf16>
    %254 = vector.shape_cast %253 : vector<1x49x128xbf16> to vector<49x128xbf16>
    %cst_122 = arith.constant dense<0.000000e+00> : vector<1x128xf32>
    %255 = tpu.matmul %252, %254, %cst_122 {dimension_numbers = #tpu.dot_dimension_numbers<[1], [0], [0], [1], [0, 0, 1, 1], [], []>} : vector<1x49xbf16>, vector<49x128xbf16>, vector<1x128xf32> -> vector<1x128xf32>
    %256 = arith.addf %250, %255 : vector<1x128xf32>
    %257 = vector.extract_strided_slice %105 {offsets = [25, 0], sizes = [1, 49], strides = [1, 1]} : vector<32x49xf32> to vector<1x49xf32>
    %258 = arith.truncf %257 : vector<1x49xf32> to vector<1x49xbf16>
    %c25 = arith.constant 25 : index
    %c0_123 = arith.constant 0 : index
    %c0_124 = arith.constant 0 : index
    %259 = vector.load %arg8[%c25, %c0_123, %c0_124] : memref<32x49x128xbf16, #tpu.memory_space<vmem>>, vector<1x49x128xbf16>
    %260 = vector.shape_cast %259 : vector<1x49x128xbf16> to vector<49x128xbf16>
    %cst_125 = arith.constant dense<0.000000e+00> : vector<1x128xf32>
    %261 = tpu.matmul %258, %260, %cst_125 {dimension_numbers = #tpu.dot_dimension_numbers<[1], [0], [0], [1], [0, 0, 1, 1], [], []>} : vector<1x49xbf16>, vector<49x128xbf16>, vector<1x128xf32> -> vector<1x128xf32>
    %262 = arith.addf %256, %261 : vector<1x128xf32>
    %263 = vector.extract_strided_slice %105 {offsets = [26, 0], sizes = [1, 49], strides = [1, 1]} : vector<32x49xf32> to vector<1x49xf32>
    %264 = arith.truncf %263 : vector<1x49xf32> to vector<1x49xbf16>
    %c26 = arith.constant 26 : index
    %c0_126 = arith.constant 0 : index
    %c0_127 = arith.constant 0 : index
    %265 = vector.load %arg8[%c26, %c0_126, %c0_127] : memref<32x49x128xbf16, #tpu.memory_space<vmem>>, vector<1x49x128xbf16>
    %266 = vector.shape_cast %265 : vector<1x49x128xbf16> to vector<49x128xbf16>
    %cst_128 = arith.constant dense<0.000000e+00> : vector<1x128xf32>
    %267 = tpu.matmul %264, %266, %cst_128 {dimension_numbers = #tpu.dot_dimension_numbers<[1], [0], [0], [1], [0, 0, 1, 1], [], []>} : vector<1x49xbf16>, vector<49x128xbf16>, vector<1x128xf32> -> vector<1x128xf32>
    %268 = arith.addf %262, %267 : vector<1x128xf32>
    %269 = vector.extract_strided_slice %105 {offsets = [27, 0], sizes = [1, 49], strides = [1, 1]} : vector<32x49xf32> to vector<1x49xf32>
    %270 = arith.truncf %269 : vector<1x49xf32> to vector<1x49xbf16>
    %c27 = arith.constant 27 : index
    %c0_129 = arith.constant 0 : index
    %c0_130 = arith.constant 0 : index
    %271 = vector.load %arg8[%c27, %c0_129, %c0_130] : memref<32x49x128xbf16, #tpu.memory_space<vmem>>, vector<1x49x128xbf16>
    %272 = vector.shape_cast %271 : vector<1x49x128xbf16> to vector<49x128xbf16>
    %cst_131 = arith.constant dense<0.000000e+00> : vector<1x128xf32>
    %273 = tpu.matmul %270, %272, %cst_131 {dimension_numbers = #tpu.dot_dimension_numbers<[1], [0], [0], [1], [0, 0, 1, 1], [], []>} : vector<1x49xbf16>, vector<49x128xbf16>, vector<1x128xf32> -> vector<1x128xf32>
    %274 = arith.addf %268, %273 : vector<1x128xf32>
    %275 = vector.extract_strided_slice %105 {offsets = [28, 0], sizes = [1, 49], strides = [1, 1]} : vector<32x49xf32> to vector<1x49xf32>
    %276 = arith.truncf %275 : vector<1x49xf32> to vector<1x49xbf16>
    %c28 = arith.constant 28 : index
    %c0_132 = arith.constant 0 : index
    %c0_133 = arith.constant 0 : index
    %277 = vector.load %arg8[%c28, %c0_132, %c0_133] : memref<32x49x128xbf16, #tpu.memory_space<vmem>>, vector<1x49x128xbf16>
    %278 = vector.shape_cast %277 : vector<1x49x128xbf16> to vector<49x128xbf16>
    %cst_134 = arith.constant dense<0.000000e+00> : vector<1x128xf32>
    %279 = tpu.matmul %276, %278, %cst_134 {dimension_numbers = #tpu.dot_dimension_numbers<[1], [0], [0], [1], [0, 0, 1, 1], [], []>} : vector<1x49xbf16>, vector<49x128xbf16>, vector<1x128xf32> -> vector<1x128xf32>
    %280 = arith.addf %274, %279 : vector<1x128xf32>
    %281 = vector.extract_strided_slice %105 {offsets = [29, 0], sizes = [1, 49], strides = [1, 1]} : vector<32x49xf32> to vector<1x49xf32>
    %282 = arith.truncf %281 : vector<1x49xf32> to vector<1x49xbf16>
    %c29 = arith.constant 29 : index
    %c0_135 = arith.constant 0 : index
    %c0_136 = arith.constant 0 : index
    %283 = vector.load %arg8[%c29, %c0_135, %c0_136] : memref<32x49x128xbf16, #tpu.memory_space<vmem>>, vector<1x49x128xbf16>
    %284 = vector.shape_cast %283 : vector<1x49x128xbf16> to vector<49x128xbf16>
    %cst_137 = arith.constant dense<0.000000e+00> : vector<1x128xf32>
    %285 = tpu.matmul %282, %284, %cst_137 {dimension_numbers = #tpu.dot_dimension_numbers<[1], [0], [0], [1], [0, 0, 1, 1], [], []>} : vector<1x49xbf16>, vector<49x128xbf16>, vector<1x128xf32> -> vector<1x128xf32>
    %286 = arith.addf %280, %285 : vector<1x128xf32>
    %287 = vector.extract_strided_slice %105 {offsets = [30, 0], sizes = [1, 49], strides = [1, 1]} : vector<32x49xf32> to vector<1x49xf32>
    %288 = arith.truncf %287 : vector<1x49xf32> to vector<1x49xbf16>
    %c30 = arith.constant 30 : index
    %c0_138 = arith.constant 0 : index
    %c0_139 = arith.constant 0 : index
    %289 = vector.load %arg8[%c30, %c0_138, %c0_139] : memref<32x49x128xbf16, #tpu.memory_space<vmem>>, vector<1x49x128xbf16>
    %290 = vector.shape_cast %289 : vector<1x49x128xbf16> to vector<49x128xbf16>
    %cst_140 = arith.constant dense<0.000000e+00> : vector<1x128xf32>
    %291 = tpu.matmul %288, %290, %cst_140 {dimension_numbers = #tpu.dot_dimension_numbers<[1], [0], [0], [1], [0, 0, 1, 1], [], []>} : vector<1x49xbf16>, vector<49x128xbf16>, vector<1x128xf32> -> vector<1x128xf32>
    %292 = arith.addf %286, %291 : vector<1x128xf32>
    %293 = vector.extract_strided_slice %105 {offsets = [31, 0], sizes = [1, 49], strides = [1, 1]} : vector<32x49xf32> to vector<1x49xf32>
    %294 = arith.truncf %293 : vector<1x49xf32> to vector<1x49xbf16>
    %c31 = arith.constant 31 : index
    %c0_141 = arith.constant 0 : index
    %c0_142 = arith.constant 0 : index
    %295 = vector.load %arg8[%c31, %c0_141, %c0_142] : memref<32x49x128xbf16, #tpu.memory_space<vmem>>, vector<1x49x128xbf16>
    %296 = vector.shape_cast %295 : vector<1x49x128xbf16> to vector<49x128xbf16>
    %cst_143 = arith.constant dense<0.000000e+00> : vector<1x128xf32>
    %297 = tpu.matmul %294, %296, %cst_143 {dimension_numbers = #tpu.dot_dimension_numbers<[1], [0], [0], [1], [0, 0, 1, 1], [], []>} : vector<1x49xbf16>, vector<49x128xbf16>, vector<1x128xf32> -> vector<1x128xf32>
    %298 = arith.addf %292, %297 : vector<1x128xf32>
    %c0_144 = arith.constant 0 : index
    %c0_145 = arith.constant 0 : index
    %c0_146 = arith.constant 0 : index
    %299 = vector.load %arg10[%c0_144, %c0_145, %c0_146] : memref<1x1x128xf32, #tpu.memory_space<vmem>>, vector<1x1x128xf32>
    %300 = vector.shape_cast %299 : vector<1x1x128xf32> to vector<1x128xf32>
    %301 = vector.shape_cast %298 : vector<1x128xf32> to vector<1x1x128xf32>
    tpu.vector_store %arg10[%c0_144, %c0_145, %c0_146], %301 {strides = array<i32>} : memref<1x1x128xf32, #tpu.memory_space<vmem>>, vector<1x1x128xf32>,
    return
  }
  func.func @transform_0(%arg0: i32) -> (i32, i32, i32) {
    %c0_i32 = arith.constant 0 : i32
    %c0_i32_0 = arith.constant 0 : i32
    %c0_i32_1 = arith.constant 0 : i32
    return %arg0, %c0_i32, %c0_i32_0 : i32, i32, i32
  }
  func.func @transform_1(%arg0: i32) -> (i32, i32) {
    %c0_i32 = arith.constant 0 : i32
    %c0_i32_0 = arith.constant 0 : i32
    %c0_i32_1 = arith.constant 0 : i32
    return %c0_i32, %c0_i32_0 : i32, i32
  }
  func.func @transform_2(%arg0: i32) -> (i32, i32) {
    %c0_i32 = arith.constant 0 : i32
    %c0_i32_0 = arith.constant 0 : i32
    %c0_i32_1 = arith.constant 0 : i32
    return %c0_i32, %c0_i32_0 : i32, i32
  }
  func.func @transform_3(%arg0: i32) -> (i32, i32, i32) {
    %c0_i32 = arith.constant 0 : i32
    %c0_i32_0 = arith.constant 0 : i32
    %c0_i32_1 = arith.constant 0 : i32
    %c0_i32_2 = arith.constant 0 : i32
    return %c0_i32, %c0_i32_0, %c0_i32_1 : i32, i32, i32
  }
  func.func @transform_4(%arg0: i32) -> (i32, i32) {
    %c0_i32 = arith.constant 0 : i32
    %c0_i32_0 = arith.constant 0 : i32
    %c0_i32_1 = arith.constant 0 : i32
    return %c0_i32, %c0_i32_0 : i32, i32
  }
  func.func @transform_5(%arg0: i32) -> (i32, i32) {
    %c0_i32 = arith.constant 0 : i32
    %c0_i32_0 = arith.constant 0 : i32
    %c0_i32_1 = arith.constant 0 : i32
    return %c0_i32, %c0_i32_0 : i32, i32
  }
  func.func @transform_6(%arg0: i32) -> (i32, i32, i32) {
    %c0_i32 = arith.constant 0 : i32
    %c0_i32_0 = arith.constant 0 : i32
    %c0_i32_1 = arith.constant 0 : i32
    %c0_i32_2 = arith.constant 0 : i32
    return %c0_i32, %c0_i32_0, %c0_i32_1 : i32, i32, i32
  }
  func.func @transform_7(%arg0: i32) -> (i32, i32, i32) {
    %c0_i32 = arith.constant 0 : i32
    %c0_i32_0 = arith.constant 0 : i32
    %c0_i32_1 = arith.constant 0 : i32
    %c0_i32_2 = arith.constant 0 : i32
    return %c0_i32, %c0_i32_0, %c0_i32_1 : i32, i32, i32
  }
  func.func @transform_8(%arg0: i32) -> (i32, i32) {
    %c0_i32 = arith.constant 0 : i32
    %c0_i32_0 = arith.constant 0 : i32
    %c0_i32_1 = arith.constant 0 : i32
    return %c0_i32, %c0_i32_0 : i32, i32
  }
  func.func @transform_9(%arg0: i32) -> (i32, i32, i32) {
    %c0_i32 = arith.constant 0 : i32
    %c0_i32_0 = arith.constant 0 : i32
    %c0_i32_1 = arith.constant 0 : i32
    return %arg0, %c0_i32, %c0_i32_0 : i32, i32, i32
  }
}

</mosaic_0001>

<llo_original>
// kernel: cnn_forward.1
$region0: #{cnn_forward.1}
  #allocation0 [shape = 'u32[]', space=smem, size = 0x4, offset = 0x4, fixed_abs, tag = 'smem constant byte address 0x4 - core index']
  #allocation1 [shape = 'u32[72,128]{1,0:T(1,128)}', space=vmem, size = 0x9000, scoped, tag = 'internal scratch']
  %s0 = inlined_call_operand.vmem [shape: f32[2,1,1056], index: 0, kind: input, shape index: {}]
  %s1 = inlined_call_operand.vmem [shape: bf16[16,25], index: 1, kind: input, shape index: {}]
  %s2 = inlined_call_operand.vmem [shape: f32[16,1], index: 2, kind: input, shape index: {}]
  %s3 = inlined_call_operand.vmem [shape: bf16[4,896,342], index: 3, kind: input, shape index: {}]
  %s4 = inlined_call_operand.vmem [shape: bf16[32,400], index: 4, kind: input, shape index: {}]
  %s5 = inlined_call_operand.vmem [shape: f32[32,1], index: 5, kind: input, shape index: {}]
  %s6 = inlined_call_operand.vmem [shape: bf16[4,252,49], index: 6, kind: input, shape index: {}]
  %s7 = inlined_call_operand.vmem [shape: bf16[32,49,128], index: 7, kind: input, shape index: {}]
  %s8 = inlined_call_operand.vmem [shape: f32[1,128], index: 8, kind: input, shape index: {}]
  %s9 = inlined_call_operand.hbm [shape: f32[2,1,128], index: 9, kind: output, shape index: {}]
  %s10 = sld [smem:[#allocation0]]
  $region69: #{cnn_forward.1} parent=0
    _
  %s12 = ssub.s32 1, %s10
  %s13 = scalar_select 0, %s12, %s10
  $region1: #{cnn_forward.1} parent=0
    #allocation2 [shape = 'u8[1024]{0}', space=vmem, size = 0x400, scoped, tag = 'output window, operand 0']
    #allocation3 [shape = 's32[2]{0}', space=sflag, size = 0x8, scoped, tag = 'scoped memory for cnn_forward.1']
    %14 = vsyncpa [#allocation3], 0
    %s15 = scalar_lea.sflag [#allocation3], 1
    %16 = vsyncpa %s15, 0
    loop: start=0, step=1, limit=4
    $region2: #{cnn_forward.1} parent=1 // loop_pre_header
      _
    $region3: #{cnn_forward.1} parent=1 // loop_header
      %s18 = sphi 0, %s22
      %p19 = scmp.ge.s32.totalorder %s18, 4
      %s28 = sphi 0, %s30
      %s31 = sphi 0, %s28
      %s32 = sphi 0, %s31
      %s48 = sphi 0, %s32
      %s52 = sphi 0, %s52
      %s54 = sphi 0, %s52
      %s55 = sphi 0, %s54
      %s69 = sphi 0, %s55
      %s73 = sphi 0, %s73
      %s75 = sphi 0, %s73
      %s76 = sphi 0, %s75
      %s90 = sphi 0, %s76
      %s94 = sphi 0, %s94
      %s96 = sphi 0, %s94
      %s97 = sphi 0, %s96
      %s111 = sphi 0, %s97
      %s115 = sphi 0, %s115
      %s117 = sphi 0, %s115
      %s118 = sphi 0, %s117
      %s132 = sphi 0, %s118
      %s136 = sphi 0, %s136
      %s138 = sphi 0, %s136
      %s139 = sphi 0, %s138
      %s153 = sphi 0, %s139
      %s157 = sphi 0, %s157
      %s159 = sphi 0, %s157
      %s160 = sphi 0, %s159
      %s174 = sphi 0, %s160
      %s178 = sphi 0, %s178
      %s180 = sphi 0, %s178
      %s181 = sphi 0, %s180
      %s195 = sphi 0, %s181
      %s199 = sphi 0, %s199
      %s201 = sphi 0, %s199
      %s202 = sphi 0, %s201
      %s216 = sphi 0, %s202
      %s222 = sphi 0, %s224
      %s225 = sphi 0, %s222
      %s226 = sphi 0, %s225
      %s242 = sphi 0, %s226
    $region4: #{cnn_forward.1} parent=1 // loop_header_branch
      %21 = sbr.rel (%p19) target = $region8
    $region5: #{cnn_forward.1} parent=1 // loop_body
      %s23 = ssub.s32 %s18, 1
      %s24 = ssub.s32 %s18, 2
      %s25 = sadd.s32 %s18, 1
      %s26 = ssub.s32 %s18, %s25
      %p27 = scmp.eq.s32.totalorder %s26, 0
      %s29 = sadd.s32 %s28, 1
      %s30 = scalar_select %p27, %s28, %s29
      %p33 = pneg %p27
      %p34 = scmp.eq.s32.totalorder %s18, 1
      %p35 = por %p33, %p34
      %p36 = scmp.ne.s32.totalorder %s28, %s31
      %p37 = scmp.eq.s32.totalorder %s18, 0
      %p38 = por %p36, %p37
      %p39 = scmp.ne.s32.totalorder %s28, %s31
      %p40 = scmp.eq.s32.totalorder %s23, 1
      %p41 = por %p39, %p40
      %p42 = scmp.ne.s32.totalorder %s31, %s32
      %p43 = scmp.eq.s32.totalorder %s23, 0
      %p44 = por %p42, %p43
      %p45 = scmp.ne.s32.totalorder %s31, %s32
      %p46 = scmp.eq.s32.totalorder %s24, 1
      %p47 = por %p45, %p46
      %p49 = scmp.ne.s32.totalorder %s32, %s48
      %p50 = scmp.eq.s32.totalorder %s24, 0
      %p51 = por %p49, %p50
      %s53 = sadd.s32 %s52, 1
      %p56 = scmp.eq.s32.totalorder %s18, 1
      %p57 = scmp.ne.s32.totalorder %s52, %s54
      %p58 = scmp.eq.s32.totalorder %s18, 0
      %p59 = por %p57, %p58
      %p60 = scmp.ne.s32.totalorder %s52, %s54
      %p61 = scmp.eq.s32.totalorder %s23, 1
      %p62 = por %p60, %p61
      %p63 = scmp.ne.s32.totalorder %s54, %s55
      %p64 = scmp.eq.s32.totalorder %s23, 0
      %p65 = por %p63, %p64
      %p66 = scmp.ne.s32.totalorder %s54, %s55
      %p67 = scmp.eq.s32.totalorder %s24, 1
      %p68 = por %p66, %p67
      %p70 = scmp.ne.s32.totalorder %s55, %s69
      %p71 = scmp.eq.s32.totalorder %s24, 0
      %p72 = por %p70, %p71
      %s74 = sadd.s32 %s73, 1
      %p77 = scmp.eq.s32.totalorder %s18, 1
      %p78 = scmp.ne.s32.totalorder %s73, %s75
      %p79 = scmp.eq.s32.totalorder %s18, 0
      %p80 = por %p78, %p79
      %p81 = scmp.ne.s32.totalorder %s73, %s75
      %p82 = scmp.eq.s32.totalorder %s23, 1
      %p83 = por %p81, %p82
      %p84 = scmp.ne.s32.totalorder %s75, %s76
      %p85 = scmp.eq.s32.totalorder %s23, 0
      %p86 = por %p84, %p85
      %p87 = scmp.ne.s32.totalorder %s75, %s76
      %p88 = scmp.eq.s32.totalorder %s24, 1
      %p89 = por %p87, %p88
      %p91 = scmp.ne.s32.totalorder %s76, %s90
      %p92 = scmp.eq.s32.totalorder %s24, 0
      %p93 = por %p91, %p92
      %s95 = sadd.s32 %s94, 1
      %p98 = scmp.eq.s32.totalorder %s18, 1
      %p99 = scmp.ne.s32.totalorder %s94, %s96
      %p100 = scmp.eq.s32.totalorder %s18, 0
      %p101 = por %p99, %p100
      %p102 = scmp.ne.s32.totalorder %s94, %s96
      %p103 = scmp.eq.s32.totalorder %s23, 1
      %p104 = por %p102, %p103
      %p105 = scmp.ne.s32.totalorder %s96, %s97
      %p106 = scmp.eq.s32.totalorder %s23, 0
      %p107 = por %p105, %p106
      %p108 = scmp.ne.s32.totalorder %s96, %s97
      %p109 = scmp.eq.s32.totalorder %s24, 1
      %p110 = por %p108, %p109
      %p112 = scmp.ne.s32.totalorder %s97, %s111
      %p113 = scmp.eq.s32.totalorder %s24, 0
      %p114 = por %p112, %p113
      %s116 = sadd.s32 %s115, 1
      %p119 = scmp.eq.s32.totalorder %s18, 1
      %p120 = scmp.ne.s32.totalorder %s115, %s117
      %p121 = scmp.eq.s32.totalorder %s18, 0
      %p122 = por %p120, %p121
      %p123 = scmp.ne.s32.totalorder %s115, %s117
      %p124 = scmp.eq.s32.totalorder %s23, 1
      %p125 = por %p123, %p124
      %p126 = scmp.ne.s32.totalorder %s117, %s118
      %p127 = scmp.eq.s32.totalorder %s23, 0
      %p128 = por %p126, %p127
      %p129 = scmp.ne.s32.totalorder %s117, %s118
      %p130 = scmp.eq.s32.totalorder %s24, 1
      %p131 = por %p129, %p130
      %p133 = scmp.ne.s32.totalorder %s118, %s132
      %p134 = scmp.eq.s32.totalorder %s24, 0
      %p135 = por %p133, %p134
      %s137 = sadd.s32 %s136, 1
      %p140 = scmp.eq.s32.totalorder %s18, 1
      %p141 = scmp.ne.s32.totalorder %s136, %s138
      %p142 = scmp.eq.s32.totalorder %s18, 0
      %p143 = por %p141, %p142
      %p144 = scmp.ne.s32.totalorder %s136, %s138
      %p145 = scmp.eq.s32.totalorder %s23, 1
      %p146 = por %p144, %p145
      %p147 = scmp.ne.s32.totalorder %s138, %s139
      %p148 = scmp.eq.s32.totalorder %s23, 0
      %p149 = por %p147, %p148
      %p150 = scmp.ne.s32.totalorder %s138, %s139
      %p151 = scmp.eq.s32.totalorder %s24, 1
      %p152 = por %p150, %p151
      %p154 = scmp.ne.s32.totalorder %s139, %s153
      %p155 = scmp.eq.s32.totalorder %s24, 0
      %p156 = por %p154, %p155
      %s158 = sadd.s32 %s157, 1
      %p161 = scmp.eq.s32.totalorder %s18, 1
      %p162 = scmp.ne.s32.totalorder %s157, %s159
      %p163 = scmp.eq.s32.totalorder %s18, 0
      %p164 = por %p162, %p163
      %p165 = scmp.ne.s32.totalorder %s157, %s159
      %p166 = scmp.eq.s32.totalorder %s23, 1
      %p167 = por %p165, %p166
      %p168 = scmp.ne.s32.totalorder %s159, %s160
      %p169 = scmp.eq.s32.totalorder %s23, 0
      %p170 = por %p168, %p169
      %p171 = scmp.ne.s32.totalorder %s159, %s160
      %p172 = scmp.eq.s32.totalorder %s24, 1
      %p173 = por %p171, %p172
      %p175 = scmp.ne.s32.totalorder %s160, %s174
      %p176 = scmp.eq.s32.totalorder %s24, 0
      %p177 = por %p175, %p176
      %s179 = sadd.s32 %s178, 1
      %p182 = scmp.eq.s32.totalorder %s18, 1
      %p183 = scmp.ne.s32.totalorder %s178, %s180
      %p184 = scmp.eq.s32.totalorder %s18, 0
      %p185 = por %p183, %p184
      %p186 = scmp.ne.s32.totalorder %s178, %s180
      %p187 = scmp.eq.s32.totalorder %s23, 1
      %p188 = por %p186, %p187
      %p189 = scmp.ne.s32.totalorder %s180, %s181
      %p190 = scmp.eq.s32.totalorder %s23, 0
      %p191 = por %p189, %p190
      %p192 = scmp.ne.s32.totalorder %s180, %s181
      %p193 = scmp.eq.s32.totalorder %s24, 1
      %p194 = por %p192, %p193
      %p196 = scmp.ne.s32.totalorder %s181, %s195
      %p197 = scmp.eq.s32.totalorder %s24, 0
      %p198 = por %p196, %p197
      %s200 = sadd.s32 %s199, 1
      %p203 = scmp.eq.s32.totalorder %s18, 1
      %p204 = scmp.ne.s32.totalorder %s199, %s201
      %p205 = scmp.eq.s32.totalorder %s18, 0
      %p206 = por %p204, %p205
      %p207 = scmp.ne.s32.totalorder %s199, %s201
      %p208 = scmp.eq.s32.totalorder %s23, 1
      %p209 = por %p207, %p208
      %p210 = scmp.ne.s32.totalorder %s201, %s202
      %p211 = scmp.eq.s32.totalorder %s23, 0
      %p212 = por %p210, %p211
      %p213 = scmp.ne.s32.totalorder %s201, %s202
      %p214 = scmp.eq.s32.totalorder %s24, 1
      %p215 = por %p213, %p214
      %p217 = scmp.ne.s32.totalorder %s202, %s216
      %p218 = scmp.eq.s32.totalorder %s24, 0
      %p219 = por %p217, %p218
      %s220 = ssub.s32 %s18, %s25
      %p221 = scmp.eq.s32.totalorder %s220, 0
      %s223 = sadd.s32 %s222, 1
      %s224 = scalar_select %p221, %s222, %s223
      %p227 = pneg %p221
      %p228 = scmp.eq.s32.totalorder %s18, 1
      %p229 = por %p227, %p228
      %p230 = scmp.ne.s32.totalorder %s222, %s225
      %p231 = scmp.eq.s32.totalorder %s18, 0
      %p232 = por %p230, %p231
      %p233 = scmp.ne.s32.totalorder %s222, %s225
      %p234 = scmp.eq.s32.totalorder %s23, 1
      %p235 = por %p233, %p234
      %p236 = scmp.ne.s32.totalorder %s225, %s226
      %p237 = scmp.eq.s32.totalorder %s23, 0
      %p238 = por %p236, %p237
      %p239 = scmp.ne.s32.totalorder %s225, %s226
      %p240 = scmp.eq.s32.totalorder %s24, 1
      %p241 = por %p239, %p240
      %p243 = scmp.ne.s32.totalorder %s226, %s242
      %p244 = scmp.eq.s32.totalorder %s24, 0
      %p245 = por %p243, %p244
      %p246 = scmp.le.s32.totalorder 1, %s18
      %p247 = scmp.lt.s32.totalorder %s18, 3
      %p248 = pnand %p246, %p247
      %p249 = pneg %p248
      // Predicated region
      $region9: #{cnn_forward.1} parent=5 // pred_check
        _
      $region10: #{cnn_forward.1} parent=5 // pred_check_branch
        %251 = sbr.rel (%p248) target = $region12
      $region11: #{cnn_forward.1} parent=5 // pred_region
        %s252 = ssub.s32 %s18, 1
        // Predicated region
        $region13: #{cnn_forward.1} parent=11 // pred_check
          %p253 = pneg %p65
        $region14: #{cnn_forward.1} parent=11 // pred_check_branch
          %255 = sbr.rel (%p253) target = $region16
        $region15: #{cnn_forward.1} parent=11 // pred_region
          _
        $region16: #{cnn_forward.1} parent=11 // pred_fallthru
          _
        // Predicated region
        $region17: #{cnn_forward.1} parent=11 // pred_check
          %p256 = pneg %p86
        $region18: #{cnn_forward.1} parent=11 // pred_check_branch
          %258 = sbr.rel (%p256) target = $region20
        $region19: #{cnn_forward.1} parent=11 // pred_region
          _
        $region20: #{cnn_forward.1} parent=11 // pred_fallthru
          _
        // Predicated region
        $region21: #{cnn_forward.1} parent=11 // pred_check
          %p259 = pneg %p107
        $region22: #{cnn_forward.1} parent=11 // pred_check_branch
          %261 = sbr.rel (%p259) target = $region24
        $region23: #{cnn_forward.1} parent=11 // pred_region
          _
        $region24: #{cnn_forward.1} parent=11 // pred_fallthru
          _
        // Predicated region
        $region25: #{cnn_forward.1} parent=11 // pred_check
          %p262 = pneg %p128
        $region26: #{cnn_forward.1} parent=11 // pred_check_branch
          %264 = sbr.rel (%p262) target = $region28
        $region27: #{cnn_forward.1} parent=11 // pred_region
          _
        $region28: #{cnn_forward.1} parent=11 // pred_fallthru
          _
        // Predicated region
        $region29: #{cnn_forward.1} parent=11 // pred_check
          %p265 = pneg %p149
        $region30: #{cnn_forward.1} parent=11 // pred_check_branch
          %267 = sbr.rel (%p265) target = $region32
        $region31: #{cnn_forward.1} parent=11 // pred_region
          _
        $region32: #{cnn_forward.1} parent=11 // pred_fallthru
          _
        // Predicated region
        $region33: #{cnn_forward.1} parent=11 // pred_check
          %p268 = pneg %p170
        $region34: #{cnn_forward.1} parent=11 // pred_check_branch
          %270 = sbr.rel (%p268) target = $region36
        $region35: #{cnn_forward.1} parent=11 // pred_region
          _
        $region36: #{cnn_forward.1} parent=11 // pred_fallthru
          _
        // Predicated region
        $region37: #{cnn_forward.1} parent=11 // pred_check
          %p271 = pneg %p191
        $region38: #{cnn_forward.1} parent=11 // pred_check_branch
          %273 = sbr.rel (%p271) target = $region40
        $region39: #{cnn_forward.1} parent=11 // pred_region
          _
        $region40: #{cnn_forward.1} parent=11 // pred_fallthru
          _
        // Predicated region
        $region41: #{cnn_forward.1} parent=11 // pred_check
          %p274 = pneg %p212
        $region42: #{cnn_forward.1} parent=11 // pred_check_branch
          %276 = sbr.rel (%p274) target = $region44
        $region43: #{cnn_forward.1} parent=11 // pred_region
          _
        $region44: #{cnn_forward.1} parent=11 // pred_fallthru
          _
      $region12: #{cnn_forward.1} parent=5 // pred_fallthru
        _
      %p277 = scmp.lt.s32.totalorder %s18, 2
      // Predicated region
      $region45: #{cnn_forward.1} parent=5 // pred_check
        %p278 = pneg %p277
      $region46: #{cnn_forward.1} parent=5 // pred_check_branch
        %280 = sbr.rel (%p278) target = $region48
      $region47: #{cnn_forward.1} parent=5 // pred_region
        // Predicated region
        $region49: #{cnn_forward.1} parent=47 // pred_check
          %p281 = pneg %p38
        $region50: #{cnn_forward.1} parent=47 // pred_check_branch
          %283 = sbr.rel (%p281) target = $region52
        $region51: #{cnn_forward.1} parent=47 // pred_region
          %p284 = scmp.lt.s32.totalorder %s18, 1
          %s285 = scalar_select %p284, %s18, 1
          %s286 = smul.addr %s285, 9
          %s287 = scalar_lea.vmem %s0, %s286
        $region52: #{cnn_forward.1} parent=47 // pred_fallthru
          _
      $region48: #{cnn_forward.1} parent=5 // pred_fallthru
        _
      %p288 = scmp.le.s32.totalorder 1, %s18
      %p289 = scmp.lt.s32.totalorder %s18, 3
      %p290 = pnand %p288, %p289
      %p291 = pneg %p290
      // Predicated region
      $region53: #{cnn_forward.1} parent=5 // pred_check
        _
      $region54: #{cnn_forward.1} parent=5 // pred_check_branch
        %293 = sbr.rel (%p290) target = $region56
      $region55: #{cnn_forward.1} parent=5 // pred_region
        %s294 = ssub.s32 %s18, 1
        %p295 = scmp.lt.s32.totalorder %s23, 1
        %s296 = scalar_select %p295, %s23, 1
        %s297 = smul.addr %s296, 9
        %s298 = scalar_lea.vmem %s0, %s297
        %p299 = pneg %p44
        %p300 = pneg %p41
        %p301 = pneg %p65
        %p302 = pneg %p62
        %p303 = pneg %p86
        %p304 = pneg %p83
        %p305 = pneg %p107
        %p306 = pneg %p104
        %p307 = pneg %p128
        %p308 = pneg %p125
        %p309 = pneg %p149
        %p310 = pneg %p146
        %p311 = pneg %p170
        %p312 = pneg %p167
        %p313 = pneg %p191
        %p314 = pneg %p188
        %p315 = pneg %p212
        %p316 = pneg %p209
        %p317 = pneg %p238
        %p318 = pneg %p235
        %s319 = sand.u32 %s225, 1
        %s320 = scalar_lea.sflag [#allocation3], %s319
        %s321 = sand.u32 %s225, 1
        %s322 = scalar_lea.vmem [#allocation2], %s321
        %p323 = scmp.lt.s32.totalorder %s23, 1
        %s324 = scalar_select %p323, %s23, 1
        %s325 = smul.addr %s324, 9
        %s326 = scalar_lea.vmem %s0, %s325
        %v328 = vld [vmem:[%s326] sm:$0xff]
        %v329 = vld [vmem:[%s326 + $0x8] sm:$0x1]
        %v331 = vperm.slane %v328, 0
        %v332 = vperm.slane %v328, 1
        %v333 = vperm.slane %v328, 2
        %v334 = vperm.slane %v328, 3
        %v335 = vperm.slane %v328, 4
        %v336 = vperm.slane %v328, 5
        %v337 = vperm.slane %v328, 6
        %v345 = vperm.slane %v328, 7
        %346 = vrot.lane.b32.xlu0 %v331, 127
        %v347 = vpop.permute.xlu0 %346
        %348 = vrot.lane.b32.xlu0 %v332, 127
        %v349 = vpop.permute.xlu0 %348
        %350 = vrot.lane.b32.xlu0 %v333, 127
        %v351 = vpop.permute.xlu0 %350
        %352 = vrot.lane.b32.xlu0 %v334, 127
        %v353 = vpop.permute.xlu0 %352
        %354 = vrot.lane.b32.xlu0 %v335, 127
        %v355 = vpop.permute.xlu0 %354
        %356 = vrot.lane.b32.xlu0 %v336, 127
        %v357 = vpop.permute.xlu0 %356
        %358 = vrot.lane.b32.xlu0 %v337, 127
        %v359 = vpop.permute.xlu0 %358
        %360 = vrot.lane.b32.xlu0 %v345, 127
        %v361 = vpop.permute.xlu0 %360
        %vm362 = vcmask 1039360
        %v363 = vsel %vm362, %v347, %v349
        %v364 = vsel %vm362, %v349, %v351
        %v365 = vsel %vm362, %v351, %v353
        %v366 = vsel %vm362, %v353, %v355
        %v367 = vsel %vm362, %v355, %v357
        %v368 = vsel %vm362, %v357, %v359
        %v369 = vsel %vm362, %v359, %v361
        %377 = vrot.lane.b32.xlu0 %v331, 126
        %v378 = vpop.permute.xlu0 %377
        %379 = vrot.lane.b32.xlu0 %v332, 126
        %v380 = vpop.permute.xlu0 %379
        %381 = vrot.lane.b32.xlu0 %v333, 126
        %v382 = vpop.permute.xlu0 %381
        %383 = vrot.lane.b32.xlu0 %v334, 126
        %v384 = vpop.permute.xlu0 %383
        %385 = vrot.lane.b32.xlu0 %v335, 126
        %v386 = vpop.permute.xlu0 %385
        %387 = vrot.lane.b32.xlu0 %v336, 126
        %v388 = vpop.permute.xlu0 %387
        %389 = vrot.lane.b32.xlu0 %v337, 126
        %v390 = vpop.permute.xlu0 %389
        %391 = vrot.lane.b32.xlu0 %v345, 126
        %v392 = vpop.permute.xlu0 %391
        %vm393 = vcmask 1031168
        %v394 = vsel %vm393, %v378, %v380
        %v395 = vsel %vm393, %v380, %v382
        %v396 = vsel %vm393, %v382, %v384
        %v397 = vsel %vm393, %v384, %v386
        %v398 = vsel %vm393, %v386, %v388
        %v399 = vsel %vm393, %v388, %v390
        %v400 = vsel %vm393, %v390, %v392
        %408 = vrot.lane.b32.xlu0 %v331, 125
        %v409 = vpop.permute.xlu0 %408
        %410 = vrot.lane.b32.xlu0 %v332, 125
        %v411 = vpop.permute.xlu0 %410
        %412 = vrot.lane.b32.xlu0 %v333, 125
        %v413 = vpop.permute.xlu0 %412
        %414 = vrot.lane.b32.xlu0 %v334, 125
        %v415 = vpop.permute.xlu0 %414
        %416 = vrot.lane.b32.xlu0 %v335, 125
        %v417 = vpop.permute.xlu0 %416
        %418 = vrot.lane.b32.xlu0 %v336, 125
        %v419 = vpop.permute.xlu0 %418
        %420 = vrot.lane.b32.xlu0 %v337, 125
        %v421 = vpop.permute.xlu0 %420
        %422 = vrot.lane.b32.xlu0 %v345, 125
        %v423 = vpop.permute.xlu0 %422
        %vm424 = vcmask 1022976
        %v425 = vsel %vm424, %v409, %v411
        %v426 = vsel %vm424, %v411, %v413
        %v427 = vsel %vm424, %v413, %v415
        %v428 = vsel %vm424, %v415, %v417
        %v429 = vsel %vm424, %v417, %v419
        %v430 = vsel %vm424, %v419, %v421
        %v431 = vsel %vm424, %v421, %v423
        %439 = vrot.lane.b32.xlu0 %v331, 124
        %v440 = vpop.permute.xlu0 %439
        %441 = vrot.lane.b32.xlu0 %v332, 124
        %v442 = vpop.permute.xlu0 %441
        %443 = vrot.lane.b32.xlu0 %v333, 124
        %v444 = vpop.permute.xlu0 %443
        %445 = vrot.lane.b32.xlu0 %v334, 124
        %v446 = vpop.permute.xlu0 %445
        %447 = vrot.lane.b32.xlu0 %v335, 124
        %v448 = vpop.permute.xlu0 %447
        %449 = vrot.lane.b32.xlu0 %v336, 124
        %v450 = vpop.permute.xlu0 %449
        %451 = vrot.lane.b32.xlu0 %v337, 124
        %v452 = vpop.permute.xlu0 %451
        %453 = vrot.lane.b32.xlu0 %v345, 124
        %v454 = vpop.permute.xlu0 %453
        %vm455 = vcmask 1014784
        %v456 = vsel %vm455, %v440, %v442
        %v457 = vsel %vm455, %v442, %v444
        %v458 = vsel %vm455, %v444, %v446
        %v459 = vsel %vm455, %v446, %v448
        %v460 = vsel %vm455, %v448, %v450
        %v461 = vsel %vm455, %v450, %v452
        %v462 = vsel %vm455, %v452, %v454
        %470 = vrot.lane.b32.xlu0 %v331, 96
        %v471 = vpop.permute.xlu0 %470
        %472 = vrot.lane.b32.xlu0 %v332, 96
        %v473 = vpop.permute.xlu0 %472
        %474 = vrot.lane.b32.xlu0 %v333, 96
        %v475 = vpop.permute.xlu0 %474
        %476 = vrot.lane.b32.xlu0 %v334, 96
        %v477 = vpop.permute.xlu0 %476
        %478 = vrot.lane.b32.xlu0 %v335, 96
        %v479 = vpop.permute.xlu0 %478
        %480 = vrot.lane.b32.xlu0 %v336, 96
        %v481 = vpop.permute.xlu0 %480
        %482 = vrot.lane.b32.xlu0 %v337, 96
        %v483 = vpop.permute.xlu0 %482
        %484 = vrot.lane.b32.xlu0 %v345, 96
        %v485 = vpop.permute.xlu0 %484
        %vm486 = vcmask 785408
        %v487 = vsel %vm486, %v471, %v473
        %v488 = vsel %vm486, %v473, %v475
        %v489 = vsel %vm486, %v475, %v477
        %v490 = vsel %vm486, %v477, %v479
        %v491 = vsel %vm486, %v479, %v481
        %v492 = vsel %vm486, %v481, %v483
        %v493 = vsel %vm486, %v483, %v485
        %501 = vrot.lane.b32.xlu0 %v331, 95
        %v502 = vpop.permute.xlu0 %501
        %503 = vrot.lane.b32.xlu0 %v332, 95
        %v504 = vpop.permute.xlu0 %503
        %505 = vrot.lane.b32.xlu0 %v333, 95
        %v506 = vpop.permute.xlu0 %505
        %507 = vrot.lane.b32.xlu0 %v334, 95
        %v508 = vpop.permute.xlu0 %507
        %509 = vrot.lane.b32.xlu0 %v335, 95
        %v510 = vpop.permute.xlu0 %509
        %511 = vrot.lane.b32.xlu0 %v336, 95
        %v512 = vpop.permute.xlu0 %511
        %513 = vrot.lane.b32.xlu0 %v337, 95
        %v514 = vpop.permute.xlu0 %513
        %515 = vrot.lane.b32.xlu0 %v345, 95
        %v516 = vpop.permute.xlu0 %515
        %vm517 = vcmask 777216
        %v518 = vsel %vm517, %v502, %v504
        %v519 = vsel %vm517, %v504, %v506
        %v520 = vsel %vm517, %v506, %v508
        %v521 = vsel %vm517, %v508, %v510
        %v522 = vsel %vm517, %v510, %v512
        %v523 = vsel %vm517, %v512, %v514
        %v524 = vsel %vm517, %v514, %v516
        %532 = vrot.lane.b32.xlu0 %v331, 94
        %v533 = vpop.permute.xlu0 %532
        %534 = vrot.lane.b32.xlu0 %v332, 94
        %v535 = vpop.permute.xlu0 %534
        %536 = vrot.lane.b32.xlu0 %v333, 94
        %v537 = vpop.permute.xlu0 %536
        %538 = vrot.lane.b32.xlu0 %v334, 94
        %v539 = vpop.permute.xlu0 %538
        %540 = vrot.lane.b32.xlu0 %v335, 94
        %v541 = vpop.permute.xlu0 %540
        %542 = vrot.lane.b32.xlu0 %v336, 94
        %v543 = vpop.permute.xlu0 %542
        %544 = vrot.lane.b32.xlu0 %v337, 94
        %v545 = vpop.permute.xlu0 %544
        %546 = vrot.lane.b32.xlu0 %v345, 94
        %v547 = vpop.permute.xlu0 %546
        %vm548 = vcmask 769024
        %v549 = vsel %vm548, %v533, %v535
        %v550 = vsel %vm548, %v535, %v537
        %v551 = vsel %vm548, %v537, %v539
        %v552 = vsel %vm548, %v539, %v541
        %v553 = vsel %vm548, %v541, %v543
        %v554 = vsel %vm548, %v543, %v545
        %v555 = vsel %vm548, %v545, %v547
        %563 = vrot.lane.b32.xlu0 %v331, 93
        %v564 = vpop.permute.xlu0 %563
        %565 = vrot.lane.b32.xlu0 %v332, 93
        %v566 = vpop.permute.xlu0 %565
        %567 = vrot.lane.b32.xlu0 %v333, 93
        %v568 = vpop.permute.xlu0 %567
        %569 = vrot.lane.b32.xlu0 %v334, 93
        %v570 = vpop.permute.xlu0 %569
        %571 = vrot.lane.b32.xlu0 %v335, 93
        %v572 = vpop.permute.xlu0 %571
        %573 = vrot.lane.b32.xlu0 %v336, 93
        %v574 = vpop.permute.xlu0 %573
        %575 = vrot.lane.b32.xlu0 %v337, 93
        %v576 = vpop.permute.xlu0 %575
        %577 = vrot.lane.b32.xlu0 %v345, 93
        %v578 = vpop.permute.xlu0 %577
        %vm579 = vcmask 760832
        %v580 = vsel %vm579, %v564, %v566
        %v581 = vsel %vm579, %v566, %v568
        %v582 = vsel %vm579, %v568, %v570
        %v583 = vsel %vm579, %v570, %v572
        %v584 = vsel %vm579, %v572, %v574
        %v585 = vsel %vm579, %v574, %v576
        %v586 = vsel %vm579, %v576, %v578
        %594 = vrot.lane.b32.xlu0 %v331, 92
        %v595 = vpop.permute.xlu0 %594
        %596 = vrot.lane.b32.xlu0 %v332, 92
        %v597 = vpop.permute.xlu0 %596
        %598 = vrot.lane.b32.xlu0 %v333, 92
        %v599 = vpop.permute.xlu0 %598
        %600 = vrot.lane.b32.xlu0 %v334, 92
        %v601 = vpop.permute.xlu0 %600
        %602 = vrot.lane.b32.xlu0 %v335, 92
        %v603 = vpop.permute.xlu0 %602
        %604 = vrot.lane.b32.xlu0 %v336, 92
        %v605 = vpop.permute.xlu0 %604
        %606 = vrot.lane.b32.xlu0 %v337, 92
        %v607 = vpop.permute.xlu0 %606
        %608 = vrot.lane.b32.xlu0 %v345, 92
        %v609 = vpop.permute.xlu0 %608
        %vm610 = vcmask 752640
        %v611 = vsel %vm610, %v595, %v597
        %v612 = vsel %vm610, %v597, %v599
        %v613 = vsel %vm610, %v599, %v601
        %v614 = vsel %vm610, %v601, %v603
        %v615 = vsel %vm610, %v603, %v605
        %v616 = vsel %vm610, %v605, %v607
        %v617 = vsel %vm610, %v607, %v609
        %625 = vrot.lane.b32.xlu0 %v331, 64
        %v626 = vpop.permute.xlu0 %625
        %627 = vrot.lane.b32.xlu0 %v332, 64
        %v628 = vpop.permute.xlu0 %627
        %629 = vrot.lane.b32.xlu0 %v333, 64
        %v630 = vpop.permute.xlu0 %629
        %631 = vrot.lane.b32.xlu0 %v334, 64
        %v632 = vpop.permute.xlu0 %631
        %633 = vrot.lane.b32.xlu0 %v335, 64
        %v634 = vpop.permute.xlu0 %633
        %635 = vrot.lane.b32.xlu0 %v336, 64
        %v636 = vpop.permute.xlu0 %635
        %637 = vrot.lane.b32.xlu0 %v337, 64
        %v638 = vpop.permute.xlu0 %637
        %639 = vrot.lane.b32.xlu0 %v345, 64
        %v640 = vpop.permute.xlu0 %639
        %vm641 = vcmask 523264
        %v642 = vsel %vm641, %v626, %v628
        %v643 = vsel %vm641, %v628, %v630
        %v644 = vsel %vm641, %v630, %v632
        %v645 = vsel %vm641, %v632, %v634
        %v646 = vsel %vm641, %v634, %v636
        %v647 = vsel %vm641, %v636, %v638
        %v648 = vsel %vm641, %v638, %v640
        %656 = vrot.lane.b32.xlu0 %v331, 63
        %v657 = vpop.permute.xlu0 %656
        %658 = vrot.lane.b32.xlu0 %v332, 63
        %v659 = vpop.permute.xlu0 %658
        %660 = vrot.lane.b32.xlu0 %v333, 63
        %v661 = vpop.permute.xlu0 %660
        %662 = vrot.lane.b32.xlu0 %v334, 63
        %v663 = vpop.permute.xlu0 %662
        %664 = vrot.lane.b32.xlu0 %v335, 63
        %v665 = vpop.permute.xlu0 %664
        %666 = vrot.lane.b32.xlu0 %v336, 63
        %v667 = vpop.permute.xlu0 %666
        %668 = vrot.lane.b32.xlu0 %v337, 63
        %v669 = vpop.permute.xlu0 %668
        %670 = vrot.lane.b32.xlu0 %v345, 63
        %v671 = vpop.permute.xlu0 %670
        %vm672 = vcmask 515072
        %v673 = vsel %vm672, %v657, %v659
        %v674 = vsel %vm672, %v659, %v661
        %v675 = vsel %vm672, %v661, %v663
        %v676 = vsel %vm672, %v663, %v665
        %v677 = vsel %vm672, %v665, %v667
        %v678 = vsel %vm672, %v667, %v669
        %v679 = vsel %vm672, %v669, %v671
        %687 = vrot.lane.b32.xlu0 %v331, 62
        %v688 = vpop.permute.xlu0 %687
        %689 = vrot.lane.b32.xlu0 %v332, 62
        %v690 = vpop.permute.xlu0 %689
        %691 = vrot.lane.b32.xlu0 %v333, 62
        %v692 = vpop.permute.xlu0 %691
        %693 = vrot.lane.b32.xlu0 %v334, 62
        %v694 = vpop.permute.xlu0 %693
        %695 = vrot.lane.b32.xlu0 %v335, 62
        %v696 = vpop.permute.xlu0 %695
        %697 = vrot.lane.b32.xlu0 %v336, 62
        %v698 = vpop.permute.xlu0 %697
        %699 = vrot.lane.b32.xlu0 %v337, 62
        %v700 = vpop.permute.xlu0 %699
        %701 = vrot.lane.b32.xlu0 %v345, 62
        %v702 = vpop.permute.xlu0 %701
        %vm703 = vcmask 506880
        %v704 = vsel %vm703, %v688, %v690
        %v705 = vsel %vm703, %v690, %v692
        %v706 = vsel %vm703, %v692, %v694
        %v707 = vsel %vm703, %v694, %v696
        %v708 = vsel %vm703, %v696, %v698
        %v709 = vsel %vm703, %v698, %v700
        %v710 = vsel %vm703, %v700, %v702
        %718 = vrot.lane.b32.xlu0 %v331, 61
        %v719 = vpop.permute.xlu0 %718
        %720 = vrot.lane.b32.xlu0 %v332, 61
        %v721 = vpop.permute.xlu0 %720
        %722 = vrot.lane.b32.xlu0 %v333, 61
        %v723 = vpop.permute.xlu0 %722
        %724 = vrot.lane.b32.xlu0 %v334, 61
        %v725 = vpop.permute.xlu0 %724
        %726 = vrot.lane.b32.xlu0 %v335, 61
        %v727 = vpop.permute.xlu0 %726
        %728 = vrot.lane.b32.xlu0 %v336, 61
        %v729 = vpop.permute.xlu0 %728
        %730 = vrot.lane.b32.xlu0 %v337, 61
        %v731 = vpop.permute.xlu0 %730
        %732 = vrot.lane.b32.xlu0 %v345, 61
        %v733 = vpop.permute.xlu0 %732
        %vm734 = vcmask 498688
        %v735 = vsel %vm734, %v719, %v721
        %v736 = vsel %vm734, %v721, %v723
        %v737 = vsel %vm734, %v723, %v725
        %v738 = vsel %vm734, %v725, %v727
        %v739 = vsel %vm734, %v727, %v729
        %v740 = vsel %vm734, %v729, %v731
        %v741 = vsel %vm734, %v731, %v733
        %749 = vrot.lane.b32.xlu0 %v331, 60
        %v750 = vpop.permute.xlu0 %749
        %751 = vrot.lane.b32.xlu0 %v332, 60
        %v752 = vpop.permute.xlu0 %751
        %753 = vrot.lane.b32.xlu0 %v333, 60
        %v754 = vpop.permute.xlu0 %753
        %755 = vrot.lane.b32.xlu0 %v334, 60
        %v756 = vpop.permute.xlu0 %755
        %757 = vrot.lane.b32.xlu0 %v335, 60
        %v758 = vpop.permute.xlu0 %757
        %759 = vrot.lane.b32.xlu0 %v336, 60
        %v760 = vpop.permute.xlu0 %759
        %761 = vrot.lane.b32.xlu0 %v337, 60
        %v762 = vpop.permute.xlu0 %761
        %763 = vrot.lane.b32.xlu0 %v345, 60
        %v764 = vpop.permute.xlu0 %763
        %vm765 = vcmask 490496
        %v766 = vsel %vm765, %v750, %v752
        %v767 = vsel %vm765, %v752, %v754
        %v768 = vsel %vm765, %v754, %v756
        %v769 = vsel %vm765, %v756, %v758
        %v770 = vsel %vm765, %v758, %v760
        %v771 = vsel %vm765, %v760, %v762
        %v772 = vsel %vm765, %v762, %v764
        %780 = vrot.lane.b32.xlu0 %v331, 32
        %v781 = vpop.permute.xlu0 %780
        %782 = vrot.lane.b32.xlu0 %v332, 32
        %v783 = vpop.permute.xlu0 %782
        %784 = vrot.lane.b32.xlu0 %v333, 32
        %v785 = vpop.permute.xlu0 %784
        %786 = vrot.lane.b32.xlu0 %v334, 32
        %v787 = vpop.permute.xlu0 %786
        %788 = vrot.lane.b32.xlu0 %v335, 32
        %v789 = vpop.permute.xlu0 %788
        %790 = vrot.lane.b32.xlu0 %v336, 32
        %v791 = vpop.permute.xlu0 %790
        %792 = vrot.lane.b32.xlu0 %v337, 32
        %v793 = vpop.permute.xlu0 %792
        %794 = vrot.lane.b32.xlu0 %v345, 32
        %v795 = vpop.permute.xlu0 %794
        %vm796 = vcmask 261120
        %v797 = vsel %vm796, %v781, %v783
        %v798 = vsel %vm796, %v783, %v785
        %v799 = vsel %vm796, %v785, %v787
        %v800 = vsel %vm796, %v787, %v789
        %v801 = vsel %vm796, %v789, %v791
        %v802 = vsel %vm796, %v791, %v793
        %v803 = vsel %vm796, %v793, %v795
        %vm811 = vcmask 1040384
        %v812 = vsel %vm811, %v331, %v363
        %v813 = vsel %vm811, %v332, %v364
        %v814 = vsel %vm811, %v333, %v365
        %v815 = vsel %vm811, %v334, %v366
        %v816 = vsel %vm811, %v335, %v367
        %v817 = vsel %vm811, %v336, %v368
        %v818 = vsel %vm811, %v337, %v369
        %vm819 = vcmask 1041408
        %v820 = vsel %vm819, %v812, %v394
        %v821 = vsel %vm819, %v813, %v395
        %v822 = vsel %vm819, %v814, %v396
        %v823 = vsel %vm819, %v815, %v397
        %v824 = vsel %vm819, %v816, %v398
        %v825 = vsel %vm819, %v817, %v399
        %v826 = vsel %vm819, %v818, %v400
        %vm827 = vcmask 1042432
        %v828 = vsel %vm827, %v820, %v425
        %v829 = vsel %vm827, %v821, %v426
        %v830 = vsel %vm827, %v822, %v427
        %v831 = vsel %vm827, %v823, %v428
        %v832 = vsel %vm827, %v824, %v429
        %v833 = vsel %vm827, %v825, %v430
        %v834 = vsel %vm827, %v826, %v431
        %vm835 = vcmask 1043456
        %v836 = vsel %vm835, %v828, %v456
        %v837 = vsel %vm835, %v829, %v457
        %v838 = vsel %vm835, %v830, %v458
        %v839 = vsel %vm835, %v831, %v459
        %v840 = vsel %vm835, %v832, %v460
        %v841 = vsel %vm835, %v833, %v461
        %v842 = vsel %vm835, %v834, %v462
        %vm843 = vcmask 1044480
        %v844 = vsel %vm843, %v836, %v487
        %v845 = vsel %vm843, %v837, %v488
        %v846 = vsel %vm843, %v838, %v489
        %v847 = vsel %vm843, %v839, %v490
        %v848 = vsel %vm843, %v840, %v491
        %v849 = vsel %vm843, %v841, %v492
        %v850 = vsel %vm843, %v842, %v493
        %vm851 = vcmask 1045504
        %v852 = vsel %vm851, %v844, %v518
        %v853 = vsel %vm851, %v845, %v519
        %v854 = vsel %vm851, %v846, %v520
        %v855 = vsel %vm851, %v847, %v521
        %v856 = vsel %vm851, %v848, %v522
        %v857 = vsel %vm851, %v849, %v523
        %v858 = vsel %vm851, %v850, %v524
        %vm859 = vcmask 1046528
        %v860 = vsel %vm859, %v852, %v549
        %v861 = vsel %vm859, %v853, %v550
        %v862 = vsel %vm859, %v854, %v551
        %v863 = vsel %vm859, %v855, %v552
        %v864 = vsel %vm859, %v856, %v553
        %v865 = vsel %vm859, %v857, %v554
        %v866 = vsel %vm859, %v858, %v555
        %v867 = vsel %vm811, %v580, %v611
        %v868 = vsel %vm811, %v581, %v612
        %v869 = vsel %vm811, %v582, %v613
        %v870 = vsel %vm811, %v583, %v614
        %v871 = vsel %vm811, %v584, %v615
        %v872 = vsel %vm811, %v585, %v616
        %v873 = vsel %vm811, %v586, %v617
        %v874 = vsel %vm819, %v867, %v642
        %v875 = vsel %vm819, %v868, %v643
        %v876 = vsel %vm819, %v869, %v644
        %v877 = vsel %vm819, %v870, %v645
        %v878 = vsel %vm819, %v871, %v646
        %v879 = vsel %vm819, %v872, %v647
        %v880 = vsel %vm819, %v873, %v648
        %v881 = vsel %vm827, %v874, %v673
        %v882 = vsel %vm827, %v875, %v674
        %v883 = vsel %vm827, %v876, %v675
        %v884 = vsel %vm827, %v877, %v676
        %v885 = vsel %vm827, %v878, %v677
        %v886 = vsel %vm827, %v879, %v678
        %v887 = vsel %vm827, %v880, %v679
        %v888 = vsel %vm835, %v881, %v704
        %v889 = vsel %vm835, %v882, %v705
        %v890 = vsel %vm835, %v883, %v706
        %v891 = vsel %vm835, %v884, %v707
        %v892 = vsel %vm835, %v885, %v708
        %v893 = vsel %vm835, %v886, %v709
        %v894 = vsel %vm835, %v887, %v710
        %v895 = vsel %vm843, %v888, %v735
        %v896 = vsel %vm843, %v889, %v736
        %v897 = vsel %vm843, %v890, %v737
        %v898 = vsel %vm843, %v891, %v738
        %v899 = vsel %vm843, %v892, %v739
        %v900 = vsel %vm843, %v893, %v740
        %v901 = vsel %vm843, %v894, %v741
        %v902 = vsel %vm851, %v895, %v766
        %v903 = vsel %vm851, %v896, %v767
        %v904 = vsel %vm851, %v897, %v768
        %v905 = vsel %vm851, %v898, %v769
        %v906 = vsel %vm851, %v899, %v770
        %v907 = vsel %vm851, %v900, %v771
        %v908 = vsel %vm851, %v901, %v772
        %v909 = vsel %vm859, %v902, %v797
        %v910 = vsel %vm859, %v903, %v798
        %v911 = vsel %vm859, %v904, %v799
        %v912 = vsel %vm859, %v905, %v800
        %v913 = vsel %vm859, %v906, %v801
        %v914 = vsel %vm859, %v907, %v802
        %v915 = vsel %vm859, %v908, %v803
        %920 = vrot.lane.b32.xlu0 %v332, 97
        %v921 = vpop.permute.xlu0 %920
        %922 = vrot.lane.b32.xlu0 %v333, 97
        %v923 = vpop.permute.xlu0 %922
        %924 = vrot.lane.b32.xlu0 %v334, 97
        %v925 = vpop.permute.xlu0 %924
        %926 = vrot.lane.b32.xlu0 %v335, 97
        %v927 = vpop.permute.xlu0 %926
        %928 = vrot.lane.b32.xlu0 %v336, 97
        %v929 = vpop.permute.xlu0 %928
        %930 = vrot.lane.b32.xlu0 %v337, 97
        %v931 = vpop.permute.xlu0 %930
        %932 = vrot.lane.b32.xlu0 %v345, 97
        %v933 = vpop.permute.xlu0 %932
        %vm934 = vcmask 793600
        %v935 = vsel %vm934, %v921, %v923
        %v936 = vsel %vm934, %v923, %v925
        %v937 = vsel %vm934, %v925, %v927
        %v938 = vsel %vm934, %v927, %v929
        %v939 = vsel %vm934, %v929, %v931
        %v940 = vsel %vm934, %v931, %v933
        %v950 = vperm.slane %v329, 0
        %951 = vrot.lane.b32.xlu0 %v950, 96
        %v952 = vpop.permute.xlu0 %951
        %v953 = vsel %vm486, %v485, %v952
        %956 = vrot.lane.b32.xlu0 %v950, 95
        %v957 = vpop.permute.xlu0 %956
        %v958 = vsel %vm517, %v516, %v957
        %961 = vrot.lane.b32.xlu0 %v950, 94
        %v962 = vpop.permute.xlu0 %961
        %v963 = vsel %vm548, %v547, %v962
        %966 = vrot.lane.b32.xlu0 %v950, 93
        %v967 = vpop.permute.xlu0 %966
        %v968 = vsel %vm579, %v578, %v967
        %v969 = vsel %vm811, %v345, %v361
        %v970 = vsel %vm819, %v969, %v392
        %v971 = vsel %vm827, %v970, %v423
        %v972 = vsel %vm835, %v828, %v921
        %v973 = vsel %vm835, %v829, %v935
        %v974 = vsel %vm835, %v830, %v936
        %v975 = vsel %vm835, %v831, %v937
        %v976 = vsel %vm835, %v832, %v938
        %v977 = vsel %vm835, %v833, %v939
        %v978 = vsel %vm835, %v834, %v940
        %v979 = vsel %vm835, %v971, %v933
        %v980 = vsel %vm843, %v972, %v473
        %v981 = vsel %vm843, %v973, %v488
        %v982 = vsel %vm843, %v974, %v489
        %v983 = vsel %vm843, %v975, %v490
        %v984 = vsel %vm843, %v976, %v491
        %v985 = vsel %vm843, %v977, %v492
        %v986 = vsel %vm843, %v978, %v493
        %v987 = vsel %vm843, %v979, %v953
        %v988 = vsel %vm851, %v980, %v504
        %v989 = vsel %vm851, %v981, %v519
        %v990 = vsel %vm851, %v982, %v520
        %v991 = vsel %vm851, %v983, %v521
        %v992 = vsel %vm851, %v984, %v522
        %v993 = vsel %vm851, %v985, %v523
        %v994 = vsel %vm851, %v986, %v524
        %v995 = vsel %vm851, %v987, %v958
        %v996 = vsel %vm859, %v988, %v535
        %v997 = vsel %vm859, %v989, %v550
        %v998 = vsel %vm859, %v990, %v551
        %v999 = vsel %vm859, %v991, %v552
        %v1000 = vsel %vm859, %v992, %v553
        %v1001 = vsel %vm859, %v993, %v554
        %v1002 = vsel %vm859, %v994, %v555
        %v1003 = vsel %vm859, %v995, %v963
        %1012 = vrot.lane.b32.xlu0 %v996, 31
        %v1013 = vpop.permute.xlu0 %1012
        %1014 = vrot.lane.b32.xlu0 %v997, 31
        %v1015 = vpop.permute.xlu0 %1014
        %1016 = vrot.lane.b32.xlu0 %v998, 31
        %v1017 = vpop.permute.xlu0 %1016
        %1018 = vrot.lane.b32.xlu0 %v999, 31
        %v1019 = vpop.permute.xlu0 %1018
        %1020 = vrot.lane.b32.xlu0 %v1000, 31
        %v1021 = vpop.permute.xlu0 %1020
        %1022 = vrot.lane.b32.xlu0 %v1001, 31
        %v1023 = vpop.permute.xlu0 %1022
        %1024 = vrot.lane.b32.xlu0 %v1002, 31
        %v1025 = vpop.permute.xlu0 %1024
        %1026 = vrot.lane.b32.xlu0 %v1003, 31
        %v1027 = vpop.permute.xlu0 %1026
        %1028 = vrot.lane.b32.xlu0 %v566, 31
        %v1029 = vpop.permute.xlu0 %1028
        %1030 = vrot.lane.b32.xlu0 %v581, 31
        %v1031 = vpop.permute.xlu0 %1030
        %1032 = vrot.lane.b32.xlu0 %v582, 31
        %v1033 = vpop.permute.xlu0 %1032
        %1034 = vrot.lane.b32.xlu0 %v583, 31
        %v1035 = vpop.permute.xlu0 %1034
        %1036 = vrot.lane.b32.xlu0 %v584, 31
        %v1037 = vpop.permute.xlu0 %1036
        %1038 = vrot.lane.b32.xlu0 %v585, 31
        %v1039 = vpop.permute.xlu0 %1038
        %1040 = vrot.lane.b32.xlu0 %v586, 31
        %v1041 = vpop.permute.xlu0 %1040
        %1042 = vrot.lane.b32.xlu0 %v968, 31
        %v1043 = vpop.permute.xlu0 %1042
        %vm1044 = vcmask 252928
        %v1045 = vsel %vm1044, %v1013, %v1015
        %v1046 = vsel %vm1044, %v1015, %v1017
        %v1047 = vsel %vm1044, %v1017, %v1019
        %v1048 = vsel %vm1044, %v1019, %v1021
        %v1049 = vsel %vm1044, %v1021, %v1023
        %v1050 = vsel %vm1044, %v1023, %v1025
        %v1051 = vsel %vm1044, %v1025, %v1027
        %v1052 = vsel %vm1044, %v1029, %v1031
        %v1053 = vsel %vm1044, %v1031, %v1033
        %v1054 = vsel %vm1044, %v1033, %v1035
        %v1055 = vsel %vm1044, %v1035, %v1037
        %v1056 = vsel %vm1044, %v1037, %v1039
        %v1057 = vsel %vm1044, %v1039, %v1041
        %v1058 = vsel %vm1044, %v1041, %v1043
        %v1073 = vld [vmem:[%s1] sm:$0xf]
        %v1074 = vld [vmem:[%s1 + $0x4] sm:$0xf]
        %v1075 = vpack.c.bf16 %v909, %v860
        %v1076 = vpack.c.bf16 %v910, %v861
        %v1077 = vpack.c.bf16 %v911, %v862
        %v1078 = vpack.c.bf16 %v912, %v863
        %v1079 = vpack.c.bf16 %v913, %v864
        %v1080 = vpack.c.bf16 %v914, %v865
        %v1081 = vpack.c.bf16 %v915, %v866
        %v1082 = vpack.c.bf16 %v1052, %v1045
        %v1083 = vpack.c.bf16 %v1053, %v1046
        %v1084 = vpack.c.bf16 %v1054, %v1047
        %v1085 = vpack.c.bf16 %v1055, %v1048
        %v1086 = vpack.c.bf16 %v1056, %v1049
        %v1087 = vpack.c.bf16 %v1057, %v1050
        %v1088 = vpack.c.bf16 %v1058, %v1051
        %v1089 = vld [vmem:[%s2] sm:$0xff]
        %v1090 = vld [vmem:[%s2 + $0x8] sm:$0xff]
        %1092 = vset.pattern.permute.xlu0 0
        %1093 = vperm.xlu0 %1092, %v1089
        %v1094 = vpop.permute.xlu0 %1093
        %1097 = vset.pattern.permute.xlu0 0
        %1098 = vperm.xlu0 %1097, %v1090
        %v1099 = vpop.permute.xlu0 %1098
        %v1103 = vunpack.c.l.b16 %v1073
        %v1104 = vunpack.c.l.b16 %v1074
        %v1105 = vpack.c.b16 %v1104, %v1103
        %vm1106 = vcmask 203776
        %v1108 = vsel %vm1106, %v1105, 0
        %v1110 = vsel %vm835, 4294967295, 65535
        %v1111 = vsel %vm843, %v1110, 0
        %v1113 = vand.u32 %v1082, %v1111
        %v1116 = vand.u32 %v1083, %v1111
        %v1119 = vand.u32 %v1084, %v1111
        %v1122 = vand.u32 %v1085, %v1111
        %v1125 = vand.u32 %v1086, %v1111
        %v1128 = vand.u32 %v1087, %v1111
        %v1131 = vand.u32 %v1088, %v1111
        %1133 = vmatpush.bf16.msra.mxu0 0
        %1134 = vmatpush.bf16.msra.mxu0 0
        %1135 = vmatpush.bf16.msra.mxu0 0
        %1136 = vmatpush.bf16.msra.mxu0 0
        %1137 = vmatpush.bf16.msra.mxu0 0
        %1138 = vmatpush.bf16.msra.mxu0 0
        %1139 = vmatpush.bf16.msra.mxu0 %v1113
        %1140 = vmatpush.bf16.msra.mxu0 %v1075
        %1141 = vmatmul.bf16.gmra.mxu0 %v1108
        %v1142 = vpop.f32.mrf.mxu0
        %v1143 = vadd.f32 %v1094, %v1142
        %v1144 = vpop.f32.mrf.mxu0
        %v1145 = vadd.f32 %v1099, %v1144
        %1146 = vdwg.mxu0
        %1147 = vmatpush.bf16.msra.mxu0 0
        %1148 = vmatpush.bf16.msra.mxu0 0
        %1149 = vmatpush.bf16.msra.mxu0 0
        %1150 = vmatpush.bf16.msra.mxu0 0
        %1151 = vmatpush.bf16.msra.mxu0 0
        %1152 = vmatpush.bf16.msra.mxu0 0
        %1153 = vmatpush.bf16.msra.mxu0 %v1116
        %1154 = vmatpush.bf16.msra.mxu0 %v1076
        %1155 = vmatmul.bf16.gmra.mxu0 %v1108
        %v1156 = vpop.f32.mrf.mxu0
        %v1157 = vadd.f32 %v1094, %v1156
        %v1158 = vpop.f32.mrf.mxu0
        %v1159 = vadd.f32 %v1099, %v1158
        %1160 = vdwg.mxu0
        %1161 = vmatpush.bf16.msra.mxu0 0
        %1162 = vmatpush.bf16.msra.mxu0 0
        %1163 = vmatpush.bf16.msra.mxu0 0
        %1164 = vmatpush.bf16.msra.mxu0 0
        %1165 = vmatpush.bf16.msra.mxu0 0
        %1166 = vmatpush.bf16.msra.mxu0 0
        %1167 = vmatpush.bf16.msra.mxu0 %v1119
        %1168 = vmatpush.bf16.msra.mxu0 %v1077
        %1169 = vmatmul.bf16.gmra.mxu0 %v1108
        %v1170 = vpop.f32.mrf.mxu0
        %v1171 = vadd.f32 %v1094, %v1170
        %v1172 = vpop.f32.mrf.mxu0
        %v1173 = vadd.f32 %v1099, %v1172
        %1174 = vdwg.mxu0
        %1175 = vmatpush.bf16.msra.mxu0 0
        %1176 = vmatpush.bf16.msra.mxu0 0
        %1177 = vmatpush.bf16.msra.mxu0 0
        %1178 = vmatpush.bf16.msra.mxu0 0
        %1179 = vmatpush.bf16.msra.mxu0 0
        %1180 = vmatpush.bf16.msra.mxu0 0
        %1181 = vmatpush.bf16.msra.mxu0 %v1122
        %1182 = vmatpush.bf16.msra.mxu0 %v1078
        %1183 = vmatmul.bf16.gmra.mxu0 %v1108
        %v1184 = vpop.f32.mrf.mxu0
        %v1185 = vadd.f32 %v1094, %v1184
        %v1186 = vpop.f32.mrf.mxu0
        %v1187 = vadd.f32 %v1099, %v1186
        %1188 = vdwg.mxu0
        %1189 = vmatpush.bf16.msra.mxu0 0
        %1190 = vmatpush.bf16.msra.mxu0 0
        %1191 = vmatpush.bf16.msra.mxu0 0
        %1192 = vmatpush.bf16.msra.mxu0 0
        %1193 = vmatpush.bf16.msra.mxu0 0
        %1194 = vmatpush.bf16.msra.mxu0 0
        %1195 = vmatpush.bf16.msra.mxu0 %v1125
        %1196 = vmatpush.bf16.msra.mxu0 %v1079
        %1197 = vmatmul.bf16.gmra.mxu0 %v1108
        %v1198 = vpop.f32.mrf.mxu0
        %v1199 = vadd.f32 %v1094, %v1198
        %v1200 = vpop.f32.mrf.mxu0
        %v1201 = vadd.f32 %v1099, %v1200
        %1202 = vdwg.mxu0
        %1203 = vmatpush.bf16.msra.mxu0 0
        %1204 = vmatpush.bf16.msra.mxu0 0
        %1205 = vmatpush.bf16.msra.mxu0 0
        %1206 = vmatpush.bf16.msra.mxu0 0
        %1207 = vmatpush.bf16.msra.mxu0 0
        %1208 = vmatpush.bf16.msra.mxu0 0
        %1209 = vmatpush.bf16.msra.mxu0 %v1128
        %1210 = vmatpush.bf16.msra.mxu0 %v1080
        %1211 = vmatmul.bf16.gmra.mxu0 %v1108
        %v1212 = vpop.f32.mrf.mxu0
        %v1213 = vadd.f32 %v1094, %v1212
        %v1214 = vpop.f32.mrf.mxu0
        %v1215 = vadd.f32 %v1099, %v1214
        %1216 = vdwg.mxu0
        %1217 = vmatpush.bf16.msra.mxu0 0
        %1218 = vmatpush.bf16.msra.mxu0 0
        %1219 = vmatpush.bf16.msra.mxu0 0
        %1220 = vmatpush.bf16.msra.mxu0 0
        %1221 = vmatpush.bf16.msra.mxu0 0
        %1222 = vmatpush.bf16.msra.mxu0 0
        %1223 = vmatpush.bf16.msra.mxu0 %v1131
        %1224 = vmatpush.bf16.msra.mxu0 %v1081
        %1225 = vmatmul.bf16.gmra.mxu0 %v1108
        %v1226 = vpop.f32.mrf.mxu0
        %v1227 = vadd.f32 %v1094, %v1226
        %v1228 = vpop.f32.mrf.mxu0
        %v1229 = vadd.f32 %v1099, %v1228
        %1230 = vdwg.mxu0
        %v1231 = vmax.f32 %v1143, 0.0
        %v1232 = vmax.f32 %v1157, 0.0
        %v1233 = vmax.f32 %v1171, 0.0
        %v1234 = vmax.f32 %v1185, 0.0
        %v1235 = vmax.f32 %v1199, 0.0
        %v1236 = vmax.f32 %v1213, 0.0
        %v1237 = vmax.f32 %v1227, 0.0
        %v1238 = vmax.f32 %v1145, 0.0
        %v1239 = vmax.f32 %v1159, 0.0
        %v1240 = vmax.f32 %v1173, 0.0
        %v1241 = vmax.f32 %v1187, 0.0
        %v1242 = vmax.f32 %v1201, 0.0
        %v1243 = vmax.f32 %v1215, 0.0
        %v1244 = vmax.f32 %v1229, 0.0
        %v1245 = vpack.c.bf16 %v1238, %v1231
        %v1246 = vpack.c.bf16 %v1239, %v1232
        %v1247 = vpack.c.bf16 %v1240, %v1233
        %v1248 = vpack.c.bf16 %v1241, %v1234
        %v1249 = vpack.c.bf16 %v1242, %v1235
        %v1250 = vpack.c.bf16 %v1243, %v1236
        %v1251 = vpack.c.bf16 %v1244, %v1237
        %v1252 = vld [vmem:[%s3] sm:$0xff]
        %v1253 = vld [vmem:[%s3 + $0x8] sm:$0xf]
        %v1254 = vld [vmem:[%s3 + $0xc] sm:$0xff]
        %v1255 = vld [vmem:[%s3 + $0x14] sm:$0xf]
        %v1256 = vld [vmem:[%s3 + $0x18] sm:$0xff]
        %v1257 = vld [vmem:[%s3 + $0x20] sm:$0xf]
        %v1258 = vld [vmem:[%s3 + $0x24] sm:$0xff]
        %v1259 = vld [vmem:[%s3 + $0x2c] sm:$0xf]
        %v1260 = vld [vmem:[%s3 + $0x30] sm:$0xff]
        %v1261 = vld [vmem:[%s3 + $0x38] sm:$0xf]
        %v1262 = vld [vmem:[%s3 + $0x3c] sm:$0xff]
        %v1263 = vld [vmem:[%s3 + $0x44] sm:$0xf]
        %v1264 = vld [vmem:[%s3 + $0x48] sm:$0xff]
        %v1265 = vld [vmem:[%s3 + $0x50] sm:$0xf]
        %v1266 = vld [vmem:[%s3 + $0x54] sm:$0xff]
        %v1267 = vld [vmem:[%s3 + $0x5c] sm:$0xf]
        %v1268 = vld [vmem:[%s3 + $0x60] sm:$0xff]
        %v1269 = vld [vmem:[%s3 + $0x68] sm:$0xf]
        %v1270 = vld [vmem:[%s3 + $0x6c] sm:$0xff]
        %v1271 = vld [vmem:[%s3 + $0x74] sm:$0xf]
        %v1272 = vld [vmem:[%s3 + $0x78] sm:$0xff]
        %v1273 = vld [vmem:[%s3 + $0x80] sm:$0xf]
        %v1274 = vld [vmem:[%s3 + $0x84] sm:$0xff]
        %v1275 = vld [vmem:[%s3 + $0x8c] sm:$0xf]
        %v1276 = vld [vmem:[%s3 + $0x90] sm:$0xff]
        %v1277 = vld [vmem:[%s3 + $0x98] sm:$0xf]
        %v1278 = vld [vmem:[%s3 + $0x9c] sm:$0xff]
        %v1279 = vld [vmem:[%s3 + $0xa4] sm:$0xf]
        %v1280 = vld [vmem:[%s3 + $0xa8] sm:$0xff]
        %v1281 = vld [vmem:[%s3 + $0xb0] sm:$0xf]
        %v1282 = vld [vmem:[%s3 + $0xb4] sm:$0xff]
        %v1283 = vld [vmem:[%s3 + $0xbc] sm:$0xf]
        %v1284 = vld [vmem:[%s3 + $0xc0] sm:$0xff]
        %v1285 = vld [vmem:[%s3 + $0xc8] sm:$0xf]
        %v1286 = vld [vmem:[%s3 + $0xcc] sm:$0xff]
        %v1287 = vld [vmem:[%s3 + $0xd4] sm:$0xf]
        %v1288 = vld [vmem:[%s3 + $0xd8] sm:$0xff]
        %v1289 = vld [vmem:[%s3 + $0xe0] sm:$0xf]
        %v1290 = vld [vmem:[%s3 + $0xe4] sm:$0xff]
        %v1291 = vld [vmem:[%s3 + $0xec] sm:$0xf]
        %v1292 = vld [vmem:[%s3 + $0xf0] sm:$0xff]
        %v1293 = vld [vmem:[%s3 + $0xf8] sm:$0xf]
        %v1294 = vld [vmem:[%s3 + $0xfc] sm:$0xff]
        %v1295 = vld [vmem:[%s3 + $0x104] sm:$0xf]
        %v1296 = vld [vmem:[%s3 + $0x108] sm:$0xff]
        %v1297 = vld [vmem:[%s3 + $0x110] sm:$0xf]
        %v1298 = vld [vmem:[%s3 + $0x114] sm:$0xff]
        %v1299 = vld [vmem:[%s3 + $0x11c] sm:$0xf]
        %v1300 = vld [vmem:[%s3 + $0x120] sm:$0xff]
        %v1301 = vld [vmem:[%s3 + $0x128] sm:$0xf]
        %v1302 = vld [vmem:[%s3 + $0x12c] sm:$0xff]
        %v1303 = vld [vmem:[%s3 + $0x134] sm:$0xf]
        %v1304 = vld [vmem:[%s3 + $0x138] sm:$0xff]
        %v1305 = vld [vmem:[%s3 + $0x140] sm:$0xf]
        %v1306 = vld [vmem:[%s3 + $0x144] sm:$0xff]
        %v1307 = vld [vmem:[%s3 + $0x14c] sm:$0xf]
        %v1308 = vld [vmem:[%s3 + $0x150] sm:$0xff]
        %v1309 = vld [vmem:[%s3 + $0x158] sm:$0xf]
        %v1310 = vld [vmem:[%s3 + $0x15c] sm:$0xff]
        %v1311 = vld [vmem:[%s3 + $0x164] sm:$0xf]
        %v1312 = vld [vmem:[%s3 + $0x168] sm:$0xff]
        %v1313 = vld [vmem:[%s3 + $0x170] sm:$0xf]
        %v1314 = vld [vmem:[%s3 + $0x174] sm:$0xff]
        %v1315 = vld [vmem:[%s3 + $0x17c] sm:$0xf]
        %v1316 = vld [vmem:[%s3 + $0x180] sm:$0xff]
        %v1317 = vld [vmem:[%s3 + $0x188] sm:$0xf]
        %v1318 = vld [vmem:[%s3 + $0x18c] sm:$0xff]
        %v1319 = vld [vmem:[%s3 + $0x194] sm:$0xf]
        %v1320 = vld [vmem:[%s3 + $0x198] sm:$0xff]
        %v1321 = vld [vmem:[%s3 + $0x1a0] sm:$0xf]
        %v1322 = vld [vmem:[%s3 + $0x1a4] sm:$0xff]
        %v1323 = vld [vmem:[%s3 + $0x1ac] sm:$0xf]
        %v1324 = vld [vmem:[%s3 + $0x1b0] sm:$0xff]
        %v1325 = vld [vmem:[%s3 + $0x1b8] sm:$0xf]
        %v1326 = vld [vmem:[%s3 + $0x1bc] sm:$0xff]
        %v1327 = vld [vmem:[%s3 + $0x1c4] sm:$0xf]
        %v1328 = vld [vmem:[%s3 + $0x1c8] sm:$0xff]
        %v1329 = vld [vmem:[%s3 + $0x1d0] sm:$0xf]
        %v1330 = vld [vmem:[%s3 + $0x1d4] sm:$0xff]
        %v1331 = vld [vmem:[%s3 + $0x1dc] sm:$0xf]
        %v1332 = vld [vmem:[%s3 + $0x1e0] sm:$0xff]
        %v1333 = vld [vmem:[%s3 + $0x1e8] sm:$0xf]
        %v1334 = vld [vmem:[%s3 + $0x1ec] sm:$0xff]
        %v1335 = vld [vmem:[%s3 + $0x1f4] sm:$0xf]
        %v1336 = vld [vmem:[%s3 + $0x1f8] sm:$0xff]
        %v1337 = vld [vmem:[%s3 + $0x200] sm:$0xf]
        %v1338 = vld [vmem:[%s3 + $0x204] sm:$0xff]
        %v1339 = vld [vmem:[%s3 + $0x20c] sm:$0xf]
        %v1340 = vld [vmem:[%s3 + $0x210] sm:$0xff]
        %v1341 = vld [vmem:[%s3 + $0x218] sm:$0xf]
        %v1342 = vld [vmem:[%s3 + $0x21c] sm:$0xff]
        %v1343 = vld [vmem:[%s3 + $0x224] sm:$0xf]
        %v1344 = vld [vmem:[%s3 + $0x228] sm:$0xff]
        %v1345 = vld [vmem:[%s3 + $0x230] sm:$0xf]
        %v1346 = vld [vmem:[%s3 + $0x234] sm:$0xff]
        %v1347 = vld [vmem:[%s3 + $0x23c] sm:$0xf]
        %v1348 = vld [vmem:[%s3 + $0x240] sm:$0xff]
        %v1349 = vld [vmem:[%s3 + $0x248] sm:$0xf]
        %v1350 = vld [vmem:[%s3 + $0x24c] sm:$0xff]
        %v1351 = vld [vmem:[%s3 + $0x254] sm:$0xf]
        %v1352 = vld [vmem:[%s3 + $0x258] sm:$0xff]
        %v1353 = vld [vmem:[%s3 + $0x260] sm:$0xf]
        %v1354 = vld [vmem:[%s3 + $0x264] sm:$0xff]
        %v1355 = vld [vmem:[%s3 + $0x26c] sm:$0xf]
        %v1356 = vld [vmem:[%s3 + $0x270] sm:$0xff]
        %v1357 = vld [vmem:[%s3 + $0x278] sm:$0xf]
        %v1358 = vld [vmem:[%s3 + $0x27c] sm:$0xff]
        %v1359 = vld [vmem:[%s3 + $0x284] sm:$0xf]
        %v1360 = vld [vmem:[%s3 + $0x288] sm:$0xff]
        %v1361 = vld [vmem:[%s3 + $0x290] sm:$0xf]
        %v1362 = vld [vmem:[%s3 + $0x294] sm:$0xff]
        %v1363 = vld [vmem:[%s3 + $0x29c] sm:$0xf]
        %v1364 = vld [vmem:[%s3 + $0x2a0] sm:$0xff]
        %v1365 = vld [vmem:[%s3 + $0x2a8] sm:$0xf]
        %v1366 = vld [vmem:[%s3 + $0x2ac] sm:$0xff]
        %v1367 = vld [vmem:[%s3 + $0x2b4] sm:$0xf]
        %v1368 = vld [vmem:[%s3 + $0x2b8] sm:$0xff]
        %v1369 = vld [vmem:[%s3 + $0x2c0] sm:$0xf]
        %v1370 = vld [vmem:[%s3 + $0x2c4] sm:$0xff]
        %v1371 = vld [vmem:[%s3 + $0x2cc] sm:$0xf]
        %v1372 = vld [vmem:[%s3 + $0x2d0] sm:$0xff]
        %v1373 = vld [vmem:[%s3 + $0x2d8] sm:$0xf]
        %v1374 = vld [vmem:[%s3 + $0x2dc] sm:$0xff]
        %v1375 = vld [vmem:[%s3 + $0x2e4] sm:$0xf]
        %v1376 = vld [vmem:[%s3 + $0x2e8] sm:$0xff]
        %v1377 = vld [vmem:[%s3 + $0x2f0] sm:$0xf]
        %v1378 = vld [vmem:[%s3 + $0x2f4] sm:$0xff]
        %v1379 = vld [vmem:[%s3 + $0x2fc] sm:$0xf]
        %v1380 = vld [vmem:[%s3 + $0x300] sm:$0xff]
        %v1381 = vld [vmem:[%s3 + $0x308] sm:$0xf]
        %v1382 = vld [vmem:[%s3 + $0x30c] sm:$0xff]
        %v1383 = vld [vmem:[%s3 + $0x314] sm:$0xf]
        %v1384 = vld [vmem:[%s3 + $0x318] sm:$0xff]
        %v1385 = vld [vmem:[%s3 + $0x320] sm:$0xf]
        %v1386 = vld [vmem:[%s3 + $0x324] sm:$0xff]
        %v1387 = vld [vmem:[%s3 + $0x32c] sm:$0xf]
        %v1388 = vld [vmem:[%s3 + $0x330] sm:$0xff]
        %v1389 = vld [vmem:[%s3 + $0x338] sm:$0xf]
        %v1390 = vld [vmem:[%s3 + $0x33c] sm:$0xff]
        %v1391 = vld [vmem:[%s3 + $0x344] sm:$0xf]
        %v1392 = vld [vmem:[%s3 + $0x348] sm:$0xff]
        %v1393 = vld [vmem:[%s3 + $0x350] sm:$0xf]
        %v1394 = vld [vmem:[%s3 + $0x354] sm:$0xff]
        %v1395 = vld [vmem:[%s3 + $0x35c] sm:$0xf]
        %v1396 = vld [vmem:[%s3 + $0x360] sm:$0xff]
        %v1397 = vld [vmem:[%s3 + $0x368] sm:$0xf]
        %v1398 = vld [vmem:[%s3 + $0x36c] sm:$0xff]
        %v1399 = vld [vmem:[%s3 + $0x374] sm:$0xf]
        %v1400 = vld [vmem:[%s3 + $0x378] sm:$0xff]
        %v1401 = vld [vmem:[%s3 + $0x380] sm:$0xf]
        %v1402 = vld [vmem:[%s3 + $0x384] sm:$0xff]
        %v1403 = vld [vmem:[%s3 + $0x38c] sm:$0xf]
        %v1404 = vld [vmem:[%s3 + $0x390] sm:$0xff]
        %v1405 = vld [vmem:[%s3 + $0x398] sm:$0xf]
        %v1406 = vld [vmem:[%s3 + $0x39c] sm:$0xff]
        %v1407 = vld [vmem:[%s3 + $0x3a4] sm:$0xf]
        %v1408 = vld [vmem:[%s3 + $0x3a8] sm:$0xff]
        %v1409 = vld [vmem:[%s3 + $0x3b0] sm:$0xf]
        %v1410 = vld [vmem:[%s3 + $0x3b4] sm:$0xff]
        %v1411 = vld [vmem:[%s3 + $0x3bc] sm:$0xf]
        %v1412 = vld [vmem:[%s3 + $0x3c0] sm:$0xff]
        %v1413 = vld [vmem:[%s3 + $0x3c8] sm:$0xf]
        %v1414 = vld [vmem:[%s3 + $0x3cc] sm:$0xff]
        %v1415 = vld [vmem:[%s3 + $0x3d4] sm:$0xf]
        %v1416 = vld [vmem:[%s3 + $0x3d8] sm:$0xff]
        %v1417 = vld [vmem:[%s3 + $0x3e0] sm:$0xf]
        %v1418 = vld [vmem:[%s3 + $0x3e4] sm:$0xff]
        %v1419 = vld [vmem:[%s3 + $0x3ec] sm:$0xf]
        %v1420 = vld [vmem:[%s3 + $0x3f0] sm:$0xff]
        %v1421 = vld [vmem:[%s3 + $0x3f8] sm:$0xf]
        %v1422 = vld [vmem:[%s3 + $0x3fc] sm:$0xff]
        %v1423 = vld [vmem:[%s3 + $0x404] sm:$0xf]
        %v1424 = vld [vmem:[%s3 + $0x408] sm:$0xff]
        %v1425 = vld [vmem:[%s3 + $0x410] sm:$0xf]
        %v1426 = vld [vmem:[%s3 + $0x414] sm:$0xff]
        %v1427 = vld [vmem:[%s3 + $0x41c] sm:$0xf]
        %v1428 = vld [vmem:[%s3 + $0x420] sm:$0xff]
        %v1429 = vld [vmem:[%s3 + $0x428] sm:$0xf]
        %v1430 = vld [vmem:[%s3 + $0x42c] sm:$0xff]
        %v1431 = vld [vmem:[%s3 + $0x434] sm:$0xf]
        %v1432 = vld [vmem:[%s3 + $0x438] sm:$0xff]
        %v1433 = vld [vmem:[%s3 + $0x440] sm:$0xf]
        %v1434 = vld [vmem:[%s3 + $0x444] sm:$0xff]
        %v1435 = vld [vmem:[%s3 + $0x44c] sm:$0xf]
        %v1436 = vld [vmem:[%s3 + $0x450] sm:$0xff]
        %v1437 = vld [vmem:[%s3 + $0x458] sm:$0xf]
        %v1438 = vld [vmem:[%s3 + $0x45c] sm:$0xff]
        %v1439 = vld [vmem:[%s3 + $0x464] sm:$0xf]
        %v1440 = vld [vmem:[%s3 + $0x468] sm:$0xff]
        %v1441 = vld [vmem:[%s3 + $0x470] sm:$0xf]
        %v1442 = vld [vmem:[%s3 + $0x474] sm:$0xff]
        %v1443 = vld [vmem:[%s3 + $0x47c] sm:$0xf]
        %v1444 = vld [vmem:[%s3 + $0x480] sm:$0xff]
        %v1445 = vld [vmem:[%s3 + $0x488] sm:$0xf]
        %v1446 = vld [vmem:[%s3 + $0x48c] sm:$0xff]
        %v1447 = vld [vmem:[%s3 + $0x494] sm:$0xf]
        %v1448 = vld [vmem:[%s3 + $0x498] sm:$0xff]
        %v1449 = vld [vmem:[%s3 + $0x4a0] sm:$0xf]
        %v1450 = vld [vmem:[%s3 + $0x4a4] sm:$0xff]
        %v1451 = vld [vmem:[%s3 + $0x4ac] sm:$0xf]
        %v1452 = vld [vmem:[%s3 + $0x4b0] sm:$0xff]
        %v1453 = vld [vmem:[%s3 + $0x4b8] sm:$0xf]
        %v1454 = vld [vmem:[%s3 + $0x4bc] sm:$0xff]
        %v1455 = vld [vmem:[%s3 + $0x4c4] sm:$0xf]
        %v1456 = vld [vmem:[%s3 + $0x4c8] sm:$0xff]
        %v1457 = vld [vmem:[%s3 + $0x4d0] sm:$0xf]
        %v1458 = vld [vmem:[%s3 + $0x4d4] sm:$0xff]
        %v1459 = vld [vmem:[%s3 + $0x4dc] sm:$0xf]
        %v1460 = vld [vmem:[%s3 + $0x4e0] sm:$0xff]
        %v1461 = vld [vmem:[%s3 + $0x4e8] sm:$0xf]
        %v1462 = vld [vmem:[%s3 + $0x4ec] sm:$0xff]
        %v1463 = vld [vmem:[%s3 + $0x4f4] sm:$0xf]
        %v1464 = vld [vmem:[%s3 + $0x4f8] sm:$0xff]
        %v1465 = vld [vmem:[%s3 + $0x500] sm:$0xf]
        %v1466 = vld [vmem:[%s3 + $0x504] sm:$0xff]
        %v1467 = vld [vmem:[%s3 + $0x50c] sm:$0xf]
        %v1468 = vld [vmem:[%s3 + $0x510] sm:$0xff]
        %v1469 = vld [vmem:[%s3 + $0x518] sm:$0xf]
        %v1470 = vld [vmem:[%s3 + $0x51c] sm:$0xff]
        %v1471 = vld [vmem:[%s3 + $0x524] sm:$0xf]
        %v1472 = vld [vmem:[%s3 + $0x528] sm:$0xff]
        %v1473 = vld [vmem:[%s3 + $0x530] sm:$0xf]
        %v1474 = vld [vmem:[%s3 + $0x534] sm:$0xff]
        %v1475 = vld [vmem:[%s3 + $0x53c] sm:$0xf]
        %v1700 = vunpack.c.l.b16 %v1252
        %v1701 = vunpack.c.h.b16 %v1252
        %v1702 = vunpack.c.l.b16 %v1253
        %v1703 = vunpack.c.l.b16 %v1254
        %v1704 = vunpack.c.h.b16 %v1254
        %v1705 = vunpack.c.l.b16 %v1255
        %v1706 = vunpack.c.l.b16 %v1256
        %v1707 = vunpack.c.h.b16 %v1256
        %v1708 = vunpack.c.l.b16 %v1257
        %v1709 = vunpack.c.l.b16 %v1258
        %v1710 = vunpack.c.h.b16 %v1258
        %v1711 = vunpack.c.l.b16 %v1259
        %v1712 = vunpack.c.l.b16 %v1260
        %v1713 = vunpack.c.h.b16 %v1260
        %v1714 = vunpack.c.l.b16 %v1261
        %v1715 = vunpack.c.l.b16 %v1262
        %v1716 = vunpack.c.h.b16 %v1262
        %v1717 = vunpack.c.l.b16 %v1263
        %v1718 = vunpack.c.l.b16 %v1264
        %v1719 = vunpack.c.h.b16 %v1264
        %v1720 = vunpack.c.l.b16 %v1265
        %v1721 = vunpack.c.l.b16 %v1266
        %v1722 = vunpack.c.h.b16 %v1266
        %v1723 = vunpack.c.l.b16 %v1267
        %v1724 = vunpack.c.l.b16 %v1268
        %v1725 = vunpack.c.h.b16 %v1268
        %v1726 = vunpack.c.l.b16 %v1269
        %v1727 = vunpack.c.l.b16 %v1270
        %v1728 = vunpack.c.h.b16 %v1270
        %v1729 = vunpack.c.l.b16 %v1271
        %v1730 = vunpack.c.l.b16 %v1272
        %v1731 = vunpack.c.h.b16 %v1272
        %v1732 = vunpack.c.l.b16 %v1273
        %v1733 = vunpack.c.l.b16 %v1274
        %v1734 = vunpack.c.h.b16 %v1274
        %v1735 = vunpack.c.l.b16 %v1275
        %v1736 = vunpack.c.l.b16 %v1276
        %v1737 = vunpack.c.h.b16 %v1276
        %v1738 = vunpack.c.l.b16 %v1277
        %v1739 = vunpack.c.l.b16 %v1278
        %v1740 = vunpack.c.h.b16 %v1278
        %v1741 = vunpack.c.l.b16 %v1279
        %v1742 = vunpack.c.l.b16 %v1280
        %v1743 = vunpack.c.h.b16 %v1280
        %v1744 = vunpack.c.l.b16 %v1281
        %v1745 = vunpack.c.l.b16 %v1282
        %v1746 = vunpack.c.h.b16 %v1282
        %v1747 = vunpack.c.l.b16 %v1283
        %v1748 = vunpack.c.l.b16 %v1284
        %v1749 = vunpack.c.h.b16 %v1284
        %v1750 = vunpack.c.l.b16 %v1285
        %v1751 = vunpack.c.l.b16 %v1286
        %v1752 = vunpack.c.h.b16 %v1286
        %v1753 = vunpack.c.l.b16 %v1287
        %v1754 = vunpack.c.l.b16 %v1288
        %v1755 = vunpack.c.h.b16 %v1288
        %v1756 = vunpack.c.l.b16 %v1289
        %v1757 = vunpack.c.l.b16 %v1290
        %v1758 = vunpack.c.h.b16 %v1290
        %v1759 = vunpack.c.l.b16 %v1291
        %v1760 = vunpack.c.l.b16 %v1292
        %v1761 = vunpack.c.h.b16 %v1292
        %v1762 = vunpack.c.l.b16 %v1293
        %v1763 = vunpack.c.l.b16 %v1294
        %v1764 = vunpack.c.h.b16 %v1294
        %v1765 = vunpack.c.l.b16 %v1295
        %v1766 = vunpack.c.l.b16 %v1296
        %v1767 = vunpack.c.h.b16 %v1296
        %v1768 = vunpack.c.l.b16 %v1297
        %v1769 = vunpack.c.l.b16 %v1298
        %v1770 = vunpack.c.h.b16 %v1298
        %v1771 = vunpack.c.l.b16 %v1299
        %v1772 = vunpack.c.l.b16 %v1300
        %v1773 = vunpack.c.h.b16 %v1300
        %v1774 = vunpack.c.l.b16 %v1301
        %v1775 = vunpack.c.l.b16 %v1302
        %v1776 = vunpack.c.h.b16 %v1302
        %v1777 = vunpack.c.l.b16 %v1303
        %v1778 = vunpack.c.l.b16 %v1304
        %v1779 = vunpack.c.h.b16 %v1304
        %v1780 = vunpack.c.l.b16 %v1305
        %v1781 = vunpack.c.l.b16 %v1306
        %v1782 = vunpack.c.h.b16 %v1306
        %v1783 = vunpack.c.l.b16 %v1307
        %v1784 = vunpack.c.l.b16 %v1308
        %v1785 = vunpack.c.h.b16 %v1308
        %v1786 = vunpack.c.l.b16 %v1309
        %v1787 = vunpack.c.l.b16 %v1310
        %v1788 = vunpack.c.h.b16 %v1310
        %v1789 = vunpack.c.l.b16 %v1311
        %v1790 = vunpack.c.l.b16 %v1312
        %v1791 = vunpack.c.h.b16 %v1312
        %v1792 = vunpack.c.l.b16 %v1313
        %v1793 = vunpack.c.l.b16 %v1314
        %v1794 = vunpack.c.h.b16 %v1314
        %v1795 = vunpack.c.l.b16 %v1315
        %v1796 = vunpack.c.l.b16 %v1316
        %v1797 = vunpack.c.h.b16 %v1316
        %v1798 = vunpack.c.l.b16 %v1317
        %v1799 = vunpack.c.l.b16 %v1318
        %v1800 = vunpack.c.h.b16 %v1318
        %v1801 = vunpack.c.l.b16 %v1319
        %v1802 = vunpack.c.l.b16 %v1320
        %v1803 = vunpack.c.h.b16 %v1320
        %v1804 = vunpack.c.l.b16 %v1321
        %v1805 = vunpack.c.l.b16 %v1322
        %v1806 = vunpack.c.h.b16 %v1322
        %v1807 = vunpack.c.l.b16 %v1323
        %v1808 = vunpack.c.l.b16 %v1324
        %v1809 = vunpack.c.h.b16 %v1324
        %v1810 = vunpack.c.l.b16 %v1325
        %v1811 = vunpack.c.l.b16 %v1326
        %v1812 = vunpack.c.h.b16 %v1326
        %v1813 = vunpack.c.l.b16 %v1327
        %v1814 = vunpack.c.l.b16 %v1328
        %v1815 = vunpack.c.h.b16 %v1328
        %v1816 = vunpack.c.l.b16 %v1329
        %v1817 = vunpack.c.l.b16 %v1330
        %v1818 = vunpack.c.h.b16 %v1330
        %v1819 = vunpack.c.l.b16 %v1331
        %v1820 = vunpack.c.l.b16 %v1332
        %v1821 = vunpack.c.h.b16 %v1332
        %v1822 = vunpack.c.l.b16 %v1333
        %v1823 = vunpack.c.l.b16 %v1334
        %v1824 = vunpack.c.h.b16 %v1334
        %v1825 = vunpack.c.l.b16 %v1335
        %v1826 = vunpack.c.l.b16 %v1336
        %v1827 = vunpack.c.h.b16 %v1336
        %v1828 = vunpack.c.l.b16 %v1337
        %v1829 = vunpack.c.l.b16 %v1338
        %v1830 = vunpack.c.h.b16 %v1338
        %v1831 = vunpack.c.l.b16 %v1339
        %v1832 = vunpack.c.l.b16 %v1340
        %v1833 = vunpack.c.h.b16 %v1340
        %v1834 = vunpack.c.l.b16 %v1341
        %v1835 = vunpack.c.l.b16 %v1342
        %v1836 = vunpack.c.h.b16 %v1342
        %v1837 = vunpack.c.l.b16 %v1343
        %v1838 = vunpack.c.l.b16 %v1344
        %v1839 = vunpack.c.h.b16 %v1344
        %v1840 = vunpack.c.l.b16 %v1345
        %v1841 = vunpack.c.l.b16 %v1346
        %v1842 = vunpack.c.h.b16 %v1346
        %v1843 = vunpack.c.l.b16 %v1347
        %v1844 = vunpack.c.l.b16 %v1348
        %v1845 = vunpack.c.h.b16 %v1348
        %v1846 = vunpack.c.l.b16 %v1349
        %v1847 = vunpack.c.l.b16 %v1350
        %v1848 = vunpack.c.h.b16 %v1350
        %v1849 = vunpack.c.l.b16 %v1351
        %v1850 = vunpack.c.l.b16 %v1352
        %v1851 = vunpack.c.h.b16 %v1352
        %v1852 = vunpack.c.l.b16 %v1353
        %v1853 = vunpack.c.l.b16 %v1354
        %v1854 = vunpack.c.h.b16 %v1354
        %v1855 = vunpack.c.l.b16 %v1355
        %v1856 = vunpack.c.l.b16 %v1356
        %v1857 = vunpack.c.h.b16 %v1356
        %v1858 = vunpack.c.l.b16 %v1357
        %v1859 = vunpack.c.l.b16 %v1358
        %v1860 = vunpack.c.h.b16 %v1358
        %v1861 = vunpack.c.l.b16 %v1359
        %v1862 = vunpack.c.l.b16 %v1360
        %v1863 = vunpack.c.h.b16 %v1360
        %v1864 = vunpack.c.l.b16 %v1361
        %v1865 = vunpack.c.l.b16 %v1362
        %v1866 = vunpack.c.h.b16 %v1362
        %v1867 = vunpack.c.l.b16 %v1363
        %v1868 = vunpack.c.l.b16 %v1364
        %v1869 = vunpack.c.h.b16 %v1364
        %v1870 = vunpack.c.l.b16 %v1365
        %v1871 = vunpack.c.l.b16 %v1366
        %v1872 = vunpack.c.h.b16 %v1366
        %v1873 = vunpack.c.l.b16 %v1367
        %v1874 = vunpack.c.l.b16 %v1368
        %v1875 = vunpack.c.h.b16 %v1368
        %v1876 = vunpack.c.l.b16 %v1369
        %v1877 = vunpack.c.l.b16 %v1370
        %v1878 = vunpack.c.h.b16 %v1370
        %v1879 = vunpack.c.l.b16 %v1371
        %v1880 = vunpack.c.l.b16 %v1372
        %v1881 = vunpack.c.h.b16 %v1372
        %v1882 = vunpack.c.l.b16 %v1373
        %v1883 = vunpack.c.l.b16 %v1374
        %v1884 = vunpack.c.h.b16 %v1374
        %v1885 = vunpack.c.l.b16 %v1375
        %v1886 = vunpack.c.l.b16 %v1376
        %v1887 = vunpack.c.h.b16 %v1376
        %v1888 = vunpack.c.l.b16 %v1377
        %v1889 = vunpack.c.l.b16 %v1378
        %v1890 = vunpack.c.h.b16 %v1378
        %v1891 = vunpack.c.l.b16 %v1379
        %v1892 = vunpack.c.l.b16 %v1380
        %v1893 = vunpack.c.h.b16 %v1380
        %v1894 = vunpack.c.l.b16 %v1381
        %v1895 = vunpack.c.l.b16 %v1382
        %v1896 = vunpack.c.h.b16 %v1382
        %v1897 = vunpack.c.l.b16 %v1383
        %v1898 = vunpack.c.l.b16 %v1384
        %v1899 = vunpack.c.h.b16 %v1384
        %v1900 = vunpack.c.l.b16 %v1385
        %v1901 = vunpack.c.l.b16 %v1386
        %v1902 = vunpack.c.h.b16 %v1386
        %v1903 = vunpack.c.l.b16 %v1387
        %v1904 = vunpack.c.l.b16 %v1388
        %v1905 = vunpack.c.h.b16 %v1388
        %v1906 = vunpack.c.l.b16 %v1389
        %v1907 = vunpack.c.l.b16 %v1390
        %v1908 = vunpack.c.h.b16 %v1390
        %v1909 = vunpack.c.l.b16 %v1391
        %v1910 = vunpack.c.l.b16 %v1392
        %v1911 = vunpack.c.h.b16 %v1392
        %v1912 = vunpack.c.l.b16 %v1393
        %v1913 = vunpack.c.l.b16 %v1394
        %v1914 = vunpack.c.h.b16 %v1394
        %v1915 = vunpack.c.l.b16 %v1395
        %v1916 = vunpack.c.l.b16 %v1396
        %v1917 = vunpack.c.h.b16 %v1396
        %v1918 = vunpack.c.l.b16 %v1397
        %v1919 = vunpack.c.l.b16 %v1398
        %v1920 = vunpack.c.h.b16 %v1398
        %v1921 = vunpack.c.l.b16 %v1399
        %v1922 = vunpack.c.l.b16 %v1400
        %v1923 = vunpack.c.h.b16 %v1400
        %v1924 = vunpack.c.l.b16 %v1401
        %v1925 = vunpack.c.l.b16 %v1402
        %v1926 = vunpack.c.h.b16 %v1402
        %v1927 = vunpack.c.l.b16 %v1403
        %v1928 = vunpack.c.l.b16 %v1404
        %v1929 = vunpack.c.h.b16 %v1404
        %v1930 = vunpack.c.l.b16 %v1405
        %v1931 = vunpack.c.l.b16 %v1406
        %v1932 = vunpack.c.h.b16 %v1406
        %v1933 = vunpack.c.l.b16 %v1407
        %v1934 = vunpack.c.l.b16 %v1408
        %v1935 = vunpack.c.h.b16 %v1408
        %v1936 = vunpack.c.l.b16 %v1409
        %v1937 = vunpack.c.l.b16 %v1410
        %v1938 = vunpack.c.h.b16 %v1410
        %v1939 = vunpack.c.l.b16 %v1411
        %v1940 = vunpack.c.l.b16 %v1412
        %v1941 = vunpack.c.h.b16 %v1412
        %v1942 = vunpack.c.l.b16 %v1413
        %v1943 = vunpack.c.l.b16 %v1414
        %v1944 = vunpack.c.h.b16 %v1414
        %v1945 = vunpack.c.l.b16 %v1415
        %v1946 = vunpack.c.l.b16 %v1416
        %v1947 = vunpack.c.h.b16 %v1416
        %v1948 = vunpack.c.l.b16 %v1417
        %v1949 = vunpack.c.l.b16 %v1418
        %v1950 = vunpack.c.h.b16 %v1418
        %v1951 = vunpack.c.l.b16 %v1419
        %v1952 = vunpack.c.l.b16 %v1420
        %v1953 = vunpack.c.h.b16 %v1420
        %v1954 = vunpack.c.l.b16 %v1421
        %v1955 = vunpack.c.l.b16 %v1422
        %v1956 = vunpack.c.h.b16 %v1422
        %v1957 = vunpack.c.l.b16 %v1423
        %v1958 = vunpack.c.l.b16 %v1424
        %v1959 = vunpack.c.h.b16 %v1424
        %v1960 = vunpack.c.l.b16 %v1425
        %v1961 = vunpack.c.l.b16 %v1426
        %v1962 = vunpack.c.h.b16 %v1426
        %v1963 = vunpack.c.l.b16 %v1427
        %v1964 = vunpack.c.l.b16 %v1428
        %v1965 = vunpack.c.h.b16 %v1428
        %v1966 = vunpack.c.l.b16 %v1429
        %v1967 = vunpack.c.l.b16 %v1430
        %v1968 = vunpack.c.h.b16 %v1430
        %v1969 = vunpack.c.l.b16 %v1431
        %v1970 = vunpack.c.l.b16 %v1432
        %v1971 = vunpack.c.h.b16 %v1432
        %v1972 = vunpack.c.l.b16 %v1433
        %v1973 = vunpack.c.l.b16 %v1434
        %v1974 = vunpack.c.h.b16 %v1434
        %v1975 = vunpack.c.l.b16 %v1435
        %v1976 = vunpack.c.l.b16 %v1436
        %v1977 = vunpack.c.h.b16 %v1436
        %v1978 = vunpack.c.l.b16 %v1437
        %v1979 = vunpack.c.l.b16 %v1438
        %v1980 = vunpack.c.h.b16 %v1438
        %v1981 = vunpack.c.l.b16 %v1439
        %v1982 = vunpack.c.l.b16 %v1440
        %v1983 = vunpack.c.h.b16 %v1440
        %v1984 = vunpack.c.l.b16 %v1441
        %v1985 = vunpack.c.l.b16 %v1442
        %v1986 = vunpack.c.h.b16 %v1442
        %v1987 = vunpack.c.l.b16 %v1443
        %v1988 = vunpack.c.l.b16 %v1444
        %v1989 = vunpack.c.h.b16 %v1444
        %v1990 = vunpack.c.l.b16 %v1445
        %v1991 = vunpack.c.l.b16 %v1446
        %v1992 = vunpack.c.h.b16 %v1446
        %v1993 = vunpack.c.l.b16 %v1447
        %v1994 = vunpack.c.l.b16 %v1448
        %v1995 = vunpack.c.h.b16 %v1448
        %v1996 = vunpack.c.l.b16 %v1449
        %v1997 = vunpack.c.l.b16 %v1450
        %v1998 = vunpack.c.h.b16 %v1450
        %v1999 = vunpack.c.l.b16 %v1451
        %v2000 = vunpack.c.l.b16 %v1452
        %v2001 = vunpack.c.h.b16 %v1452
        %v2002 = vunpack.c.l.b16 %v1453
        %v2003 = vunpack.c.l.b16 %v1454
        %v2004 = vunpack.c.h.b16 %v1454
        %v2005 = vunpack.c.l.b16 %v1455
        %v2006 = vunpack.c.l.b16 %v1456
        %v2007 = vunpack.c.h.b16 %v1456
        %v2008 = vunpack.c.l.b16 %v1457
        %v2009 = vunpack.c.l.b16 %v1458
        %v2010 = vunpack.c.h.b16 %v1458
        %v2011 = vunpack.c.l.b16 %v1459
        %v2012 = vunpack.c.l.b16 %v1460
        %v2013 = vunpack.c.h.b16 %v1460
        %v2014 = vunpack.c.l.b16 %v1461
        %v2015 = vunpack.c.l.b16 %v1462
        %v2016 = vunpack.c.h.b16 %v1462
        %v2017 = vunpack.c.l.b16 %v1463
        %v2018 = vunpack.c.l.b16 %v1464
        %v2019 = vunpack.c.h.b16 %v1464
        %v2020 = vunpack.c.l.b16 %v1465
        %v2021 = vunpack.c.l.b16 %v1466
        %v2022 = vunpack.c.h.b16 %v1466
        %v2023 = vunpack.c.l.b16 %v1467
        %v2024 = vunpack.c.l.b16 %v1468
        %v2025 = vunpack.c.h.b16 %v1468
        %v2026 = vunpack.c.l.b16 %v1469
        %v2027 = vunpack.c.l.b16 %v1470
        %v2028 = vunpack.c.h.b16 %v1470
        %v2029 = vunpack.c.l.b16 %v1471
        %v2030 = vunpack.c.l.b16 %v1472
        %v2031 = vunpack.c.h.b16 %v1472
        %v2032 = vunpack.c.l.b16 %v1473
        %v2033 = vunpack.c.l.b16 %v1474
        %v2034 = vunpack.c.h.b16 %v1474
        %v2035 = vunpack.c.l.b16 %v1475
        %v2036 = vpack.c.b16 %v1703, %v1700
        %v2037 = vpack.c.b16 %v1704, %v1701
        %v2038 = vpack.c.b16 %v1705, %v1702
        %v2039 = vpack.c.b16 %v1709, %v1706
        %v2040 = vpack.c.b16 %v1710, %v1707
        %v2041 = vpack.c.b16 %v1711, %v1708
        %v2042 = vpack.c.b16 %v1715, %v1712
        %v2043 = vpack.c.b16 %v1716, %v1713
        %v2044 = vpack.c.b16 %v1717, %v1714
        %v2045 = vpack.c.b16 %v1721, %v1718
        %v2046 = vpack.c.b16 %v1722, %v1719
        %v2047 = vpack.c.b16 %v1723, %v1720
        %v2048 = vpack.c.b16 %v1727, %v1724
        %v2049 = vpack.c.b16 %v1728, %v1725
        %v2050 = vpack.c.b16 %v1729, %v1726
        %v2051 = vpack.c.b16 %v1733, %v1730
        %v2052 = vpack.c.b16 %v1734, %v1731
        %v2053 = vpack.c.b16 %v1735, %v1732
        %v2054 = vpack.c.b16 %v1739, %v1736
        %v2055 = vpack.c.b16 %v1740, %v1737
        %v2056 = vpack.c.b16 %v1741, %v1738
        %v2057 = vpack.c.b16 %v1745, %v1742
        %v2058 = vpack.c.b16 %v1746, %v1743
        %v2059 = vpack.c.b16 %v1747, %v1744
        %v2060 = vpack.c.b16 %v1751, %v1748
        %v2061 = vpack.c.b16 %v1752, %v1749
        %v2062 = vpack.c.b16 %v1753, %v1750
        %v2063 = vpack.c.b16 %v1757, %v1754
        %v2064 = vpack.c.b16 %v1758, %v1755
        %v2065 = vpack.c.b16 %v1759, %v1756
        %v2066 = vpack.c.b16 %v1763, %v1760
        %v2067 = vpack.c.b16 %v1764, %v1761
        %v2068 = vpack.c.b16 %v1765, %v1762
        %v2069 = vpack.c.b16 %v1769, %v1766
        %v2070 = vpack.c.b16 %v1770, %v1767
        %v2071 = vpack.c.b16 %v1771, %v1768
        %v2072 = vpack.c.b16 %v1775, %v1772
        %v2073 = vpack.c.b16 %v1776, %v1773
        %v2074 = vpack.c.b16 %v1777, %v1774
        %v2075 = vpack.c.b16 %v1781, %v1778
        %v2076 = vpack.c.b16 %v1782, %v1779
        %v2077 = vpack.c.b16 %v1783, %v1780
        %v2078 = vpack.c.b16 %v1787, %v1784
        %v2079 = vpack.c.b16 %v1788, %v1785
        %v2080 = vpack.c.b16 %v1789, %v1786
        %v2081 = vpack.c.b16 %v1793, %v1790
        %v2082 = vpack.c.b16 %v1794, %v1791
        %v2083 = vpack.c.b16 %v1795, %v1792
        %v2084 = vpack.c.b16 %v1799, %v1796
        %v2085 = vpack.c.b16 %v1800, %v1797
        %v2086 = vpack.c.b16 %v1801, %v1798
        %v2087 = vpack.c.b16 %v1805, %v1802
        %v2088 = vpack.c.b16 %v1806, %v1803
        %v2089 = vpack.c.b16 %v1807, %v1804
        %v2090 = vpack.c.b16 %v1811, %v1808
        %v2091 = vpack.c.b16 %v1812, %v1809
        %v2092 = vpack.c.b16 %v1813, %v1810
        %v2093 = vpack.c.b16 %v1817, %v1814
        %v2094 = vpack.c.b16 %v1818, %v1815
        %v2095 = vpack.c.b16 %v1819, %v1816
        %v2096 = vpack.c.b16 %v1823, %v1820
        %v2097 = vpack.c.b16 %v1824, %v1821
        %v2098 = vpack.c.b16 %v1825, %v1822
        %v2099 = vpack.c.b16 %v1829, %v1826
        %v2100 = vpack.c.b16 %v1830, %v1827
        %v2101 = vpack.c.b16 %v1831, %v1828
        %v2102 = vpack.c.b16 %v1835, %v1832
        %v2103 = vpack.c.b16 %v1836, %v1833
        %v2104 = vpack.c.b16 %v1837, %v1834
        %v2105 = vpack.c.b16 %v1841, %v1838
        %v2106 = vpack.c.b16 %v1842, %v1839
        %v2107 = vpack.c.b16 %v1843, %v1840
        %v2108 = vpack.c.b16 %v1847, %v1844
        %v2109 = vpack.c.b16 %v1848, %v1845
        %v2110 = vpack.c.b16 %v1849, %v1846
        %v2111 = vpack.c.b16 %v1853, %v1850
        %v2112 = vpack.c.b16 %v1854, %v1851
        %v2113 = vpack.c.b16 %v1855, %v1852
        %v2114 = vpack.c.b16 %v1859, %v1856
        %v2115 = vpack.c.b16 %v1860, %v1857
        %v2116 = vpack.c.b16 %v1861, %v1858
        %v2117 = vpack.c.b16 %v1865, %v1862
        %v2118 = vpack.c.b16 %v1866, %v1863
        %v2119 = vpack.c.b16 %v1867, %v1864
        %v2120 = vpack.c.b16 %v1871, %v1868
        %v2121 = vpack.c.b16 %v1872, %v1869
        %v2122 = vpack.c.b16 %v1873, %v1870
        %v2123 = vpack.c.b16 %v1877, %v1874
        %v2124 = vpack.c.b16 %v1878, %v1875
        %v2125 = vpack.c.b16 %v1879, %v1876
        %v2126 = vpack.c.b16 %v1883, %v1880
        %v2127 = vpack.c.b16 %v1884, %v1881
        %v2128 = vpack.c.b16 %v1885, %v1882
        %v2129 = vpack.c.b16 %v1889, %v1886
        %v2130 = vpack.c.b16 %v1890, %v1887
        %v2131 = vpack.c.b16 %v1891, %v1888
        %v2132 = vpack.c.b16 %v1895, %v1892
        %v2133 = vpack.c.b16 %v1896, %v1893
        %v2134 = vpack.c.b16 %v1897, %v1894
        %v2135 = vpack.c.b16 %v1901, %v1898
        %v2136 = vpack.c.b16 %v1902, %v1899
        %v2137 = vpack.c.b16 %v1903, %v1900
        %v2138 = vpack.c.b16 %v1907, %v1904
        %v2139 = vpack.c.b16 %v1908, %v1905
        %v2140 = vpack.c.b16 %v1909, %v1906
        %v2141 = vpack.c.b16 %v1913, %v1910
        %v2142 = vpack.c.b16 %v1914, %v1911
        %v2143 = vpack.c.b16 %v1915, %v1912
        %v2144 = vpack.c.b16 %v1919, %v1916
        %v2145 = vpack.c.b16 %v1920, %v1917
        %v2146 = vpack.c.b16 %v1921, %v1918
        %v2147 = vpack.c.b16 %v1925, %v1922
        %v2148 = vpack.c.b16 %v1926, %v1923
        %v2149 = vpack.c.b16 %v1927, %v1924
        %v2150 = vpack.c.b16 %v1931, %v1928
        %v2151 = vpack.c.b16 %v1932, %v1929
        %v2152 = vpack.c.b16 %v1933, %v1930
        %v2153 = vpack.c.b16 %v1937, %v1934
        %v2154 = vpack.c.b16 %v1938, %v1935
        %v2155 = vpack.c.b16 %v1939, %v1936
        %v2156 = vpack.c.b16 %v1943, %v1940
        %v2157 = vpack.c.b16 %v1944, %v1941
        %v2158 = vpack.c.b16 %v1945, %v1942
        %v2159 = vpack.c.b16 %v1949, %v1946
        %v2160 = vpack.c.b16 %v1950, %v1947
        %v2161 = vpack.c.b16 %v1951, %v1948
        %v2162 = vpack.c.b16 %v1955, %v1952
        %v2163 = vpack.c.b16 %v1956, %v1953
        %v2164 = vpack.c.b16 %v1957, %v1954
        %v2165 = vpack.c.b16 %v1961, %v1958
        %v2166 = vpack.c.b16 %v1962, %v1959
        %v2167 = vpack.c.b16 %v1963, %v1960
        %v2168 = vpack.c.b16 %v1967, %v1964
        %v2169 = vpack.c.b16 %v1968, %v1965
        %v2170 = vpack.c.b16 %v1969, %v1966
        %v2171 = vpack.c.b16 %v1973, %v1970
        %v2172 = vpack.c.b16 %v1974, %v1971
        %v2173 = vpack.c.b16 %v1975, %v1972
        %v2174 = vpack.c.b16 %v1979, %v1976
        %v2175 = vpack.c.b16 %v1980, %v1977
        %v2176 = vpack.c.b16 %v1981, %v1978
        %v2177 = vpack.c.b16 %v1985, %v1982
        %v2178 = vpack.c.b16 %v1986, %v1983
        %v2179 = vpack.c.b16 %v1987, %v1984
        %v2180 = vpack.c.b16 %v1991, %v1988
        %v2181 = vpack.c.b16 %v1992, %v1989
        %v2182 = vpack.c.b16 %v1993, %v1990
        %v2183 = vpack.c.b16 %v1997, %v1994
        %v2184 = vpack.c.b16 %v1998, %v1995
        %v2185 = vpack.c.b16 %v1999, %v1996
        %v2186 = vpack.c.b16 %v2003, %v2000
        %v2187 = vpack.c.b16 %v2004, %v2001
        %v2188 = vpack.c.b16 %v2005, %v2002
        %v2189 = vpack.c.b16 %v2009, %v2006
        %v2190 = vpack.c.b16 %v2010, %v2007
        %v2191 = vpack.c.b16 %v2011, %v2008
        %v2192 = vpack.c.b16 %v2015, %v2012
        %v2193 = vpack.c.b16 %v2016, %v2013
        %v2194 = vpack.c.b16 %v2017, %v2014
        %v2195 = vpack.c.b16 %v2021, %v2018
        %v2196 = vpack.c.b16 %v2022, %v2019
        %v2197 = vpack.c.b16 %v2023, %v2020
        %v2198 = vpack.c.b16 %v2027, %v2024
        %v2199 = vpack.c.b16 %v2028, %v2025
        %v2200 = vpack.c.b16 %v2029, %v2026
        %v2201 = vpack.c.b16 %v2033, %v2030
        %v2202 = vpack.c.b16 %v2034, %v2031
        %v2203 = vpack.c.b16 %v2035, %v2032
        %2372 = vmatpush.bf16.msra.mxu0 %v2057
        %2373 = vmatpush.bf16.msra.mxu0 %v2054
        %2374 = vmatpush.bf16.msra.mxu0 %v2051
        %2375 = vmatpush.bf16.msra.mxu0 %v2048
        %2376 = vmatpush.bf16.msra.mxu0 %v2045
        %2377 = vmatpush.bf16.msra.mxu0 %v2042
        %2378 = vmatpush.bf16.msra.mxu0 %v2039
        %2379 = vmatpush.bf16.msra.mxu0 %v2036
        %2380 = vmatmul.bf16.gmra.mxu0 %v1245
        %v2381 = vpop.f32.mrf.mxu0
        %v2382 = vadd.f32 0.0, %v2381
        %v2383 = vpop.f32.mrf.mxu0
        %v2384 = vadd.f32 0.0, %v2383
        %2385 = vdwg.mxu0
        %2386 = vmatpush.bf16.msra.mxu0 %v2081
        %2387 = vmatpush.bf16.msra.mxu0 %v2078
        %2388 = vmatpush.bf16.msra.mxu0 %v2075
        %2389 = vmatpush.bf16.msra.mxu0 %v2072
        %2390 = vmatpush.bf16.msra.mxu0 %v2069
        %2391 = vmatpush.bf16.msra.mxu0 %v2066
        %2392 = vmatpush.bf16.msra.mxu0 %v2063
        %2393 = vmatpush.bf16.msra.mxu0 %v2060
        %2394 = vmatmul.bf16.gmra.mxu0 %v1246
        %v2395 = vpop.f32.mrf.mxu0
        %v2396 = vadd.f32 %v2382, %v2395
        %v2397 = vpop.f32.mrf.mxu0
        %v2398 = vadd.f32 %v2384, %v2397
        %2399 = vdwg.mxu0
        %2400 = vmatpush.bf16.msra.mxu0 %v2105
        %2401 = vmatpush.bf16.msra.mxu0 %v2102
        %2402 = vmatpush.bf16.msra.mxu0 %v2099
        %2403 = vmatpush.bf16.msra.mxu0 %v2096
        %2404 = vmatpush.bf16.msra.mxu0 %v2093
        %2405 = vmatpush.bf16.msra.mxu0 %v2090
        %2406 = vmatpush.bf16.msra.mxu0 %v2087
        %2407 = vmatpush.bf16.msra.mxu0 %v2084
        %2408 = vmatmul.bf16.gmra.mxu0 %v1247
        %v2409 = vpop.f32.mrf.mxu0
        %v2410 = vadd.f32 %v2396, %v2409
        %v2411 = vpop.f32.mrf.mxu0
        %v2412 = vadd.f32 %v2398, %v2411
        %2413 = vdwg.mxu0
        %2414 = vmatpush.bf16.msra.mxu0 %v2129
        %2415 = vmatpush.bf16.msra.mxu0 %v2126
        %2416 = vmatpush.bf16.msra.mxu0 %v2123
        %2417 = vmatpush.bf16.msra.mxu0 %v2120
        %2418 = vmatpush.bf16.msra.mxu0 %v2117
        %2419 = vmatpush.bf16.msra.mxu0 %v2114
        %2420 = vmatpush.bf16.msra.mxu0 %v2111
        %2421 = vmatpush.bf16.msra.mxu0 %v2108
        %2422 = vmatmul.bf16.gmra.mxu0 %v1248
        %v2423 = vpop.f32.mrf.mxu0
        %v2424 = vadd.f32 %v2410, %v2423
        %v2425 = vpop.f32.mrf.mxu0
        %v2426 = vadd.f32 %v2412, %v2425
        %2427 = vdwg.mxu0
        %2428 = vmatpush.bf16.msra.mxu0 %v2153
        %2429 = vmatpush.bf16.msra.mxu0 %v2150
        %2430 = vmatpush.bf16.msra.mxu0 %v2147
        %2431 = vmatpush.bf16.msra.mxu0 %v2144
        %2432 = vmatpush.bf16.msra.mxu0 %v2141
        %2433 = vmatpush.bf16.msra.mxu0 %v2138
        %2434 = vmatpush.bf16.msra.mxu0 %v2135
        %2435 = vmatpush.bf16.msra.mxu0 %v2132
        %2436 = vmatmul.bf16.gmra.mxu0 %v1249
        %v2437 = vpop.f32.mrf.mxu0
        %v2438 = vadd.f32 %v2424, %v2437
        %v2439 = vpop.f32.mrf.mxu0
        %v2440 = vadd.f32 %v2426, %v2439
        %2441 = vdwg.mxu0
        %2442 = vmatpush.bf16.msra.mxu0 %v2177
        %2443 = vmatpush.bf16.msra.mxu0 %v2174
        %2444 = vmatpush.bf16.msra.mxu0 %v2171
        %2445 = vmatpush.bf16.msra.mxu0 %v2168
        %2446 = vmatpush.bf16.msra.mxu0 %v2165
        %2447 = vmatpush.bf16.msra.mxu0 %v2162
        %2448 = vmatpush.bf16.msra.mxu0 %v2159
        %2449 = vmatpush.bf16.msra.mxu0 %v2156
        %2450 = vmatmul.bf16.gmra.mxu0 %v1250
        %v2451 = vpop.f32.mrf.mxu0
        %v2452 = vadd.f32 %v2438, %v2451
        %v2453 = vpop.f32.mrf.mxu0
        %v2454 = vadd.f32 %v2440, %v2453
        %2455 = vdwg.mxu0
        %2456 = vmatpush.bf16.msra.mxu0 %v2201
        %2457 = vmatpush.bf16.msra.mxu0 %v2198
        %2458 = vmatpush.bf16.msra.mxu0 %v2195
        %2459 = vmatpush.bf16.msra.mxu0 %v2192
        %2460 = vmatpush.bf16.msra.mxu0 %v2189
        %2461 = vmatpush.bf16.msra.mxu0 %v2186
        %2462 = vmatpush.bf16.msra.mxu0 %v2183
        %2463 = vmatpush.bf16.msra.mxu0 %v2180
        %2464 = vmatmul.bf16.gmra.mxu0 %v1251
        %v2465 = vpop.f32.mrf.mxu0
        %v2466 = vadd.f32 %v2452, %v2465
        %v2467 = vpop.f32.mrf.mxu0
        %v2468 = vadd.f32 %v2454, %v2467
        %2469 = vdwg.mxu0
        %2470 = vmatpush.bf16.msra.mxu0 %v2058
        %2471 = vmatpush.bf16.msra.mxu0 %v2055
        %2472 = vmatpush.bf16.msra.mxu0 %v2052
        %2473 = vmatpush.bf16.msra.mxu0 %v2049
        %2474 = vmatpush.bf16.msra.mxu0 %v2046
        %2475 = vmatpush.bf16.msra.mxu0 %v2043
        %2476 = vmatpush.bf16.msra.mxu0 %v2040
        %2477 = vmatpush.bf16.msra.mxu0 %v2037
        %2478 = vmatmul.bf16.gmra.mxu0 %v1245
        %v2479 = vpop.f32.mrf.mxu0
        %v2480 = vadd.f32 0.0, %v2479
        %v2481 = vpop.f32.mrf.mxu0
        %v2482 = vadd.f32 0.0, %v2481
        %2483 = vdwg.mxu0
        %2484 = vmatpush.bf16.msra.mxu0 %v2082
        %2485 = vmatpush.bf16.msra.mxu0 %v2079
        %2486 = vmatpush.bf16.msra.mxu0 %v2076
        %2487 = vmatpush.bf16.msra.mxu0 %v2073
        %2488 = vmatpush.bf16.msra.mxu0 %v2070
        %2489 = vmatpush.bf16.msra.mxu0 %v2067
        %2490 = vmatpush.bf16.msra.mxu0 %v2064
        %2491 = vmatpush.bf16.msra.mxu0 %v2061
        %2492 = vmatmul.bf16.gmra.mxu0 %v1246
        %v2493 = vpop.f32.mrf.mxu0
        %v2494 = vadd.f32 %v2480, %v2493
        %v2495 = vpop.f32.mrf.mxu0
        %v2496 = vadd.f32 %v2482, %v2495
        %2497 = vdwg.mxu0
        %2498 = vmatpush.bf16.msra.mxu0 %v2106
        %2499 = vmatpush.bf16.msra.mxu0 %v2103
        %2500 = vmatpush.bf16.msra.mxu0 %v2100
        %2501 = vmatpush.bf16.msra.mxu0 %v2097
        %2502 = vmatpush.bf16.msra.mxu0 %v2094
        %2503 = vmatpush.bf16.msra.mxu0 %v2091
        %2504 = vmatpush.bf16.msra.mxu0 %v2088
        %2505 = vmatpush.bf16.msra.mxu0 %v2085
        %2506 = vmatmul.bf16.gmra.mxu0 %v1247
        %v2507 = vpop.f32.mrf.mxu0
        %v2508 = vadd.f32 %v2494, %v2507
        %v2509 = vpop.f32.mrf.mxu0
        %v2510 = vadd.f32 %v2496, %v2509
        %2511 = vdwg.mxu0
        %2512 = vmatpush.bf16.msra.mxu0 %v2130
        %2513 = vmatpush.bf16.msra.mxu0 %v2127
        %2514 = vmatpush.bf16.msra.mxu0 %v2124
        %2515 = vmatpush.bf16.msra.mxu0 %v2121
        %2516 = vmatpush.bf16.msra.mxu0 %v2118
        %2517 = vmatpush.bf16.msra.mxu0 %v2115
        %2518 = vmatpush.bf16.msra.mxu0 %v2112
        %2519 = vmatpush.bf16.msra.mxu0 %v2109
        %2520 = vmatmul.bf16.gmra.mxu0 %v1248
        %v2521 = vpop.f32.mrf.mxu0
        %v2522 = vadd.f32 %v2508, %v2521
        %v2523 = vpop.f32.mrf.mxu0
        %v2524 = vadd.f32 %v2510, %v2523
        %2525 = vdwg.mxu0
        %2526 = vmatpush.bf16.msra.mxu0 %v2154
        %2527 = vmatpush.bf16.msra.mxu0 %v2151
        %2528 = vmatpush.bf16.msra.mxu0 %v2148
        %2529 = vmatpush.bf16.msra.mxu0 %v2145
        %2530 = vmatpush.bf16.msra.mxu0 %v2142
        %2531 = vmatpush.bf16.msra.mxu0 %v2139
        %2532 = vmatpush.bf16.msra.mxu0 %v2136
        %2533 = vmatpush.bf16.msra.mxu0 %v2133
        %2534 = vmatmul.bf16.gmra.mxu0 %v1249
        %v2535 = vpop.f32.mrf.mxu0
        %v2536 = vadd.f32 %v2522, %v2535
        %v2537 = vpop.f32.mrf.mxu0
        %v2538 = vadd.f32 %v2524, %v2537
        %2539 = vdwg.mxu0
        %2540 = vmatpush.bf16.msra.mxu0 %v2178
        %2541 = vmatpush.bf16.msra.mxu0 %v2175
        %2542 = vmatpush.bf16.msra.mxu0 %v2172
        %2543 = vmatpush.bf16.msra.mxu0 %v2169
        %2544 = vmatpush.bf16.msra.mxu0 %v2166
        %2545 = vmatpush.bf16.msra.mxu0 %v2163
        %2546 = vmatpush.bf16.msra.mxu0 %v2160
        %2547 = vmatpush.bf16.msra.mxu0 %v2157
        %2548 = vmatmul.bf16.gmra.mxu0 %v1250
        %v2549 = vpop.f32.mrf.mxu0
        %v2550 = vadd.f32 %v2536, %v2549
        %v2551 = vpop.f32.mrf.mxu0
        %v2552 = vadd.f32 %v2538, %v2551
        %2553 = vdwg.mxu0
        %2554 = vmatpush.bf16.msra.mxu0 %v2202
        %2555 = vmatpush.bf16.msra.mxu0 %v2199
        %2556 = vmatpush.bf16.msra.mxu0 %v2196
        %2557 = vmatpush.bf16.msra.mxu0 %v2193
        %2558 = vmatpush.bf16.msra.mxu0 %v2190
        %2559 = vmatpush.bf16.msra.mxu0 %v2187
        %2560 = vmatpush.bf16.msra.mxu0 %v2184
        %2561 = vmatpush.bf16.msra.mxu0 %v2181
        %2562 = vmatmul.bf16.gmra.mxu0 %v1251
        %v2563 = vpop.f32.mrf.mxu0
        %v2564 = vadd.f32 %v2550, %v2563
        %v2565 = vpop.f32.mrf.mxu0
        %v2566 = vadd.f32 %v2552, %v2565
        %2567 = vdwg.mxu0
        %2568 = vmatpush.bf16.msra.mxu0 %v2059
        %2569 = vmatpush.bf16.msra.mxu0 %v2056
        %2570 = vmatpush.bf16.msra.mxu0 %v2053
        %2571 = vmatpush.bf16.msra.mxu0 %v2050
        %2572 = vmatpush.bf16.msra.mxu0 %v2047
        %2573 = vmatpush.bf16.msra.mxu0 %v2044
        %2574 = vmatpush.bf16.msra.mxu0 %v2041
        %2575 = vmatpush.bf16.msra.mxu0 %v2038
        %2576 = vmatmul.bf16.gmra.mxu0 %v1245
        %v2577 = vpop.f32.mrf.mxu0
        %v2578 = vadd.f32 0.0, %v2577
        %v2579 = vpop.f32.mrf.mxu0
        %v2580 = vadd.f32 0.0, %v2579
        %2581 = vdwg.mxu0
        %2582 = vmatpush.bf16.msra.mxu0 %v2083
        %2583 = vmatpush.bf16.msra.mxu0 %v2080
        %2584 = vmatpush.bf16.msra.mxu0 %v2077
        %2585 = vmatpush.bf16.msra.mxu0 %v2074
        %2586 = vmatpush.bf16.msra.mxu0 %v2071
        %2587 = vmatpush.bf16.msra.mxu0 %v2068
        %2588 = vmatpush.bf16.msra.mxu0 %v2065
        %2589 = vmatpush.bf16.msra.mxu0 %v2062
        %2590 = vmatmul.bf16.gmra.mxu0 %v1246
        %v2591 = vpop.f32.mrf.mxu0
        %v2592 = vadd.f32 %v2578, %v2591
        %v2593 = vpop.f32.mrf.mxu0
        %v2594 = vadd.f32 %v2580, %v2593
        %2595 = vdwg.mxu0
        %2596 = vmatpush.bf16.msra.mxu0 %v2107
        %2597 = vmatpush.bf16.msra.mxu0 %v2104
        %2598 = vmatpush.bf16.msra.mxu0 %v2101
        %2599 = vmatpush.bf16.msra.mxu0 %v2098
        %2600 = vmatpush.bf16.msra.mxu0 %v2095
        %2601 = vmatpush.bf16.msra.mxu0 %v2092
        %2602 = vmatpush.bf16.msra.mxu0 %v2089
        %2603 = vmatpush.bf16.msra.mxu0 %v2086
        %2604 = vmatmul.bf16.gmra.mxu0 %v1247
        %v2605 = vpop.f32.mrf.mxu0
        %v2606 = vadd.f32 %v2592, %v2605
        %v2607 = vpop.f32.mrf.mxu0
        %v2608 = vadd.f32 %v2594, %v2607
        %2609 = vdwg.mxu0
        %2610 = vmatpush.bf16.msra.mxu0 %v2131
        %2611 = vmatpush.bf16.msra.mxu0 %v2128
        %2612 = vmatpush.bf16.msra.mxu0 %v2125
        %2613 = vmatpush.bf16.msra.mxu0 %v2122
        %2614 = vmatpush.bf16.msra.mxu0 %v2119
        %2615 = vmatpush.bf16.msra.mxu0 %v2116
        %2616 = vmatpush.bf16.msra.mxu0 %v2113
        %2617 = vmatpush.bf16.msra.mxu0 %v2110
        %2618 = vmatmul.bf16.gmra.mxu0 %v1248
        %v2619 = vpop.f32.mrf.mxu0
        %v2620 = vadd.f32 %v2606, %v2619
        %v2621 = vpop.f32.mrf.mxu0
        %v2622 = vadd.f32 %v2608, %v2621
        %2623 = vdwg.mxu0
        %2624 = vmatpush.bf16.msra.mxu0 %v2155
        %2625 = vmatpush.bf16.msra.mxu0 %v2152
        %2626 = vmatpush.bf16.msra.mxu0 %v2149
        %2627 = vmatpush.bf16.msra.mxu0 %v2146
        %2628 = vmatpush.bf16.msra.mxu0 %v2143
        %2629 = vmatpush.bf16.msra.mxu0 %v2140
        %2630 = vmatpush.bf16.msra.mxu0 %v2137
        %2631 = vmatpush.bf16.msra.mxu0 %v2134
        %2632 = vmatmul.bf16.gmra.mxu0 %v1249
        %v2633 = vpop.f32.mrf.mxu0
        %v2634 = vadd.f32 %v2620, %v2633
        %v2635 = vpop.f32.mrf.mxu0
        %v2636 = vadd.f32 %v2622, %v2635
        %2637 = vdwg.mxu0
        %2638 = vmatpush.bf16.msra.mxu0 %v2179
        %2639 = vmatpush.bf16.msra.mxu0 %v2176
        %2640 = vmatpush.bf16.msra.mxu0 %v2173
        %2641 = vmatpush.bf16.msra.mxu0 %v2170
        %2642 = vmatpush.bf16.msra.mxu0 %v2167
        %2643 = vmatpush.bf16.msra.mxu0 %v2164
        %2644 = vmatpush.bf16.msra.mxu0 %v2161
        %2645 = vmatpush.bf16.msra.mxu0 %v2158
        %2646 = vmatmul.bf16.gmra.mxu0 %v1250
        %v2647 = vpop.f32.mrf.mxu0
        %v2648 = vadd.f32 %v2634, %v2647
        %v2649 = vpop.f32.mrf.mxu0
        %v2650 = vadd.f32 %v2636, %v2649
        %2651 = vdwg.mxu0
        %2652 = vmatpush.bf16.msra.mxu0 %v2203
        %2653 = vmatpush.bf16.msra.mxu0 %v2200
        %2654 = vmatpush.bf16.msra.mxu0 %v2197
        %2655 = vmatpush.bf16.msra.mxu0 %v2194
        %2656 = vmatpush.bf16.msra.mxu0 %v2191
        %2657 = vmatpush.bf16.msra.mxu0 %v2188
        %2658 = vmatpush.bf16.msra.mxu0 %v2185
        %2659 = vmatpush.bf16.msra.mxu0 %v2182
        %2660 = vmatmul.bf16.gmra.mxu0 %v1251
        %v2661 = vpop.f32.mrf.mxu0
        %v2662 = vadd.f32 %v2648, %v2661
        %v2663 = vpop.f32.mrf.mxu0
        %v2664 = vadd.f32 %v2650, %v2663
        %2665 = vdwg.mxu0
        %s2666 = scalar_lea.vmem %s3, 1344
        %v2667 = vld [vmem:[%s2666] sm:$0xff]
        %v2668 = vld [vmem:[%s2666 + $0x8] sm:$0xf]
        %v2669 = vld [vmem:[%s2666 + $0xc] sm:$0xff]
        %v2670 = vld [vmem:[%s2666 + $0x14] sm:$0xf]
        %v2671 = vld [vmem:[%s2666 + $0x18] sm:$0xff]
        %v2672 = vld [vmem:[%s2666 + $0x20] sm:$0xf]
        %v2673 = vld [vmem:[%s2666 + $0x24] sm:$0xff]
        %v2674 = vld [vmem:[%s2666 + $0x2c] sm:$0xf]
        %v2675 = vld [vmem:[%s2666 + $0x30] sm:$0xff]
        %v2676 = vld [vmem:[%s2666 + $0x38] sm:$0xf]
        %v2677 = vld [vmem:[%s2666 + $0x3c] sm:$0xff]
        %v2678 = vld [vmem:[%s2666 + $0x44] sm:$0xf]
        %v2679 = vld [vmem:[%s2666 + $0x48] sm:$0xff]
        %v2680 = vld [vmem:[%s2666 + $0x50] sm:$0xf]
        %v2681 = vld [vmem:[%s2666 + $0x54] sm:$0xff]
        %v2682 = vld [vmem:[%s2666 + $0x5c] sm:$0xf]
        %v2683 = vld [vmem:[%s2666 + $0x60] sm:$0xff]
        %v2684 = vld [vmem:[%s2666 + $0x68] sm:$0xf]
        %v2685 = vld [vmem:[%s2666 + $0x6c] sm:$0xff]
        %v2686 = vld [vmem:[%s2666 + $0x74] sm:$0xf]
        %v2687 = vld [vmem:[%s2666 + $0x78] sm:$0xff]
        %v2688 = vld [vmem:[%s2666 + $0x80] sm:$0xf]
        %v2689 = vld [vmem:[%s2666 + $0x84] sm:$0xff]
        %v2690 = vld [vmem:[%s2666 + $0x8c] sm:$0xf]
        %v2691 = vld [vmem:[%s2666 + $0x90] sm:$0xff]
        %v2692 = vld [vmem:[%s2666 + $0x98] sm:$0xf]
        %v2693 = vld [vmem:[%s2666 + $0x9c] sm:$0xff]
        %v2694 = vld [vmem:[%s2666 + $0xa4] sm:$0xf]
        %v2695 = vld [vmem:[%s2666 + $0xa8] sm:$0xff]
        %v2696 = vld [vmem:[%s2666 + $0xb0] sm:$0xf]
        %v2697 = vld [vmem:[%s2666 + $0xb4] sm:$0xff]
        %v2698 = vld [vmem:[%s2666 + $0xbc] sm:$0xf]
        %v2699 = vld [vmem:[%s2666 + $0xc0] sm:$0xff]
        %v2700 = vld [vmem:[%s2666 + $0xc8] sm:$0xf]
        %v2701 = vld [vmem:[%s2666 + $0xcc] sm:$0xff]
        %v2702 = vld [vmem:[%s2666 + $0xd4] sm:$0xf]
        %v2703 = vld [vmem:[%s2666 + $0xd8] sm:$0xff]
        %v2704 = vld [vmem:[%s2666 + $0xe0] sm:$0xf]
        %v2705 = vld [vmem:[%s2666 + $0xe4] sm:$0xff]
        %v2706 = vld [vmem:[%s2666 + $0xec] sm:$0xf]
        %v2707 = vld [vmem:[%s2666 + $0xf0] sm:$0xff]
        %v2708 = vld [vmem:[%s2666 + $0xf8] sm:$0xf]
        %v2709 = vld [vmem:[%s2666 + $0xfc] sm:$0xff]
        %v2710 = vld [vmem:[%s2666 + $0x104] sm:$0xf]
        %v2711 = vld [vmem:[%s2666 + $0x108] sm:$0xff]
        %v2712 = vld [vmem:[%s2666 + $0x110] sm:$0xf]
        %v2713 = vld [vmem:[%s2666 + $0x114] sm:$0xff]
        %v2714 = vld [vmem:[%s2666 + $0x11c] sm:$0xf]
        %v2715 = vld [vmem:[%s2666 + $0x120] sm:$0xff]
        %v2716 = vld [vmem:[%s2666 + $0x128] sm:$0xf]
        %v2717 = vld [vmem:[%s2666 + $0x12c] sm:$0xff]
        %v2718 = vld [vmem:[%s2666 + $0x134] sm:$0xf]
        %v2719 = vld [vmem:[%s2666 + $0x138] sm:$0xff]
        %v2720 = vld [vmem:[%s2666 + $0x140] sm:$0xf]
        %v2721 = vld [vmem:[%s2666 + $0x144] sm:$0xff]
        %v2722 = vld [vmem:[%s2666 + $0x14c] sm:$0xf]
        %v2723 = vld [vmem:[%s2666 + $0x150] sm:$0xff]
        %v2724 = vld [vmem:[%s2666 + $0x158] sm:$0xf]
        %v2725 = vld [vmem:[%s2666 + $0x15c] sm:$0xff]
        %v2726 = vld [vmem:[%s2666 + $0x164] sm:$0xf]
        %v2727 = vld [vmem:[%s2666 + $0x168] sm:$0xff]
        %v2728 = vld [vmem:[%s2666 + $0x170] sm:$0xf]
        %v2729 = vld [vmem:[%s2666 + $0x174] sm:$0xff]
        %v2730 = vld [vmem:[%s2666 + $0x17c] sm:$0xf]
        %v2731 = vld [vmem:[%s2666 + $0x180] sm:$0xff]
        %v2732 = vld [vmem:[%s2666 + $0x188] sm:$0xf]
        %v2733 = vld [vmem:[%s2666 + $0x18c] sm:$0xff]
        %v2734 = vld [vmem:[%s2666 + $0x194] sm:$0xf]
        %v2735 = vld [vmem:[%s2666 + $0x198] sm:$0xff]
        %v2736 = vld [vmem:[%s2666 + $0x1a0] sm:$0xf]
        %v2737 = vld [vmem:[%s2666 + $0x1a4] sm:$0xff]
        %v2738 = vld [vmem:[%s2666 + $0x1ac] sm:$0xf]
        %v2739 = vld [vmem:[%s2666 + $0x1b0] sm:$0xff]
        %v2740 = vld [vmem:[%s2666 + $0x1b8] sm:$0xf]
        %v2741 = vld [vmem:[%s2666 + $0x1bc] sm:$0xff]
        %v2742 = vld [vmem:[%s2666 + $0x1c4] sm:$0xf]
        %v2743 = vld [vmem:[%s2666 + $0x1c8] sm:$0xff]
        %v2744 = vld [vmem:[%s2666 + $0x1d0] sm:$0xf]
        %v2745 = vld [vmem:[%s2666 + $0x1d4] sm:$0xff]
        %v2746 = vld [vmem:[%s2666 + $0x1dc] sm:$0xf]
        %v2747 = vld [vmem:[%s2666 + $0x1e0] sm:$0xff]
        %v2748 = vld [vmem:[%s2666 + $0x1e8] sm:$0xf]
        %v2749 = vld [vmem:[%s2666 + $0x1ec] sm:$0xff]
        %v2750 = vld [vmem:[%s2666 + $0x1f4] sm:$0xf]
        %v2751 = vld [vmem:[%s2666 + $0x1f8] sm:$0xff]
        %v2752 = vld [vmem:[%s2666 + $0x200] sm:$0xf]
        %v2753 = vld [vmem:[%s2666 + $0x204] sm:$0xff]
        %v2754 = vld [vmem:[%s2666 + $0x20c] sm:$0xf]
        %v2755 = vld [vmem:[%s2666 + $0x210] sm:$0xff]
        %v2756 = vld [vmem:[%s2666 + $0x218] sm:$0xf]
        %v2757 = vld [vmem:[%s2666 + $0x21c] sm:$0xff]
        %v2758 = vld [vmem:[%s2666 + $0x224] sm:$0xf]
        %v2759 = vld [vmem:[%s2666 + $0x228] sm:$0xff]
        %v2760 = vld [vmem:[%s2666 + $0x230] sm:$0xf]
        %v2761 = vld [vmem:[%s2666 + $0x234] sm:$0xff]
        %v2762 = vld [vmem:[%s2666 + $0x23c] sm:$0xf]
        %v2763 = vld [vmem:[%s2666 + $0x240] sm:$0xff]
        %v2764 = vld [vmem:[%s2666 + $0x248] sm:$0xf]
        %v2765 = vld [vmem:[%s2666 + $0x24c] sm:$0xff]
        %v2766 = vld [vmem:[%s2666 + $0x254] sm:$0xf]
        %v2767 = vld [vmem:[%s2666 + $0x258] sm:$0xff]
        %v2768 = vld [vmem:[%s2666 + $0x260] sm:$0xf]
        %v2769 = vld [vmem:[%s2666 + $0x264] sm:$0xff]
        %v2770 = vld [vmem:[%s2666 + $0x26c] sm:$0xf]
        %v2771 = vld [vmem:[%s2666 + $0x270] sm:$0xff]
        %v2772 = vld [vmem:[%s2666 + $0x278] sm:$0xf]
        %v2773 = vld [vmem:[%s2666 + $0x27c] sm:$0xff]
        %v2774 = vld [vmem:[%s2666 + $0x284] sm:$0xf]
        %v2775 = vld [vmem:[%s2666 + $0x288] sm:$0xff]
        %v2776 = vld [vmem:[%s2666 + $0x290] sm:$0xf]
        %v2777 = vld [vmem:[%s2666 + $0x294] sm:$0xff]
        %v2778 = vld [vmem:[%s2666 + $0x29c] sm:$0xf]
        %v2779 = vld [vmem:[%s2666 + $0x2a0] sm:$0xff]
        %v2780 = vld [vmem:[%s2666 + $0x2a8] sm:$0xf]
        %v2781 = vld [vmem:[%s2666 + $0x2ac] sm:$0xff]
        %v2782 = vld [vmem:[%s2666 + $0x2b4] sm:$0xf]
        %v2783 = vld [vmem:[%s2666 + $0x2b8] sm:$0xff]
        %v2784 = vld [vmem:[%s2666 + $0x2c0] sm:$0xf]
        %v2785 = vld [vmem:[%s2666 + $0x2c4] sm:$0xff]
        %v2786 = vld [vmem:[%s2666 + $0x2cc] sm:$0xf]
        %v2787 = vld [vmem:[%s2666 + $0x2d0] sm:$0xff]
        %v2788 = vld [vmem:[%s2666 + $0x2d8] sm:$0xf]
        %v2789 = vld [vmem:[%s2666 + $0x2dc] sm:$0xff]
        %v2790 = vld [vmem:[%s2666 + $0x2e4] sm:$0xf]
        %v2791 = vld [vmem:[%s2666 + $0x2e8] sm:$0xff]
        %v2792 = vld [vmem:[%s2666 + $0x2f0] sm:$0xf]
        %v2793 = vld [vmem:[%s2666 + $0x2f4] sm:$0xff]
        %v2794 = vld [vmem:[%s2666 + $0x2fc] sm:$0xf]
        %v2795 = vld [vmem:[%s2666 + $0x300] sm:$0xff]
        %v2796 = vld [vmem:[%s2666 + $0x308] sm:$0xf]
        %v2797 = vld [vmem:[%s2666 + $0x30c] sm:$0xff]
        %v2798 = vld [vmem:[%s2666 + $0x314] sm:$0xf]
        %v2799 = vld [vmem:[%s2666 + $0x318] sm:$0xff]
        %v2800 = vld [vmem:[%s2666 + $0x320] sm:$0xf]
        %v2801 = vld [vmem:[%s2666 + $0x324] sm:$0xff]
        %v2802 = vld [vmem:[%s2666 + $0x32c] sm:$0xf]
        %v2803 = vld [vmem:[%s2666 + $0x330] sm:$0xff]
        %v2804 = vld [vmem:[%s2666 + $0x338] sm:$0xf]
        %v2805 = vld [vmem:[%s2666 + $0x33c] sm:$0xff]
        %v2806 = vld [vmem:[%s2666 + $0x344] sm:$0xf]
        %v2807 = vld [vmem:[%s2666 + $0x348] sm:$0xff]
        %v2808 = vld [vmem:[%s2666 + $0x350] sm:$0xf]
        %v2809 = vld [vmem:[%s2666 + $0x354] sm:$0xff]
        %v2810 = vld [vmem:[%s2666 + $0x35c] sm:$0xf]
        %v2811 = vld [vmem:[%s2666 + $0x360] sm:$0xff]
        %v2812 = vld [vmem:[%s2666 + $0x368] sm:$0xf]
        %v2813 = vld [vmem:[%s2666 + $0x36c] sm:$0xff]
        %v2814 = vld [vmem:[%s2666 + $0x374] sm:$0xf]
        %v2815 = vld [vmem:[%s2666 + $0x378] sm:$0xff]
        %v2816 = vld [vmem:[%s2666 + $0x380] sm:$0xf]
        %v2817 = vld [vmem:[%s2666 + $0x384] sm:$0xff]
        %v2818 = vld [vmem:[%s2666 + $0x38c] sm:$0xf]
        %v2819 = vld [vmem:[%s2666 + $0x390] sm:$0xff]
        %v2820 = vld [vmem:[%s2666 + $0x398] sm:$0xf]
        %v2821 = vld [vmem:[%s2666 + $0x39c] sm:$0xff]
        %v2822 = vld [vmem:[%s2666 + $0x3a4] sm:$0xf]
        %v2823 = vld [vmem:[%s2666 + $0x3a8] sm:$0xff]
        %v2824 = vld [vmem:[%s2666 + $0x3b0] sm:$0xf]
        %v2825 = vld [vmem:[%s2666 + $0x3b4] sm:$0xff]
        %v2826 = vld [vmem:[%s2666 + $0x3bc] sm:$0xf]
        %v2827 = vld [vmem:[%s2666 + $0x3c0] sm:$0xff]
        %v2828 = vld [vmem:[%s2666 + $0x3c8] sm:$0xf]
        %v2829 = vld [vmem:[%s2666 + $0x3cc] sm:$0xff]
        %v2830 = vld [vmem:[%s2666 + $0x3d4] sm:$0xf]
        %v2831 = vld [vmem:[%s2666 + $0x3d8] sm:$0xff]
        %v2832 = vld [vmem:[%s2666 + $0x3e0] sm:$0xf]
        %v2833 = vld [vmem:[%s2666 + $0x3e4] sm:$0xff]
        %v2834 = vld [vmem:[%s2666 + $0x3ec] sm:$0xf]
        %v2835 = vld [vmem:[%s2666 + $0x3f0] sm:$0xff]
        %v2836 = vld [vmem:[%s2666 + $0x3f8] sm:$0xf]
        %v2837 = vld [vmem:[%s2666 + $0x3fc] sm:$0xff]
        %v2838 = vld [vmem:[%s2666 + $0x404] sm:$0xf]
        %v2839 = vld [vmem:[%s2666 + $0x408] sm:$0xff]
        %v2840 = vld [vmem:[%s2666 + $0x410] sm:$0xf]
        %v2841 = vld [vmem:[%s2666 + $0x414] sm:$0xff]
        %v2842 = vld [vmem:[%s2666 + $0x41c] sm:$0xf]
        %v2843 = vld [vmem:[%s2666 + $0x420] sm:$0xff]
        %v2844 = vld [vmem:[%s2666 + $0x428] sm:$0xf]
        %v2845 = vld [vmem:[%s2666 + $0x42c] sm:$0xff]
        %v2846 = vld [vmem:[%s2666 + $0x434] sm:$0xf]
        %v2847 = vld [vmem:[%s2666 + $0x438] sm:$0xff]
        %v2848 = vld [vmem:[%s2666 + $0x440] sm:$0xf]
        %v2849 = vld [vmem:[%s2666 + $0x444] sm:$0xff]
        %v2850 = vld [vmem:[%s2666 + $0x44c] sm:$0xf]
        %v2851 = vld [vmem:[%s2666 + $0x450] sm:$0xff]
        %v2852 = vld [vmem:[%s2666 + $0x458] sm:$0xf]
        %v2853 = vld [vmem:[%s2666 + $0x45c] sm:$0xff]
        %v2854 = vld [vmem:[%s2666 + $0x464] sm:$0xf]
        %v2855 = vld [vmem:[%s2666 + $0x468] sm:$0xff]
        %v2856 = vld [vmem:[%s2666 + $0x470] sm:$0xf]
        %v2857 = vld [vmem:[%s2666 + $0x474] sm:$0xff]
        %v2858 = vld [vmem:[%s2666 + $0x47c] sm:$0xf]
        %v2859 = vld [vmem:[%s2666 + $0x480] sm:$0xff]
        %v2860 = vld [vmem:[%s2666 + $0x488] sm:$0xf]
        %v2861 = vld [vmem:[%s2666 + $0x48c] sm:$0xff]
        %v2862 = vld [vmem:[%s2666 + $0x494] sm:$0xf]
        %v2863 = vld [vmem:[%s2666 + $0x498] sm:$0xff]
        %v2864 = vld [vmem:[%s2666 + $0x4a0] sm:$0xf]
        %v2865 = vld [vmem:[%s2666 + $0x4a4] sm:$0xff]
        %v2866 = vld [vmem:[%s2666 + $0x4ac] sm:$0xf]
        %v2867 = vld [vmem:[%s2666 + $0x4b0] sm:$0xff]
        %v2868 = vld [vmem:[%s2666 + $0x4b8] sm:$0xf]
        %v2869 = vld [vmem:[%s2666 + $0x4bc] sm:$0xff]
        %v2870 = vld [vmem:[%s2666 + $0x4c4] sm:$0xf]
        %v2871 = vld [vmem:[%s2666 + $0x4c8] sm:$0xff]
        %v2872 = vld [vmem:[%s2666 + $0x4d0] sm:$0xf]
        %v2873 = vld [vmem:[%s2666 + $0x4d4] sm:$0xff]
        %v2874 = vld [vmem:[%s2666 + $0x4dc] sm:$0xf]
        %v2875 = vld [vmem:[%s2666 + $0x4e0] sm:$0xff]
        %v2876 = vld [vmem:[%s2666 + $0x4e8] sm:$0xf]
        %v2877 = vld [vmem:[%s2666 + $0x4ec] sm:$0xff]
        %v2878 = vld [vmem:[%s2666 + $0x4f4] sm:$0xf]
        %v2879 = vld [vmem:[%s2666 + $0x4f8] sm:$0xff]
        %v2880 = vld [vmem:[%s2666 + $0x500] sm:$0xf]
        %v2881 = vld [vmem:[%s2666 + $0x504] sm:$0xff]
        %v2882 = vld [vmem:[%s2666 + $0x50c] sm:$0xf]
        %v2883 = vld [vmem:[%s2666 + $0x510] sm:$0xff]
        %v2884 = vld [vmem:[%s2666 + $0x518] sm:$0xf]
        %v2885 = vld [vmem:[%s2666 + $0x51c] sm:$0xff]
        %v2886 = vld [vmem:[%s2666 + $0x524] sm:$0xf]
        %v2887 = vld [vmem:[%s2666 + $0x528] sm:$0xff]
        %v2888 = vld [vmem:[%s2666 + $0x530] sm:$0xf]
        %v2889 = vld [vmem:[%s2666 + $0x534] sm:$0xff]
        %v2890 = vld [vmem:[%s2666 + $0x53c] sm:$0xf]
        %v3115 = vunpack.c.l.b16 %v2667
        %v3116 = vunpack.c.h.b16 %v2667
        %v3117 = vunpack.c.l.b16 %v2668
        %v3118 = vunpack.c.l.b16 %v2669
        %v3119 = vunpack.c.h.b16 %v2669
        %v3120 = vunpack.c.l.b16 %v2670
        %v3121 = vunpack.c.l.b16 %v2671
        %v3122 = vunpack.c.h.b16 %v2671
        %v3123 = vunpack.c.l.b16 %v2672
        %v3124 = vunpack.c.l.b16 %v2673
        %v3125 = vunpack.c.h.b16 %v2673
        %v3126 = vunpack.c.l.b16 %v2674
        %v3127 = vunpack.c.l.b16 %v2675
        %v3128 = vunpack.c.h.b16 %v2675
        %v3129 = vunpack.c.l.b16 %v2676
        %v3130 = vunpack.c.l.b16 %v2677
        %v3131 = vunpack.c.h.b16 %v2677
        %v3132 = vunpack.c.l.b16 %v2678
        %v3133 = vunpack.c.l.b16 %v2679
        %v3134 = vunpack.c.h.b16 %v2679
        %v3135 = vunpack.c.l.b16 %v2680
        %v3136 = vunpack.c.l.b16 %v2681
        %v3137 = vunpack.c.h.b16 %v2681
        %v3138 = vunpack.c.l.b16 %v2682
        %v3139 = vunpack.c.l.b16 %v2683
        %v3140 = vunpack.c.h.b16 %v2683
        %v3141 = vunpack.c.l.b16 %v2684
        %v3142 = vunpack.c.l.b16 %v2685
        %v3143 = vunpack.c.h.b16 %v2685
        %v3144 = vunpack.c.l.b16 %v2686
        %v3145 = vunpack.c.l.b16 %v2687
        %v3146 = vunpack.c.h.b16 %v2687
        %v3147 = vunpack.c.l.b16 %v2688
        %v3148 = vunpack.c.l.b16 %v2689
        %v3149 = vunpack.c.h.b16 %v2689
        %v3150 = vunpack.c.l.b16 %v2690
        %v3151 = vunpack.c.l.b16 %v2691
        %v3152 = vunpack.c.h.b16 %v2691
        %v3153 = vunpack.c.l.b16 %v2692
        %v3154 = vunpack.c.l.b16 %v2693
        %v3155 = vunpack.c.h.b16 %v2693
        %v3156 = vunpack.c.l.b16 %v2694
        %v3157 = vunpack.c.l.b16 %v2695
        %v3158 = vunpack.c.h.b16 %v2695
        %v3159 = vunpack.c.l.b16 %v2696
        %v3160 = vunpack.c.l.b16 %v2697
        %v3161 = vunpack.c.h.b16 %v2697
        %v3162 = vunpack.c.l.b16 %v2698
        %v3163 = vunpack.c.l.b16 %v2699
        %v3164 = vunpack.c.h.b16 %v2699
        %v3165 = vunpack.c.l.b16 %v2700
        %v3166 = vunpack.c.l.b16 %v2701
        %v3167 = vunpack.c.h.b16 %v2701
        %v3168 = vunpack.c.l.b16 %v2702
        %v3169 = vunpack.c.l.b16 %v2703
        %v3170 = vunpack.c.h.b16 %v2703
        %v3171 = vunpack.c.l.b16 %v2704
        %v3172 = vunpack.c.l.b16 %v2705
        %v3173 = vunpack.c.h.b16 %v2705
        %v3174 = vunpack.c.l.b16 %v2706
        %v3175 = vunpack.c.l.b16 %v2707
        %v3176 = vunpack.c.h.b16 %v2707
        %v3177 = vunpack.c.l.b16 %v2708
        %v3178 = vunpack.c.l.b16 %v2709
        %v3179 = vunpack.c.h.b16 %v2709
        %v3180 = vunpack.c.l.b16 %v2710
        %v3181 = vunpack.c.l.b16 %v2711
        %v3182 = vunpack.c.h.b16 %v2711
        %v3183 = vunpack.c.l.b16 %v2712
        %v3184 = vunpack.c.l.b16 %v2713
        %v3185 = vunpack.c.h.b16 %v2713
        %v3186 = vunpack.c.l.b16 %v2714
        %v3187 = vunpack.c.l.b16 %v2715
        %v3188 = vunpack.c.h.b16 %v2715
        %v3189 = vunpack.c.l.b16 %v2716
        %v3190 = vunpack.c.l.b16 %v2717
        %v3191 = vunpack.c.h.b16 %v2717
        %v3192 = vunpack.c.l.b16 %v2718
        %v3193 = vunpack.c.l.b16 %v2719
        %v3194 = vunpack.c.h.b16 %v2719
        %v3195 = vunpack.c.l.b16 %v2720
        %v3196 = vunpack.c.l.b16 %v2721
        %v3197 = vunpack.c.h.b16 %v2721
        %v3198 = vunpack.c.l.b16 %v2722
        %v3199 = vunpack.c.l.b16 %v2723
        %v3200 = vunpack.c.h.b16 %v2723
        %v3201 = vunpack.c.l.b16 %v2724
        %v3202 = vunpack.c.l.b16 %v2725
        %v3203 = vunpack.c.h.b16 %v2725
        %v3204 = vunpack.c.l.b16 %v2726
        %v3205 = vunpack.c.l.b16 %v2727
        %v3206 = vunpack.c.h.b16 %v2727
        %v3207 = vunpack.c.l.b16 %v2728
        %v3208 = vunpack.c.l.b16 %v2729
        %v3209 = vunpack.c.h.b16 %v2729
        %v3210 = vunpack.c.l.b16 %v2730
        %v3211 = vunpack.c.l.b16 %v2731
        %v3212 = vunpack.c.h.b16 %v2731
        %v3213 = vunpack.c.l.b16 %v2732
        %v3214 = vunpack.c.l.b16 %v2733
        %v3215 = vunpack.c.h.b16 %v2733
        %v3216 = vunpack.c.l.b16 %v2734
        %v3217 = vunpack.c.l.b16 %v2735
        %v3218 = vunpack.c.h.b16 %v2735
        %v3219 = vunpack.c.l.b16 %v2736
        %v3220 = vunpack.c.l.b16 %v2737
        %v3221 = vunpack.c.h.b16 %v2737
        %v3222 = vunpack.c.l.b16 %v2738
        %v3223 = vunpack.c.l.b16 %v2739
        %v3224 = vunpack.c.h.b16 %v2739
        %v3225 = vunpack.c.l.b16 %v2740
        %v3226 = vunpack.c.l.b16 %v2741
        %v3227 = vunpack.c.h.b16 %v2741
        %v3228 = vunpack.c.l.b16 %v2742
        %v3229 = vunpack.c.l.b16 %v2743
        %v3230 = vunpack.c.h.b16 %v2743
        %v3231 = vunpack.c.l.b16 %v2744
        %v3232 = vunpack.c.l.b16 %v2745
        %v3233 = vunpack.c.h.b16 %v2745
        %v3234 = vunpack.c.l.b16 %v2746
        %v3235 = vunpack.c.l.b16 %v2747
        %v3236 = vunpack.c.h.b16 %v2747
        %v3237 = vunpack.c.l.b16 %v2748
        %v3238 = vunpack.c.l.b16 %v2749
        %v3239 = vunpack.c.h.b16 %v2749
        %v3240 = vunpack.c.l.b16 %v2750
        %v3241 = vunpack.c.l.b16 %v2751
        %v3242 = vunpack.c.h.b16 %v2751
        %v3243 = vunpack.c.l.b16 %v2752
        %v3244 = vunpack.c.l.b16 %v2753
        %v3245 = vunpack.c.h.b16 %v2753
        %v3246 = vunpack.c.l.b16 %v2754
        %v3247 = vunpack.c.l.b16 %v2755
        %v3248 = vunpack.c.h.b16 %v2755
        %v3249 = vunpack.c.l.b16 %v2756
        %v3250 = vunpack.c.l.b16 %v2757
        %v3251 = vunpack.c.h.b16 %v2757
        %v3252 = vunpack.c.l.b16 %v2758
        %v3253 = vunpack.c.l.b16 %v2759
        %v3254 = vunpack.c.h.b16 %v2759
        %v3255 = vunpack.c.l.b16 %v2760
        %v3256 = vunpack.c.l.b16 %v2761
        %v3257 = vunpack.c.h.b16 %v2761
        %v3258 = vunpack.c.l.b16 %v2762
        %v3259 = vunpack.c.l.b16 %v2763
        %v3260 = vunpack.c.h.b16 %v2763
        %v3261 = vunpack.c.l.b16 %v2764
        %v3262 = vunpack.c.l.b16 %v2765
        %v3263 = vunpack.c.h.b16 %v2765
        %v3264 = vunpack.c.l.b16 %v2766
        %v3265 = vunpack.c.l.b16 %v2767
        %v3266 = vunpack.c.h.b16 %v2767
        %v3267 = vunpack.c.l.b16 %v2768
        %v3268 = vunpack.c.l.b16 %v2769
        %v3269 = vunpack.c.h.b16 %v2769
        %v3270 = vunpack.c.l.b16 %v2770
        %v3271 = vunpack.c.l.b16 %v2771
        %v3272 = vunpack.c.h.b16 %v2771
        %v3273 = vunpack.c.l.b16 %v2772
        %v3274 = vunpack.c.l.b16 %v2773
        %v3275 = vunpack.c.h.b16 %v2773
        %v3276 = vunpack.c.l.b16 %v2774
        %v3277 = vunpack.c.l.b16 %v2775
        %v3278 = vunpack.c.h.b16 %v2775
        %v3279 = vunpack.c.l.b16 %v2776
        %v3280 = vunpack.c.l.b16 %v2777
        %v3281 = vunpack.c.h.b16 %v2777
        %v3282 = vunpack.c.l.b16 %v2778
        %v3283 = vunpack.c.l.b16 %v2779
        %v3284 = vunpack.c.h.b16 %v2779
        %v3285 = vunpack.c.l.b16 %v2780
        %v3286 = vunpack.c.l.b16 %v2781
        %v3287 = vunpack.c.h.b16 %v2781
        %v3288 = vunpack.c.l.b16 %v2782
        %v3289 = vunpack.c.l.b16 %v2783
        %v3290 = vunpack.c.h.b16 %v2783
        %v3291 = vunpack.c.l.b16 %v2784
        %v3292 = vunpack.c.l.b16 %v2785
        %v3293 = vunpack.c.h.b16 %v2785
        %v3294 = vunpack.c.l.b16 %v2786
        %v3295 = vunpack.c.l.b16 %v2787
        %v3296 = vunpack.c.h.b16 %v2787
        %v3297 = vunpack.c.l.b16 %v2788
        %v3298 = vunpack.c.l.b16 %v2789
        %v3299 = vunpack.c.h.b16 %v2789
        %v3300 = vunpack.c.l.b16 %v2790
        %v3301 = vunpack.c.l.b16 %v2791
        %v3302 = vunpack.c.h.b16 %v2791
        %v3303 = vunpack.c.l.b16 %v2792
        %v3304 = vunpack.c.l.b16 %v2793
        %v3305 = vunpack.c.h.b16 %v2793
        %v3306 = vunpack.c.l.b16 %v2794
        %v3307 = vunpack.c.l.b16 %v2795
        %v3308 = vunpack.c.h.b16 %v2795
        %v3309 = vunpack.c.l.b16 %v2796
        %v3310 = vunpack.c.l.b16 %v2797
        %v3311 = vunpack.c.h.b16 %v2797
        %v3312 = vunpack.c.l.b16 %v2798
        %v3313 = vunpack.c.l.b16 %v2799
        %v3314 = vunpack.c.h.b16 %v2799
        %v3315 = vunpack.c.l.b16 %v2800
        %v3316 = vunpack.c.l.b16 %v2801
        %v3317 = vunpack.c.h.b16 %v2801
        %v3318 = vunpack.c.l.b16 %v2802
        %v3319 = vunpack.c.l.b16 %v2803
        %v3320 = vunpack.c.h.b16 %v2803
        %v3321 = vunpack.c.l.b16 %v2804
        %v3322 = vunpack.c.l.b16 %v2805
        %v3323 = vunpack.c.h.b16 %v2805
        %v3324 = vunpack.c.l.b16 %v2806
        %v3325 = vunpack.c.l.b16 %v2807
        %v3326 = vunpack.c.h.b16 %v2807
        %v3327 = vunpack.c.l.b16 %v2808
        %v3328 = vunpack.c.l.b16 %v2809
        %v3329 = vunpack.c.h.b16 %v2809
        %v3330 = vunpack.c.l.b16 %v2810
        %v3331 = vunpack.c.l.b16 %v2811
        %v3332 = vunpack.c.h.b16 %v2811
        %v3333 = vunpack.c.l.b16 %v2812
        %v3334 = vunpack.c.l.b16 %v2813
        %v3335 = vunpack.c.h.b16 %v2813
        %v3336 = vunpack.c.l.b16 %v2814
        %v3337 = vunpack.c.l.b16 %v2815
        %v3338 = vunpack.c.h.b16 %v2815
        %v3339 = vunpack.c.l.b16 %v2816
        %v3340 = vunpack.c.l.b16 %v2817
        %v3341 = vunpack.c.h.b16 %v2817
        %v3342 = vunpack.c.l.b16 %v2818
        %v3343 = vunpack.c.l.b16 %v2819
        %v3344 = vunpack.c.h.b16 %v2819
        %v3345 = vunpack.c.l.b16 %v2820
        %v3346 = vunpack.c.l.b16 %v2821
        %v3347 = vunpack.c.h.b16 %v2821
        %v3348 = vunpack.c.l.b16 %v2822
        %v3349 = vunpack.c.l.b16 %v2823
        %v3350 = vunpack.c.h.b16 %v2823
        %v3351 = vunpack.c.l.b16 %v2824
        %v3352 = vunpack.c.l.b16 %v2825
        %v3353 = vunpack.c.h.b16 %v2825
        %v3354 = vunpack.c.l.b16 %v2826
        %v3355 = vunpack.c.l.b16 %v2827
        %v3356 = vunpack.c.h.b16 %v2827
        %v3357 = vunpack.c.l.b16 %v2828
        %v3358 = vunpack.c.l.b16 %v2829
        %v3359 = vunpack.c.h.b16 %v2829
        %v3360 = vunpack.c.l.b16 %v2830
        %v3361 = vunpack.c.l.b16 %v2831
        %v3362 = vunpack.c.h.b16 %v2831
        %v3363 = vunpack.c.l.b16 %v2832
        %v3364 = vunpack.c.l.b16 %v2833
        %v3365 = vunpack.c.h.b16 %v2833
        %v3366 = vunpack.c.l.b16 %v2834
        %v3367 = vunpack.c.l.b16 %v2835
        %v3368 = vunpack.c.h.b16 %v2835
        %v3369 = vunpack.c.l.b16 %v2836
        %v3370 = vunpack.c.l.b16 %v2837
        %v3371 = vunpack.c.h.b16 %v2837
        %v3372 = vunpack.c.l.b16 %v2838
        %v3373 = vunpack.c.l.b16 %v2839
        %v3374 = vunpack.c.h.b16 %v2839
        %v3375 = vunpack.c.l.b16 %v2840
        %v3376 = vunpack.c.l.b16 %v2841
        %v3377 = vunpack.c.h.b16 %v2841
        %v3378 = vunpack.c.l.b16 %v2842
        %v3379 = vunpack.c.l.b16 %v2843
        %v3380 = vunpack.c.h.b16 %v2843
        %v3381 = vunpack.c.l.b16 %v2844
        %v3382 = vunpack.c.l.b16 %v2845
        %v3383 = vunpack.c.h.b16 %v2845
        %v3384 = vunpack.c.l.b16 %v2846
        %v3385 = vunpack.c.l.b16 %v2847
        %v3386 = vunpack.c.h.b16 %v2847
        %v3387 = vunpack.c.l.b16 %v2848
        %v3388 = vunpack.c.l.b16 %v2849
        %v3389 = vunpack.c.h.b16 %v2849
        %v3390 = vunpack.c.l.b16 %v2850
        %v3391 = vunpack.c.l.b16 %v2851
        %v3392 = vunpack.c.h.b16 %v2851
        %v3393 = vunpack.c.l.b16 %v2852
        %v3394 = vunpack.c.l.b16 %v2853
        %v3395 = vunpack.c.h.b16 %v2853
        %v3396 = vunpack.c.l.b16 %v2854
        %v3397 = vunpack.c.l.b16 %v2855
        %v3398 = vunpack.c.h.b16 %v2855
        %v3399 = vunpack.c.l.b16 %v2856
        %v3400 = vunpack.c.l.b16 %v2857
        %v3401 = vunpack.c.h.b16 %v2857
        %v3402 = vunpack.c.l.b16 %v2858
        %v3403 = vunpack.c.l.b16 %v2859
        %v3404 = vunpack.c.h.b16 %v2859
        %v3405 = vunpack.c.l.b16 %v2860
        %v3406 = vunpack.c.l.b16 %v2861
        %v3407 = vunpack.c.h.b16 %v2861
        %v3408 = vunpack.c.l.b16 %v2862
        %v3409 = vunpack.c.l.b16 %v2863
        %v3410 = vunpack.c.h.b16 %v2863
        %v3411 = vunpack.c.l.b16 %v2864
        %v3412 = vunpack.c.l.b16 %v2865
        %v3413 = vunpack.c.h.b16 %v2865
        %v3414 = vunpack.c.l.b16 %v2866
        %v3415 = vunpack.c.l.b16 %v2867
        %v3416 = vunpack.c.h.b16 %v2867
        %v3417 = vunpack.c.l.b16 %v2868
        %v3418 = vunpack.c.l.b16 %v2869
        %v3419 = vunpack.c.h.b16 %v2869
        %v3420 = vunpack.c.l.b16 %v2870
        %v3421 = vunpack.c.l.b16 %v2871
        %v3422 = vunpack.c.h.b16 %v2871
        %v3423 = vunpack.c.l.b16 %v2872
        %v3424 = vunpack.c.l.b16 %v2873
        %v3425 = vunpack.c.h.b16 %v2873
        %v3426 = vunpack.c.l.b16 %v2874
        %v3427 = vunpack.c.l.b16 %v2875
        %v3428 = vunpack.c.h.b16 %v2875
        %v3429 = vunpack.c.l.b16 %v2876
        %v3430 = vunpack.c.l.b16 %v2877
        %v3431 = vunpack.c.h.b16 %v2877
        %v3432 = vunpack.c.l.b16 %v2878
        %v3433 = vunpack.c.l.b16 %v2879
        %v3434 = vunpack.c.h.b16 %v2879
        %v3435 = vunpack.c.l.b16 %v2880
        %v3436 = vunpack.c.l.b16 %v2881
        %v3437 = vunpack.c.h.b16 %v2881
        %v3438 = vunpack.c.l.b16 %v2882
        %v3439 = vunpack.c.l.b16 %v2883
        %v3440 = vunpack.c.h.b16 %v2883
        %v3441 = vunpack.c.l.b16 %v2884
        %v3442 = vunpack.c.l.b16 %v2885
        %v3443 = vunpack.c.h.b16 %v2885
        %v3444 = vunpack.c.l.b16 %v2886
        %v3445 = vunpack.c.l.b16 %v2887
        %v3446 = vunpack.c.h.b16 %v2887
        %v3447 = vunpack.c.l.b16 %v2888
        %v3448 = vunpack.c.l.b16 %v2889
        %v3449 = vunpack.c.h.b16 %v2889
        %v3450 = vunpack.c.l.b16 %v2890
        %v3451 = vpack.c.b16 %v3118, %v3115
        %v3452 = vpack.c.b16 %v3119, %v3116
        %v3453 = vpack.c.b16 %v3120, %v3117
        %v3454 = vpack.c.b16 %v3124, %v3121
        %v3455 = vpack.c.b16 %v3125, %v3122
        %v3456 = vpack.c.b16 %v3126, %v3123
        %v3457 = vpack.c.b16 %v3130, %v3127
        %v3458 = vpack.c.b16 %v3131, %v3128
        %v3459 = vpack.c.b16 %v3132, %v3129
        %v3460 = vpack.c.b16 %v3136, %v3133
        %v3461 = vpack.c.b16 %v3137, %v3134
        %v3462 = vpack.c.b16 %v3138, %v3135
        %v3463 = vpack.c.b16 %v3142, %v3139
        %v3464 = vpack.c.b16 %v3143, %v3140
        %v3465 = vpack.c.b16 %v3144, %v3141
        %v3466 = vpack.c.b16 %v3148, %v3145
        %v3467 = vpack.c.b16 %v3149, %v3146
        %v3468 = vpack.c.b16 %v3150, %v3147
        %v3469 = vpack.c.b16 %v3154, %v3151
        %v3470 = vpack.c.b16 %v3155, %v3152
        %v3471 = vpack.c.b16 %v3156, %v3153
        %v3472 = vpack.c.b16 %v3160, %v3157
        %v3473 = vpack.c.b16 %v3161, %v3158
        %v3474 = vpack.c.b16 %v3162, %v3159
        %v3475 = vpack.c.b16 %v3166, %v3163
        %v3476 = vpack.c.b16 %v3167, %v3164
        %v3477 = vpack.c.b16 %v3168, %v3165
        %v3478 = vpack.c.b16 %v3172, %v3169
        %v3479 = vpack.c.b16 %v3173, %v3170
        %v3480 = vpack.c.b16 %v3174, %v3171
        %v3481 = vpack.c.b16 %v3178, %v3175
        %v3482 = vpack.c.b16 %v3179, %v3176
        %v3483 = vpack.c.b16 %v3180, %v3177
        %v3484 = vpack.c.b16 %v3184, %v3181
        %v3485 = vpack.c.b16 %v3185, %v3182
        %v3486 = vpack.c.b16 %v3186, %v3183
        %v3487 = vpack.c.b16 %v3190, %v3187
        %v3488 = vpack.c.b16 %v3191, %v3188
        %v3489 = vpack.c.b16 %v3192, %v3189
        %v3490 = vpack.c.b16 %v3196, %v3193
        %v3491 = vpack.c.b16 %v3197, %v3194
        %v3492 = vpack.c.b16 %v3198, %v3195
        %v3493 = vpack.c.b16 %v3202, %v3199
        %v3494 = vpack.c.b16 %v3203, %v3200
        %v3495 = vpack.c.b16 %v3204, %v3201
        %v3496 = vpack.c.b16 %v3208, %v3205
        %v3497 = vpack.c.b16 %v3209, %v3206
        %v3498 = vpack.c.b16 %v3210, %v3207
        %v3499 = vpack.c.b16 %v3214, %v3211
        %v3500 = vpack.c.b16 %v3215, %v3212
        %v3501 = vpack.c.b16 %v3216, %v3213
        %v3502 = vpack.c.b16 %v3220, %v3217
        %v3503 = vpack.c.b16 %v3221, %v3218
        %v3504 = vpack.c.b16 %v3222, %v3219
        %v3505 = vpack.c.b16 %v3226, %v3223
        %v3506 = vpack.c.b16 %v3227, %v3224
        %v3507 = vpack.c.b16 %v3228, %v3225
        %v3508 = vpack.c.b16 %v3232, %v3229
        %v3509 = vpack.c.b16 %v3233, %v3230
        %v3510 = vpack.c.b16 %v3234, %v3231
        %v3511 = vpack.c.b16 %v3238, %v3235
        %v3512 = vpack.c.b16 %v3239, %v3236
        %v3513 = vpack.c.b16 %v3240, %v3237
        %v3514 = vpack.c.b16 %v3244, %v3241
        %v3515 = vpack.c.b16 %v3245, %v3242
        %v3516 = vpack.c.b16 %v3246, %v3243
        %v3517 = vpack.c.b16 %v3250, %v3247
        %v3518 = vpack.c.b16 %v3251, %v3248
        %v3519 = vpack.c.b16 %v3252, %v3249
        %v3520 = vpack.c.b16 %v3256, %v3253
        %v3521 = vpack.c.b16 %v3257, %v3254
        %v3522 = vpack.c.b16 %v3258, %v3255
        %v3523 = vpack.c.b16 %v3262, %v3259
        %v3524 = vpack.c.b16 %v3263, %v3260
        %v3525 = vpack.c.b16 %v3264, %v3261
        %v3526 = vpack.c.b16 %v3268, %v3265
        %v3527 = vpack.c.b16 %v3269, %v3266
        %v3528 = vpack.c.b16 %v3270, %v3267
        %v3529 = vpack.c.b16 %v3274, %v3271
        %v3530 = vpack.c.b16 %v3275, %v3272
        %v3531 = vpack.c.b16 %v3276, %v3273
        %v3532 = vpack.c.b16 %v3280, %v3277
        %v3533 = vpack.c.b16 %v3281, %v3278
        %v3534 = vpack.c.b16 %v3282, %v3279
        %v3535 = vpack.c.b16 %v3286, %v3283
        %v3536 = vpack.c.b16 %v3287, %v3284
        %v3537 = vpack.c.b16 %v3288, %v3285
        %v3538 = vpack.c.b16 %v3292, %v3289
        %v3539 = vpack.c.b16 %v3293, %v3290
        %v3540 = vpack.c.b16 %v3294, %v3291
        %v3541 = vpack.c.b16 %v3298, %v3295
        %v3542 = vpack.c.b16 %v3299, %v3296
        %v3543 = vpack.c.b16 %v3300, %v3297
        %v3544 = vpack.c.b16 %v3304, %v3301
        %v3545 = vpack.c.b16 %v3305, %v3302
        %v3546 = vpack.c.b16 %v3306, %v3303
        %v3547 = vpack.c.b16 %v3310, %v3307
        %v3548 = vpack.c.b16 %v3311, %v3308
        %v3549 = vpack.c.b16 %v3312, %v3309
        %v3550 = vpack.c.b16 %v3316, %v3313
        %v3551 = vpack.c.b16 %v3317, %v3314
        %v3552 = vpack.c.b16 %v3318, %v3315
        %v3553 = vpack.c.b16 %v3322, %v3319
        %v3554 = vpack.c.b16 %v3323, %v3320
        %v3555 = vpack.c.b16 %v3324, %v3321
        %v3556 = vpack.c.b16 %v3328, %v3325
        %v3557 = vpack.c.b16 %v3329, %v3326
        %v3558 = vpack.c.b16 %v3330, %v3327
        %v3559 = vpack.c.b16 %v3334, %v3331
        %v3560 = vpack.c.b16 %v3335, %v3332
        %v3561 = vpack.c.b16 %v3336, %v3333
        %v3562 = vpack.c.b16 %v3340, %v3337
        %v3563 = vpack.c.b16 %v3341, %v3338
        %v3564 = vpack.c.b16 %v3342, %v3339
        %v3565 = vpack.c.b16 %v3346, %v3343
        %v3566 = vpack.c.b16 %v3347, %v3344
        %v3567 = vpack.c.b16 %v3348, %v3345
        %v3568 = vpack.c.b16 %v3352, %v3349
        %v3569 = vpack.c.b16 %v3353, %v3350
        %v3570 = vpack.c.b16 %v3354, %v3351
        %v3571 = vpack.c.b16 %v3358, %v3355
        %v3572 = vpack.c.b16 %v3359, %v3356
        %v3573 = vpack.c.b16 %v3360, %v3357
        %v3574 = vpack.c.b16 %v3364, %v3361
        %v3575 = vpack.c.b16 %v3365, %v3362
        %v3576 = vpack.c.b16 %v3366, %v3363
        %v3577 = vpack.c.b16 %v3370, %v3367
        %v3578 = vpack.c.b16 %v3371, %v3368
        %v3579 = vpack.c.b16 %v3372, %v3369
        %v3580 = vpack.c.b16 %v3376, %v3373
        %v3581 = vpack.c.b16 %v3377, %v3374
        %v3582 = vpack.c.b16 %v3378, %v3375
        %v3583 = vpack.c.b16 %v3382, %v3379
        %v3584 = vpack.c.b16 %v3383, %v3380
        %v3585 = vpack.c.b16 %v3384, %v3381
        %v3586 = vpack.c.b16 %v3388, %v3385
        %v3587 = vpack.c.b16 %v3389, %v3386
        %v3588 = vpack.c.b16 %v3390, %v3387
        %v3589 = vpack.c.b16 %v3394, %v3391
        %v3590 = vpack.c.b16 %v3395, %v3392
        %v3591 = vpack.c.b16 %v3396, %v3393
        %v3592 = vpack.c.b16 %v3400, %v3397
        %v3593 = vpack.c.b16 %v3401, %v3398
        %v3594 = vpack.c.b16 %v3402, %v3399
        %v3595 = vpack.c.b16 %v3406, %v3403
        %v3596 = vpack.c.b16 %v3407, %v3404
        %v3597 = vpack.c.b16 %v3408, %v3405
        %v3598 = vpack.c.b16 %v3412, %v3409
        %v3599 = vpack.c.b16 %v3413, %v3410
        %v3600 = vpack.c.b16 %v3414, %v3411
        %v3601 = vpack.c.b16 %v3418, %v3415
        %v3602 = vpack.c.b16 %v3419, %v3416
        %v3603 = vpack.c.b16 %v3420, %v3417
        %v3604 = vpack.c.b16 %v3424, %v3421
        %v3605 = vpack.c.b16 %v3425, %v3422
        %v3606 = vpack.c.b16 %v3426, %v3423
        %v3607 = vpack.c.b16 %v3430, %v3427
        %v3608 = vpack.c.b16 %v3431, %v3428
        %v3609 = vpack.c.b16 %v3432, %v3429
        %v3610 = vpack.c.b16 %v3436, %v3433
        %v3611 = vpack.c.b16 %v3437, %v3434
        %v3612 = vpack.c.b16 %v3438, %v3435
        %v3613 = vpack.c.b16 %v3442, %v3439
        %v3614 = vpack.c.b16 %v3443, %v3440
        %v3615 = vpack.c.b16 %v3444, %v3441
        %v3616 = vpack.c.b16 %v3448, %v3445
        %v3617 = vpack.c.b16 %v3449, %v3446
        %v3618 = vpack.c.b16 %v3450, %v3447
        %3787 = vmatpush.bf16.msra.mxu0 %v3472
        %3788 = vmatpush.bf16.msra.mxu0 %v3469
        %3789 = vmatpush.bf16.msra.mxu0 %v3466
        %3790 = vmatpush.bf16.msra.mxu0 %v3463
        %3791 = vmatpush.bf16.msra.mxu0 %v3460
        %3792 = vmatpush.bf16.msra.mxu0 %v3457
        %3793 = vmatpush.bf16.msra.mxu0 %v3454
        %3794 = vmatpush.bf16.msra.mxu0 %v3451
        %3795 = vmatmul.bf16.gmra.mxu0 %v1245
        %v3796 = vpop.f32.mrf.mxu0
        %v3797 = vadd.f32 0.0, %v3796
        %v3798 = vpop.f32.mrf.mxu0
        %v3799 = vadd.f32 0.0, %v3798
        %3800 = vdwg.mxu0
        %3801 = vmatpush.bf16.msra.mxu0 %v3496
        %3802 = vmatpush.bf16.msra.mxu0 %v3493
        %3803 = vmatpush.bf16.msra.mxu0 %v3490
        %3804 = vmatpush.bf16.msra.mxu0 %v3487
        %3805 = vmatpush.bf16.msra.mxu0 %v3484
        %3806 = vmatpush.bf16.msra.mxu0 %v3481
        %3807 = vmatpush.bf16.msra.mxu0 %v3478
        %3808 = vmatpush.bf16.msra.mxu0 %v3475
        %3809 = vmatmul.bf16.gmra.mxu0 %v1246
        %v3810 = vpop.f32.mrf.mxu0
        %v3811 = vadd.f32 %v3797, %v3810
        %v3812 = vpop.f32.mrf.mxu0
        %v3813 = vadd.f32 %v3799, %v3812
        %3814 = vdwg.mxu0
        %3815 = vmatpush.bf16.msra.mxu0 %v3520
        %3816 = vmatpush.bf16.msra.mxu0 %v3517
        %3817 = vmatpush.bf16.msra.mxu0 %v3514
        %3818 = vmatpush.bf16.msra.mxu0 %v3511
        %3819 = vmatpush.bf16.msra.mxu0 %v3508
        %3820 = vmatpush.bf16.msra.mxu0 %v3505
        %3821 = vmatpush.bf16.msra.mxu0 %v3502
        %3822 = vmatpush.bf16.msra.mxu0 %v3499
        %3823 = vmatmul.bf16.gmra.mxu0 %v1247
        %v3824 = vpop.f32.mrf.mxu0
        %v3825 = vadd.f32 %v3811, %v3824
        %v3826 = vpop.f32.mrf.mxu0
        %v3827 = vadd.f32 %v3813, %v3826
        %3828 = vdwg.mxu0
        %3829 = vmatpush.bf16.msra.mxu0 %v3544
        %3830 = vmatpush.bf16.msra.mxu0 %v3541
        %3831 = vmatpush.bf16.msra.mxu0 %v3538
        %3832 = vmatpush.bf16.msra.mxu0 %v3535
        %3833 = vmatpush.bf16.msra.mxu0 %v3532
        %3834 = vmatpush.bf16.msra.mxu0 %v3529
        %3835 = vmatpush.bf16.msra.mxu0 %v3526
        %3836 = vmatpush.bf16.msra.mxu0 %v3523
        %3837 = vmatmul.bf16.gmra.mxu0 %v1248
        %v3838 = vpop.f32.mrf.mxu0
        %v3839 = vadd.f32 %v3825, %v3838
        %v3840 = vpop.f32.mrf.mxu0
        %v3841 = vadd.f32 %v3827, %v3840
        %3842 = vdwg.mxu0
        %3843 = vmatpush.bf16.msra.mxu0 %v3568
        %3844 = vmatpush.bf16.msra.mxu0 %v3565
        %3845 = vmatpush.bf16.msra.mxu0 %v3562
        %3846 = vmatpush.bf16.msra.mxu0 %v3559
        %3847 = vmatpush.bf16.msra.mxu0 %v3556
        %3848 = vmatpush.bf16.msra.mxu0 %v3553
        %3849 = vmatpush.bf16.msra.mxu0 %v3550
        %3850 = vmatpush.bf16.msra.mxu0 %v3547
        %3851 = vmatmul.bf16.gmra.mxu0 %v1249
        %v3852 = vpop.f32.mrf.mxu0
        %v3853 = vadd.f32 %v3839, %v3852
        %v3854 = vpop.f32.mrf.mxu0
        %v3855 = vadd.f32 %v3841, %v3854
        %3856 = vdwg.mxu0
        %3857 = vmatpush.bf16.msra.mxu0 %v3592
        %3858 = vmatpush.bf16.msra.mxu0 %v3589
        %3859 = vmatpush.bf16.msra.mxu0 %v3586
        %3860 = vmatpush.bf16.msra.mxu0 %v3583
        %3861 = vmatpush.bf16.msra.mxu0 %v3580
        %3862 = vmatpush.bf16.msra.mxu0 %v3577
        %3863 = vmatpush.bf16.msra.mxu0 %v3574
        %3864 = vmatpush.bf16.msra.mxu0 %v3571
        %3865 = vmatmul.bf16.gmra.mxu0 %v1250
        %v3866 = vpop.f32.mrf.mxu0
        %v3867 = vadd.f32 %v3853, %v3866
        %v3868 = vpop.f32.mrf.mxu0
        %v3869 = vadd.f32 %v3855, %v3868
        %3870 = vdwg.mxu0
        %3871 = vmatpush.bf16.msra.mxu0 %v3616
        %3872 = vmatpush.bf16.msra.mxu0 %v3613
        %3873 = vmatpush.bf16.msra.mxu0 %v3610
        %3874 = vmatpush.bf16.msra.mxu0 %v3607
        %3875 = vmatpush.bf16.msra.mxu0 %v3604
        %3876 = vmatpush.bf16.msra.mxu0 %v3601
        %3877 = vmatpush.bf16.msra.mxu0 %v3598
        %3878 = vmatpush.bf16.msra.mxu0 %v3595
        %3879 = vmatmul.bf16.gmra.mxu0 %v1251
        %v3880 = vpop.f32.mrf.mxu0
        %v3881 = vadd.f32 %v3867, %v3880
        %v3882 = vpop.f32.mrf.mxu0
        %v3883 = vadd.f32 %v3869, %v3882
        %3884 = vdwg.mxu0
        %3885 = vmatpush.bf16.msra.mxu0 %v3473
        %3886 = vmatpush.bf16.msra.mxu0 %v3470
        %3887 = vmatpush.bf16.msra.mxu0 %v3467
        %3888 = vmatpush.bf16.msra.mxu0 %v3464
        %3889 = vmatpush.bf16.msra.mxu0 %v3461
        %3890 = vmatpush.bf16.msra.mxu0 %v3458
        %3891 = vmatpush.bf16.msra.mxu0 %v3455
        %3892 = vmatpush.bf16.msra.mxu0 %v3452
        %3893 = vmatmul.bf16.gmra.mxu0 %v1245
        %v3894 = vpop.f32.mrf.mxu0
        %v3895 = vadd.f32 0.0, %v3894
        %v3896 = vpop.f32.mrf.mxu0
        %v3897 = vadd.f32 0.0, %v3896
        %3898 = vdwg.mxu0
        %3899 = vmatpush.bf16.msra.mxu0 %v3497
        %3900 = vmatpush.bf16.msra.mxu0 %v3494
        %3901 = vmatpush.bf16.msra.mxu0 %v3491
        %3902 = vmatpush.bf16.msra.mxu0 %v3488
        %3903 = vmatpush.bf16.msra.mxu0 %v3485
        %3904 = vmatpush.bf16.msra.mxu0 %v3482
        %3905 = vmatpush.bf16.msra.mxu0 %v3479
        %3906 = vmatpush.bf16.msra.mxu0 %v3476
        %3907 = vmatmul.bf16.gmra.mxu0 %v1246
        %v3908 = vpop.f32.mrf.mxu0
        %v3909 = vadd.f32 %v3895, %v3908
        %v3910 = vpop.f32.mrf.mxu0
        %v3911 = vadd.f32 %v3897, %v3910
        %3912 = vdwg.mxu0
        %3913 = vmatpush.bf16.msra.mxu0 %v3521
        %3914 = vmatpush.bf16.msra.mxu0 %v3518
        %3915 = vmatpush.bf16.msra.mxu0 %v3515
        %3916 = vmatpush.bf16.msra.mxu0 %v3512
        %3917 = vmatpush.bf16.msra.mxu0 %v3509
        %3918 = vmatpush.bf16.msra.mxu0 %v3506
        %3919 = vmatpush.bf16.msra.mxu0 %v3503
        %3920 = vmatpush.bf16.msra.mxu0 %v3500
        %3921 = vmatmul.bf16.gmra.mxu0 %v1247
        %v3922 = vpop.f32.mrf.mxu0
        %v3923 = vadd.f32 %v3909, %v3922
        %v3924 = vpop.f32.mrf.mxu0
        %v3925 = vadd.f32 %v3911, %v3924
        %3926 = vdwg.mxu0
        %3927 = vmatpush.bf16.msra.mxu0 %v3545
        %3928 = vmatpush.bf16.msra.mxu0 %v3542
        %3929 = vmatpush.bf16.msra.mxu0 %v3539
        %3930 = vmatpush.bf16.msra.mxu0 %v3536
        %3931 = vmatpush.bf16.msra.mxu0 %v3533
        %3932 = vmatpush.bf16.msra.mxu0 %v3530
        %3933 = vmatpush.bf16.msra.mxu0 %v3527
        %3934 = vmatpush.bf16.msra.mxu0 %v3524
        %3935 = vmatmul.bf16.gmra.mxu0 %v1248
        %v3936 = vpop.f32.mrf.mxu0
        %v3937 = vadd.f32 %v3923, %v3936
        %v3938 = vpop.f32.mrf.mxu0
        %v3939 = vadd.f32 %v3925, %v3938
        %3940 = vdwg.mxu0
        %3941 = vmatpush.bf16.msra.mxu0 %v3569
        %3942 = vmatpush.bf16.msra.mxu0 %v3566
        %3943 = vmatpush.bf16.msra.mxu0 %v3563
        %3944 = vmatpush.bf16.msra.mxu0 %v3560
        %3945 = vmatpush.bf16.msra.mxu0 %v3557
        %3946 = vmatpush.bf16.msra.mxu0 %v3554
        %3947 = vmatpush.bf16.msra.mxu0 %v3551
        %3948 = vmatpush.bf16.msra.mxu0 %v3548
        %3949 = vmatmul.bf16.gmra.mxu0 %v1249
        %v3950 = vpop.f32.mrf.mxu0
        %v3951 = vadd.f32 %v3937, %v3950
        %v3952 = vpop.f32.mrf.mxu0
        %v3953 = vadd.f32 %v3939, %v3952
        %3954 = vdwg.mxu0
        %3955 = vmatpush.bf16.msra.mxu0 %v3593
        %3956 = vmatpush.bf16.msra.mxu0 %v3590
        %3957 = vmatpush.bf16.msra.mxu0 %v3587
        %3958 = vmatpush.bf16.msra.mxu0 %v3584
        %3959 = vmatpush.bf16.msra.mxu0 %v3581
        %3960 = vmatpush.bf16.msra.mxu0 %v3578
        %3961 = vmatpush.bf16.msra.mxu0 %v3575
        %3962 = vmatpush.bf16.msra.mxu0 %v3572
        %3963 = vmatmul.bf16.gmra.mxu0 %v1250
        %v3964 = vpop.f32.mrf.mxu0
        %v3965 = vadd.f32 %v3951, %v3964
        %v3966 = vpop.f32.mrf.mxu0
        %v3967 = vadd.f32 %v3953, %v3966
        %3968 = vdwg.mxu0
        %3969 = vmatpush.bf16.msra.mxu0 %v3617
        %3970 = vmatpush.bf16.msra.mxu0 %v3614
        %3971 = vmatpush.bf16.msra.mxu0 %v3611
        %3972 = vmatpush.bf16.msra.mxu0 %v3608
        %3973 = vmatpush.bf16.msra.mxu0 %v3605
        %3974 = vmatpush.bf16.msra.mxu0 %v3602
        %3975 = vmatpush.bf16.msra.mxu0 %v3599
        %3976 = vmatpush.bf16.msra.mxu0 %v3596
        %3977 = vmatmul.bf16.gmra.mxu0 %v1251
        %v3978 = vpop.f32.mrf.mxu0
        %v3979 = vadd.f32 %v3965, %v3978
        %v3980 = vpop.f32.mrf.mxu0
        %v3981 = vadd.f32 %v3967, %v3980
        %3982 = vdwg.mxu0
        %3983 = vmatpush.bf16.msra.mxu0 %v3474
        %3984 = vmatpush.bf16.msra.mxu0 %v3471
        %3985 = vmatpush.bf16.msra.mxu0 %v3468
        %3986 = vmatpush.bf16.msra.mxu0 %v3465
        %3987 = vmatpush.bf16.msra.mxu0 %v3462
        %3988 = vmatpush.bf16.msra.mxu0 %v3459
        %3989 = vmatpush.bf16.msra.mxu0 %v3456
        %3990 = vmatpush.bf16.msra.mxu0 %v3453
        %3991 = vmatmul.bf16.gmra.mxu0 %v1245
        %v3992 = vpop.f32.mrf.mxu0
        %v3993 = vadd.f32 0.0, %v3992
        %v3994 = vpop.f32.mrf.mxu0
        %v3995 = vadd.f32 0.0, %v3994
        %3996 = vdwg.mxu0
        %3997 = vmatpush.bf16.msra.mxu0 %v3498
        %3998 = vmatpush.bf16.msra.mxu0 %v3495
        %3999 = vmatpush.bf16.msra.mxu0 %v3492
        %4000 = vmatpush.bf16.msra.mxu0 %v3489
        %4001 = vmatpush.bf16.msra.mxu0 %v3486
        %4002 = vmatpush.bf16.msra.mxu0 %v3483
        %4003 = vmatpush.bf16.msra.mxu0 %v3480
        %4004 = vmatpush.bf16.msra.mxu0 %v3477
        %4005 = vmatmul.bf16.gmra.mxu0 %v1246
        %v4006 = vpop.f32.mrf.mxu0
        %v4007 = vadd.f32 %v3993, %v4006
        %v4008 = vpop.f32.mrf.mxu0
        %v4009 = vadd.f32 %v3995, %v4008
        %4010 = vdwg.mxu0
        %4011 = vmatpush.bf16.msra.mxu0 %v3522
        %4012 = vmatpush.bf16.msra.mxu0 %v3519
        %4013 = vmatpush.bf16.msra.mxu0 %v3516
        %4014 = vmatpush.bf16.msra.mxu0 %v3513
        %4015 = vmatpush.bf16.msra.mxu0 %v3510
        %4016 = vmatpush.bf16.msra.mxu0 %v3507
        %4017 = vmatpush.bf16.msra.mxu0 %v3504
        %4018 = vmatpush.bf16.msra.mxu0 %v3501
        %4019 = vmatmul.bf16.gmra.mxu0 %v1247
        %v4020 = vpop.f32.mrf.mxu0
        %v4021 = vadd.f32 %v4007, %v4020
        %v4022 = vpop.f32.mrf.mxu0
        %v4023 = vadd.f32 %v4009, %v4022
        %4024 = vdwg.mxu0
        %4025 = vmatpush.bf16.msra.mxu0 %v3546
        %4026 = vmatpush.bf16.msra.mxu0 %v3543
        %4027 = vmatpush.bf16.msra.mxu0 %v3540
        %4028 = vmatpush.bf16.msra.mxu0 %v3537
        %4029 = vmatpush.bf16.msra.mxu0 %v3534
        %4030 = vmatpush.bf16.msra.mxu0 %v3531
        %4031 = vmatpush.bf16.msra.mxu0 %v3528
        %4032 = vmatpush.bf16.msra.mxu0 %v3525
        %4033 = vmatmul.bf16.gmra.mxu0 %v1248
        %v4034 = vpop.f32.mrf.mxu0
        %v4035 = vadd.f32 %v4021, %v4034
        %v4036 = vpop.f32.mrf.mxu0
        %v4037 = vadd.f32 %v4023, %v4036
        %4038 = vdwg.mxu0
        %4039 = vmatpush.bf16.msra.mxu0 %v3570
        %4040 = vmatpush.bf16.msra.mxu0 %v3567
        %4041 = vmatpush.bf16.msra.mxu0 %v3564
        %4042 = vmatpush.bf16.msra.mxu0 %v3561
        %4043 = vmatpush.bf16.msra.mxu0 %v3558
        %4044 = vmatpush.bf16.msra.mxu0 %v3555
        %4045 = vmatpush.bf16.msra.mxu0 %v3552
        %4046 = vmatpush.bf16.msra.mxu0 %v3549
        %4047 = vmatmul.bf16.gmra.mxu0 %v1249
        %v4048 = vpop.f32.mrf.mxu0
        %v4049 = vadd.f32 %v4035, %v4048
        %v4050 = vpop.f32.mrf.mxu0
        %v4051 = vadd.f32 %v4037, %v4050
        %4052 = vdwg.mxu0
        %4053 = vmatpush.bf16.msra.mxu0 %v3594
        %4054 = vmatpush.bf16.msra.mxu0 %v3591
        %4055 = vmatpush.bf16.msra.mxu0 %v3588
        %4056 = vmatpush.bf16.msra.mxu0 %v3585
        %4057 = vmatpush.bf16.msra.mxu0 %v3582
        %4058 = vmatpush.bf16.msra.mxu0 %v3579
        %4059 = vmatpush.bf16.msra.mxu0 %v3576
        %4060 = vmatpush.bf16.msra.mxu0 %v3573
        %4061 = vmatmul.bf16.gmra.mxu0 %v1250
        %v4062 = vpop.f32.mrf.mxu0
        %v4063 = vadd.f32 %v4049, %v4062
        %v4064 = vpop.f32.mrf.mxu0
        %v4065 = vadd.f32 %v4051, %v4064
        %4066 = vdwg.mxu0
        %4067 = vmatpush.bf16.msra.mxu0 %v3618
        %4068 = vmatpush.bf16.msra.mxu0 %v3615
        %4069 = vmatpush.bf16.msra.mxu0 %v3612
        %4070 = vmatpush.bf16.msra.mxu0 %v3609
        %4071 = vmatpush.bf16.msra.mxu0 %v3606
        %4072 = vmatpush.bf16.msra.mxu0 %v3603
        %4073 = vmatpush.bf16.msra.mxu0 %v3600
        %4074 = vmatpush.bf16.msra.mxu0 %v3597
        %4075 = vmatmul.bf16.gmra.mxu0 %v1251
        %v4076 = vpop.f32.mrf.mxu0
        %v4077 = vadd.f32 %v4063, %v4076
        %v4078 = vpop.f32.mrf.mxu0
        %v4079 = vadd.f32 %v4065, %v4078
        %4080 = vdwg.mxu0
        %v4081 = vmax.f32 %v2466, %v3881
        %v4082 = vmax.f32 %v2564, %v3979
        %v4083 = vmax.f32 %v2662, %v4077
        %v4084 = vmax.f32 %v2468, %v3883
        %v4085 = vmax.f32 %v2566, %v3981
        %v4086 = vmax.f32 %v2664, %v4079
        %s4087 = scalar_lea.vmem %s3, 2688
        %v4088 = vld [vmem:[%s4087] sm:$0xff]
        %v4089 = vld [vmem:[%s4087 + $0x8] sm:$0xf]
        %v4090 = vld [vmem:[%s4087 + $0xc] sm:$0xff]
        %v4091 = vld [vmem:[%s4087 + $0x14] sm:$0xf]
        %v4092 = vld [vmem:[%s4087 + $0x18] sm:$0xff]
        %v4093 = vld [vmem:[%s4087 + $0x20] sm:$0xf]
        %v4094 = vld [vmem:[%s4087 + $0x24] sm:$0xff]
        %v4095 = vld [vmem:[%s4087 + $0x2c] sm:$0xf]
        %v4096 = vld [vmem:[%s4087 + $0x30] sm:$0xff]
        %v4097 = vld [vmem:[%s4087 + $0x38] sm:$0xf]
        %v4098 = vld [vmem:[%s4087 + $0x3c] sm:$0xff]
        %v4099 = vld [vmem:[%s4087 + $0x44] sm:$0xf]
        %v4100 = vld [vmem:[%s4087 + $0x48] sm:$0xff]
        %v4101 = vld [vmem:[%s4087 + $0x50] sm:$0xf]
        %v4102 = vld [vmem:[%s4087 + $0x54] sm:$0xff]
        %v4103 = vld [vmem:[%s4087 + $0x5c] sm:$0xf]
        %v4104 = vld [vmem:[%s4087 + $0x60] sm:$0xff]
        %v4105 = vld [vmem:[%s4087 + $0x68] sm:$0xf]
        %v4106 = vld [vmem:[%s4087 + $0x6c] sm:$0xff]
        %v4107 = vld [vmem:[%s4087 + $0x74] sm:$0xf]
        %v4108 = vld [vmem:[%s4087 + $0x78] sm:$0xff]
        %v4109 = vld [vmem:[%s4087 + $0x80] sm:$0xf]
        %v4110 = vld [vmem:[%s4087 + $0x84] sm:$0xff]
        %v4111 = vld [vmem:[%s4087 + $0x8c] sm:$0xf]
        %v4112 = vld [vmem:[%s4087 + $0x90] sm:$0xff]
        %v4113 = vld [vmem:[%s4087 + $0x98] sm:$0xf]
        %v4114 = vld [vmem:[%s4087 + $0x9c] sm:$0xff]
        %v4115 = vld [vmem:[%s4087 + $0xa4] sm:$0xf]
        %v4116 = vld [vmem:[%s4087 + $0xa8] sm:$0xff]
        %v4117 = vld [vmem:[%s4087 + $0xb0] sm:$0xf]
        %v4118 = vld [vmem:[%s4087 + $0xb4] sm:$0xff]
        %v4119 = vld [vmem:[%s4087 + $0xbc] sm:$0xf]
        %v4120 = vld [vmem:[%s4087 + $0xc0] sm:$0xff]
        %v4121 = vld [vmem:[%s4087 + $0xc8] sm:$0xf]
        %v4122 = vld [vmem:[%s4087 + $0xcc] sm:$0xff]
        %v4123 = vld [vmem:[%s4087 + $0xd4] sm:$0xf]
        %v4124 = vld [vmem:[%s4087 + $0xd8] sm:$0xff]
        %v4125 = vld [vmem:[%s4087 + $0xe0] sm:$0xf]
        %v4126 = vld [vmem:[%s4087 + $0xe4] sm:$0xff]
        %v4127 = vld [vmem:[%s4087 + $0xec] sm:$0xf]
        %v4128 = vld [vmem:[%s4087 + $0xf0] sm:$0xff]
        %v4129 = vld [vmem:[%s4087 + $0xf8] sm:$0xf]
        %v4130 = vld [vmem:[%s4087 + $0xfc] sm:$0xff]
        %v4131 = vld [vmem:[%s4087 + $0x104] sm:$0xf]
        %v4132 = vld [vmem:[%s4087 + $0x108] sm:$0xff]
        %v4133 = vld [vmem:[%s4087 + $0x110] sm:$0xf]
        %v4134 = vld [vmem:[%s4087 + $0x114] sm:$0xff]
        %v4135 = vld [vmem:[%s4087 + $0x11c] sm:$0xf]
        %v4136 = vld [vmem:[%s4087 + $0x120] sm:$0xff]
        %v4137 = vld [vmem:[%s4087 + $0x128] sm:$0xf]
        %v4138 = vld [vmem:[%s4087 + $0x12c] sm:$0xff]
        %v4139 = vld [vmem:[%s4087 + $0x134] sm:$0xf]
        %v4140 = vld [vmem:[%s4087 + $0x138] sm:$0xff]
        %v4141 = vld [vmem:[%s4087 + $0x140] sm:$0xf]
        %v4142 = vld [vmem:[%s4087 + $0x144] sm:$0xff]
        %v4143 = vld [vmem:[%s4087 + $0x14c] sm:$0xf]
        %v4144 = vld [vmem:[%s4087 + $0x150] sm:$0xff]
        %v4145 = vld [vmem:[%s4087 + $0x158] sm:$0xf]
        %v4146 = vld [vmem:[%s4087 + $0x15c] sm:$0xff]
        %v4147 = vld [vmem:[%s4087 + $0x164] sm:$0xf]
        %v4148 = vld [vmem:[%s4087 + $0x168] sm:$0xff]
        %v4149 = vld [vmem:[%s4087 + $0x170] sm:$0xf]
        %v4150 = vld [vmem:[%s4087 + $0x174] sm:$0xff]
        %v4151 = vld [vmem:[%s4087 + $0x17c] sm:$0xf]
        %v4152 = vld [vmem:[%s4087 + $0x180] sm:$0xff]
        %v4153 = vld [vmem:[%s4087 + $0x188] sm:$0xf]
        %v4154 = vld [vmem:[%s4087 + $0x18c] sm:$0xff]
        %v4155 = vld [vmem:[%s4087 + $0x194] sm:$0xf]
        %v4156 = vld [vmem:[%s4087 + $0x198] sm:$0xff]
        %v4157 = vld [vmem:[%s4087 + $0x1a0] sm:$0xf]
        %v4158 = vld [vmem:[%s4087 + $0x1a4] sm:$0xff]
        %v4159 = vld [vmem:[%s4087 + $0x1ac] sm:$0xf]
        %v4160 = vld [vmem:[%s4087 + $0x1b0] sm:$0xff]
        %v4161 = vld [vmem:[%s4087 + $0x1b8] sm:$0xf]
        %v4162 = vld [vmem:[%s4087 + $0x1bc] sm:$0xff]
        %v4163 = vld [vmem:[%s4087 + $0x1c4] sm:$0xf]
        %v4164 = vld [vmem:[%s4087 + $0x1c8] sm:$0xff]
        %v4165 = vld [vmem:[%s4087 + $0x1d0] sm:$0xf]
        %v4166 = vld [vmem:[%s4087 + $0x1d4] sm:$0xff]
        %v4167 = vld [vmem:[%s4087 + $0x1dc] sm:$0xf]
        %v4168 = vld [vmem:[%s4087 + $0x1e0] sm:$0xff]
        %v4169 = vld [vmem:[%s4087 + $0x1e8] sm:$0xf]
        %v4170 = vld [vmem:[%s4087 + $0x1ec] sm:$0xff]
        %v4171 = vld [vmem:[%s4087 + $0x1f4] sm:$0xf]
        %v4172 = vld [vmem:[%s4087 + $0x1f8] sm:$0xff]
        %v4173 = vld [vmem:[%s4087 + $0x200] sm:$0xf]
        %v4174 = vld [vmem:[%s4087 + $0x204] sm:$0xff]
        %v4175 = vld [vmem:[%s4087 + $0x20c] sm:$0xf]
        %v4176 = vld [vmem:[%s4087 + $0x210] sm:$0xff]
        %v4177 = vld [vmem:[%s4087 + $0x218] sm:$0xf]
        %v4178 = vld [vmem:[%s4087 + $0x21c] sm:$0xff]
        %v4179 = vld [vmem:[%s4087 + $0x224] sm:$0xf]
        %v4180 = vld [vmem:[%s4087 + $0x228] sm:$0xff]
        %v4181 = vld [vmem:[%s4087 + $0x230] sm:$0xf]
        %v4182 = vld [vmem:[%s4087 + $0x234] sm:$0xff]
        %v4183 = vld [vmem:[%s4087 + $0x23c] sm:$0xf]
        %v4184 = vld [vmem:[%s4087 + $0x240] sm:$0xff]
        %v4185 = vld [vmem:[%s4087 + $0x248] sm:$0xf]
        %v4186 = vld [vmem:[%s4087 + $0x24c] sm:$0xff]
        %v4187 = vld [vmem:[%s4087 + $0x254] sm:$0xf]
        %v4188 = vld [vmem:[%s4087 + $0x258] sm:$0xff]
        %v4189 = vld [vmem:[%s4087 + $0x260] sm:$0xf]
        %v4190 = vld [vmem:[%s4087 + $0x264] sm:$0xff]
        %v4191 = vld [vmem:[%s4087 + $0x26c] sm:$0xf]
        %v4192 = vld [vmem:[%s4087 + $0x270] sm:$0xff]
        %v4193 = vld [vmem:[%s4087 + $0x278] sm:$0xf]
        %v4194 = vld [vmem:[%s4087 + $0x27c] sm:$0xff]
        %v4195 = vld [vmem:[%s4087 + $0x284] sm:$0xf]
        %v4196 = vld [vmem:[%s4087 + $0x288] sm:$0xff]
        %v4197 = vld [vmem:[%s4087 + $0x290] sm:$0xf]
        %v4198 = vld [vmem:[%s4087 + $0x294] sm:$0xff]
        %v4199 = vld [vmem:[%s4087 + $0x29c] sm:$0xf]
        %v4200 = vld [vmem:[%s4087 + $0x2a0] sm:$0xff]
        %v4201 = vld [vmem:[%s4087 + $0x2a8] sm:$0xf]
        %v4202 = vld [vmem:[%s4087 + $0x2ac] sm:$0xff]
        %v4203 = vld [vmem:[%s4087 + $0x2b4] sm:$0xf]
        %v4204 = vld [vmem:[%s4087 + $0x2b8] sm:$0xff]
        %v4205 = vld [vmem:[%s4087 + $0x2c0] sm:$0xf]
        %v4206 = vld [vmem:[%s4087 + $0x2c4] sm:$0xff]
        %v4207 = vld [vmem:[%s4087 + $0x2cc] sm:$0xf]
        %v4208 = vld [vmem:[%s4087 + $0x2d0] sm:$0xff]
        %v4209 = vld [vmem:[%s4087 + $0x2d8] sm:$0xf]
        %v4210 = vld [vmem:[%s4087 + $0x2dc] sm:$0xff]
        %v4211 = vld [vmem:[%s4087 + $0x2e4] sm:$0xf]
        %v4212 = vld [vmem:[%s4087 + $0x2e8] sm:$0xff]
        %v4213 = vld [vmem:[%s4087 + $0x2f0] sm:$0xf]
        %v4214 = vld [vmem:[%s4087 + $0x2f4] sm:$0xff]
        %v4215 = vld [vmem:[%s4087 + $0x2fc] sm:$0xf]
        %v4216 = vld [vmem:[%s4087 + $0x300] sm:$0xff]
        %v4217 = vld [vmem:[%s4087 + $0x308] sm:$0xf]
        %v4218 = vld [vmem:[%s4087 + $0x30c] sm:$0xff]
        %v4219 = vld [vmem:[%s4087 + $0x314] sm:$0xf]
        %v4220 = vld [vmem:[%s4087 + $0x318] sm:$0xff]
        %v4221 = vld [vmem:[%s4087 + $0x320] sm:$0xf]
        %v4222 = vld [vmem:[%s4087 + $0x324] sm:$0xff]
        %v4223 = vld [vmem:[%s4087 + $0x32c] sm:$0xf]
        %v4224 = vld [vmem:[%s4087 + $0x330] sm:$0xff]
        %v4225 = vld [vmem:[%s4087 + $0x338] sm:$0xf]
        %v4226 = vld [vmem:[%s4087 + $0x33c] sm:$0xff]
        %v4227 = vld [vmem:[%s4087 + $0x344] sm:$0xf]
        %v4228 = vld [vmem:[%s4087 + $0x348] sm:$0xff]
        %v4229 = vld [vmem:[%s4087 + $0x350] sm:$0xf]
        %v4230 = vld [vmem:[%s4087 + $0x354] sm:$0xff]
        %v4231 = vld [vmem:[%s4087 + $0x35c] sm:$0xf]
        %v4232 = vld [vmem:[%s4087 + $0x360] sm:$0xff]
        %v4233 = vld [vmem:[%s4087 + $0x368] sm:$0xf]
        %v4234 = vld [vmem:[%s4087 + $0x36c] sm:$0xff]
        %v4235 = vld [vmem:[%s4087 + $0x374] sm:$0xf]
        %v4236 = vld [vmem:[%s4087 + $0x378] sm:$0xff]
        %v4237 = vld [vmem:[%s4087 + $0x380] sm:$0xf]
        %v4238 = vld [vmem:[%s4087 + $0x384] sm:$0xff]
        %v4239 = vld [vmem:[%s4087 + $0x38c] sm:$0xf]
        %v4240 = vld [vmem:[%s4087 + $0x390] sm:$0xff]
        %v4241 = vld [vmem:[%s4087 + $0x398] sm:$0xf]
        %v4242 = vld [vmem:[%s4087 + $0x39c] sm:$0xff]
        %v4243 = vld [vmem:[%s4087 + $0x3a4] sm:$0xf]
        %v4244 = vld [vmem:[%s4087 + $0x3a8] sm:$0xff]
        %v4245 = vld [vmem:[%s4087 + $0x3b0] sm:$0xf]
        %v4246 = vld [vmem:[%s4087 + $0x3b4] sm:$0xff]
        %v4247 = vld [vmem:[%s4087 + $0x3bc] sm:$0xf]
        %v4248 = vld [vmem:[%s4087 + $0x3c0] sm:$0xff]
        %v4249 = vld [vmem:[%s4087 + $0x3c8] sm:$0xf]
        %v4250 = vld [vmem:[%s4087 + $0x3cc] sm:$0xff]
        %v4251 = vld [vmem:[%s4087 + $0x3d4] sm:$0xf]
        %v4252 = vld [vmem:[%s4087 + $0x3d8] sm:$0xff]
        %v4253 = vld [vmem:[%s4087 + $0x3e0] sm:$0xf]
        %v4254 = vld [vmem:[%s4087 + $0x3e4] sm:$0xff]
        %v4255 = vld [vmem:[%s4087 + $0x3ec] sm:$0xf]
        %v4256 = vld [vmem:[%s4087 + $0x3f0] sm:$0xff]
        %v4257 = vld [vmem:[%s4087 + $0x3f8] sm:$0xf]
        %v4258 = vld [vmem:[%s4087 + $0x3fc] sm:$0xff]
        %v4259 = vld [vmem:[%s4087 + $0x404] sm:$0xf]
        %v4260 = vld [vmem:[%s4087 + $0x408] sm:$0xff]
        %v4261 = vld [vmem:[%s4087 + $0x410] sm:$0xf]
        %v4262 = vld [vmem:[%s4087 + $0x414] sm:$0xff]
        %v4263 = vld [vmem:[%s4087 + $0x41c] sm:$0xf]
        %v4264 = vld [vmem:[%s4087 + $0x420] sm:$0xff]
        %v4265 = vld [vmem:[%s4087 + $0x428] sm:$0xf]
        %v4266 = vld [vmem:[%s4087 + $0x42c] sm:$0xff]
        %v4267 = vld [vmem:[%s4087 + $0x434] sm:$0xf]
        %v4268 = vld [vmem:[%s4087 + $0x438] sm:$0xff]
        %v4269 = vld [vmem:[%s4087 + $0x440] sm:$0xf]
        %v4270 = vld [vmem:[%s4087 + $0x444] sm:$0xff]
        %v4271 = vld [vmem:[%s4087 + $0x44c] sm:$0xf]
        %v4272 = vld [vmem:[%s4087 + $0x450] sm:$0xff]
        %v4273 = vld [vmem:[%s4087 + $0x458] sm:$0xf]
        %v4274 = vld [vmem:[%s4087 + $0x45c] sm:$0xff]
        %v4275 = vld [vmem:[%s4087 + $0x464] sm:$0xf]
        %v4276 = vld [vmem:[%s4087 + $0x468] sm:$0xff]
        %v4277 = vld [vmem:[%s4087 + $0x470] sm:$0xf]
        %v4278 = vld [vmem:[%s4087 + $0x474] sm:$0xff]
        %v4279 = vld [vmem:[%s4087 + $0x47c] sm:$0xf]
        %v4280 = vld [vmem:[%s4087 + $0x480] sm:$0xff]
        %v4281 = vld [vmem:[%s4087 + $0x488] sm:$0xf]
        %v4282 = vld [vmem:[%s4087 + $0x48c] sm:$0xff]
        %v4283 = vld [vmem:[%s4087 + $0x494] sm:$0xf]
        %v4284 = vld [vmem:[%s4087 + $0x498] sm:$0xff]
        %v4285 = vld [vmem:[%s4087 + $0x4a0] sm:$0xf]
        %v4286 = vld [vmem:[%s4087 + $0x4a4] sm:$0xff]
        %v4287 = vld [vmem:[%s4087 + $0x4ac] sm:$0xf]
        %v4288 = vld [vmem:[%s4087 + $0x4b0] sm:$0xff]
        %v4289 = vld [vmem:[%s4087 + $0x4b8] sm:$0xf]
        %v4290 = vld [vmem:[%s4087 + $0x4bc] sm:$0xff]
        %v4291 = vld [vmem:[%s4087 + $0x4c4] sm:$0xf]
        %v4292 = vld [vmem:[%s4087 + $0x4c8] sm:$0xff]
        %v4293 = vld [vmem:[%s4087 + $0x4d0] sm:$0xf]
        %v4294 = vld [vmem:[%s4087 + $0x4d4] sm:$0xff]
        %v4295 = vld [vmem:[%s4087 + $0x4dc] sm:$0xf]
        %v4296 = vld [vmem:[%s4087 + $0x4e0] sm:$0xff]
        %v4297 = vld [vmem:[%s4087 + $0x4e8] sm:$0xf]
        %v4298 = vld [vmem:[%s4087 + $0x4ec] sm:$0xff]
        %v4299 = vld [vmem:[%s4087 + $0x4f4] sm:$0xf]
        %v4300 = vld [vmem:[%s4087 + $0x4f8] sm:$0xff]
        %v4301 = vld [vmem:[%s4087 + $0x500] sm:$0xf]
        %v4302 = vld [vmem:[%s4087 + $0x504] sm:$0xff]
        %v4303 = vld [vmem:[%s4087 + $0x50c] sm:$0xf]
        %v4304 = vld [vmem:[%s4087 + $0x510] sm:$0xff]
        %v4305 = vld [vmem:[%s4087 + $0x518] sm:$0xf]
        %v4306 = vld [vmem:[%s4087 + $0x51c] sm:$0xff]
        %v4307 = vld [vmem:[%s4087 + $0x524] sm:$0xf]
        %v4308 = vld [vmem:[%s4087 + $0x528] sm:$0xff]
        %v4309 = vld [vmem:[%s4087 + $0x530] sm:$0xf]
        %v4310 = vld [vmem:[%s4087 + $0x534] sm:$0xff]
        %v4311 = vld [vmem:[%s4087 + $0x53c] sm:$0xf]
        %v4536 = vunpack.c.l.b16 %v4088
        %v4537 = vunpack.c.h.b16 %v4088
        %v4538 = vunpack.c.l.b16 %v4089
        %v4539 = vunpack.c.l.b16 %v4090
        %v4540 = vunpack.c.h.b16 %v4090
        %v4541 = vunpack.c.l.b16 %v4091
        %v4542 = vunpack.c.l.b16 %v4092
        %v4543 = vunpack.c.h.b16 %v4092
        %v4544 = vunpack.c.l.b16 %v4093
        %v4545 = vunpack.c.l.b16 %v4094
        %v4546 = vunpack.c.h.b16 %v4094
        %v4547 = vunpack.c.l.b16 %v4095
        %v4548 = vunpack.c.l.b16 %v4096
        %v4549 = vunpack.c.h.b16 %v4096
        %v4550 = vunpack.c.l.b16 %v4097
        %v4551 = vunpack.c.l.b16 %v4098
        %v4552 = vunpack.c.h.b16 %v4098
        %v4553 = vunpack.c.l.b16 %v4099
        %v4554 = vunpack.c.l.b16 %v4100
        %v4555 = vunpack.c.h.b16 %v4100
        %v4556 = vunpack.c.l.b16 %v4101
        %v4557 = vunpack.c.l.b16 %v4102
        %v4558 = vunpack.c.h.b16 %v4102
        %v4559 = vunpack.c.l.b16 %v4103
        %v4560 = vunpack.c.l.b16 %v4104
        %v4561 = vunpack.c.h.b16 %v4104
        %v4562 = vunpack.c.l.b16 %v4105
        %v4563 = vunpack.c.l.b16 %v4106
        %v4564 = vunpack.c.h.b16 %v4106
        %v4565 = vunpack.c.l.b16 %v4107
        %v4566 = vunpack.c.l.b16 %v4108
        %v4567 = vunpack.c.h.b16 %v4108
        %v4568 = vunpack.c.l.b16 %v4109
        %v4569 = vunpack.c.l.b16 %v4110
        %v4570 = vunpack.c.h.b16 %v4110
        %v4571 = vunpack.c.l.b16 %v4111
        %v4572 = vunpack.c.l.b16 %v4112
        %v4573 = vunpack.c.h.b16 %v4112
        %v4574 = vunpack.c.l.b16 %v4113
        %v4575 = vunpack.c.l.b16 %v4114
        %v4576 = vunpack.c.h.b16 %v4114
        %v4577 = vunpack.c.l.b16 %v4115
        %v4578 = vunpack.c.l.b16 %v4116
        %v4579 = vunpack.c.h.b16 %v4116
        %v4580 = vunpack.c.l.b16 %v4117
        %v4581 = vunpack.c.l.b16 %v4118
        %v4582 = vunpack.c.h.b16 %v4118
        %v4583 = vunpack.c.l.b16 %v4119
        %v4584 = vunpack.c.l.b16 %v4120
        %v4585 = vunpack.c.h.b16 %v4120
        %v4586 = vunpack.c.l.b16 %v4121
        %v4587 = vunpack.c.l.b16 %v4122
        %v4588 = vunpack.c.h.b16 %v4122
        %v4589 = vunpack.c.l.b16 %v4123
        %v4590 = vunpack.c.l.b16 %v4124
        %v4591 = vunpack.c.h.b16 %v4124
        %v4592 = vunpack.c.l.b16 %v4125
        %v4593 = vunpack.c.l.b16 %v4126
        %v4594 = vunpack.c.h.b16 %v4126
        %v4595 = vunpack.c.l.b16 %v4127
        %v4596 = vunpack.c.l.b16 %v4128
        %v4597 = vunpack.c.h.b16 %v4128
        %v4598 = vunpack.c.l.b16 %v4129
        %v4599 = vunpack.c.l.b16 %v4130
        %v4600 = vunpack.c.h.b16 %v4130
        %v4601 = vunpack.c.l.b16 %v4131
        %v4602 = vunpack.c.l.b16 %v4132
        %v4603 = vunpack.c.h.b16 %v4132
        %v4604 = vunpack.c.l.b16 %v4133
        %v4605 = vunpack.c.l.b16 %v4134
        %v4606 = vunpack.c.h.b16 %v4134
        %v4607 = vunpack.c.l.b16 %v4135
        %v4608 = vunpack.c.l.b16 %v4136
        %v4609 = vunpack.c.h.b16 %v4136
        %v4610 = vunpack.c.l.b16 %v4137
        %v4611 = vunpack.c.l.b16 %v4138
        %v4612 = vunpack.c.h.b16 %v4138
        %v4613 = vunpack.c.l.b16 %v4139
        %v4614 = vunpack.c.l.b16 %v4140
        %v4615 = vunpack.c.h.b16 %v4140
        %v4616 = vunpack.c.l.b16 %v4141
        %v4617 = vunpack.c.l.b16 %v4142
        %v4618 = vunpack.c.h.b16 %v4142
        %v4619 = vunpack.c.l.b16 %v4143
        %v4620 = vunpack.c.l.b16 %v4144
        %v4621 = vunpack.c.h.b16 %v4144
        %v4622 = vunpack.c.l.b16 %v4145
        %v4623 = vunpack.c.l.b16 %v4146
        %v4624 = vunpack.c.h.b16 %v4146
        %v4625 = vunpack.c.l.b16 %v4147
        %v4626 = vunpack.c.l.b16 %v4148
        %v4627 = vunpack.c.h.b16 %v4148
        %v4628 = vunpack.c.l.b16 %v4149
        %v4629 = vunpack.c.l.b16 %v4150
        %v4630 = vunpack.c.h.b16 %v4150
        %v4631 = vunpack.c.l.b16 %v4151
        %v4632 = vunpack.c.l.b16 %v4152
        %v4633 = vunpack.c.h.b16 %v4152
        %v4634 = vunpack.c.l.b16 %v4153
        %v4635 = vunpack.c.l.b16 %v4154
        %v4636 = vunpack.c.h.b16 %v4154
        %v4637 = vunpack.c.l.b16 %v4155
        %v4638 = vunpack.c.l.b16 %v4156
        %v4639 = vunpack.c.h.b16 %v4156
        %v4640 = vunpack.c.l.b16 %v4157
        %v4641 = vunpack.c.l.b16 %v4158
        %v4642 = vunpack.c.h.b16 %v4158
        %v4643 = vunpack.c.l.b16 %v4159
        %v4644 = vunpack.c.l.b16 %v4160
        %v4645 = vunpack.c.h.b16 %v4160
        %v4646 = vunpack.c.l.b16 %v4161
        %v4647 = vunpack.c.l.b16 %v4162
        %v4648 = vunpack.c.h.b16 %v4162
        %v4649 = vunpack.c.l.b16 %v4163
        %v4650 = vunpack.c.l.b16 %v4164
        %v4651 = vunpack.c.h.b16 %v4164
        %v4652 = vunpack.c.l.b16 %v4165
        %v4653 = vunpack.c.l.b16 %v4166
        %v4654 = vunpack.c.h.b16 %v4166
        %v4655 = vunpack.c.l.b16 %v4167
        %v4656 = vunpack.c.l.b16 %v4168
        %v4657 = vunpack.c.h.b16 %v4168
        %v4658 = vunpack.c.l.b16 %v4169
        %v4659 = vunpack.c.l.b16 %v4170
        %v4660 = vunpack.c.h.b16 %v4170
        %v4661 = vunpack.c.l.b16 %v4171
        %v4662 = vunpack.c.l.b16 %v4172
        %v4663 = vunpack.c.h.b16 %v4172
        %v4664 = vunpack.c.l.b16 %v4173
        %v4665 = vunpack.c.l.b16 %v4174
        %v4666 = vunpack.c.h.b16 %v4174
        %v4667 = vunpack.c.l.b16 %v4175
        %v4668 = vunpack.c.l.b16 %v4176
        %v4669 = vunpack.c.h.b16 %v4176
        %v4670 = vunpack.c.l.b16 %v4177
        %v4671 = vunpack.c.l.b16 %v4178
        %v4672 = vunpack.c.h.b16 %v4178
        %v4673 = vunpack.c.l.b16 %v4179
        %v4674 = vunpack.c.l.b16 %v4180
        %v4675 = vunpack.c.h.b16 %v4180
        %v4676 = vunpack.c.l.b16 %v4181
        %v4677 = vunpack.c.l.b16 %v4182
        %v4678 = vunpack.c.h.b16 %v4182
        %v4679 = vunpack.c.l.b16 %v4183
        %v4680 = vunpack.c.l.b16 %v4184
        %v4681 = vunpack.c.h.b16 %v4184
        %v4682 = vunpack.c.l.b16 %v4185
        %v4683 = vunpack.c.l.b16 %v4186
        %v4684 = vunpack.c.h.b16 %v4186
        %v4685 = vunpack.c.l.b16 %v4187
        %v4686 = vunpack.c.l.b16 %v4188
        %v4687 = vunpack.c.h.b16 %v4188
        %v4688 = vunpack.c.l.b16 %v4189
        %v4689 = vunpack.c.l.b16 %v4190
        %v4690 = vunpack.c.h.b16 %v4190
        %v4691 = vunpack.c.l.b16 %v4191
        %v4692 = vunpack.c.l.b16 %v4192
        %v4693 = vunpack.c.h.b16 %v4192
        %v4694 = vunpack.c.l.b16 %v4193
        %v4695 = vunpack.c.l.b16 %v4194
        %v4696 = vunpack.c.h.b16 %v4194
        %v4697 = vunpack.c.l.b16 %v4195
        %v4698 = vunpack.c.l.b16 %v4196
        %v4699 = vunpack.c.h.b16 %v4196
        %v4700 = vunpack.c.l.b16 %v4197
        %v4701 = vunpack.c.l.b16 %v4198
        %v4702 = vunpack.c.h.b16 %v4198
        %v4703 = vunpack.c.l.b16 %v4199
        %v4704 = vunpack.c.l.b16 %v4200
        %v4705 = vunpack.c.h.b16 %v4200
        %v4706 = vunpack.c.l.b16 %v4201
        %v4707 = vunpack.c.l.b16 %v4202
        %v4708 = vunpack.c.h.b16 %v4202
        %v4709 = vunpack.c.l.b16 %v4203
        %v4710 = vunpack.c.l.b16 %v4204
        %v4711 = vunpack.c.h.b16 %v4204
        %v4712 = vunpack.c.l.b16 %v4205
        %v4713 = vunpack.c.l.b16 %v4206
        %v4714 = vunpack.c.h.b16 %v4206
        %v4715 = vunpack.c.l.b16 %v4207
        %v4716 = vunpack.c.l.b16 %v4208
        %v4717 = vunpack.c.h.b16 %v4208
        %v4718 = vunpack.c.l.b16 %v4209
        %v4719 = vunpack.c.l.b16 %v4210
        %v4720 = vunpack.c.h.b16 %v4210
        %v4721 = vunpack.c.l.b16 %v4211
        %v4722 = vunpack.c.l.b16 %v4212
        %v4723 = vunpack.c.h.b16 %v4212
        %v4724 = vunpack.c.l.b16 %v4213
        %v4725 = vunpack.c.l.b16 %v4214
        %v4726 = vunpack.c.h.b16 %v4214
        %v4727 = vunpack.c.l.b16 %v4215
        %v4728 = vunpack.c.l.b16 %v4216
        %v4729 = vunpack.c.h.b16 %v4216
        %v4730 = vunpack.c.l.b16 %v4217
        %v4731 = vunpack.c.l.b16 %v4218
        %v4732 = vunpack.c.h.b16 %v4218
        %v4733 = vunpack.c.l.b16 %v4219
        %v4734 = vunpack.c.l.b16 %v4220
        %v4735 = vunpack.c.h.b16 %v4220
        %v4736 = vunpack.c.l.b16 %v4221
        %v4737 = vunpack.c.l.b16 %v4222
        %v4738 = vunpack.c.h.b16 %v4222
        %v4739 = vunpack.c.l.b16 %v4223
        %v4740 = vunpack.c.l.b16 %v4224
        %v4741 = vunpack.c.h.b16 %v4224
        %v4742 = vunpack.c.l.b16 %v4225
        %v4743 = vunpack.c.l.b16 %v4226
        %v4744 = vunpack.c.h.b16 %v4226
        %v4745 = vunpack.c.l.b16 %v4227
        %v4746 = vunpack.c.l.b16 %v4228
        %v4747 = vunpack.c.h.b16 %v4228
        %v4748 = vunpack.c.l.b16 %v4229
        %v4749 = vunpack.c.l.b16 %v4230
        %v4750 = vunpack.c.h.b16 %v4230
        %v4751 = vunpack.c.l.b16 %v4231
        %v4752 = vunpack.c.l.b16 %v4232
        %v4753 = vunpack.c.h.b16 %v4232
        %v4754 = vunpack.c.l.b16 %v4233
        %v4755 = vunpack.c.l.b16 %v4234
        %v4756 = vunpack.c.h.b16 %v4234
        %v4757 = vunpack.c.l.b16 %v4235
        %v4758 = vunpack.c.l.b16 %v4236
        %v4759 = vunpack.c.h.b16 %v4236
        %v4760 = vunpack.c.l.b16 %v4237
        %v4761 = vunpack.c.l.b16 %v4238
        %v4762 = vunpack.c.h.b16 %v4238
        %v4763 = vunpack.c.l.b16 %v4239
        %v4764 = vunpack.c.l.b16 %v4240
        %v4765 = vunpack.c.h.b16 %v4240
        %v4766 = vunpack.c.l.b16 %v4241
        %v4767 = vunpack.c.l.b16 %v4242
        %v4768 = vunpack.c.h.b16 %v4242
        %v4769 = vunpack.c.l.b16 %v4243
        %v4770 = vunpack.c.l.b16 %v4244
        %v4771 = vunpack.c.h.b16 %v4244
        %v4772 = vunpack.c.l.b16 %v4245
        %v4773 = vunpack.c.l.b16 %v4246
        %v4774 = vunpack.c.h.b16 %v4246
        %v4775 = vunpack.c.l.b16 %v4247
        %v4776 = vunpack.c.l.b16 %v4248
        %v4777 = vunpack.c.h.b16 %v4248
        %v4778 = vunpack.c.l.b16 %v4249
        %v4779 = vunpack.c.l.b16 %v4250
        %v4780 = vunpack.c.h.b16 %v4250
        %v4781 = vunpack.c.l.b16 %v4251
        %v4782 = vunpack.c.l.b16 %v4252
        %v4783 = vunpack.c.h.b16 %v4252
        %v4784 = vunpack.c.l.b16 %v4253
        %v4785 = vunpack.c.l.b16 %v4254
        %v4786 = vunpack.c.h.b16 %v4254
        %v4787 = vunpack.c.l.b16 %v4255
        %v4788 = vunpack.c.l.b16 %v4256
        %v4789 = vunpack.c.h.b16 %v4256
        %v4790 = vunpack.c.l.b16 %v4257
        %v4791 = vunpack.c.l.b16 %v4258
        %v4792 = vunpack.c.h.b16 %v4258
        %v4793 = vunpack.c.l.b16 %v4259
        %v4794 = vunpack.c.l.b16 %v4260
        %v4795 = vunpack.c.h.b16 %v4260
        %v4796 = vunpack.c.l.b16 %v4261
        %v4797 = vunpack.c.l.b16 %v4262
        %v4798 = vunpack.c.h.b16 %v4262
        %v4799 = vunpack.c.l.b16 %v4263
        %v4800 = vunpack.c.l.b16 %v4264
        %v4801 = vunpack.c.h.b16 %v4264
        %v4802 = vunpack.c.l.b16 %v4265
        %v4803 = vunpack.c.l.b16 %v4266
        %v4804 = vunpack.c.h.b16 %v4266
        %v4805 = vunpack.c.l.b16 %v4267
        %v4806 = vunpack.c.l.b16 %v4268
        %v4807 = vunpack.c.h.b16 %v4268
        %v4808 = vunpack.c.l.b16 %v4269
        %v4809 = vunpack.c.l.b16 %v4270
        %v4810 = vunpack.c.h.b16 %v4270
        %v4811 = vunpack.c.l.b16 %v4271
        %v4812 = vunpack.c.l.b16 %v4272
        %v4813 = vunpack.c.h.b16 %v4272
        %v4814 = vunpack.c.l.b16 %v4273
        %v4815 = vunpack.c.l.b16 %v4274
        %v4816 = vunpack.c.h.b16 %v4274
        %v4817 = vunpack.c.l.b16 %v4275
        %v4818 = vunpack.c.l.b16 %v4276
        %v4819 = vunpack.c.h.b16 %v4276
        %v4820 = vunpack.c.l.b16 %v4277
        %v4821 = vunpack.c.l.b16 %v4278
        %v4822 = vunpack.c.h.b16 %v4278
        %v4823 = vunpack.c.l.b16 %v4279
        %v4824 = vunpack.c.l.b16 %v4280
        %v4825 = vunpack.c.h.b16 %v4280
        %v4826 = vunpack.c.l.b16 %v4281
        %v4827 = vunpack.c.l.b16 %v4282
        %v4828 = vunpack.c.h.b16 %v4282
        %v4829 = vunpack.c.l.b16 %v4283
        %v4830 = vunpack.c.l.b16 %v4284
        %v4831 = vunpack.c.h.b16 %v4284
        %v4832 = vunpack.c.l.b16 %v4285
        %v4833 = vunpack.c.l.b16 %v4286
        %v4834 = vunpack.c.h.b16 %v4286
        %v4835 = vunpack.c.l.b16 %v4287
        %v4836 = vunpack.c.l.b16 %v4288
        %v4837 = vunpack.c.h.b16 %v4288
        %v4838 = vunpack.c.l.b16 %v4289
        %v4839 = vunpack.c.l.b16 %v4290
        %v4840 = vunpack.c.h.b16 %v4290
        %v4841 = vunpack.c.l.b16 %v4291
        %v4842 = vunpack.c.l.b16 %v4292
        %v4843 = vunpack.c.h.b16 %v4292
        %v4844 = vunpack.c.l.b16 %v4293
        %v4845 = vunpack.c.l.b16 %v4294
        %v4846 = vunpack.c.h.b16 %v4294
        %v4847 = vunpack.c.l.b16 %v4295
        %v4848 = vunpack.c.l.b16 %v4296
        %v4849 = vunpack.c.h.b16 %v4296
        %v4850 = vunpack.c.l.b16 %v4297
        %v4851 = vunpack.c.l.b16 %v4298
        %v4852 = vunpack.c.h.b16 %v4298
        %v4853 = vunpack.c.l.b16 %v4299
        %v4854 = vunpack.c.l.b16 %v4300
        %v4855 = vunpack.c.h.b16 %v4300
        %v4856 = vunpack.c.l.b16 %v4301
        %v4857 = vunpack.c.l.b16 %v4302
        %v4858 = vunpack.c.h.b16 %v4302
        %v4859 = vunpack.c.l.b16 %v4303
        %v4860 = vunpack.c.l.b16 %v4304
        %v4861 = vunpack.c.h.b16 %v4304
        %v4862 = vunpack.c.l.b16 %v4305
        %v4863 = vunpack.c.l.b16 %v4306
        %v4864 = vunpack.c.h.b16 %v4306
        %v4865 = vunpack.c.l.b16 %v4307
        %v4866 = vunpack.c.l.b16 %v4308
        %v4867 = vunpack.c.h.b16 %v4308
        %v4868 = vunpack.c.l.b16 %v4309
        %v4869 = vunpack.c.l.b16 %v4310
        %v4870 = vunpack.c.h.b16 %v4310
        %v4871 = vunpack.c.l.b16 %v4311
        %v4872 = vpack.c.b16 %v4539, %v4536
        %v4873 = vpack.c.b16 %v4540, %v4537
        %v4874 = vpack.c.b16 %v4541, %v4538
        %v4875 = vpack.c.b16 %v4545, %v4542
        %v4876 = vpack.c.b16 %v4546, %v4543
        %v4877 = vpack.c.b16 %v4547, %v4544
        %v4878 = vpack.c.b16 %v4551, %v4548
        %v4879 = vpack.c.b16 %v4552, %v4549
        %v4880 = vpack.c.b16 %v4553, %v4550
        %v4881 = vpack.c.b16 %v4557, %v4554
        %v4882 = vpack.c.b16 %v4558, %v4555
        %v4883 = vpack.c.b16 %v4559, %v4556
        %v4884 = vpack.c.b16 %v4563, %v4560
        %v4885 = vpack.c.b16 %v4564, %v4561
        %v4886 = vpack.c.b16 %v4565, %v4562
        %v4887 = vpack.c.b16 %v4569, %v4566
        %v4888 = vpack.c.b16 %v4570, %v4567
        %v4889 = vpack.c.b16 %v4571, %v4568
        %v4890 = vpack.c.b16 %v4575, %v4572
        %v4891 = vpack.c.b16 %v4576, %v4573
        %v4892 = vpack.c.b16 %v4577, %v4574
        %v4893 = vpack.c.b16 %v4581, %v4578
        %v4894 = vpack.c.b16 %v4582, %v4579
        %v4895 = vpack.c.b16 %v4583, %v4580
        %v4896 = vpack.c.b16 %v4587, %v4584
        %v4897 = vpack.c.b16 %v4588, %v4585
        %v4898 = vpack.c.b16 %v4589, %v4586
        %v4899 = vpack.c.b16 %v4593, %v4590
        %v4900 = vpack.c.b16 %v4594, %v4591
        %v4901 = vpack.c.b16 %v4595, %v4592
        %v4902 = vpack.c.b16 %v4599, %v4596
        %v4903 = vpack.c.b16 %v4600, %v4597
        %v4904 = vpack.c.b16 %v4601, %v4598
        %v4905 = vpack.c.b16 %v4605, %v4602
        %v4906 = vpack.c.b16 %v4606, %v4603
        %v4907 = vpack.c.b16 %v4607, %v4604
        %v4908 = vpack.c.b16 %v4611, %v4608
        %v4909 = vpack.c.b16 %v4612, %v4609
        %v4910 = vpack.c.b16 %v4613, %v4610
        %v4911 = vpack.c.b16 %v4617, %v4614
        %v4912 = vpack.c.b16 %v4618, %v4615
        %v4913 = vpack.c.b16 %v4619, %v4616
        %v4914 = vpack.c.b16 %v4623, %v4620
        %v4915 = vpack.c.b16 %v4624, %v4621
        %v4916 = vpack.c.b16 %v4625, %v4622
        %v4917 = vpack.c.b16 %v4629, %v4626
        %v4918 = vpack.c.b16 %v4630, %v4627
        %v4919 = vpack.c.b16 %v4631, %v4628
        %v4920 = vpack.c.b16 %v4635, %v4632
        %v4921 = vpack.c.b16 %v4636, %v4633
        %v4922 = vpack.c.b16 %v4637, %v4634
        %v4923 = vpack.c.b16 %v4641, %v4638
        %v4924 = vpack.c.b16 %v4642, %v4639
        %v4925 = vpack.c.b16 %v4643, %v4640
        %v4926 = vpack.c.b16 %v4647, %v4644
        %v4927 = vpack.c.b16 %v4648, %v4645
        %v4928 = vpack.c.b16 %v4649, %v4646
        %v4929 = vpack.c.b16 %v4653, %v4650
        %v4930 = vpack.c.b16 %v4654, %v4651
        %v4931 = vpack.c.b16 %v4655, %v4652
        %v4932 = vpack.c.b16 %v4659, %v4656
        %v4933 = vpack.c.b16 %v4660, %v4657
        %v4934 = vpack.c.b16 %v4661, %v4658
        %v4935 = vpack.c.b16 %v4665, %v4662
        %v4936 = vpack.c.b16 %v4666, %v4663
        %v4937 = vpack.c.b16 %v4667, %v4664
        %v4938 = vpack.c.b16 %v4671, %v4668
        %v4939 = vpack.c.b16 %v4672, %v4669
        %v4940 = vpack.c.b16 %v4673, %v4670
        %v4941 = vpack.c.b16 %v4677, %v4674
        %v4942 = vpack.c.b16 %v4678, %v4675
        %v4943 = vpack.c.b16 %v4679, %v4676
        %v4944 = vpack.c.b16 %v4683, %v4680
        %v4945 = vpack.c.b16 %v4684, %v4681
        %v4946 = vpack.c.b16 %v4685, %v4682
        %v4947 = vpack.c.b16 %v4689, %v4686
        %v4948 = vpack.c.b16 %v4690, %v4687
        %v4949 = vpack.c.b16 %v4691, %v4688
        %v4950 = vpack.c.b16 %v4695, %v4692
        %v4951 = vpack.c.b16 %v4696, %v4693
        %v4952 = vpack.c.b16 %v4697, %v4694
        %v4953 = vpack.c.b16 %v4701, %v4698
        %v4954 = vpack.c.b16 %v4702, %v4699
        %v4955 = vpack.c.b16 %v4703, %v4700
        %v4956 = vpack.c.b16 %v4707, %v4704
        %v4957 = vpack.c.b16 %v4708, %v4705
        %v4958 = vpack.c.b16 %v4709, %v4706
        %v4959 = vpack.c.b16 %v4713, %v4710
        %v4960 = vpack.c.b16 %v4714, %v4711
        %v4961 = vpack.c.b16 %v4715, %v4712
        %v4962 = vpack.c.b16 %v4719, %v4716
        %v4963 = vpack.c.b16 %v4720, %v4717
        %v4964 = vpack.c.b16 %v4721, %v4718
        %v4965 = vpack.c.b16 %v4725, %v4722
        %v4966 = vpack.c.b16 %v4726, %v4723
        %v4967 = vpack.c.b16 %v4727, %v4724
        %v4968 = vpack.c.b16 %v4731, %v4728
        %v4969 = vpack.c.b16 %v4732, %v4729
        %v4970 = vpack.c.b16 %v4733, %v4730
        %v4971 = vpack.c.b16 %v4737, %v4734
        %v4972 = vpack.c.b16 %v4738, %v4735
        %v4973 = vpack.c.b16 %v4739, %v4736
        %v4974 = vpack.c.b16 %v4743, %v4740
        %v4975 = vpack.c.b16 %v4744, %v4741
        %v4976 = vpack.c.b16 %v4745, %v4742
        %v4977 = vpack.c.b16 %v4749, %v4746
        %v4978 = vpack.c.b16 %v4750, %v4747
        %v4979 = vpack.c.b16 %v4751, %v4748
        %v4980 = vpack.c.b16 %v4755, %v4752
        %v4981 = vpack.c.b16 %v4756, %v4753
        %v4982 = vpack.c.b16 %v4757, %v4754
        %v4983 = vpack.c.b16 %v4761, %v4758
        %v4984 = vpack.c.b16 %v4762, %v4759
        %v4985 = vpack.c.b16 %v4763, %v4760
        %v4986 = vpack.c.b16 %v4767, %v4764
        %v4987 = vpack.c.b16 %v4768, %v4765
        %v4988 = vpack.c.b16 %v4769, %v4766
        %v4989 = vpack.c.b16 %v4773, %v4770
        %v4990 = vpack.c.b16 %v4774, %v4771
        %v4991 = vpack.c.b16 %v4775, %v4772
        %v4992 = vpack.c.b16 %v4779, %v4776
        %v4993 = vpack.c.b16 %v4780, %v4777
        %v4994 = vpack.c.b16 %v4781, %v4778
        %v4995 = vpack.c.b16 %v4785, %v4782
        %v4996 = vpack.c.b16 %v4786, %v4783
        %v4997 = vpack.c.b16 %v4787, %v4784
        %v4998 = vpack.c.b16 %v4791, %v4788
        %v4999 = vpack.c.b16 %v4792, %v4789
        %v5000 = vpack.c.b16 %v4793, %v4790
        %v5001 = vpack.c.b16 %v4797, %v4794
        %v5002 = vpack.c.b16 %v4798, %v4795
        %v5003 = vpack.c.b16 %v4799, %v4796
        %v5004 = vpack.c.b16 %v4803, %v4800
        %v5005 = vpack.c.b16 %v4804, %v4801
        %v5006 = vpack.c.b16 %v4805, %v4802
        %v5007 = vpack.c.b16 %v4809, %v4806
        %v5008 = vpack.c.b16 %v4810, %v4807
        %v5009 = vpack.c.b16 %v4811, %v4808
        %v5010 = vpack.c.b16 %v4815, %v4812
        %v5011 = vpack.c.b16 %v4816, %v4813
        %v5012 = vpack.c.b16 %v4817, %v4814
        %v5013 = vpack.c.b16 %v4821, %v4818
        %v5014 = vpack.c.b16 %v4822, %v4819
        %v5015 = vpack.c.b16 %v4823, %v4820
        %v5016 = vpack.c.b16 %v4827, %v4824
        %v5017 = vpack.c.b16 %v4828, %v4825
        %v5018 = vpack.c.b16 %v4829, %v4826
        %v5019 = vpack.c.b16 %v4833, %v4830
        %v5020 = vpack.c.b16 %v4834, %v4831
        %v5021 = vpack.c.b16 %v4835, %v4832
        %v5022 = vpack.c.b16 %v4839, %v4836
        %v5023 = vpack.c.b16 %v4840, %v4837
        %v5024 = vpack.c.b16 %v4841, %v4838
        %v5025 = vpack.c.b16 %v4845, %v4842
        %v5026 = vpack.c.b16 %v4846, %v4843
        %v5027 = vpack.c.b16 %v4847, %v4844
        %v5028 = vpack.c.b16 %v4851, %v4848
        %v5029 = vpack.c.b16 %v4852, %v4849
        %v5030 = vpack.c.b16 %v4853, %v4850
        %v5031 = vpack.c.b16 %v4857, %v4854
        %v5032 = vpack.c.b16 %v4858, %v4855
        %v5033 = vpack.c.b16 %v4859, %v4856
        %v5034 = vpack.c.b16 %v4863, %v4860
        %v5035 = vpack.c.b16 %v4864, %v4861
        %v5036 = vpack.c.b16 %v4865, %v4862
        %v5037 = vpack.c.b16 %v4869, %v4866
        %v5038 = vpack.c.b16 %v4870, %v4867
        %v5039 = vpack.c.b16 %v4871, %v4868
        %5208 = vmatpush.bf16.msra.mxu0 %v4893
        %5209 = vmatpush.bf16.msra.mxu0 %v4890
        %5210 = vmatpush.bf16.msra.mxu0 %v4887
        %5211 = vmatpush.bf16.msra.mxu0 %v4884
        %5212 = vmatpush.bf16.msra.mxu0 %v4881
        %5213 = vmatpush.bf16.msra.mxu0 %v4878
        %5214 = vmatpush.bf16.msra.mxu0 %v4875
        %5215 = vmatpush.bf16.msra.mxu0 %v4872
        %5216 = vmatmul.bf16.gmra.mxu0 %v1245
        %v5217 = vpop.f32.mrf.mxu0
        %v5218 = vadd.f32 0.0, %v5217
        %v5219 = vpop.f32.mrf.mxu0
        %v5220 = vadd.f32 0.0, %v5219
        %5221 = vdwg.mxu0
        %5222 = vmatpush.bf16.msra.mxu0 %v4917
        %5223 = vmatpush.bf16.msra.mxu0 %v4914
        %5224 = vmatpush.bf16.msra.mxu0 %v4911
        %5225 = vmatpush.bf16.msra.mxu0 %v4908
        %5226 = vmatpush.bf16.msra.mxu0 %v4905
        %5227 = vmatpush.bf16.msra.mxu0 %v4902
        %5228 = vmatpush.bf16.msra.mxu0 %v4899
        %5229 = vmatpush.bf16.msra.mxu0 %v4896
        %5230 = vmatmul.bf16.gmra.mxu0 %v1246
        %v5231 = vpop.f32.mrf.mxu0
        %v5232 = vadd.f32 %v5218, %v5231
        %v5233 = vpop.f32.mrf.mxu0
        %v5234 = vadd.f32 %v5220, %v5233
        %5235 = vdwg.mxu0
        %5236 = vmatpush.bf16.msra.mxu0 %v4941
        %5237 = vmatpush.bf16.msra.mxu0 %v4938
        %5238 = vmatpush.bf16.msra.mxu0 %v4935
        %5239 = vmatpush.bf16.msra.mxu0 %v4932
        %5240 = vmatpush.bf16.msra.mxu0 %v4929
        %5241 = vmatpush.bf16.msra.mxu0 %v4926
        %5242 = vmatpush.bf16.msra.mxu0 %v4923
        %5243 = vmatpush.bf16.msra.mxu0 %v4920
        %5244 = vmatmul.bf16.gmra.mxu0 %v1247
        %v5245 = vpop.f32.mrf.mxu0
        %v5246 = vadd.f32 %v5232, %v5245
        %v5247 = vpop.f32.mrf.mxu0
        %v5248 = vadd.f32 %v5234, %v5247
        %5249 = vdwg.mxu0
        %5250 = vmatpush.bf16.msra.mxu0 %v4965
        %5251 = vmatpush.bf16.msra.mxu0 %v4962
        %5252 = vmatpush.bf16.msra.mxu0 %v4959
        %5253 = vmatpush.bf16.msra.mxu0 %v4956
        %5254 = vmatpush.bf16.msra.mxu0 %v4953
        %5255 = vmatpush.bf16.msra.mxu0 %v4950
        %5256 = vmatpush.bf16.msra.mxu0 %v4947
        %5257 = vmatpush.bf16.msra.mxu0 %v4944
        %5258 = vmatmul.bf16.gmra.mxu0 %v1248
        %v5259 = vpop.f32.mrf.mxu0
        %v5260 = vadd.f32 %v5246, %v5259
        %v5261 = vpop.f32.mrf.mxu0
        %v5262 = vadd.f32 %v5248, %v5261
        %5263 = vdwg.mxu0
        %5264 = vmatpush.bf16.msra.mxu0 %v4989
        %5265 = vmatpush.bf16.msra.mxu0 %v4986
        %5266 = vmatpush.bf16.msra.mxu0 %v4983
        %5267 = vmatpush.bf16.msra.mxu0 %v4980
        %5268 = vmatpush.bf16.msra.mxu0 %v4977
        %5269 = vmatpush.bf16.msra.mxu0 %v4974
        %5270 = vmatpush.bf16.msra.mxu0 %v4971
        %5271 = vmatpush.bf16.msra.mxu0 %v4968
        %5272 = vmatmul.bf16.gmra.mxu0 %v1249
        %v5273 = vpop.f32.mrf.mxu0
        %v5274 = vadd.f32 %v5260, %v5273
        %v5275 = vpop.f32.mrf.mxu0
        %v5276 = vadd.f32 %v5262, %v5275
        %5277 = vdwg.mxu0
        %5278 = vmatpush.bf16.msra.mxu0 %v5013
        %5279 = vmatpush.bf16.msra.mxu0 %v5010
        %5280 = vmatpush.bf16.msra.mxu0 %v5007
        %5281 = vmatpush.bf16.msra.mxu0 %v5004
        %5282 = vmatpush.bf16.msra.mxu0 %v5001
        %5283 = vmatpush.bf16.msra.mxu0 %v4998
        %5284 = vmatpush.bf16.msra.mxu0 %v4995
        %5285 = vmatpush.bf16.msra.mxu0 %v4992
        %5286 = vmatmul.bf16.gmra.mxu0 %v1250
        %v5287 = vpop.f32.mrf.mxu0
        %v5288 = vadd.f32 %v5274, %v5287
        %v5289 = vpop.f32.mrf.mxu0
        %v5290 = vadd.f32 %v5276, %v5289
        %5291 = vdwg.mxu0
        %5292 = vmatpush.bf16.msra.mxu0 %v5037
        %5293 = vmatpush.bf16.msra.mxu0 %v5034
        %5294 = vmatpush.bf16.msra.mxu0 %v5031
        %5295 = vmatpush.bf16.msra.mxu0 %v5028
        %5296 = vmatpush.bf16.msra.mxu0 %v5025
        %5297 = vmatpush.bf16.msra.mxu0 %v5022
        %5298 = vmatpush.bf16.msra.mxu0 %v5019
        %5299 = vmatpush.bf16.msra.mxu0 %v5016
        %5300 = vmatmul.bf16.gmra.mxu0 %v1251
        %v5301 = vpop.f32.mrf.mxu0
        %v5302 = vadd.f32 %v5288, %v5301
        %v5303 = vpop.f32.mrf.mxu0
        %v5304 = vadd.f32 %v5290, %v5303
        %5305 = vdwg.mxu0
        %5306 = vmatpush.bf16.msra.mxu0 %v4894
        %5307 = vmatpush.bf16.msra.mxu0 %v4891
        %5308 = vmatpush.bf16.msra.mxu0 %v4888
        %5309 = vmatpush.bf16.msra.mxu0 %v4885
        %5310 = vmatpush.bf16.msra.mxu0 %v4882
        %5311 = vmatpush.bf16.msra.mxu0 %v4879
        %5312 = vmatpush.bf16.msra.mxu0 %v4876
        %5313 = vmatpush.bf16.msra.mxu0 %v4873
        %5314 = vmatmul.bf16.gmra.mxu0 %v1245
        %v5315 = vpop.f32.mrf.mxu0
        %v5316 = vadd.f32 0.0, %v5315
        %v5317 = vpop.f32.mrf.mxu0
        %v5318 = vadd.f32 0.0, %v5317
        %5319 = vdwg.mxu0
        %5320 = vmatpush.bf16.msra.mxu0 %v4918
        %5321 = vmatpush.bf16.msra.mxu0 %v4915
        %5322 = vmatpush.bf16.msra.mxu0 %v4912
        %5323 = vmatpush.bf16.msra.mxu0 %v4909
        %5324 = vmatpush.bf16.msra.mxu0 %v4906
        %5325 = vmatpush.bf16.msra.mxu0 %v4903
        %5326 = vmatpush.bf16.msra.mxu0 %v4900
        %5327 = vmatpush.bf16.msra.mxu0 %v4897
        %5328 = vmatmul.bf16.gmra.mxu0 %v1246
        %v5329 = vpop.f32.mrf.mxu0
        %v5330 = vadd.f32 %v5316, %v5329
        %v5331 = vpop.f32.mrf.mxu0
        %v5332 = vadd.f32 %v5318, %v5331
        %5333 = vdwg.mxu0
        %5334 = vmatpush.bf16.msra.mxu0 %v4942
        %5335 = vmatpush.bf16.msra.mxu0 %v4939
        %5336 = vmatpush.bf16.msra.mxu0 %v4936
        %5337 = vmatpush.bf16.msra.mxu0 %v4933
        %5338 = vmatpush.bf16.msra.mxu0 %v4930
        %5339 = vmatpush.bf16.msra.mxu0 %v4927
        %5340 = vmatpush.bf16.msra.mxu0 %v4924
        %5341 = vmatpush.bf16.msra.mxu0 %v4921
        %5342 = vmatmul.bf16.gmra.mxu0 %v1247
        %v5343 = vpop.f32.mrf.mxu0
        %v5344 = vadd.f32 %v5330, %v5343
        %v5345 = vpop.f32.mrf.mxu0
        %v5346 = vadd.f32 %v5332, %v5345
        %5347 = vdwg.mxu0
        %5348 = vmatpush.bf16.msra.mxu0 %v4966
        %5349 = vmatpush.bf16.msra.mxu0 %v4963
        %5350 = vmatpush.bf16.msra.mxu0 %v4960
        %5351 = vmatpush.bf16.msra.mxu0 %v4957
        %5352 = vmatpush.bf16.msra.mxu0 %v4954
        %5353 = vmatpush.bf16.msra.mxu0 %v4951
        %5354 = vmatpush.bf16.msra.mxu0 %v4948
        %5355 = vmatpush.bf16.msra.mxu0 %v4945
        %5356 = vmatmul.bf16.gmra.mxu0 %v1248
        %v5357 = vpop.f32.mrf.mxu0
        %v5358 = vadd.f32 %v5344, %v5357
        %v5359 = vpop.f32.mrf.mxu0
        %v5360 = vadd.f32 %v5346, %v5359
        %5361 = vdwg.mxu0
        %5362 = vmatpush.bf16.msra.mxu0 %v4990
        %5363 = vmatpush.bf16.msra.mxu0 %v4987
        %5364 = vmatpush.bf16.msra.mxu0 %v4984
        %5365 = vmatpush.bf16.msra.mxu0 %v4981
        %5366 = vmatpush.bf16.msra.mxu0 %v4978
        %5367 = vmatpush.bf16.msra.mxu0 %v4975
        %5368 = vmatpush.bf16.msra.mxu0 %v4972
        %5369 = vmatpush.bf16.msra.mxu0 %v4969
        %5370 = vmatmul.bf16.gmra.mxu0 %v1249
        %v5371 = vpop.f32.mrf.mxu0
        %v5372 = vadd.f32 %v5358, %v5371
        %v5373 = vpop.f32.mrf.mxu0
        %v5374 = vadd.f32 %v5360, %v5373
        %5375 = vdwg.mxu0
        %5376 = vmatpush.bf16.msra.mxu0 %v5014
        %5377 = vmatpush.bf16.msra.mxu0 %v5011
        %5378 = vmatpush.bf16.msra.mxu0 %v5008
        %5379 = vmatpush.bf16.msra.mxu0 %v5005
        %5380 = vmatpush.bf16.msra.mxu0 %v5002
        %5381 = vmatpush.bf16.msra.mxu0 %v4999
        %5382 = vmatpush.bf16.msra.mxu0 %v4996
        %5383 = vmatpush.bf16.msra.mxu0 %v4993
        %5384 = vmatmul.bf16.gmra.mxu0 %v1250
        %v5385 = vpop.f32.mrf.mxu0
        %v5386 = vadd.f32 %v5372, %v5385
        %v5387 = vpop.f32.mrf.mxu0
        %v5388 = vadd.f32 %v5374, %v5387
        %5389 = vdwg.mxu0
        %5390 = vmatpush.bf16.msra.mxu0 %v5038
        %5391 = vmatpush.bf16.msra.mxu0 %v5035
        %5392 = vmatpush.bf16.msra.mxu0 %v5032
        %5393 = vmatpush.bf16.msra.mxu0 %v5029
        %5394 = vmatpush.bf16.msra.mxu0 %v5026
        %5395 = vmatpush.bf16.msra.mxu0 %v5023
        %5396 = vmatpush.bf16.msra.mxu0 %v5020
        %5397 = vmatpush.bf16.msra.mxu0 %v5017
        %5398 = vmatmul.bf16.gmra.mxu0 %v1251
        %v5399 = vpop.f32.mrf.mxu0
        %v5400 = vadd.f32 %v5386, %v5399
        %v5401 = vpop.f32.mrf.mxu0
        %v5402 = vadd.f32 %v5388, %v5401
        %5403 = vdwg.mxu0
        %5404 = vmatpush.bf16.msra.mxu0 %v4895
        %5405 = vmatpush.bf16.msra.mxu0 %v4892
        %5406 = vmatpush.bf16.msra.mxu0 %v4889
        %5407 = vmatpush.bf16.msra.mxu0 %v4886
        %5408 = vmatpush.bf16.msra.mxu0 %v4883
        %5409 = vmatpush.bf16.msra.mxu0 %v4880
        %5410 = vmatpush.bf16.msra.mxu0 %v4877
        %5411 = vmatpush.bf16.msra.mxu0 %v4874
        %5412 = vmatmul.bf16.gmra.mxu0 %v1245
        %v5413 = vpop.f32.mrf.mxu0
        %v5414 = vadd.f32 0.0, %v5413
        %v5415 = vpop.f32.mrf.mxu0
        %v5416 = vadd.f32 0.0, %v5415
        %5417 = vdwg.mxu0
        %5418 = vmatpush.bf16.msra.mxu0 %v4919
        %5419 = vmatpush.bf16.msra.mxu0 %v4916
        %5420 = vmatpush.bf16.msra.mxu0 %v4913
        %5421 = vmatpush.bf16.msra.mxu0 %v4910
        %5422 = vmatpush.bf16.msra.mxu0 %v4907
        %5423 = vmatpush.bf16.msra.mxu0 %v4904
        %5424 = vmatpush.bf16.msra.mxu0 %v4901
        %5425 = vmatpush.bf16.msra.mxu0 %v4898
        %5426 = vmatmul.bf16.gmra.mxu0 %v1246
        %v5427 = vpop.f32.mrf.mxu0
        %v5428 = vadd.f32 %v5414, %v5427
        %v5429 = vpop.f32.mrf.mxu0
        %v5430 = vadd.f32 %v5416, %v5429
        %5431 = vdwg.mxu0
        %5432 = vmatpush.bf16.msra.mxu0 %v4943
        %5433 = vmatpush.bf16.msra.mxu0 %v4940
        %5434 = vmatpush.bf16.msra.mxu0 %v4937
        %5435 = vmatpush.bf16.msra.mxu0 %v4934
        %5436 = vmatpush.bf16.msra.mxu0 %v4931
        %5437 = vmatpush.bf16.msra.mxu0 %v4928
        %5438 = vmatpush.bf16.msra.mxu0 %v4925
        %5439 = vmatpush.bf16.msra.mxu0 %v4922
        %5440 = vmatmul.bf16.gmra.mxu0 %v1247
        %v5441 = vpop.f32.mrf.mxu0
        %v5442 = vadd.f32 %v5428, %v5441
        %v5443 = vpop.f32.mrf.mxu0
        %v5444 = vadd.f32 %v5430, %v5443
        %5445 = vdwg.mxu0
        %5446 = vmatpush.bf16.msra.mxu0 %v4967
        %5447 = vmatpush.bf16.msra.mxu0 %v4964
        %5448 = vmatpush.bf16.msra.mxu0 %v4961
        %5449 = vmatpush.bf16.msra.mxu0 %v4958
        %5450 = vmatpush.bf16.msra.mxu0 %v4955
        %5451 = vmatpush.bf16.msra.mxu0 %v4952
        %5452 = vmatpush.bf16.msra.mxu0 %v4949
        %5453 = vmatpush.bf16.msra.mxu0 %v4946
        %5454 = vmatmul.bf16.gmra.mxu0 %v1248
        %v5455 = vpop.f32.mrf.mxu0
        %v5456 = vadd.f32 %v5442, %v5455
        %v5457 = vpop.f32.mrf.mxu0
        %v5458 = vadd.f32 %v5444, %v5457
        %5459 = vdwg.mxu0
        %5460 = vmatpush.bf16.msra.mxu0 %v4991
        %5461 = vmatpush.bf16.msra.mxu0 %v4988
        %5462 = vmatpush.bf16.msra.mxu0 %v4985
        %5463 = vmatpush.bf16.msra.mxu0 %v4982
        %5464 = vmatpush.bf16.msra.mxu0 %v4979
        %5465 = vmatpush.bf16.msra.mxu0 %v4976
        %5466 = vmatpush.bf16.msra.mxu0 %v4973
        %5467 = vmatpush.bf16.msra.mxu0 %v4970
        %5468 = vmatmul.bf16.gmra.mxu0 %v1249
        %v5469 = vpop.f32.mrf.mxu0
        %v5470 = vadd.f32 %v5456, %v5469
        %v5471 = vpop.f32.mrf.mxu0
        %v5472 = vadd.f32 %v5458, %v5471
        %5473 = vdwg.mxu0
        %5474 = vmatpush.bf16.msra.mxu0 %v5015
        %5475 = vmatpush.bf16.msra.mxu0 %v5012
        %5476 = vmatpush.bf16.msra.mxu0 %v5009
        %5477 = vmatpush.bf16.msra.mxu0 %v5006
        %5478 = vmatpush.bf16.msra.mxu0 %v5003
        %5479 = vmatpush.bf16.msra.mxu0 %v5000
        %5480 = vmatpush.bf16.msra.mxu0 %v4997
        %5481 = vmatpush.bf16.msra.mxu0 %v4994
        %5482 = vmatmul.bf16.gmra.mxu0 %v1250
        %v5483 = vpop.f32.mrf.mxu0
        %v5484 = vadd.f32 %v5470, %v5483
        %v5485 = vpop.f32.mrf.mxu0
        %v5486 = vadd.f32 %v5472, %v5485
        %5487 = vdwg.mxu0
        %5488 = vmatpush.bf16.msra.mxu0 %v5039
        %5489 = vmatpush.bf16.msra.mxu0 %v5036
        %5490 = vmatpush.bf16.msra.mxu0 %v5033
        %5491 = vmatpush.bf16.msra.mxu0 %v5030
        %5492 = vmatpush.bf16.msra.mxu0 %v5027
        %5493 = vmatpush.bf16.msra.mxu0 %v5024
        %5494 = vmatpush.bf16.msra.mxu0 %v5021
        %5495 = vmatpush.bf16.msra.mxu0 %v5018
        %5496 = vmatmul.bf16.gmra.mxu0 %v1251
        %v5497 = vpop.f32.mrf.mxu0
        %v5498 = vadd.f32 %v5484, %v5497
        %v5499 = vpop.f32.mrf.mxu0
        %v5500 = vadd.f32 %v5486, %v5499
        %5501 = vdwg.mxu0
        %v5502 = vmax.f32 %v4081, %v5302
        %v5503 = vmax.f32 %v4082, %v5400
        %v5504 = vmax.f32 %v4083, %v5498
        %v5505 = vmax.f32 %v4084, %v5304
        %v5506 = vmax.f32 %v4085, %v5402
        %v5507 = vmax.f32 %v4086, %v5500
        %s5508 = scalar_lea.vmem %s3, 4032
        %v5509 = vld [vmem:[%s5508] sm:$0xff]
        %v5510 = vld [vmem:[%s5508 + $0x8] sm:$0xf]
        %v5511 = vld [vmem:[%s5508 + $0xc] sm:$0xff]
        %v5512 = vld [vmem:[%s5508 + $0x14] sm:$0xf]
        %v5513 = vld [vmem:[%s5508 + $0x18] sm:$0xff]
        %v5514 = vld [vmem:[%s5508 + $0x20] sm:$0xf]
        %v5515 = vld [vmem:[%s5508 + $0x24] sm:$0xff]
        %v5516 = vld [vmem:[%s5508 + $0x2c] sm:$0xf]
        %v5517 = vld [vmem:[%s5508 + $0x30] sm:$0xff]
        %v5518 = vld [vmem:[%s5508 + $0x38] sm:$0xf]
        %v5519 = vld [vmem:[%s5508 + $0x3c] sm:$0xff]
        %v5520 = vld [vmem:[%s5508 + $0x44] sm:$0xf]
        %v5521 = vld [vmem:[%s5508 + $0x48] sm:$0xff]
        %v5522 = vld [vmem:[%s5508 + $0x50] sm:$0xf]
        %v5523 = vld [vmem:[%s5508 + $0x54] sm:$0xff]
        %v5524 = vld [vmem:[%s5508 + $0x5c] sm:$0xf]
        %v5525 = vld [vmem:[%s5508 + $0x60] sm:$0xff]
        %v5526 = vld [vmem:[%s5508 + $0x68] sm:$0xf]
        %v5527 = vld [vmem:[%s5508 + $0x6c] sm:$0xff]
        %v5528 = vld [vmem:[%s5508 + $0x74] sm:$0xf]
        %v5529 = vld [vmem:[%s5508 + $0x78] sm:$0xff]
        %v5530 = vld [vmem:[%s5508 + $0x80] sm:$0xf]
        %v5531 = vld [vmem:[%s5508 + $0x84] sm:$0xff]
        %v5532 = vld [vmem:[%s5508 + $0x8c] sm:$0xf]
        %v5533 = vld [vmem:[%s5508 + $0x90] sm:$0xff]
        %v5534 = vld [vmem:[%s5508 + $0x98] sm:$0xf]
        %v5535 = vld [vmem:[%s5508 + $0x9c] sm:$0xff]
        %v5536 = vld [vmem:[%s5508 + $0xa4] sm:$0xf]
        %v5537 = vld [vmem:[%s5508 + $0xa8] sm:$0xff]
        %v5538 = vld [vmem:[%s5508 + $0xb0] sm:$0xf]
        %v5539 = vld [vmem:[%s5508 + $0xb4] sm:$0xff]
        %v5540 = vld [vmem:[%s5508 + $0xbc] sm:$0xf]
        %v5541 = vld [vmem:[%s5508 + $0xc0] sm:$0xff]
        %v5542 = vld [vmem:[%s5508 + $0xc8] sm:$0xf]
        %v5543 = vld [vmem:[%s5508 + $0xcc] sm:$0xff]
        %v5544 = vld [vmem:[%s5508 + $0xd4] sm:$0xf]
        %v5545 = vld [vmem:[%s5508 + $0xd8] sm:$0xff]
        %v5546 = vld [vmem:[%s5508 + $0xe0] sm:$0xf]
        %v5547 = vld [vmem:[%s5508 + $0xe4] sm:$0xff]
        %v5548 = vld [vmem:[%s5508 + $0xec] sm:$0xf]
        %v5549 = vld [vmem:[%s5508 + $0xf0] sm:$0xff]
        %v5550 = vld [vmem:[%s5508 + $0xf8] sm:$0xf]
        %v5551 = vld [vmem:[%s5508 + $0xfc] sm:$0xff]
        %v5552 = vld [vmem:[%s5508 + $0x104] sm:$0xf]
        %v5553 = vld [vmem:[%s5508 + $0x108] sm:$0xff]
        %v5554 = vld [vmem:[%s5508 + $0x110] sm:$0xf]
        %v5555 = vld [vmem:[%s5508 + $0x114] sm:$0xff]
        %v5556 = vld [vmem:[%s5508 + $0x11c] sm:$0xf]
        %v5557 = vld [vmem:[%s5508 + $0x120] sm:$0xff]
        %v5558 = vld [vmem:[%s5508 + $0x128] sm:$0xf]
        %v5559 = vld [vmem:[%s5508 + $0x12c] sm:$0xff]
        %v5560 = vld [vmem:[%s5508 + $0x134] sm:$0xf]
        %v5561 = vld [vmem:[%s5508 + $0x138] sm:$0xff]
        %v5562 = vld [vmem:[%s5508 + $0x140] sm:$0xf]
        %v5563 = vld [vmem:[%s5508 + $0x144] sm:$0xff]
        %v5564 = vld [vmem:[%s5508 + $0x14c] sm:$0xf]
        %v5565 = vld [vmem:[%s5508 + $0x150] sm:$0xff]
        %v5566 = vld [vmem:[%s5508 + $0x158] sm:$0xf]
        %v5567 = vld [vmem:[%s5508 + $0x15c] sm:$0xff]
        %v5568 = vld [vmem:[%s5508 + $0x164] sm:$0xf]
        %v5569 = vld [vmem:[%s5508 + $0x168] sm:$0xff]
        %v5570 = vld [vmem:[%s5508 + $0x170] sm:$0xf]
        %v5571 = vld [vmem:[%s5508 + $0x174] sm:$0xff]
        %v5572 = vld [vmem:[%s5508 + $0x17c] sm:$0xf]
        %v5573 = vld [vmem:[%s5508 + $0x180] sm:$0xff]
        %v5574 = vld [vmem:[%s5508 + $0x188] sm:$0xf]
        %v5575 = vld [vmem:[%s5508 + $0x18c] sm:$0xff]
        %v5576 = vld [vmem:[%s5508 + $0x194] sm:$0xf]
        %v5577 = vld [vmem:[%s5508 + $0x198] sm:$0xff]
        %v5578 = vld [vmem:[%s5508 + $0x1a0] sm:$0xf]
        %v5579 = vld [vmem:[%s5508 + $0x1a4] sm:$0xff]
        %v5580 = vld [vmem:[%s5508 + $0x1ac] sm:$0xf]
        %v5581 = vld [vmem:[%s5508 + $0x1b0] sm:$0xff]
        %v5582 = vld [vmem:[%s5508 + $0x1b8] sm:$0xf]
        %v5583 = vld [vmem:[%s5508 + $0x1bc] sm:$0xff]
        %v5584 = vld [vmem:[%s5508 + $0x1c4] sm:$0xf]
        %v5585 = vld [vmem:[%s5508 + $0x1c8] sm:$0xff]
        %v5586 = vld [vmem:[%s5508 + $0x1d0] sm:$0xf]
        %v5587 = vld [vmem:[%s5508 + $0x1d4] sm:$0xff]
        %v5588 = vld [vmem:[%s5508 + $0x1dc] sm:$0xf]
        %v5589 = vld [vmem:[%s5508 + $0x1e0] sm:$0xff]
        %v5590 = vld [vmem:[%s5508 + $0x1e8] sm:$0xf]
        %v5591 = vld [vmem:[%s5508 + $0x1ec] sm:$0xff]
        %v5592 = vld [vmem:[%s5508 + $0x1f4] sm:$0xf]
        %v5593 = vld [vmem:[%s5508 + $0x1f8] sm:$0xff]
        %v5594 = vld [vmem:[%s5508 + $0x200] sm:$0xf]
        %v5595 = vld [vmem:[%s5508 + $0x204] sm:$0xff]
        %v5596 = vld [vmem:[%s5508 + $0x20c] sm:$0xf]
        %v5597 = vld [vmem:[%s5508 + $0x210] sm:$0xff]
        %v5598 = vld [vmem:[%s5508 + $0x218] sm:$0xf]
        %v5599 = vld [vmem:[%s5508 + $0x21c] sm:$0xff]
        %v5600 = vld [vmem:[%s5508 + $0x224] sm:$0xf]
        %v5601 = vld [vmem:[%s5508 + $0x228] sm:$0xff]
        %v5602 = vld [vmem:[%s5508 + $0x230] sm:$0xf]
        %v5603 = vld [vmem:[%s5508 + $0x234] sm:$0xff]
        %v5604 = vld [vmem:[%s5508 + $0x23c] sm:$0xf]
        %v5605 = vld [vmem:[%s5508 + $0x240] sm:$0xff]
        %v5606 = vld [vmem:[%s5508 + $0x248] sm:$0xf]
        %v5607 = vld [vmem:[%s5508 + $0x24c] sm:$0xff]
        %v5608 = vld [vmem:[%s5508 + $0x254] sm:$0xf]
        %v5609 = vld [vmem:[%s5508 + $0x258] sm:$0xff]
        %v5610 = vld [vmem:[%s5508 + $0x260] sm:$0xf]
        %v5611 = vld [vmem:[%s5508 + $0x264] sm:$0xff]
        %v5612 = vld [vmem:[%s5508 + $0x26c] sm:$0xf]
        %v5613 = vld [vmem:[%s5508 + $0x270] sm:$0xff]
        %v5614 = vld [vmem:[%s5508 + $0x278] sm:$0xf]
        %v5615 = vld [vmem:[%s5508 + $0x27c] sm:$0xff]
        %v5616 = vld [vmem:[%s5508 + $0x284] sm:$0xf]
        %v5617 = vld [vmem:[%s5508 + $0x288] sm:$0xff]
        %v5618 = vld [vmem:[%s5508 + $0x290] sm:$0xf]
        %v5619 = vld [vmem:[%s5508 + $0x294] sm:$0xff]
        %v5620 = vld [vmem:[%s5508 + $0x29c] sm:$0xf]
        %v5621 = vld [vmem:[%s5508 + $0x2a0] sm:$0xff]
        %v5622 = vld [vmem:[%s5508 + $0x2a8] sm:$0xf]
        %v5623 = vld [vmem:[%s5508 + $0x2ac] sm:$0xff]
        %v5624 = vld [vmem:[%s5508 + $0x2b4] sm:$0xf]
        %v5625 = vld [vmem:[%s5508 + $0x2b8] sm:$0xff]
        %v5626 = vld [vmem:[%s5508 + $0x2c0] sm:$0xf]
        %v5627 = vld [vmem:[%s5508 + $0x2c4] sm:$0xff]
        %v5628 = vld [vmem:[%s5508 + $0x2cc] sm:$0xf]
        %v5629 = vld [vmem:[%s5508 + $0x2d0] sm:$0xff]
        %v5630 = vld [vmem:[%s5508 + $0x2d8] sm:$0xf]
        %v5631 = vld [vmem:[%s5508 + $0x2dc] sm:$0xff]
        %v5632 = vld [vmem:[%s5508 + $0x2e4] sm:$0xf]
        %v5633 = vld [vmem:[%s5508 + $0x2e8] sm:$0xff]
        %v5634 = vld [vmem:[%s5508 + $0x2f0] sm:$0xf]
        %v5635 = vld [vmem:[%s5508 + $0x2f4] sm:$0xff]
        %v5636 = vld [vmem:[%s5508 + $0x2fc] sm:$0xf]
        %v5637 = vld [vmem:[%s5508 + $0x300] sm:$0xff]
        %v5638 = vld [vmem:[%s5508 + $0x308] sm:$0xf]
        %v5639 = vld [vmem:[%s5508 + $0x30c] sm:$0xff]
        %v5640 = vld [vmem:[%s5508 + $0x314] sm:$0xf]
        %v5641 = vld [vmem:[%s5508 + $0x318] sm:$0xff]
        %v5642 = vld [vmem:[%s5508 + $0x320] sm:$0xf]
        %v5643 = vld [vmem:[%s5508 + $0x324] sm:$0xff]
        %v5644 = vld [vmem:[%s5508 + $0x32c] sm:$0xf]
        %v5645 = vld [vmem:[%s5508 + $0x330] sm:$0xff]
        %v5646 = vld [vmem:[%s5508 + $0x338] sm:$0xf]
        %v5647 = vld [vmem:[%s5508 + $0x33c] sm:$0xff]
        %v5648 = vld [vmem:[%s5508 + $0x344] sm:$0xf]
        %v5649 = vld [vmem:[%s5508 + $0x348] sm:$0xff]
        %v5650 = vld [vmem:[%s5508 + $0x350] sm:$0xf]
        %v5651 = vld [vmem:[%s5508 + $0x354] sm:$0xff]
        %v5652 = vld [vmem:[%s5508 + $0x35c] sm:$0xf]
        %v5653 = vld [vmem:[%s5508 + $0x360] sm:$0xff]
        %v5654 = vld [vmem:[%s5508 + $0x368] sm:$0xf]
        %v5655 = vld [vmem:[%s5508 + $0x36c] sm:$0xff]
        %v5656 = vld [vmem:[%s5508 + $0x374] sm:$0xf]
        %v5657 = vld [vmem:[%s5508 + $0x378] sm:$0xff]
        %v5658 = vld [vmem:[%s5508 + $0x380] sm:$0xf]
        %v5659 = vld [vmem:[%s5508 + $0x384] sm:$0xff]
        %v5660 = vld [vmem:[%s5508 + $0x38c] sm:$0xf]
        %v5661 = vld [vmem:[%s5508 + $0x390] sm:$0xff]
        %v5662 = vld [vmem:[%s5508 + $0x398] sm:$0xf]
        %v5663 = vld [vmem:[%s5508 + $0x39c] sm:$0xff]
        %v5664 = vld [vmem:[%s5508 + $0x3a4] sm:$0xf]
        %v5665 = vld [vmem:[%s5508 + $0x3a8] sm:$0xff]
        %v5666 = vld [vmem:[%s5508 + $0x3b0] sm:$0xf]
        %v5667 = vld [vmem:[%s5508 + $0x3b4] sm:$0xff]
        %v5668 = vld [vmem:[%s5508 + $0x3bc] sm:$0xf]
        %v5669 = vld [vmem:[%s5508 + $0x3c0] sm:$0xff]
        %v5670 = vld [vmem:[%s5508 + $0x3c8] sm:$0xf]
        %v5671 = vld [vmem:[%s5508 + $0x3cc] sm:$0xff]
        %v5672 = vld [vmem:[%s5508 + $0x3d4] sm:$0xf]
        %v5673 = vld [vmem:[%s5508 + $0x3d8] sm:$0xff]
        %v5674 = vld [vmem:[%s5508 + $0x3e0] sm:$0xf]
        %v5675 = vld [vmem:[%s5508 + $0x3e4] sm:$0xff]
        %v5676 = vld [vmem:[%s5508 + $0x3ec] sm:$0xf]
        %v5677 = vld [vmem:[%s5508 + $0x3f0] sm:$0xff]
        %v5678 = vld [vmem:[%s5508 + $0x3f8] sm:$0xf]
        %v5679 = vld [vmem:[%s5508 + $0x3fc] sm:$0xff]
        %v5680 = vld [vmem:[%s5508 + $0x404] sm:$0xf]
        %v5681 = vld [vmem:[%s5508 + $0x408] sm:$0xff]
        %v5682 = vld [vmem:[%s5508 + $0x410] sm:$0xf]
        %v5683 = vld [vmem:[%s5508 + $0x414] sm:$0xff]
        %v5684 = vld [vmem:[%s5508 + $0x41c] sm:$0xf]
        %v5685 = vld [vmem:[%s5508 + $0x420] sm:$0xff]
        %v5686 = vld [vmem:[%s5508 + $0x428] sm:$0xf]
        %v5687 = vld [vmem:[%s5508 + $0x42c] sm:$0xff]
        %v5688 = vld [vmem:[%s5508 + $0x434] sm:$0xf]
        %v5689 = vld [vmem:[%s5508 + $0x438] sm:$0xff]
        %v5690 = vld [vmem:[%s5508 + $0x440] sm:$0xf]
        %v5691 = vld [vmem:[%s5508 + $0x444] sm:$0xff]
        %v5692 = vld [vmem:[%s5508 + $0x44c] sm:$0xf]
        %v5693 = vld [vmem:[%s5508 + $0x450] sm:$0xff]
        %v5694 = vld [vmem:[%s5508 + $0x458] sm:$0xf]
        %v5695 = vld [vmem:[%s5508 + $0x45c] sm:$0xff]
        %v5696 = vld [vmem:[%s5508 + $0x464] sm:$0xf]
        %v5697 = vld [vmem:[%s5508 + $0x468] sm:$0xff]
        %v5698 = vld [vmem:[%s5508 + $0x470] sm:$0xf]
        %v5699 = vld [vmem:[%s5508 + $0x474] sm:$0xff]
        %v5700 = vld [vmem:[%s5508 + $0x47c] sm:$0xf]
        %v5701 = vld [vmem:[%s5508 + $0x480] sm:$0xff]
        %v5702 = vld [vmem:[%s5508 + $0x488] sm:$0xf]
        %v5703 = vld [vmem:[%s5508 + $0x48c] sm:$0xff]
        %v5704 = vld [vmem:[%s5508 + $0x494] sm:$0xf]
        %v5705 = vld [vmem:[%s5508 + $0x498] sm:$0xff]
        %v5706 = vld [vmem:[%s5508 + $0x4a0] sm:$0xf]
        %v5707 = vld [vmem:[%s5508 + $0x4a4] sm:$0xff]
        %v5708 = vld [vmem:[%s5508 + $0x4ac] sm:$0xf]
        %v5709 = vld [vmem:[%s5508 + $0x4b0] sm:$0xff]
        %v5710 = vld [vmem:[%s5508 + $0x4b8] sm:$0xf]
        %v5711 = vld [vmem:[%s5508 + $0x4bc] sm:$0xff]
        %v5712 = vld [vmem:[%s5508 + $0x4c4] sm:$0xf]
        %v5713 = vld [vmem:[%s5508 + $0x4c8] sm:$0xff]
        %v5714 = vld [vmem:[%s5508 + $0x4d0] sm:$0xf]
        %v5715 = vld [vmem:[%s5508 + $0x4d4] sm:$0xff]
        %v5716 = vld [vmem:[%s5508 + $0x4dc] sm:$0xf]
        %v5717 = vld [vmem:[%s5508 + $0x4e0] sm:$0xff]
        %v5718 = vld [vmem:[%s5508 + $0x4e8] sm:$0xf]
        %v5719 = vld [vmem:[%s5508 + $0x4ec] sm:$0xff]
        %v5720 = vld [vmem:[%s5508 + $0x4f4] sm:$0xf]
        %v5721 = vld [vmem:[%s5508 + $0x4f8] sm:$0xff]
        %v5722 = vld [vmem:[%s5508 + $0x500] sm:$0xf]
        %v5723 = vld [vmem:[%s5508 + $0x504] sm:$0xff]
        %v5724 = vld [vmem:[%s5508 + $0x50c] sm:$0xf]
        %v5725 = vld [vmem:[%s5508 + $0x510] sm:$0xff]
        %v5726 = vld [vmem:[%s5508 + $0x518] sm:$0xf]
        %v5727 = vld [vmem:[%s5508 + $0x51c] sm:$0xff]
        %v5728 = vld [vmem:[%s5508 + $0x524] sm:$0xf]
        %v5729 = vld [vmem:[%s5508 + $0x528] sm:$0xff]
        %v5730 = vld [vmem:[%s5508 + $0x530] sm:$0xf]
        %v5731 = vld [vmem:[%s5508 + $0x534] sm:$0xff]
        %v5732 = vld [vmem:[%s5508 + $0x53c] sm:$0xf]
        %v5957 = vunpack.c.l.b16 %v5509
        %v5958 = vunpack.c.h.b16 %v5509
        %v5959 = vunpack.c.l.b16 %v5510
        %v5960 = vunpack.c.l.b16 %v5511
        %v5961 = vunpack.c.h.b16 %v5511
        %v5962 = vunpack.c.l.b16 %v5512
        %v5963 = vunpack.c.l.b16 %v5513
        %v5964 = vunpack.c.h.b16 %v5513
        %v5965 = vunpack.c.l.b16 %v5514
        %v5966 = vunpack.c.l.b16 %v5515
        %v5967 = vunpack.c.h.b16 %v5515
        %v5968 = vunpack.c.l.b16 %v5516
        %v5969 = vunpack.c.l.b16 %v5517
        %v5970 = vunpack.c.h.b16 %v5517
        %v5971 = vunpack.c.l.b16 %v5518
        %v5972 = vunpack.c.l.b16 %v5519
        %v5973 = vunpack.c.h.b16 %v5519
        %v5974 = vunpack.c.l.b16 %v5520
        %v5975 = vunpack.c.l.b16 %v5521
        %v5976 = vunpack.c.h.b16 %v5521
        %v5977 = vunpack.c.l.b16 %v5522
        %v5978 = vunpack.c.l.b16 %v5523
        %v5979 = vunpack.c.h.b16 %v5523
        %v5980 = vunpack.c.l.b16 %v5524
        %v5981 = vunpack.c.l.b16 %v5525
        %v5982 = vunpack.c.h.b16 %v5525
        %v5983 = vunpack.c.l.b16 %v5526
        %v5984 = vunpack.c.l.b16 %v5527
        %v5985 = vunpack.c.h.b16 %v5527
        %v5986 = vunpack.c.l.b16 %v5528
        %v5987 = vunpack.c.l.b16 %v5529
        %v5988 = vunpack.c.h.b16 %v5529
        %v5989 = vunpack.c.l.b16 %v5530
        %v5990 = vunpack.c.l.b16 %v5531
        %v5991 = vunpack.c.h.b16 %v5531
        %v5992 = vunpack.c.l.b16 %v5532
        %v5993 = vunpack.c.l.b16 %v5533
        %v5994 = vunpack.c.h.b16 %v5533
        %v5995 = vunpack.c.l.b16 %v5534
        %v5996 = vunpack.c.l.b16 %v5535
        %v5997 = vunpack.c.h.b16 %v5535
        %v5998 = vunpack.c.l.b16 %v5536
        %v5999 = vunpack.c.l.b16 %v5537
        %v6000 = vunpack.c.h.b16 %v5537
        %v6001 = vunpack.c.l.b16 %v5538
        %v6002 = vunpack.c.l.b16 %v5539
        %v6003 = vunpack.c.h.b16 %v5539
        %v6004 = vunpack.c.l.b16 %v5540
        %v6005 = vunpack.c.l.b16 %v5541
        %v6006 = vunpack.c.h.b16 %v5541
        %v6007 = vunpack.c.l.b16 %v5542
        %v6008 = vunpack.c.l.b16 %v5543
        %v6009 = vunpack.c.h.b16 %v5543
        %v6010 = vunpack.c.l.b16 %v5544
        %v6011 = vunpack.c.l.b16 %v5545
        %v6012 = vunpack.c.h.b16 %v5545
        %v6013 = vunpack.c.l.b16 %v5546
        %v6014 = vunpack.c.l.b16 %v5547
        %v6015 = vunpack.c.h.b16 %v5547
        %v6016 = vunpack.c.l.b16 %v5548
        %v6017 = vunpack.c.l.b16 %v5549
        %v6018 = vunpack.c.h.b16 %v5549
        %v6019 = vunpack.c.l.b16 %v5550
        %v6020 = vunpack.c.l.b16 %v5551
        %v6021 = vunpack.c.h.b16 %v5551
        %v6022 = vunpack.c.l.b16 %v5552
        %v6023 = vunpack.c.l.b16 %v5553
        %v6024 = vunpack.c.h.b16 %v5553
        %v6025 = vunpack.c.l.b16 %v5554
        %v6026 = vunpack.c.l.b16 %v5555
        %v6027 = vunpack.c.h.b16 %v5555
        %v6028 = vunpack.c.l.b16 %v5556
        %v6029 = vunpack.c.l.b16 %v5557
        %v6030 = vunpack.c.h.b16 %v5557
        %v6031 = vunpack.c.l.b16 %v5558
        %v6032 = vunpack.c.l.b16 %v5559
        %v6033 = vunpack.c.h.b16 %v5559
        %v6034 = vunpack.c.l.b16 %v5560
        %v6035 = vunpack.c.l.b16 %v5561
        %v6036 = vunpack.c.h.b16 %v5561
        %v6037 = vunpack.c.l.b16 %v5562
        %v6038 = vunpack.c.l.b16 %v5563
        %v6039 = vunpack.c.h.b16 %v5563
        %v6040 = vunpack.c.l.b16 %v5564
        %v6041 = vunpack.c.l.b16 %v5565
        %v6042 = vunpack.c.h.b16 %v5565
        %v6043 = vunpack.c.l.b16 %v5566
        %v6044 = vunpack.c.l.b16 %v5567
        %v6045 = vunpack.c.h.b16 %v5567
        %v6046 = vunpack.c.l.b16 %v5568
        %v6047 = vunpack.c.l.b16 %v5569
        %v6048 = vunpack.c.h.b16 %v5569
        %v6049 = vunpack.c.l.b16 %v5570
        %v6050 = vunpack.c.l.b16 %v5571
        %v6051 = vunpack.c.h.b16 %v5571
        %v6052 = vunpack.c.l.b16 %v5572
        %v6053 = vunpack.c.l.b16 %v5573
        %v6054 = vunpack.c.h.b16 %v5573
        %v6055 = vunpack.c.l.b16 %v5574
        %v6056 = vunpack.c.l.b16 %v5575
        %v6057 = vunpack.c.h.b16 %v5575
        %v6058 = vunpack.c.l.b16 %v5576
        %v6059 = vunpack.c.l.b16 %v5577
        %v6060 = vunpack.c.h.b16 %v5577
        %v6061 = vunpack.c.l.b16 %v5578
        %v6062 = vunpack.c.l.b16 %v5579
        %v6063 = vunpack.c.h.b16 %v5579
        %v6064 = vunpack.c.l.b16 %v5580
        %v6065 = vunpack.c.l.b16 %v5581
        %v6066 = vunpack.c.h.b16 %v5581
        %v6067 = vunpack.c.l.b16 %v5582
        %v6068 = vunpack.c.l.b16 %v5583
        %v6069 = vunpack.c.h.b16 %v5583
        %v6070 = vunpack.c.l.b16 %v5584
        %v6071 = vunpack.c.l.b16 %v5585
        %v6072 = vunpack.c.h.b16 %v5585
        %v6073 = vunpack.c.l.b16 %v5586
        %v6074 = vunpack.c.l.b16 %v5587
        %v6075 = vunpack.c.h.b16 %v5587
        %v6076 = vunpack.c.l.b16 %v5588
        %v6077 = vunpack.c.l.b16 %v5589
        %v6078 = vunpack.c.h.b16 %v5589
        %v6079 = vunpack.c.l.b16 %v5590
        %v6080 = vunpack.c.l.b16 %v5591
        %v6081 = vunpack.c.h.b16 %v5591
        %v6082 = vunpack.c.l.b16 %v5592
        %v6083 = vunpack.c.l.b16 %v5593
        %v6084 = vunpack.c.h.b16 %v5593
        %v6085 = vunpack.c.l.b16 %v5594
        %v6086 = vunpack.c.l.b16 %v5595
        %v6087 = vunpack.c.h.b16 %v5595
        %v6088 = vunpack.c.l.b16 %v5596
        %v6089 = vunpack.c.l.b16 %v5597
        %v6090 = vunpack.c.h.b16 %v5597
        %v6091 = vunpack.c.l.b16 %v5598
        %v6092 = vunpack.c.l.b16 %v5599
        %v6093 = vunpack.c.h.b16 %v5599
        %v6094 = vunpack.c.l.b16 %v5600
        %v6095 = vunpack.c.l.b16 %v5601
        %v6096 = vunpack.c.h.b16 %v5601
        %v6097 = vunpack.c.l.b16 %v5602
        %v6098 = vunpack.c.l.b16 %v5603
        %v6099 = vunpack.c.h.b16 %v5603
        %v6100 = vunpack.c.l.b16 %v5604
        %v6101 = vunpack.c.l.b16 %v5605
        %v6102 = vunpack.c.h.b16 %v5605
        %v6103 = vunpack.c.l.b16 %v5606
        %v6104 = vunpack.c.l.b16 %v5607
        %v6105 = vunpack.c.h.b16 %v5607
        %v6106 = vunpack.c.l.b16 %v5608
        %v6107 = vunpack.c.l.b16 %v5609
        %v6108 = vunpack.c.h.b16 %v5609
        %v6109 = vunpack.c.l.b16 %v5610
        %v6110 = vunpack.c.l.b16 %v5611
        %v6111 = vunpack.c.h.b16 %v5611
        %v6112 = vunpack.c.l.b16 %v5612
        %v6113 = vunpack.c.l.b16 %v5613
        %v6114 = vunpack.c.h.b16 %v5613
        %v6115 = vunpack.c.l.b16 %v5614
        %v6116 = vunpack.c.l.b16 %v5615
        %v6117 = vunpack.c.h.b16 %v5615
        %v6118 = vunpack.c.l.b16 %v5616
        %v6119 = vunpack.c.l.b16 %v5617
        %v6120 = vunpack.c.h.b16 %v5617
        %v6121 = vunpack.c.l.b16 %v5618
        %v6122 = vunpack.c.l.b16 %v5619
        %v6123 = vunpack.c.h.b16 %v5619
        %v6124 = vunpack.c.l.b16 %v5620
        %v6125 = vunpack.c.l.b16 %v5621
        %v6126 = vunpack.c.h.b16 %v5621
        %v6127 = vunpack.c.l.b16 %v5622
        %v6128 = vunpack.c.l.b16 %v5623
        %v6129 = vunpack.c.h.b16 %v5623
        %v6130 = vunpack.c.l.b16 %v5624
        %v6131 = vunpack.c.l.b16 %v5625
        %v6132 = vunpack.c.h.b16 %v5625
        %v6133 = vunpack.c.l.b16 %v5626
        %v6134 = vunpack.c.l.b16 %v5627
        %v6135 = vunpack.c.h.b16 %v5627
        %v6136 = vunpack.c.l.b16 %v5628
        %v6137 = vunpack.c.l.b16 %v5629
        %v6138 = vunpack.c.h.b16 %v5629
        %v6139 = vunpack.c.l.b16 %v5630
        %v6140 = vunpack.c.l.b16 %v5631
        %v6141 = vunpack.c.h.b16 %v5631
        %v6142 = vunpack.c.l.b16 %v5632
        %v6143 = vunpack.c.l.b16 %v5633
        %v6144 = vunpack.c.h.b16 %v5633
        %v6145 = vunpack.c.l.b16 %v5634
        %v6146 = vunpack.c.l.b16 %v5635
        %v6147 = vunpack.c.h.b16 %v5635
        %v6148 = vunpack.c.l.b16 %v5636
        %v6149 = vunpack.c.l.b16 %v5637
        %v6150 = vunpack.c.h.b16 %v5637
        %v6151 = vunpack.c.l.b16 %v5638
        %v6152 = vunpack.c.l.b16 %v5639
        %v6153 = vunpack.c.h.b16 %v5639
        %v6154 = vunpack.c.l.b16 %v5640
        %v6155 = vunpack.c.l.b16 %v5641
        %v6156 = vunpack.c.h.b16 %v5641
        %v6157 = vunpack.c.l.b16 %v5642
        %v6158 = vunpack.c.l.b16 %v5643
        %v6159 = vunpack.c.h.b16 %v5643
        %v6160 = vunpack.c.l.b16 %v5644
        %v6161 = vunpack.c.l.b16 %v5645
        %v6162 = vunpack.c.h.b16 %v5645
        %v6163 = vunpack.c.l.b16 %v5646
        %v6164 = vunpack.c.l.b16 %v5647
        %v6165 = vunpack.c.h.b16 %v5647
        %v6166 = vunpack.c.l.b16 %v5648
        %v6167 = vunpack.c.l.b16 %v5649
        %v6168 = vunpack.c.h.b16 %v5649
        %v6169 = vunpack.c.l.b16 %v5650
        %v6170 = vunpack.c.l.b16 %v5651
        %v6171 = vunpack.c.h.b16 %v5651
        %v6172 = vunpack.c.l.b16 %v5652
        %v6173 = vunpack.c.l.b16 %v5653
        %v6174 = vunpack.c.h.b16 %v5653
        %v6175 = vunpack.c.l.b16 %v5654
        %v6176 = vunpack.c.l.b16 %v5655
        %v6177 = vunpack.c.h.b16 %v5655
        %v6178 = vunpack.c.l.b16 %v5656
        %v6179 = vunpack.c.l.b16 %v5657
        %v6180 = vunpack.c.h.b16 %v5657
        %v6181 = vunpack.c.l.b16 %v5658
        %v6182 = vunpack.c.l.b16 %v5659
        %v6183 = vunpack.c.h.b16 %v5659
        %v6184 = vunpack.c.l.b16 %v5660
        %v6185 = vunpack.c.l.b16 %v5661
        %v6186 = vunpack.c.h.b16 %v5661
        %v6187 = vunpack.c.l.b16 %v5662
        %v6188 = vunpack.c.l.b16 %v5663
        %v6189 = vunpack.c.h.b16 %v5663
        %v6190 = vunpack.c.l.b16 %v5664
        %v6191 = vunpack.c.l.b16 %v5665
        %v6192 = vunpack.c.h.b16 %v5665
        %v6193 = vunpack.c.l.b16 %v5666
        %v6194 = vunpack.c.l.b16 %v5667
        %v6195 = vunpack.c.h.b16 %v5667
        %v6196 = vunpack.c.l.b16 %v5668
        %v6197 = vunpack.c.l.b16 %v5669
        %v6198 = vunpack.c.h.b16 %v5669
        %v6199 = vunpack.c.l.b16 %v5670
        %v6200 = vunpack.c.l.b16 %v5671
        %v6201 = vunpack.c.h.b16 %v5671
        %v6202 = vunpack.c.l.b16 %v5672
        %v6203 = vunpack.c.l.b16 %v5673
        %v6204 = vunpack.c.h.b16 %v5673
        %v6205 = vunpack.c.l.b16 %v5674
        %v6206 = vunpack.c.l.b16 %v5675
        %v6207 = vunpack.c.h.b16 %v5675
        %v6208 = vunpack.c.l.b16 %v5676
        %v6209 = vunpack.c.l.b16 %v5677
        %v6210 = vunpack.c.h.b16 %v5677
        %v6211 = vunpack.c.l.b16 %v5678
        %v6212 = vunpack.c.l.b16 %v5679
        %v6213 = vunpack.c.h.b16 %v5679
        %v6214 = vunpack.c.l.b16 %v5680
        %v6215 = vunpack.c.l.b16 %v5681
        %v6216 = vunpack.c.h.b16 %v5681
        %v6217 = vunpack.c.l.b16 %v5682
        %v6218 = vunpack.c.l.b16 %v5683
        %v6219 = vunpack.c.h.b16 %v5683
        %v6220 = vunpack.c.l.b16 %v5684
        %v6221 = vunpack.c.l.b16 %v5685
        %v6222 = vunpack.c.h.b16 %v5685
        %v6223 = vunpack.c.l.b16 %v5686
        %v6224 = vunpack.c.l.b16 %v5687
        %v6225 = vunpack.c.h.b16 %v5687
        %v6226 = vunpack.c.l.b16 %v5688
        %v6227 = vunpack.c.l.b16 %v5689
        %v6228 = vunpack.c.h.b16 %v5689
        %v6229 = vunpack.c.l.b16 %v5690
        %v6230 = vunpack.c.l.b16 %v5691
        %v6231 = vunpack.c.h.b16 %v5691
        %v6232 = vunpack.c.l.b16 %v5692
        %v6233 = vunpack.c.l.b16 %v5693
        %v6234 = vunpack.c.h.b16 %v5693
        %v6235 = vunpack.c.l.b16 %v5694
        %v6236 = vunpack.c.l.b16 %v5695
        %v6237 = vunpack.c.h.b16 %v5695
        %v6238 = vunpack.c.l.b16 %v5696
        %v6239 = vunpack.c.l.b16 %v5697
        %v6240 = vunpack.c.h.b16 %v5697
        %v6241 = vunpack.c.l.b16 %v5698
        %v6242 = vunpack.c.l.b16 %v5699
        %v6243 = vunpack.c.h.b16 %v5699
        %v6244 = vunpack.c.l.b16 %v5700
        %v6245 = vunpack.c.l.b16 %v5701
        %v6246 = vunpack.c.h.b16 %v5701
        %v6247 = vunpack.c.l.b16 %v5702
        %v6248 = vunpack.c.l.b16 %v5703
        %v6249 = vunpack.c.h.b16 %v5703
        %v6250 = vunpack.c.l.b16 %v5704
        %v6251 = vunpack.c.l.b16 %v5705
        %v6252 = vunpack.c.h.b16 %v5705
        %v6253 = vunpack.c.l.b16 %v5706
        %v6254 = vunpack.c.l.b16 %v5707
        %v6255 = vunpack.c.h.b16 %v5707
        %v6256 = vunpack.c.l.b16 %v5708
        %v6257 = vunpack.c.l.b16 %v5709
        %v6258 = vunpack.c.h.b16 %v5709
        %v6259 = vunpack.c.l.b16 %v5710
        %v6260 = vunpack.c.l.b16 %v5711
        %v6261 = vunpack.c.h.b16 %v5711
        %v6262 = vunpack.c.l.b16 %v5712
        %v6263 = vunpack.c.l.b16 %v5713
        %v6264 = vunpack.c.h.b16 %v5713
        %v6265 = vunpack.c.l.b16 %v5714
        %v6266 = vunpack.c.l.b16 %v5715
        %v6267 = vunpack.c.h.b16 %v5715
        %v6268 = vunpack.c.l.b16 %v5716
        %v6269 = vunpack.c.l.b16 %v5717
        %v6270 = vunpack.c.h.b16 %v5717
        %v6271 = vunpack.c.l.b16 %v5718
        %v6272 = vunpack.c.l.b16 %v5719
        %v6273 = vunpack.c.h.b16 %v5719
        %v6274 = vunpack.c.l.b16 %v5720
        %v6275 = vunpack.c.l.b16 %v5721
        %v6276 = vunpack.c.h.b16 %v5721
        %v6277 = vunpack.c.l.b16 %v5722
        %v6278 = vunpack.c.l.b16 %v5723
        %v6279 = vunpack.c.h.b16 %v5723
        %v6280 = vunpack.c.l.b16 %v5724
        %v6281 = vunpack.c.l.b16 %v5725
        %v6282 = vunpack.c.h.b16 %v5725
        %v6283 = vunpack.c.l.b16 %v5726
        %v6284 = vunpack.c.l.b16 %v5727
        %v6285 = vunpack.c.h.b16 %v5727
        %v6286 = vunpack.c.l.b16 %v5728
        %v6287 = vunpack.c.l.b16 %v5729
        %v6288 = vunpack.c.h.b16 %v5729
        %v6289 = vunpack.c.l.b16 %v5730
        %v6290 = vunpack.c.l.b16 %v5731
        %v6291 = vunpack.c.h.b16 %v5731
        %v6292 = vunpack.c.l.b16 %v5732
        %v6293 = vpack.c.b16 %v5960, %v5957
        %v6294 = vpack.c.b16 %v5961, %v5958
        %v6295 = vpack.c.b16 %v5962, %v5959
        %v6296 = vpack.c.b16 %v5966, %v5963
        %v6297 = vpack.c.b16 %v5967, %v5964
        %v6298 = vpack.c.b16 %v5968, %v5965
        %v6299 = vpack.c.b16 %v5972, %v5969
        %v6300 = vpack.c.b16 %v5973, %v5970
        %v6301 = vpack.c.b16 %v5974, %v5971
        %v6302 = vpack.c.b16 %v5978, %v5975
        %v6303 = vpack.c.b16 %v5979, %v5976
        %v6304 = vpack.c.b16 %v5980, %v5977
        %v6305 = vpack.c.b16 %v5984, %v5981
        %v6306 = vpack.c.b16 %v5985, %v5982
        %v6307 = vpack.c.b16 %v5986, %v5983
        %v6308 = vpack.c.b16 %v5990, %v5987
        %v6309 = vpack.c.b16 %v5991, %v5988
        %v6310 = vpack.c.b16 %v5992, %v5989
        %v6311 = vpack.c.b16 %v5996, %v5993
        %v6312 = vpack.c.b16 %v5997, %v5994
        %v6313 = vpack.c.b16 %v5998, %v5995
        %v6314 = vpack.c.b16 %v6002, %v5999
        %v6315 = vpack.c.b16 %v6003, %v6000
        %v6316 = vpack.c.b16 %v6004, %v6001
        %v6317 = vpack.c.b16 %v6008, %v6005
        %v6318 = vpack.c.b16 %v6009, %v6006
        %v6319 = vpack.c.b16 %v6010, %v6007
        %v6320 = vpack.c.b16 %v6014, %v6011
        %v6321 = vpack.c.b16 %v6015, %v6012
        %v6322 = vpack.c.b16 %v6016, %v6013
        %v6323 = vpack.c.b16 %v6020, %v6017
        %v6324 = vpack.c.b16 %v6021, %v6018
        %v6325 = vpack.c.b16 %v6022, %v6019
        %v6326 = vpack.c.b16 %v6026, %v6023
        %v6327 = vpack.c.b16 %v6027, %v6024
        %v6328 = vpack.c.b16 %v6028, %v6025
        %v6329 = vpack.c.b16 %v6032, %v6029
        %v6330 = vpack.c.b16 %v6033, %v6030
        %v6331 = vpack.c.b16 %v6034, %v6031
        %v6332 = vpack.c.b16 %v6038, %v6035
        %v6333 = vpack.c.b16 %v6039, %v6036
        %v6334 = vpack.c.b16 %v6040, %v6037
        %v6335 = vpack.c.b16 %v6044, %v6041
        %v6336 = vpack.c.b16 %v6045, %v6042
        %v6337 = vpack.c.b16 %v6046, %v6043
        %v6338 = vpack.c.b16 %v6050, %v6047
        %v6339 = vpack.c.b16 %v6051, %v6048
        %v6340 = vpack.c.b16 %v6052, %v6049
        %v6341 = vpack.c.b16 %v6056, %v6053
        %v6342 = vpack.c.b16 %v6057, %v6054
        %v6343 = vpack.c.b16 %v6058, %v6055
        %v6344 = vpack.c.b16 %v6062, %v6059
        %v6345 = vpack.c.b16 %v6063, %v6060
        %v6346 = vpack.c.b16 %v6064, %v6061
        %v6347 = vpack.c.b16 %v6068, %v6065
        %v6348 = vpack.c.b16 %v6069, %v6066
        %v6349 = vpack.c.b16 %v6070, %v6067
        %v6350 = vpack.c.b16 %v6074, %v6071
        %v6351 = vpack.c.b16 %v6075, %v6072
        %v6352 = vpack.c.b16 %v6076, %v6073
        %v6353 = vpack.c.b16 %v6080, %v6077
        %v6354 = vpack.c.b16 %v6081, %v6078
        %v6355 = vpack.c.b16 %v6082, %v6079
        %v6356 = vpack.c.b16 %v6086, %v6083
        %v6357 = vpack.c.b16 %v6087, %v6084
        %v6358 = vpack.c.b16 %v6088, %v6085
        %v6359 = vpack.c.b16 %v6092, %v6089
        %v6360 = vpack.c.b16 %v6093, %v6090
        %v6361 = vpack.c.b16 %v6094, %v6091
        %v6362 = vpack.c.b16 %v6098, %v6095
        %v6363 = vpack.c.b16 %v6099, %v6096
        %v6364 = vpack.c.b16 %v6100, %v6097
        %v6365 = vpack.c.b16 %v6104, %v6101
        %v6366 = vpack.c.b16 %v6105, %v6102
        %v6367 = vpack.c.b16 %v6106, %v6103
        %v6368 = vpack.c.b16 %v6110, %v6107
        %v6369 = vpack.c.b16 %v6111, %v6108
        %v6370 = vpack.c.b16 %v6112, %v6109
        %v6371 = vpack.c.b16 %v6116, %v6113
        %v6372 = vpack.c.b16 %v6117, %v6114
        %v6373 = vpack.c.b16 %v6118, %v6115
        %v6374 = vpack.c.b16 %v6122, %v6119
        %v6375 = vpack.c.b16 %v6123, %v6120
        %v6376 = vpack.c.b16 %v6124, %v6121
        %v6377 = vpack.c.b16 %v6128, %v6125
        %v6378 = vpack.c.b16 %v6129, %v6126
        %v6379 = vpack.c.b16 %v6130, %v6127
        %v6380 = vpack.c.b16 %v6134, %v6131
        %v6381 = vpack.c.b16 %v6135, %v6132
        %v6382 = vpack.c.b16 %v6136, %v6133
        %v6383 = vpack.c.b16 %v6140, %v6137
        %v6384 = vpack.c.b16 %v6141, %v6138
        %v6385 = vpack.c.b16 %v6142, %v6139
        %v6386 = vpack.c.b16 %v6146, %v6143
        %v6387 = vpack.c.b16 %v6147, %v6144
        %v6388 = vpack.c.b16 %v6148, %v6145
        %v6389 = vpack.c.b16 %v6152, %v6149
        %v6390 = vpack.c.b16 %v6153, %v6150
        %v6391 = vpack.c.b16 %v6154, %v6151
        %v6392 = vpack.c.b16 %v6158, %v6155
        %v6393 = vpack.c.b16 %v6159, %v6156
        %v6394 = vpack.c.b16 %v6160, %v6157
        %v6395 = vpack.c.b16 %v6164, %v6161
        %v6396 = vpack.c.b16 %v6165, %v6162
        %v6397 = vpack.c.b16 %v6166, %v6163
        %v6398 = vpack.c.b16 %v6170, %v6167
        %v6399 = vpack.c.b16 %v6171, %v6168
        %v6400 = vpack.c.b16 %v6172, %v6169
        %v6401 = vpack.c.b16 %v6176, %v6173
        %v6402 = vpack.c.b16 %v6177, %v6174
        %v6403 = vpack.c.b16 %v6178, %v6175
        %v6404 = vpack.c.b16 %v6182, %v6179
        %v6405 = vpack.c.b16 %v6183, %v6180
        %v6406 = vpack.c.b16 %v6184, %v6181
        %v6407 = vpack.c.b16 %v6188, %v6185
        %v6408 = vpack.c.b16 %v6189, %v6186
        %v6409 = vpack.c.b16 %v6190, %v6187
        %v6410 = vpack.c.b16 %v6194, %v6191
        %v6411 = vpack.c.b16 %v6195, %v6192
        %v6412 = vpack.c.b16 %v6196, %v6193
        %v6413 = vpack.c.b16 %v6200, %v6197
        %v6414 = vpack.c.b16 %v6201, %v6198
        %v6415 = vpack.c.b16 %v6202, %v6199
        %v6416 = vpack.c.b16 %v6206, %v6203
        %v6417 = vpack.c.b16 %v6207, %v6204
        %v6418 = vpack.c.b16 %v6208, %v6205
        %v6419 = vpack.c.b16 %v6212, %v6209
        %v6420 = vpack.c.b16 %v6213, %v6210
        %v6421 = vpack.c.b16 %v6214, %v6211
        %v6422 = vpack.c.b16 %v6218, %v6215
        %v6423 = vpack.c.b16 %v6219, %v6216
        %v6424 = vpack.c.b16 %v6220, %v6217
        %v6425 = vpack.c.b16 %v6224, %v6221
        %v6426 = vpack.c.b16 %v6225, %v6222
        %v6427 = vpack.c.b16 %v6226, %v6223
        %v6428 = vpack.c.b16 %v6230, %v6227
        %v6429 = vpack.c.b16 %v6231, %v6228
        %v6430 = vpack.c.b16 %v6232, %v6229
        %v6431 = vpack.c.b16 %v6236, %v6233
        %v6432 = vpack.c.b16 %v6237, %v6234
        %v6433 = vpack.c.b16 %v6238, %v6235
        %v6434 = vpack.c.b16 %v6242, %v6239
        %v6435 = vpack.c.b16 %v6243, %v6240
        %v6436 = vpack.c.b16 %v6244, %v6241
        %v6437 = vpack.c.b16 %v6248, %v6245
        %v6438 = vpack.c.b16 %v6249, %v6246
        %v6439 = vpack.c.b16 %v6250, %v6247
        %v6440 = vpack.c.b16 %v6254, %v6251
        %v6441 = vpack.c.b16 %v6255, %v6252
        %v6442 = vpack.c.b16 %v6256, %v6253
        %v6443 = vpack.c.b16 %v6260, %v6257
        %v6444 = vpack.c.b16 %v6261, %v6258
        %v6445 = vpack.c.b16 %v6262, %v6259
        %v6446 = vpack.c.b16 %v6266, %v6263
        %v6447 = vpack.c.b16 %v6267, %v6264
        %v6448 = vpack.c.b16 %v6268, %v6265
        %v6449 = vpack.c.b16 %v6272, %v6269
        %v6450 = vpack.c.b16 %v6273, %v6270
        %v6451 = vpack.c.b16 %v6274, %v6271
        %v6452 = vpack.c.b16 %v6278, %v6275
        %v6453 = vpack.c.b16 %v6279, %v6276
        %v6454 = vpack.c.b16 %v6280, %v6277
        %v6455 = vpack.c.b16 %v6284, %v6281
        %v6456 = vpack.c.b16 %v6285, %v6282
        %v6457 = vpack.c.b16 %v6286, %v6283
        %v6458 = vpack.c.b16 %v6290, %v6287
        %v6459 = vpack.c.b16 %v6291, %v6288
        %v6460 = vpack.c.b16 %v6292, %v6289
        %6629 = vmatpush.bf16.msra.mxu0 %v6314
        %6630 = vmatpush.bf16.msra.mxu0 %v6311
        %6631 = vmatpush.bf16.msra.mxu0 %v6308
        %6632 = vmatpush.bf16.msra.mxu0 %v6305
        %6633 = vmatpush.bf16.msra.mxu0 %v6302
        %6634 = vmatpush.bf16.msra.mxu0 %v6299
        %6635 = vmatpush.bf16.msra.mxu0 %v6296
        %6636 = vmatpush.bf16.msra.mxu0 %v6293
        %6637 = vmatmul.bf16.gmra.mxu0 %v1245
        %v6638 = vpop.f32.mrf.mxu0
        %v6639 = vadd.f32 0.0, %v6638
        %v6640 = vpop.f32.mrf.mxu0
        %v6641 = vadd.f32 0.0, %v6640
        %6642 = vdwg.mxu0
        %6643 = vmatpush.bf16.msra.mxu0 %v6338
        %6644 = vmatpush.bf16.msra.mxu0 %v6335
        %6645 = vmatpush.bf16.msra.mxu0 %v6332
        %6646 = vmatpush.bf16.msra.mxu0 %v6329
        %6647 = vmatpush.bf16.msra.mxu0 %v6326
        %6648 = vmatpush.bf16.msra.mxu0 %v6323
        %6649 = vmatpush.bf16.msra.mxu0 %v6320
        %6650 = vmatpush.bf16.msra.mxu0 %v6317
        %6651 = vmatmul.bf16.gmra.mxu0 %v1246
        %v6652 = vpop.f32.mrf.mxu0
        %v6653 = vadd.f32 %v6639, %v6652
        %v6654 = vpop.f32.mrf.mxu0
        %v6655 = vadd.f32 %v6641, %v6654
        %6656 = vdwg.mxu0
        %6657 = vmatpush.bf16.msra.mxu0 %v6362
        %6658 = vmatpush.bf16.msra.mxu0 %v6359
        %6659 = vmatpush.bf16.msra.mxu0 %v6356
        %6660 = vmatpush.bf16.msra.mxu0 %v6353
        %6661 = vmatpush.bf16.msra.mxu0 %v6350
        %6662 = vmatpush.bf16.msra.mxu0 %v6347
        %6663 = vmatpush.bf16.msra.mxu0 %v6344
        %6664 = vmatpush.bf16.msra.mxu0 %v6341
        %6665 = vmatmul.bf16.gmra.mxu0 %v1247
        %v6666 = vpop.f32.mrf.mxu0
        %v6667 = vadd.f32 %v6653, %v6666
        %v6668 = vpop.f32.mrf.mxu0
        %v6669 = vadd.f32 %v6655, %v6668
        %6670 = vdwg.mxu0
        %6671 = vmatpush.bf16.msra.mxu0 %v6386
        %6672 = vmatpush.bf16.msra.mxu0 %v6383
        %6673 = vmatpush.bf16.msra.mxu0 %v6380
        %6674 = vmatpush.bf16.msra.mxu0 %v6377
        %6675 = vmatpush.bf16.msra.mxu0 %v6374
        %6676 = vmatpush.bf16.msra.mxu0 %v6371
        %6677 = vmatpush.bf16.msra.mxu0 %v6368
        %6678 = vmatpush.bf16.msra.mxu0 %v6365
        %6679 = vmatmul.bf16.gmra.mxu0 %v1248
        %v6680 = vpop.f32.mrf.mxu0
        %v6681 = vadd.f32 %v6667, %v6680
        %v6682 = vpop.f32.mrf.mxu0
        %v6683 = vadd.f32 %v6669, %v6682
        %6684 = vdwg.mxu0
        %6685 = vmatpush.bf16.msra.mxu0 %v6410
        %6686 = vmatpush.bf16.msra.mxu0 %v6407
        %6687 = vmatpush.bf16.msra.mxu0 %v6404
        %6688 = vmatpush.bf16.msra.mxu0 %v6401
        %6689 = vmatpush.bf16.msra.mxu0 %v6398
        %6690 = vmatpush.bf16.msra.mxu0 %v6395
        %6691 = vmatpush.bf16.msra.mxu0 %v6392
        %6692 = vmatpush.bf16.msra.mxu0 %v6389
        %6693 = vmatmul.bf16.gmra.mxu0 %v1249
        %v6694 = vpop.f32.mrf.mxu0
        %v6695 = vadd.f32 %v6681, %v6694
        %v6696 = vpop.f32.mrf.mxu0
        %v6697 = vadd.f32 %v6683, %v6696
        %6698 = vdwg.mxu0
        %6699 = vmatpush.bf16.msra.mxu0 %v6434
        %6700 = vmatpush.bf16.msra.mxu0 %v6431
        %6701 = vmatpush.bf16.msra.mxu0 %v6428
        %6702 = vmatpush.bf16.msra.mxu0 %v6425
        %6703 = vmatpush.bf16.msra.mxu0 %v6422
        %6704 = vmatpush.bf16.msra.mxu0 %v6419
        %6705 = vmatpush.bf16.msra.mxu0 %v6416
        %6706 = vmatpush.bf16.msra.mxu0 %v6413
        %6707 = vmatmul.bf16.gmra.mxu0 %v1250
        %v6708 = vpop.f32.mrf.mxu0
        %v6709 = vadd.f32 %v6695, %v6708
        %v6710 = vpop.f32.mrf.mxu0
        %v6711 = vadd.f32 %v6697, %v6710
        %6712 = vdwg.mxu0
        %6713 = vmatpush.bf16.msra.mxu0 %v6458
        %6714 = vmatpush.bf16.msra.mxu0 %v6455
        %6715 = vmatpush.bf16.msra.mxu0 %v6452
        %6716 = vmatpush.bf16.msra.mxu0 %v6449
        %6717 = vmatpush.bf16.msra.mxu0 %v6446
        %6718 = vmatpush.bf16.msra.mxu0 %v6443
        %6719 = vmatpush.bf16.msra.mxu0 %v6440
        %6720 = vmatpush.bf16.msra.mxu0 %v6437
        %6721 = vmatmul.bf16.gmra.mxu0 %v1251
        %v6722 = vpop.f32.mrf.mxu0
        %v6723 = vadd.f32 %v6709, %v6722
        %v6724 = vpop.f32.mrf.mxu0
        %v6725 = vadd.f32 %v6711, %v6724
        %6726 = vdwg.mxu0
        %6727 = vmatpush.bf16.msra.mxu0 %v6315
        %6728 = vmatpush.bf16.msra.mxu0 %v6312
        %6729 = vmatpush.bf16.msra.mxu0 %v6309
        %6730 = vmatpush.bf16.msra.mxu0 %v6306
        %6731 = vmatpush.bf16.msra.mxu0 %v6303
        %6732 = vmatpush.bf16.msra.mxu0 %v6300
        %6733 = vmatpush.bf16.msra.mxu0 %v6297
        %6734 = vmatpush.bf16.msra.mxu0 %v6294
        %6735 = vmatmul.bf16.gmra.mxu0 %v1245
        %v6736 = vpop.f32.mrf.mxu0
        %v6737 = vadd.f32 0.0, %v6736
        %v6738 = vpop.f32.mrf.mxu0
        %v6739 = vadd.f32 0.0, %v6738
        %6740 = vdwg.mxu0
        %6741 = vmatpush.bf16.msra.mxu0 %v6339
        %6742 = vmatpush.bf16.msra.mxu0 %v6336
        %6743 = vmatpush.bf16.msra.mxu0 %v6333
        %6744 = vmatpush.bf16.msra.mxu0 %v6330
        %6745 = vmatpush.bf16.msra.mxu0 %v6327
        %6746 = vmatpush.bf16.msra.mxu0 %v6324
        %6747 = vmatpush.bf16.msra.mxu0 %v6321
        %6748 = vmatpush.bf16.msra.mxu0 %v6318
        %6749 = vmatmul.bf16.gmra.mxu0 %v1246
        %v6750 = vpop.f32.mrf.mxu0
        %v6751 = vadd.f32 %v6737, %v6750
        %v6752 = vpop.f32.mrf.mxu0
        %v6753 = vadd.f32 %v6739, %v6752
        %6754 = vdwg.mxu0
        %6755 = vmatpush.bf16.msra.mxu0 %v6363
        %6756 = vmatpush.bf16.msra.mxu0 %v6360
        %6757 = vmatpush.bf16.msra.mxu0 %v6357
        %6758 = vmatpush.bf16.msra.mxu0 %v6354
        %6759 = vmatpush.bf16.msra.mxu0 %v6351
        %6760 = vmatpush.bf16.msra.mxu0 %v6348
        %6761 = vmatpush.bf16.msra.mxu0 %v6345
        %6762 = vmatpush.bf16.msra.mxu0 %v6342
        %6763 = vmatmul.bf16.gmra.mxu0 %v1247
        %v6764 = vpop.f32.mrf.mxu0
        %v6765 = vadd.f32 %v6751, %v6764
        %v6766 = vpop.f32.mrf.mxu0
        %v6767 = vadd.f32 %v6753, %v6766
        %6768 = vdwg.mxu0
        %6769 = vmatpush.bf16.msra.mxu0 %v6387
        %6770 = vmatpush.bf16.msra.mxu0 %v6384
        %6771 = vmatpush.bf16.msra.mxu0 %v6381
        %6772 = vmatpush.bf16.msra.mxu0 %v6378
        %6773 = vmatpush.bf16.msra.mxu0 %v6375
        %6774 = vmatpush.bf16.msra.mxu0 %v6372
        %6775 = vmatpush.bf16.msra.mxu0 %v6369
        %6776 = vmatpush.bf16.msra.mxu0 %v6366
        %6777 = vmatmul.bf16.gmra.mxu0 %v1248
        %v6778 = vpop.f32.mrf.mxu0
        %v6779 = vadd.f32 %v6765, %v6778
        %v6780 = vpop.f32.mrf.mxu0
        %v6781 = vadd.f32 %v6767, %v6780
        %6782 = vdwg.mxu0
        %6783 = vmatpush.bf16.msra.mxu0 %v6411
        %6784 = vmatpush.bf16.msra.mxu0 %v6408
        %6785 = vmatpush.bf16.msra.mxu0 %v6405
        %6786 = vmatpush.bf16.msra.mxu0 %v6402
        %6787 = vmatpush.bf16.msra.mxu0 %v6399
        %6788 = vmatpush.bf16.msra.mxu0 %v6396
        %6789 = vmatpush.bf16.msra.mxu0 %v6393
        %6790 = vmatpush.bf16.msra.mxu0 %v6390
        %6791 = vmatmul.bf16.gmra.mxu0 %v1249
        %v6792 = vpop.f32.mrf.mxu0
        %v6793 = vadd.f32 %v6779, %v6792
        %v6794 = vpop.f32.mrf.mxu0
        %v6795 = vadd.f32 %v6781, %v6794
        %6796 = vdwg.mxu0
        %6797 = vmatpush.bf16.msra.mxu0 %v6435
        %6798 = vmatpush.bf16.msra.mxu0 %v6432
        %6799 = vmatpush.bf16.msra.mxu0 %v6429
        %6800 = vmatpush.bf16.msra.mxu0 %v6426
        %6801 = vmatpush.bf16.msra.mxu0 %v6423
        %6802 = vmatpush.bf16.msra.mxu0 %v6420
        %6803 = vmatpush.bf16.msra.mxu0 %v6417
        %6804 = vmatpush.bf16.msra.mxu0 %v6414
        %6805 = vmatmul.bf16.gmra.mxu0 %v1250
        %v6806 = vpop.f32.mrf.mxu0
        %v6807 = vadd.f32 %v6793, %v6806
        %v6808 = vpop.f32.mrf.mxu0
        %v6809 = vadd.f32 %v6795, %v6808
        %6810 = vdwg.mxu0
        %6811 = vmatpush.bf16.msra.mxu0 %v6459
        %6812 = vmatpush.bf16.msra.mxu0 %v6456
        %6813 = vmatpush.bf16.msra.mxu0 %v6453
        %6814 = vmatpush.bf16.msra.mxu0 %v6450
        %6815 = vmatpush.bf16.msra.mxu0 %v6447
        %6816 = vmatpush.bf16.msra.mxu0 %v6444
        %6817 = vmatpush.bf16.msra.mxu0 %v6441
        %6818 = vmatpush.bf16.msra.mxu0 %v6438
        %6819 = vmatmul.bf16.gmra.mxu0 %v1251
        %v6820 = vpop.f32.mrf.mxu0
        %v6821 = vadd.f32 %v6807, %v6820
        %v6822 = vpop.f32.mrf.mxu0
        %v6823 = vadd.f32 %v6809, %v6822
        %6824 = vdwg.mxu0
        %6825 = vmatpush.bf16.msra.mxu0 %v6316
        %6826 = vmatpush.bf16.msra.mxu0 %v6313
        %6827 = vmatpush.bf16.msra.mxu0 %v6310
        %6828 = vmatpush.bf16.msra.mxu0 %v6307
        %6829 = vmatpush.bf16.msra.mxu0 %v6304
        %6830 = vmatpush.bf16.msra.mxu0 %v6301
        %6831 = vmatpush.bf16.msra.mxu0 %v6298
        %6832 = vmatpush.bf16.msra.mxu0 %v6295
        %6833 = vmatmul.bf16.gmra.mxu0 %v1245
        %v6834 = vpop.f32.mrf.mxu0
        %v6835 = vadd.f32 0.0, %v6834
        %v6836 = vpop.f32.mrf.mxu0
        %v6837 = vadd.f32 0.0, %v6836
        %6838 = vdwg.mxu0
        %6839 = vmatpush.bf16.msra.mxu0 %v6340
        %6840 = vmatpush.bf16.msra.mxu0 %v6337
        %6841 = vmatpush.bf16.msra.mxu0 %v6334
        %6842 = vmatpush.bf16.msra.mxu0 %v6331
        %6843 = vmatpush.bf16.msra.mxu0 %v6328
        %6844 = vmatpush.bf16.msra.mxu0 %v6325
        %6845 = vmatpush.bf16.msra.mxu0 %v6322
        %6846 = vmatpush.bf16.msra.mxu0 %v6319
        %6847 = vmatmul.bf16.gmra.mxu0 %v1246
        %v6848 = vpop.f32.mrf.mxu0
        %v6849 = vadd.f32 %v6835, %v6848
        %v6850 = vpop.f32.mrf.mxu0
        %v6851 = vadd.f32 %v6837, %v6850
        %6852 = vdwg.mxu0
        %6853 = vmatpush.bf16.msra.mxu0 %v6364
        %6854 = vmatpush.bf16.msra.mxu0 %v6361
        %6855 = vmatpush.bf16.msra.mxu0 %v6358
        %6856 = vmatpush.bf16.msra.mxu0 %v6355
        %6857 = vmatpush.bf16.msra.mxu0 %v6352
        %6858 = vmatpush.bf16.msra.mxu0 %v6349
        %6859 = vmatpush.bf16.msra.mxu0 %v6346
        %6860 = vmatpush.bf16.msra.mxu0 %v6343
        %6861 = vmatmul.bf16.gmra.mxu0 %v1247
        %v6862 = vpop.f32.mrf.mxu0
        %v6863 = vadd.f32 %v6849, %v6862
        %v6864 = vpop.f32.mrf.mxu0
        %v6865 = vadd.f32 %v6851, %v6864
        %6866 = vdwg.mxu0
        %6867 = vmatpush.bf16.msra.mxu0 %v6388
        %6868 = vmatpush.bf16.msra.mxu0 %v6385
        %6869 = vmatpush.bf16.msra.mxu0 %v6382
        %6870 = vmatpush.bf16.msra.mxu0 %v6379
        %6871 = vmatpush.bf16.msra.mxu0 %v6376
        %6872 = vmatpush.bf16.msra.mxu0 %v6373
        %6873 = vmatpush.bf16.msra.mxu0 %v6370
        %6874 = vmatpush.bf16.msra.mxu0 %v6367
        %6875 = vmatmul.bf16.gmra.mxu0 %v1248
        %v6876 = vpop.f32.mrf.mxu0
        %v6877 = vadd.f32 %v6863, %v6876
        %v6878 = vpop.f32.mrf.mxu0
        %v6879 = vadd.f32 %v6865, %v6878
        %6880 = vdwg.mxu0
        %6881 = vmatpush.bf16.msra.mxu0 %v6412
        %6882 = vmatpush.bf16.msra.mxu0 %v6409
        %6883 = vmatpush.bf16.msra.mxu0 %v6406
        %6884 = vmatpush.bf16.msra.mxu0 %v6403
        %6885 = vmatpush.bf16.msra.mxu0 %v6400
        %6886 = vmatpush.bf16.msra.mxu0 %v6397
        %6887 = vmatpush.bf16.msra.mxu0 %v6394
        %6888 = vmatpush.bf16.msra.mxu0 %v6391
        %6889 = vmatmul.bf16.gmra.mxu0 %v1249
        %v6890 = vpop.f32.mrf.mxu0
        %v6891 = vadd.f32 %v6877, %v6890
        %v6892 = vpop.f32.mrf.mxu0
        %v6893 = vadd.f32 %v6879, %v6892
        %6894 = vdwg.mxu0
        %6895 = vmatpush.bf16.msra.mxu0 %v6436
        %6896 = vmatpush.bf16.msra.mxu0 %v6433
        %6897 = vmatpush.bf16.msra.mxu0 %v6430
        %6898 = vmatpush.bf16.msra.mxu0 %v6427
        %6899 = vmatpush.bf16.msra.mxu0 %v6424
        %6900 = vmatpush.bf16.msra.mxu0 %v6421
        %6901 = vmatpush.bf16.msra.mxu0 %v6418
        %6902 = vmatpush.bf16.msra.mxu0 %v6415
        %6903 = vmatmul.bf16.gmra.mxu0 %v1250
        %v6904 = vpop.f32.mrf.mxu0
        %v6905 = vadd.f32 %v6891, %v6904
        %v6906 = vpop.f32.mrf.mxu0
        %v6907 = vadd.f32 %v6893, %v6906
        %6908 = vdwg.mxu0
        %6909 = vmatpush.bf16.msra.mxu0 %v6460
        %6910 = vmatpush.bf16.msra.mxu0 %v6457
        %6911 = vmatpush.bf16.msra.mxu0 %v6454
        %6912 = vmatpush.bf16.msra.mxu0 %v6451
        %6913 = vmatpush.bf16.msra.mxu0 %v6448
        %6914 = vmatpush.bf16.msra.mxu0 %v6445
        %6915 = vmatpush.bf16.msra.mxu0 %v6442
        %6916 = vmatpush.bf16.msra.mxu0 %v6439
        %6917 = vmatmul.bf16.gmra.mxu0 %v1251
        %v6918 = vpop.f32.mrf.mxu0
        %v6919 = vadd.f32 %v6905, %v6918
        %v6920 = vpop.f32.mrf.mxu0
        %v6921 = vadd.f32 %v6907, %v6920
        %6922 = vdwg.mxu0
        %v6923 = vmax.f32 %v5502, %v6723
        %v6924 = vmax.f32 %v5503, %v6821
        %v6925 = vmax.f32 %v5504, %v6919
        %v6926 = vmax.f32 %v5505, %v6725
        %v6927 = vmax.f32 %v5506, %v6823
        %v6928 = vmax.f32 %v5507, %v6921
        %6933 = vrot.lane.b32.xlu0 %v6923, 127
        %v6934 = vpop.permute.xlu0 %6933
        %6935 = vrot.lane.b32.xlu0 %v6924, 127
        %v6936 = vpop.permute.xlu0 %6935
        %6937 = vrot.lane.b32.xlu0 %v6926, 127
        %v6938 = vpop.permute.xlu0 %6937
        %6939 = vrot.lane.b32.xlu0 %v6927, 127
        %v6940 = vpop.permute.xlu0 %6939
        %v6941 = vsel %vm362, %v6934, %v6936
        %v6942 = vsel %vm362, %v6938, %v6940
        %6947 = vrot.lane.b32.xlu0 %v6923, 126
        %v6948 = vpop.permute.xlu0 %6947
        %6949 = vrot.lane.b32.xlu0 %v6924, 126
        %v6950 = vpop.permute.xlu0 %6949
        %6951 = vrot.lane.b32.xlu0 %v6926, 126
        %v6952 = vpop.permute.xlu0 %6951
        %6953 = vrot.lane.b32.xlu0 %v6927, 126
        %v6954 = vpop.permute.xlu0 %6953
        %v6955 = vsel %vm393, %v6948, %v6950
        %v6956 = vsel %vm393, %v6952, %v6954
        %6961 = vrot.lane.b32.xlu0 %v6923, 125
        %v6962 = vpop.permute.xlu0 %6961
        %6963 = vrot.lane.b32.xlu0 %v6924, 125
        %v6964 = vpop.permute.xlu0 %6963
        %6965 = vrot.lane.b32.xlu0 %v6926, 125
        %v6966 = vpop.permute.xlu0 %6965
        %6967 = vrot.lane.b32.xlu0 %v6927, 125
        %v6968 = vpop.permute.xlu0 %6967
        %v6969 = vsel %vm424, %v6962, %v6964
        %v6970 = vsel %vm424, %v6966, %v6968
        %6975 = vrot.lane.b32.xlu0 %v6923, 124
        %v6976 = vpop.permute.xlu0 %6975
        %6977 = vrot.lane.b32.xlu0 %v6924, 124
        %v6978 = vpop.permute.xlu0 %6977
        %6979 = vrot.lane.b32.xlu0 %v6926, 124
        %v6980 = vpop.permute.xlu0 %6979
        %6981 = vrot.lane.b32.xlu0 %v6927, 124
        %v6982 = vpop.permute.xlu0 %6981
        %v6983 = vsel %vm455, %v6976, %v6978
        %v6984 = vsel %vm455, %v6980, %v6982
        %6991 = vrot.lane.b32.xlu0 %v6923, 110
        %v6992 = vpop.permute.xlu0 %6991
        %6993 = vrot.lane.b32.xlu0 %v6924, 110
        %v6994 = vpop.permute.xlu0 %6993
        %6995 = vrot.lane.b32.xlu0 %v6925, 110
        %v6996 = vpop.permute.xlu0 %6995
        %6997 = vrot.lane.b32.xlu0 %v6926, 110
        %v6998 = vpop.permute.xlu0 %6997
        %6999 = vrot.lane.b32.xlu0 %v6927, 110
        %v7000 = vpop.permute.xlu0 %6999
        %7001 = vrot.lane.b32.xlu0 %v6928, 110
        %v7002 = vpop.permute.xlu0 %7001
        %vm7003 = vcmask 900096
        %v7004 = vsel %vm7003, %v6992, %v6994
        %v7005 = vsel %vm7003, %v6994, %v6996
        %v7006 = vsel %vm7003, %v6998, %v7000
        %v7007 = vsel %vm7003, %v7000, %v7002
        %7012 = vrot.lane.b32.xlu0 %v6923, 109
        %v7013 = vpop.permute.xlu0 %7012
        %7014 = vrot.lane.b32.xlu0 %v6924, 109
        %v7015 = vpop.permute.xlu0 %7014
        %7016 = vrot.lane.b32.xlu0 %v6925, 109
        %v7017 = vpop.permute.xlu0 %7016
        %7018 = vrot.lane.b32.xlu0 %v6926, 109
        %v7019 = vpop.permute.xlu0 %7018
        %7020 = vrot.lane.b32.xlu0 %v6927, 109
        %v7021 = vpop.permute.xlu0 %7020
        %7022 = vrot.lane.b32.xlu0 %v6928, 109
        %v7023 = vpop.permute.xlu0 %7022
        %vm7024 = vcmask 891904
        %v7025 = vsel %vm7024, %v7013, %v7015
        %v7026 = vsel %vm7024, %v7015, %v7017
        %v7027 = vsel %vm7024, %v7019, %v7021
        %v7028 = vsel %vm7024, %v7021, %v7023
        %7033 = vrot.lane.b32.xlu0 %v6923, 108
        %v7034 = vpop.permute.xlu0 %7033
        %7035 = vrot.lane.b32.xlu0 %v6924, 108
        %v7036 = vpop.permute.xlu0 %7035
        %7037 = vrot.lane.b32.xlu0 %v6925, 108
        %v7038 = vpop.permute.xlu0 %7037
        %7039 = vrot.lane.b32.xlu0 %v6926, 108
        %v7040 = vpop.permute.xlu0 %7039
        %7041 = vrot.lane.b32.xlu0 %v6927, 108
        %v7042 = vpop.permute.xlu0 %7041
        %7043 = vrot.lane.b32.xlu0 %v6928, 108
        %v7044 = vpop.permute.xlu0 %7043
        %vm7045 = vcmask 883712
        %v7046 = vsel %vm7045, %v7034, %v7036
        %v7047 = vsel %vm7045, %v7036, %v7038
        %v7048 = vsel %vm7045, %v7040, %v7042
        %v7049 = vsel %vm7045, %v7042, %v7044
        %7054 = vrot.lane.b32.xlu0 %v6923, 107
        %v7055 = vpop.permute.xlu0 %7054
        %7056 = vrot.lane.b32.xlu0 %v6924, 107
        %v7057 = vpop.permute.xlu0 %7056
        %7058 = vrot.lane.b32.xlu0 %v6925, 107
        %v7059 = vpop.permute.xlu0 %7058
        %7060 = vrot.lane.b32.xlu0 %v6926, 107
        %v7061 = vpop.permute.xlu0 %7060
        %7062 = vrot.lane.b32.xlu0 %v6927, 107
        %v7063 = vpop.permute.xlu0 %7062
        %7064 = vrot.lane.b32.xlu0 %v6928, 107
        %v7065 = vpop.permute.xlu0 %7064
        %vm7066 = vcmask 875520
        %v7067 = vsel %vm7066, %v7055, %v7057
        %v7068 = vsel %vm7066, %v7057, %v7059
        %v7069 = vsel %vm7066, %v7061, %v7063
        %v7070 = vsel %vm7066, %v7063, %v7065
        %7075 = vrot.lane.b32.xlu0 %v6923, 106
        %v7076 = vpop.permute.xlu0 %7075
        %7077 = vrot.lane.b32.xlu0 %v6924, 106
        %v7078 = vpop.permute.xlu0 %7077
        %7079 = vrot.lane.b32.xlu0 %v6925, 106
        %v7080 = vpop.permute.xlu0 %7079
        %7081 = vrot.lane.b32.xlu0 %v6926, 106
        %v7082 = vpop.permute.xlu0 %7081
        %7083 = vrot.lane.b32.xlu0 %v6927, 106
        %v7084 = vpop.permute.xlu0 %7083
        %7085 = vrot.lane.b32.xlu0 %v6928, 106
        %v7086 = vpop.permute.xlu0 %7085
        %vm7087 = vcmask 867328
        %v7088 = vsel %vm7087, %v7076, %v7078
        %v7089 = vsel %vm7087, %v7078, %v7080
        %v7090 = vsel %vm7087, %v7082, %v7084
        %v7091 = vsel %vm7087, %v7084, %v7086
        %7096 = vrot.lane.b32.xlu0 %v6923, 92
        %v7097 = vpop.permute.xlu0 %7096
        %7098 = vrot.lane.b32.xlu0 %v6924, 92
        %v7099 = vpop.permute.xlu0 %7098
        %7100 = vrot.lane.b32.xlu0 %v6925, 92
        %v7101 = vpop.permute.xlu0 %7100
        %7102 = vrot.lane.b32.xlu0 %v6926, 92
        %v7103 = vpop.permute.xlu0 %7102
        %7104 = vrot.lane.b32.xlu0 %v6927, 92
        %v7105 = vpop.permute.xlu0 %7104
        %7106 = vrot.lane.b32.xlu0 %v6928, 92
        %v7107 = vpop.permute.xlu0 %7106
        %v7108 = vsel %vm610, %v7097, %v7099
        %v7109 = vsel %vm610, %v7099, %v7101
        %v7110 = vsel %vm610, %v7103, %v7105
        %v7111 = vsel %vm610, %v7105, %v7107
        %7116 = vrot.lane.b32.xlu0 %v6923, 91
        %v7117 = vpop.permute.xlu0 %7116
        %7118 = vrot.lane.b32.xlu0 %v6924, 91
        %v7119 = vpop.permute.xlu0 %7118
        %7120 = vrot.lane.b32.xlu0 %v6925, 91
        %v7121 = vpop.permute.xlu0 %7120
        %7122 = vrot.lane.b32.xlu0 %v6926, 91
        %v7123 = vpop.permute.xlu0 %7122
        %7124 = vrot.lane.b32.xlu0 %v6927, 91
        %v7125 = vpop.permute.xlu0 %7124
        %7126 = vrot.lane.b32.xlu0 %v6928, 91
        %v7127 = vpop.permute.xlu0 %7126
        %vm7128 = vcmask 744448
        %v7129 = vsel %vm7128, %v7117, %v7119
        %v7130 = vsel %vm7128, %v7119, %v7121
        %v7131 = vsel %vm7128, %v7123, %v7125
        %v7132 = vsel %vm7128, %v7125, %v7127
        %7137 = vrot.lane.b32.xlu0 %v6923, 90
        %v7138 = vpop.permute.xlu0 %7137
        %7139 = vrot.lane.b32.xlu0 %v6924, 90
        %v7140 = vpop.permute.xlu0 %7139
        %7141 = vrot.lane.b32.xlu0 %v6925, 90
        %v7142 = vpop.permute.xlu0 %7141
        %7143 = vrot.lane.b32.xlu0 %v6926, 90
        %v7144 = vpop.permute.xlu0 %7143
        %7145 = vrot.lane.b32.xlu0 %v6927, 90
        %v7146 = vpop.permute.xlu0 %7145
        %7147 = vrot.lane.b32.xlu0 %v6928, 90
        %v7148 = vpop.permute.xlu0 %7147
        %vm7149 = vcmask 736256
        %v7150 = vsel %vm7149, %v7138, %v7140
        %v7151 = vsel %vm7149, %v7140, %v7142
        %v7152 = vsel %vm7149, %v7144, %v7146
        %v7153 = vsel %vm7149, %v7146, %v7148
        %7158 = vrot.lane.b32.xlu0 %v6923, 89
        %v7159 = vpop.permute.xlu0 %7158
        %7160 = vrot.lane.b32.xlu0 %v6924, 89
        %v7161 = vpop.permute.xlu0 %7160
        %7162 = vrot.lane.b32.xlu0 %v6925, 89
        %v7163 = vpop.permute.xlu0 %7162
        %7164 = vrot.lane.b32.xlu0 %v6926, 89
        %v7165 = vpop.permute.xlu0 %7164
        %7166 = vrot.lane.b32.xlu0 %v6927, 89
        %v7167 = vpop.permute.xlu0 %7166
        %7168 = vrot.lane.b32.xlu0 %v6928, 89
        %v7169 = vpop.permute.xlu0 %7168
        %vm7170 = vcmask 728064
        %v7171 = vsel %vm7170, %v7159, %v7161
        %v7172 = vsel %vm7170, %v7161, %v7163
        %v7173 = vsel %vm7170, %v7165, %v7167
        %v7174 = vsel %vm7170, %v7167, %v7169
        %7179 = vrot.lane.b32.xlu0 %v6923, 88
        %v7180 = vpop.permute.xlu0 %7179
        %7181 = vrot.lane.b32.xlu0 %v6924, 88
        %v7182 = vpop.permute.xlu0 %7181
        %7183 = vrot.lane.b32.xlu0 %v6925, 88
        %v7184 = vpop.permute.xlu0 %7183
        %7185 = vrot.lane.b32.xlu0 %v6926, 88
        %v7186 = vpop.permute.xlu0 %7185
        %7187 = vrot.lane.b32.xlu0 %v6927, 88
        %v7188 = vpop.permute.xlu0 %7187
        %7189 = vrot.lane.b32.xlu0 %v6928, 88
        %v7190 = vpop.permute.xlu0 %7189
        %vm7191 = vcmask 719872
        %v7192 = vsel %vm7191, %v7180, %v7182
        %v7193 = vsel %vm7191, %v7182, %v7184
        %v7194 = vsel %vm7191, %v7186, %v7188
        %v7195 = vsel %vm7191, %v7188, %v7190
        %7200 = vrot.lane.b32.xlu0 %v6923, 74
        %v7201 = vpop.permute.xlu0 %7200
        %7202 = vrot.lane.b32.xlu0 %v6924, 74
        %v7203 = vpop.permute.xlu0 %7202
        %7204 = vrot.lane.b32.xlu0 %v6925, 74
        %v7205 = vpop.permute.xlu0 %7204
        %7206 = vrot.lane.b32.xlu0 %v6926, 74
        %v7207 = vpop.permute.xlu0 %7206
        %7208 = vrot.lane.b32.xlu0 %v6927, 74
        %v7209 = vpop.permute.xlu0 %7208
        %7210 = vrot.lane.b32.xlu0 %v6928, 74
        %v7211 = vpop.permute.xlu0 %7210
        %vm7212 = vcmask 605184
        %v7213 = vsel %vm7212, %v7201, %v7203
        %v7214 = vsel %vm7212, %v7203, %v7205
        %v7215 = vsel %vm7212, %v7207, %v7209
        %v7216 = vsel %vm7212, %v7209, %v7211
        %7221 = vrot.lane.b32.xlu0 %v6925, 127
        %v7222 = vpop.permute.xlu0 %7221
        %7223 = vrot.lane.b32.xlu0 %v6928, 127
        %v7224 = vpop.permute.xlu0 %7223
        %v7225 = vsel %vm362, %v6936, %v7222
        %v7226 = vsel %vm362, %v6940, %v7224
        %7227 = vrot.lane.b32.xlu0 %v6925, 126
        %v7228 = vpop.permute.xlu0 %7227
        %7229 = vrot.lane.b32.xlu0 %v6928, 126
        %v7230 = vpop.permute.xlu0 %7229
        %v7231 = vsel %vm393, %v6950, %v7228
        %v7232 = vsel %vm393, %v6954, %v7230
        %7233 = vrot.lane.b32.xlu0 %v6925, 125
        %v7234 = vpop.permute.xlu0 %7233
        %7235 = vrot.lane.b32.xlu0 %v6928, 125
        %v7236 = vpop.permute.xlu0 %7235
        %v7237 = vsel %vm424, %v6964, %v7234
        %v7238 = vsel %vm424, %v6968, %v7236
        %7239 = vrot.lane.b32.xlu0 %v6923, 111
        %v7240 = vpop.permute.xlu0 %7239
        %7241 = vrot.lane.b32.xlu0 %v6924, 111
        %v7242 = vpop.permute.xlu0 %7241
        %7243 = vrot.lane.b32.xlu0 %v6925, 111
        %v7244 = vpop.permute.xlu0 %7243
        %7245 = vrot.lane.b32.xlu0 %v6926, 111
        %v7246 = vpop.permute.xlu0 %7245
        %7247 = vrot.lane.b32.xlu0 %v6927, 111
        %v7248 = vpop.permute.xlu0 %7247
        %7249 = vrot.lane.b32.xlu0 %v6928, 111
        %v7250 = vpop.permute.xlu0 %7249
        %vm7251 = vcmask 908288
        %v7252 = vsel %vm7251, %v7240, %v7242
        %v7253 = vsel %vm7251, %v7242, %v7244
        %v7254 = vsel %vm7251, %v7246, %v7248
        %v7255 = vsel %vm7251, %v7248, %v7250
        %7256 = vrot.lane.b32.xlu0 %v6923, 73
        %v7257 = vpop.permute.xlu0 %7256
        %7258 = vrot.lane.b32.xlu0 %v6924, 73
        %v7259 = vpop.permute.xlu0 %7258
        %7260 = vrot.lane.b32.xlu0 %v6925, 73
        %v7261 = vpop.permute.xlu0 %7260
        %7262 = vrot.lane.b32.xlu0 %v6926, 73
        %v7263 = vpop.permute.xlu0 %7262
        %7264 = vrot.lane.b32.xlu0 %v6927, 73
        %v7265 = vpop.permute.xlu0 %7264
        %7266 = vrot.lane.b32.xlu0 %v6928, 73
        %v7267 = vpop.permute.xlu0 %7266
        %7268 = vrot.lane.b32.xlu0 %v6941, 73
        %v7269 = vpop.permute.xlu0 %7268
        %7270 = vrot.lane.b32.xlu0 %v7225, 73
        %v7271 = vpop.permute.xlu0 %7270
        %7272 = vrot.lane.b32.xlu0 %v7222, 73
        %v7273 = vpop.permute.xlu0 %7272
        %7274 = vrot.lane.b32.xlu0 %v6942, 73
        %v7275 = vpop.permute.xlu0 %7274
        %7276 = vrot.lane.b32.xlu0 %v7226, 73
        %v7277 = vpop.permute.xlu0 %7276
        %7278 = vrot.lane.b32.xlu0 %v7224, 73
        %v7279 = vpop.permute.xlu0 %7278
        %7280 = vrot.lane.b32.xlu0 %v6955, 73
        %v7281 = vpop.permute.xlu0 %7280
        %7282 = vrot.lane.b32.xlu0 %v7231, 73
        %v7283 = vpop.permute.xlu0 %7282
        %7284 = vrot.lane.b32.xlu0 %v7228, 73
        %v7285 = vpop.permute.xlu0 %7284
        %7286 = vrot.lane.b32.xlu0 %v6956, 73
        %v7287 = vpop.permute.xlu0 %7286
        %7288 = vrot.lane.b32.xlu0 %v7232, 73
        %v7289 = vpop.permute.xlu0 %7288
        %7290 = vrot.lane.b32.xlu0 %v7230, 73
        %v7291 = vpop.permute.xlu0 %7290
        %7292 = vrot.lane.b32.xlu0 %v6969, 73
        %v7293 = vpop.permute.xlu0 %7292
        %7294 = vrot.lane.b32.xlu0 %v7237, 73
        %v7295 = vpop.permute.xlu0 %7294
        %7296 = vrot.lane.b32.xlu0 %v7234, 73
        %v7297 = vpop.permute.xlu0 %7296
        %7298 = vrot.lane.b32.xlu0 %v6970, 73
        %v7299 = vpop.permute.xlu0 %7298
        %7300 = vrot.lane.b32.xlu0 %v7238, 73
        %v7301 = vpop.permute.xlu0 %7300
        %7302 = vrot.lane.b32.xlu0 %v7236, 73
        %v7303 = vpop.permute.xlu0 %7302
        %7304 = vrot.lane.b32.xlu0 %v7252, 73
        %v7305 = vpop.permute.xlu0 %7304
        %7306 = vrot.lane.b32.xlu0 %v7253, 73
        %v7307 = vpop.permute.xlu0 %7306
        %7308 = vrot.lane.b32.xlu0 %v7244, 73
        %v7309 = vpop.permute.xlu0 %7308
        %7310 = vrot.lane.b32.xlu0 %v7254, 73
        %v7311 = vpop.permute.xlu0 %7310
        %7312 = vrot.lane.b32.xlu0 %v7255, 73
        %v7313 = vpop.permute.xlu0 %7312
        %7314 = vrot.lane.b32.xlu0 %v7250, 73
        %v7315 = vpop.permute.xlu0 %7314
        %7316 = vrot.lane.b32.xlu0 %v7004, 73
        %v7317 = vpop.permute.xlu0 %7316
        %7318 = vrot.lane.b32.xlu0 %v7005, 73
        %v7319 = vpop.permute.xlu0 %7318
        %7320 = vrot.lane.b32.xlu0 %v6996, 73
        %v7321 = vpop.permute.xlu0 %7320
        %7322 = vrot.lane.b32.xlu0 %v7006, 73
        %v7323 = vpop.permute.xlu0 %7322
        %7324 = vrot.lane.b32.xlu0 %v7007, 73
        %v7325 = vpop.permute.xlu0 %7324
        %7326 = vrot.lane.b32.xlu0 %v7002, 73
        %v7327 = vpop.permute.xlu0 %7326
        %7328 = vrot.lane.b32.xlu0 %v7025, 73
        %v7329 = vpop.permute.xlu0 %7328
        %7330 = vrot.lane.b32.xlu0 %v7026, 73
        %v7331 = vpop.permute.xlu0 %7330
        %7332 = vrot.lane.b32.xlu0 %v7017, 73
        %v7333 = vpop.permute.xlu0 %7332
        %7334 = vrot.lane.b32.xlu0 %v7027, 73
        %v7335 = vpop.permute.xlu0 %7334
        %7336 = vrot.lane.b32.xlu0 %v7028, 73
        %v7337 = vpop.permute.xlu0 %7336
        %7338 = vrot.lane.b32.xlu0 %v7023, 73
        %v7339 = vpop.permute.xlu0 %7338
        %7340 = vrot.lane.b32.xlu0 %v7046, 73
        %v7341 = vpop.permute.xlu0 %7340
        %7342 = vrot.lane.b32.xlu0 %v7047, 73
        %v7343 = vpop.permute.xlu0 %7342
        %7344 = vrot.lane.b32.xlu0 %v7038, 73
        %v7345 = vpop.permute.xlu0 %7344
        %7346 = vrot.lane.b32.xlu0 %v7048, 73
        %v7347 = vpop.permute.xlu0 %7346
        %7348 = vrot.lane.b32.xlu0 %v7049, 73
        %v7349 = vpop.permute.xlu0 %7348
        %7350 = vrot.lane.b32.xlu0 %v7044, 73
        %v7351 = vpop.permute.xlu0 %7350
        %7352 = vrot.lane.b32.xlu0 %v7067, 73
        %v7353 = vpop.permute.xlu0 %7352
        %7354 = vrot.lane.b32.xlu0 %v7068, 73
        %v7355 = vpop.permute.xlu0 %7354
        %7356 = vrot.lane.b32.xlu0 %v7059, 73
        %v7357 = vpop.permute.xlu0 %7356
        %7358 = vrot.lane.b32.xlu0 %v7069, 73
        %v7359 = vpop.permute.xlu0 %7358
        %7360 = vrot.lane.b32.xlu0 %v7070, 73
        %v7361 = vpop.permute.xlu0 %7360
        %7362 = vrot.lane.b32.xlu0 %v7065, 73
        %v7363 = vpop.permute.xlu0 %7362
        %vm7364 = vcmask 596992
        %v7365 = vsel %vm7364, %v7257, %v7259
        %v7366 = vsel %vm7364, %v7259, %v7261
        %v7367 = vsel %vm7364, %v7263, %v7265
        %v7368 = vsel %vm7364, %v7265, %v7267
        %v7369 = vsel %vm7364, %v7269, %v7271
        %v7370 = vsel %vm7364, %v7271, %v7273
        %v7371 = vsel %vm7364, %v7275, %v7277
        %v7372 = vsel %vm7364, %v7277, %v7279
        %v7373 = vsel %vm7364, %v7281, %v7283
        %v7374 = vsel %vm7364, %v7283, %v7285
        %v7375 = vsel %vm7364, %v7287, %v7289
        %v7376 = vsel %vm7364, %v7289, %v7291
        %v7377 = vsel %vm7364, %v7293, %v7295
        %v7378 = vsel %vm7364, %v7295, %v7297
        %v7379 = vsel %vm7364, %v7299, %v7301
        %v7380 = vsel %vm7364, %v7301, %v7303
        %v7381 = vsel %vm7364, %v7305, %v7307
        %v7382 = vsel %vm7364, %v7307, %v7309
        %v7383 = vsel %vm7364, %v7311, %v7313
        %v7384 = vsel %vm7364, %v7313, %v7315
        %v7385 = vsel %vm7364, %v7317, %v7319
        %v7386 = vsel %vm7364, %v7319, %v7321
        %v7387 = vsel %vm7364, %v7323, %v7325
        %v7388 = vsel %vm7364, %v7325, %v7327
        %v7389 = vsel %vm7364, %v7329, %v7331
        %v7390 = vsel %vm7364, %v7331, %v7333
        %v7391 = vsel %vm7364, %v7335, %v7337
        %v7392 = vsel %vm7364, %v7337, %v7339
        %v7393 = vsel %vm7364, %v7341, %v7343
        %v7394 = vsel %vm7364, %v7343, %v7345
        %v7395 = vsel %vm7364, %v7347, %v7349
        %v7396 = vsel %vm7364, %v7349, %v7351
        %v7397 = vsel %vm7364, %v7353, %v7355
        %v7398 = vsel %vm7364, %v7355, %v7357
        %v7399 = vsel %vm7364, %v7359, %v7361
        %v7400 = vsel %vm7364, %v7361, %v7363
        %v7437 = vld [vmem:[%s4] sm:$0xff]
        %v7438 = vld [vmem:[%s4 + $0x8] sm:$0xff]
        %v7439 = vld [vmem:[%s4 + $0x10] sm:$0xff]
        %v7440 = vld [vmem:[%s4 + $0x18] sm:$0xff]
        %v7441 = vld [vmem:[%s4 + $0x20] sm:$0xff]
        %v7442 = vld [vmem:[%s4 + $0x28] sm:$0xff]
        %v7443 = vld [vmem:[%s4 + $0x30] sm:$0xff]
        %v7444 = vld [vmem:[%s4 + $0x38] sm:$0xff]
        %v7445 = vpack.c.bf16 %v6926, %v6923
        %v7446 = vpack.c.bf16 %v6927, %v6924
        %v7447 = vpack.c.bf16 %v6942, %v6941
        %v7448 = vpack.c.bf16 %v6940, %v6936
        %v7449 = vpack.c.bf16 %v6956, %v6955
        %v7450 = vpack.c.bf16 %v6954, %v6950
        %v7451 = vpack.c.bf16 %v6970, %v6969
        %v7452 = vpack.c.bf16 %v6968, %v6964
        %v7453 = vpack.c.bf16 %v6984, %v6983
        %v7454 = vpack.c.bf16 %v6982, %v6978
        %v7455 = vpack.c.bf16 %v7006, %v7004
        %v7456 = vpack.c.bf16 %v7007, %v7005
        %v7457 = vpack.c.bf16 %v7027, %v7025
        %v7458 = vpack.c.bf16 %v7028, %v7026
        %v7459 = vpack.c.bf16 %v7048, %v7046
        %v7460 = vpack.c.bf16 %v7049, %v7047
        %v7461 = vpack.c.bf16 %v7069, %v7067
        %v7462 = vpack.c.bf16 %v7070, %v7068
        %v7463 = vpack.c.bf16 %v7090, %v7088
        %v7464 = vpack.c.bf16 %v7091, %v7089
        %v7465 = vpack.c.bf16 %v7110, %v7108
        %v7466 = vpack.c.bf16 %v7111, %v7109
        %v7467 = vpack.c.bf16 %v7131, %v7129
        %v7468 = vpack.c.bf16 %v7132, %v7130
        %v7469 = vpack.c.bf16 %v7152, %v7150
        %v7470 = vpack.c.bf16 %v7153, %v7151
        %v7471 = vpack.c.bf16 %v7173, %v7171
        %v7472 = vpack.c.bf16 %v7174, %v7172
        %v7473 = vpack.c.bf16 %v7194, %v7192
        %v7474 = vpack.c.bf16 %v7195, %v7193
        %v7475 = vpack.c.bf16 %v7215, %v7213
        %v7476 = vpack.c.bf16 %v7216, %v7214
        %v7477 = vpack.c.bf16 %v7367, %v7365
        %v7478 = vpack.c.bf16 %v7368, %v7366
        %v7479 = vpack.c.bf16 %v7371, %v7369
        %v7480 = vpack.c.bf16 %v7372, %v7370
        %v7481 = vpack.c.bf16 %v7375, %v7373
        %v7482 = vpack.c.bf16 %v7376, %v7374
        %v7483 = vpack.c.bf16 %v7379, %v7377
        %v7484 = vpack.c.bf16 %v7380, %v7378
        %v7485 = vpack.c.bf16 %v7383, %v7381
        %v7486 = vpack.c.bf16 %v7384, %v7382
        %v7487 = vpack.c.bf16 %v7387, %v7385
        %v7488 = vpack.c.bf16 %v7388, %v7386
        %v7489 = vpack.c.bf16 %v7391, %v7389
        %v7490 = vpack.c.bf16 %v7392, %v7390
        %v7491 = vpack.c.bf16 %v7395, %v7393
        %v7492 = vpack.c.bf16 %v7396, %v7394
        %v7493 = vpack.c.bf16 %v7399, %v7397
        %v7494 = vpack.c.bf16 %v7400, %v7398
        %v7495 = vld [vmem:[%s5] sm:$0xff]
        %v7496 = vld [vmem:[%s5 + $0x8] sm:$0xff]
        %v7497 = vld [vmem:[%s5 + $0x10] sm:$0xff]
        %v7498 = vld [vmem:[%s5 + $0x18] sm:$0xff]
        %7500 = vset.pattern.permute.xlu0 0
        %7501 = vperm.xlu0 %7500, %v7495
        %v7502 = vpop.permute.xlu0 %7501
        %7505 = vset.pattern.permute.xlu0 0
        %7506 = vperm.xlu0 %7505, %v7496
        %v7507 = vpop.permute.xlu0 %7506
        %7510 = vset.pattern.permute.xlu0 0
        %7511 = vperm.xlu0 %7510, %v7497
        %v7512 = vpop.permute.xlu0 %7511
        %7515 = vset.pattern.permute.xlu0 0
        %7516 = vperm.xlu0 %7515, %v7498
        %v7517 = vpop.permute.xlu0 %7516
        %v7527 = vunpack.c.l.b16 %v7437
        %v7528 = vunpack.c.h.b16 %v7437
        %v7529 = vunpack.c.l.b16 %v7438
        %v7530 = vunpack.c.h.b16 %v7438
        %v7531 = vunpack.c.l.b16 %v7439
        %v7532 = vunpack.c.h.b16 %v7439
        %v7533 = vunpack.c.l.b16 %v7440
        %v7534 = vunpack.c.h.b16 %v7440
        %v7535 = vunpack.c.l.b16 %v7441
        %v7536 = vunpack.c.h.b16 %v7441
        %v7537 = vunpack.c.l.b16 %v7442
        %v7538 = vunpack.c.h.b16 %v7442
        %v7539 = vunpack.c.l.b16 %v7443
        %v7540 = vunpack.c.h.b16 %v7443
        %v7541 = vunpack.c.l.b16 %v7444
        %v7542 = vunpack.c.h.b16 %v7444
        %v7543 = vpack.c.b16 %v7531, %v7527
        %v7544 = vpack.c.b16 %v7532, %v7528
        %v7545 = vpack.c.b16 %v7533, %v7529
        %v7546 = vpack.c.b16 %v7534, %v7530
        %v7547 = vpack.c.b16 %v7539, %v7535
        %v7548 = vpack.c.b16 %v7540, %v7536
        %v7549 = vpack.c.b16 %v7541, %v7537
        %v7550 = vpack.c.b16 %v7542, %v7538
        %vm7557 = vcmask 130048
        %v7559 = vsel %vm7557, %v7546, 0
        %v7562 = vsel %vm7557, %v7550, 0
        %7564 = vmatpush.bf16.msra.mxu0 %v7459
        %7565 = vmatpush.bf16.msra.mxu0 %v7457
        %7566 = vmatpush.bf16.msra.mxu0 %v7455
        %7567 = vmatpush.bf16.msra.mxu0 %v7453
        %7568 = vmatpush.bf16.msra.mxu0 %v7451
        %7569 = vmatpush.bf16.msra.mxu0 %v7449
        %7570 = vmatpush.bf16.msra.mxu0 %v7447
        %7571 = vmatpush.bf16.msra.mxu0 %v7445
        %7572 = vmatmul.bf16.gmra.mxu0 %v7543
        %v7573 = vpop.f32.mrf.mxu0
        %v7574 = vadd.f32 %v7502, %v7573
        %v7575 = vpop.f32.mrf.mxu0
        %v7576 = vadd.f32 %v7507, %v7575
        %7577 = vmatmul.bf16.gmra.mxu0 %v7547
        %v7578 = vpop.f32.mrf.mxu0
        %v7579 = vadd.f32 %v7512, %v7578
        %v7580 = vpop.f32.mrf.mxu0
        %v7581 = vadd.f32 %v7517, %v7580
        %7582 = vdwg.mxu0
        %7583 = vmatpush.bf16.msra.mxu0 %v7475
        %7584 = vmatpush.bf16.msra.mxu0 %v7473
        %7585 = vmatpush.bf16.msra.mxu0 %v7471
        %7586 = vmatpush.bf16.msra.mxu0 %v7469
        %7587 = vmatpush.bf16.msra.mxu0 %v7467
        %7588 = vmatpush.bf16.msra.mxu0 %v7465
        %7589 = vmatpush.bf16.msra.mxu0 %v7463
        %7590 = vmatpush.bf16.msra.mxu0 %v7461
        %7591 = vmatmul.bf16.gmra.mxu0 %v7544
        %v7592 = vpop.f32.mrf.mxu0
        %v7593 = vadd.f32 %v7574, %v7592
        %v7594 = vpop.f32.mrf.mxu0
        %v7595 = vadd.f32 %v7576, %v7594
        %7596 = vmatmul.bf16.gmra.mxu0 %v7548
        %v7597 = vpop.f32.mrf.mxu0
        %v7598 = vadd.f32 %v7579, %v7597
        %v7599 = vpop.f32.mrf.mxu0
        %v7600 = vadd.f32 %v7581, %v7599
        %7601 = vdwg.mxu0
        %7602 = vmatpush.bf16.msra.mxu0 %v7491
        %7603 = vmatpush.bf16.msra.mxu0 %v7489
        %7604 = vmatpush.bf16.msra.mxu0 %v7487
        %7605 = vmatpush.bf16.msra.mxu0 %v7485
        %7606 = vmatpush.bf16.msra.mxu0 %v7483
        %7607 = vmatpush.bf16.msra.mxu0 %v7481
        %7608 = vmatpush.bf16.msra.mxu0 %v7479
        %7609 = vmatpush.bf16.msra.mxu0 %v7477
        %7610 = vmatmul.bf16.gmra.mxu0 %v7545
        %v7611 = vpop.f32.mrf.mxu0
        %v7612 = vadd.f32 %v7593, %v7611
        %v7613 = vpop.f32.mrf.mxu0
        %v7614 = vadd.f32 %v7595, %v7613
        %7615 = vmatmul.bf16.gmra.mxu0 %v7549
        %v7616 = vpop.f32.mrf.mxu0
        %v7617 = vadd.f32 %v7598, %v7616
        %v7618 = vpop.f32.mrf.mxu0
        %v7619 = vadd.f32 %v7600, %v7618
        %7620 = vdwg.mxu0
        %7621 = vmatpush.bf16.msra.mxu0 0
        %7622 = vmatpush.bf16.msra.mxu0 0
        %7623 = vmatpush.bf16.msra.mxu0 0
        %7624 = vmatpush.bf16.msra.mxu0 0
        %7625 = vmatpush.bf16.msra.mxu0 0
        %7626 = vmatpush.bf16.msra.mxu0 0
        %7627 = vmatpush.bf16.msra.mxu0 0
        %7628 = vmatpush.bf16.msra.mxu0 %v7493
        %7629 = vmatmul.bf16.gmra.mxu0 %v7559
        %v7630 = vpop.f32.mrf.mxu0
        %v7631 = vadd.f32 %v7612, %v7630
        %v7632 = vpop.f32.mrf.mxu0
        %v7633 = vadd.f32 %v7614, %v7632
        %7634 = vmatmul.bf16.gmra.mxu0 %v7562
        %v7635 = vpop.f32.mrf.mxu0
        %v7636 = vadd.f32 %v7617, %v7635
        %v7637 = vpop.f32.mrf.mxu0
        %v7638 = vadd.f32 %v7619, %v7637
        %7639 = vdwg.mxu0
        %7640 = vmatpush.bf16.msra.mxu0 %v7460
        %7641 = vmatpush.bf16.msra.mxu0 %v7458
        %7642 = vmatpush.bf16.msra.mxu0 %v7456
        %7643 = vmatpush.bf16.msra.mxu0 %v7454
        %7644 = vmatpush.bf16.msra.mxu0 %v7452
        %7645 = vmatpush.bf16.msra.mxu0 %v7450
        %7646 = vmatpush.bf16.msra.mxu0 %v7448
        %7647 = vmatpush.bf16.msra.mxu0 %v7446
        %7648 = vmatmul.bf16.gmra.mxu0 %v7543
        %v7649 = vpop.f32.mrf.mxu0
        %v7650 = vadd.f32 %v7502, %v7649
        %v7651 = vpop.f32.mrf.mxu0
        %v7652 = vadd.f32 %v7507, %v7651
        %7653 = vmatmul.bf16.gmra.mxu0 %v7547
        %v7654 = vpop.f32.mrf.mxu0
        %v7655 = vadd.f32 %v7512, %v7654
        %v7656 = vpop.f32.mrf.mxu0
        %v7657 = vadd.f32 %v7517, %v7656
        %7658 = vdwg.mxu0
        %7659 = vmatpush.bf16.msra.mxu0 %v7476
        %7660 = vmatpush.bf16.msra.mxu0 %v7474
        %7661 = vmatpush.bf16.msra.mxu0 %v7472
        %7662 = vmatpush.bf16.msra.mxu0 %v7470
        %7663 = vmatpush.bf16.msra.mxu0 %v7468
        %7664 = vmatpush.bf16.msra.mxu0 %v7466
        %7665 = vmatpush.bf16.msra.mxu0 %v7464
        %7666 = vmatpush.bf16.msra.mxu0 %v7462
        %7667 = vmatmul.bf16.gmra.mxu0 %v7544
        %v7668 = vpop.f32.mrf.mxu0
        %v7669 = vadd.f32 %v7650, %v7668
        %v7670 = vpop.f32.mrf.mxu0
        %v7671 = vadd.f32 %v7652, %v7670
        %7672 = vmatmul.bf16.gmra.mxu0 %v7548
        %v7673 = vpop.f32.mrf.mxu0
        %v7674 = vadd.f32 %v7655, %v7673
        %v7675 = vpop.f32.mrf.mxu0
        %v7676 = vadd.f32 %v7657, %v7675
        %7677 = vdwg.mxu0
        %7678 = vmatpush.bf16.msra.mxu0 %v7492
        %7679 = vmatpush.bf16.msra.mxu0 %v7490
        %7680 = vmatpush.bf16.msra.mxu0 %v7488
        %7681 = vmatpush.bf16.msra.mxu0 %v7486
        %7682 = vmatpush.bf16.msra.mxu0 %v7484
        %7683 = vmatpush.bf16.msra.mxu0 %v7482
        %7684 = vmatpush.bf16.msra.mxu0 %v7480
        %7685 = vmatpush.bf16.msra.mxu0 %v7478
        %7686 = vmatmul.bf16.gmra.mxu0 %v7545
        %v7687 = vpop.f32.mrf.mxu0
        %v7688 = vadd.f32 %v7669, %v7687
        %v7689 = vpop.f32.mrf.mxu0
        %v7690 = vadd.f32 %v7671, %v7689
        %7691 = vmatmul.bf16.gmra.mxu0 %v7549
        %v7692 = vpop.f32.mrf.mxu0
        %v7693 = vadd.f32 %v7674, %v7692
        %v7694 = vpop.f32.mrf.mxu0
        %v7695 = vadd.f32 %v7676, %v7694
        %7696 = vdwg.mxu0
        %7697 = vmatpush.bf16.msra.mxu0 0
        %7698 = vmatpush.bf16.msra.mxu0 0
        %7699 = vmatpush.bf16.msra.mxu0 0
        %7700 = vmatpush.bf16.msra.mxu0 0
        %7701 = vmatpush.bf16.msra.mxu0 0
        %7702 = vmatpush.bf16.msra.mxu0 0
        %7703 = vmatpush.bf16.msra.mxu0 0
        %7704 = vmatpush.bf16.msra.mxu0 %v7494
        %7705 = vmatmul.bf16.gmra.mxu0 %v7559
        %v7706 = vpop.f32.mrf.mxu0
        %v7707 = vadd.f32 %v7688, %v7706
        %v7708 = vpop.f32.mrf.mxu0
        %v7709 = vadd.f32 %v7690, %v7708
        %7710 = vmatmul.bf16.gmra.mxu0 %v7562
        %v7711 = vpop.f32.mrf.mxu0
        %v7712 = vadd.f32 %v7693, %v7711
        %v7713 = vpop.f32.mrf.mxu0
        %v7714 = vadd.f32 %v7695, %v7713
        %7715 = vdwg.mxu0
        %v7716 = vmax.f32 %v7631, 0.0
        %v7717 = vmax.f32 %v7707, 0.0
        %v7718 = vmax.f32 %v7633, 0.0
        %v7719 = vmax.f32 %v7709, 0.0
        %v7720 = vmax.f32 %v7636, 0.0
        %v7721 = vmax.f32 %v7712, 0.0
        %v7722 = vmax.f32 %v7638, 0.0
        %v7723 = vmax.f32 %v7714, 0.0
        %v7724 = vpack.c.bf16 %v7718, %v7716
        %v7725 = vpack.c.bf16 %v7719, %v7717
        %v7726 = vpack.c.bf16 %v7722, %v7720
        %v7727 = vpack.c.bf16 %v7723, %v7721
        %v7728 = vld [vmem:[%s6] sm:$0xf]
        %v7729 = vld [vmem:[%s6 + $0x4] sm:$0xf]
        %v7730 = vld [vmem:[%s6 + $0x8] sm:$0xf]
        %v7731 = vld [vmem:[%s6 + $0xc] sm:$0xf]
        %v7732 = vld [vmem:[%s6 + $0x10] sm:$0xf]
        %v7733 = vld [vmem:[%s6 + $0x14] sm:$0xf]
        %v7734 = vld [vmem:[%s6 + $0x18] sm:$0xf]
        %v7735 = vld [vmem:[%s6 + $0x1c] sm:$0xf]
        %v7736 = vld [vmem:[%s6 + $0x20] sm:$0xf]
        %v7737 = vld [vmem:[%s6 + $0x24] sm:$0xf]
        %v7738 = vld [vmem:[%s6 + $0x28] sm:$0xf]
        %v7739 = vld [vmem:[%s6 + $0x2c] sm:$0xf]
        %v7740 = vld [vmem:[%s6 + $0x30] sm:$0xf]
        %v7741 = vld [vmem:[%s6 + $0x34] sm:$0xf]
        %v7742 = vld [vmem:[%s6 + $0x38] sm:$0xf]
        %v7743 = vld [vmem:[%s6 + $0x3c] sm:$0xf]
        %v7744 = vld [vmem:[%s6 + $0x40] sm:$0xf]
        %v7745 = vld [vmem:[%s6 + $0x44] sm:$0xf]
        %v7746 = vld [vmem:[%s6 + $0x48] sm:$0xf]
        %v7747 = vld [vmem:[%s6 + $0x4c] sm:$0xf]
        %v7748 = vld [vmem:[%s6 + $0x50] sm:$0xf]
        %v7749 = vld [vmem:[%s6 + $0x54] sm:$0xf]
        %v7750 = vld [vmem:[%s6 + $0x58] sm:$0xf]
        %v7751 = vld [vmem:[%s6 + $0x5c] sm:$0xf]
        %v7752 = vld [vmem:[%s6 + $0x60] sm:$0xf]
        %v7753 = vld [vmem:[%s6 + $0x64] sm:$0xf]
        %v7754 = vld [vmem:[%s6 + $0x68] sm:$0xf]
        %v7755 = vld [vmem:[%s6 + $0x6c] sm:$0xf]
        %v7756 = vld [vmem:[%s6 + $0x70] sm:$0xf]
        %v7757 = vld [vmem:[%s6 + $0x74] sm:$0xf]
        %v7758 = vld [vmem:[%s6 + $0x78] sm:$0xf]
        %v7759 = vld [vmem:[%s6 + $0x7c] sm:$0x3]
        %v7792 = vunpack.c.l.b16 %v7728
        %v7793 = vunpack.c.l.b16 %v7729
        %v7794 = vunpack.c.l.b16 %v7730
        %v7795 = vunpack.c.l.b16 %v7731
        %v7796 = vunpack.c.l.b16 %v7732
        %v7797 = vunpack.c.l.b16 %v7733
        %v7798 = vunpack.c.l.b16 %v7734
        %v7799 = vunpack.c.l.b16 %v7735
        %v7800 = vunpack.c.l.b16 %v7736
        %v7801 = vunpack.c.l.b16 %v7737
        %v7802 = vunpack.c.l.b16 %v7738
        %v7803 = vunpack.c.l.b16 %v7739
        %v7804 = vunpack.c.l.b16 %v7740
        %v7805 = vunpack.c.l.b16 %v7741
        %v7806 = vunpack.c.l.b16 %v7742
        %v7807 = vunpack.c.l.b16 %v7743
        %v7808 = vunpack.c.l.b16 %v7744
        %v7809 = vunpack.c.l.b16 %v7745
        %v7810 = vunpack.c.l.b16 %v7746
        %v7811 = vunpack.c.l.b16 %v7747
        %v7812 = vunpack.c.l.b16 %v7748
        %v7813 = vunpack.c.l.b16 %v7749
        %v7814 = vunpack.c.l.b16 %v7750
        %v7815 = vunpack.c.l.b16 %v7751
        %v7816 = vunpack.c.l.b16 %v7752
        %v7817 = vunpack.c.l.b16 %v7753
        %v7818 = vunpack.c.l.b16 %v7754
        %v7819 = vunpack.c.l.b16 %v7755
        %v7820 = vunpack.c.l.b16 %v7756
        %v7821 = vunpack.c.l.b16 %v7757
        %v7822 = vunpack.c.l.b16 %v7758
        %v7823 = vunpack.c.l.b16 %v7759
        %v7824 = vpack.c.b16 %v7793, %v7792
        %v7825 = vpack.c.b16 %v7795, %v7794
        %v7826 = vpack.c.b16 %v7797, %v7796
        %v7827 = vpack.c.b16 %v7799, %v7798
        %v7828 = vpack.c.b16 %v7801, %v7800
        %v7829 = vpack.c.b16 %v7803, %v7802
        %v7830 = vpack.c.b16 %v7805, %v7804
        %v7831 = vpack.c.b16 %v7807, %v7806
        %v7832 = vpack.c.b16 %v7809, %v7808
        %v7833 = vpack.c.b16 %v7811, %v7810
        %v7834 = vpack.c.b16 %v7813, %v7812
        %v7835 = vpack.c.b16 %v7815, %v7814
        %v7836 = vpack.c.b16 %v7817, %v7816
        %v7837 = vpack.c.b16 %v7819, %v7818
        %v7838 = vpack.c.b16 %v7821, %v7820
        %v7839 = vpack.c.b16 %v7823, %v7822
        %v7856 = vsel %vm455, %v7725, 0
        %v7859 = vsel %vm455, %v7727, 0
        %v7862 = vsel %vm851, %v7839, 0
        %7864 = vmatpush.bf16.msra.mxu0 %v7831
        %7865 = vmatpush.bf16.msra.mxu0 %v7830
        %7866 = vmatpush.bf16.msra.mxu0 %v7829
        %7867 = vmatpush.bf16.msra.mxu0 %v7828
        %7868 = vmatpush.bf16.msra.mxu0 %v7827
        %7869 = vmatpush.bf16.msra.mxu0 %v7826
        %7870 = vmatpush.bf16.msra.mxu0 %v7825
        %7871 = vmatpush.bf16.msra.mxu0 %v7824
        %7872 = vmatmul.bf16.gmra.mxu0 %v7724
        %v7873 = vpop.f32.mrf.mxu0
        %v7874 = vadd.f32 0.0, %v7873
        %v7875 = vpop.f32.mrf.mxu0
        %v7876 = vadd.f32 0.0, %v7875
        %7877 = vmatmul.bf16.gmra.mxu0 %v7726
        %v7878 = vpop.f32.mrf.mxu0
        %v7879 = vadd.f32 0.0, %v7878
        %v7880 = vpop.f32.mrf.mxu0
        %v7881 = vadd.f32 0.0, %v7880
        %7882 = vdwg.mxu0
        %7883 = vmatpush.bf16.msra.mxu0 %v7862
        %7884 = vmatpush.bf16.msra.mxu0 %v7838
        %7885 = vmatpush.bf16.msra.mxu0 %v7837
        %7886 = vmatpush.bf16.msra.mxu0 %v7836
        %7887 = vmatpush.bf16.msra.mxu0 %v7835
        %7888 = vmatpush.bf16.msra.mxu0 %v7834
        %7889 = vmatpush.bf16.msra.mxu0 %v7833
        %7890 = vmatpush.bf16.msra.mxu0 %v7832
        %7891 = vmatmul.bf16.gmra.mxu0 %v7856
        %v7892 = vpop.f32.mrf.mxu0
        %v7893 = vadd.f32 %v7874, %v7892
        %v7894 = vpop.f32.mrf.mxu0
        %v7895 = vadd.f32 %v7876, %v7894
        %7896 = vmatmul.bf16.gmra.mxu0 %v7859
        %v7897 = vpop.f32.mrf.mxu0
        %v7898 = vadd.f32 %v7879, %v7897
        %v7899 = vpop.f32.mrf.mxu0
        %v7900 = vadd.f32 %v7881, %v7899
        %7901 = vdwg.mxu0
        %s7902 = scalar_lea.vmem %s6, 128
        %v7903 = vld [vmem:[%s7902] sm:$0xf]
        %v7904 = vld [vmem:[%s7902 + $0x4] sm:$0xf]
        %v7905 = vld [vmem:[%s7902 + $0x8] sm:$0xf]
        %v7906 = vld [vmem:[%s7902 + $0xc] sm:$0xf]
        %v7907 = vld [vmem:[%s7902 + $0x10] sm:$0xf]
        %v7908 = vld [vmem:[%s7902 + $0x14] sm:$0xf]
        %v7909 = vld [vmem:[%s7902 + $0x18] sm:$0xf]
        %v7910 = vld [vmem:[%s7902 + $0x1c] sm:$0xf]
        %v7911 = vld [vmem:[%s7902 + $0x20] sm:$0xf]
        %v7912 = vld [vmem:[%s7902 + $0x24] sm:$0xf]
        %v7913 = vld [vmem:[%s7902 + $0x28] sm:$0xf]
        %v7914 = vld [vmem:[%s7902 + $0x2c] sm:$0xf]
        %v7915 = vld [vmem:[%s7902 + $0x30] sm:$0xf]
        %v7916 = vld [vmem:[%s7902 + $0x34] sm:$0xf]
        %v7917 = vld [vmem:[%s7902 + $0x38] sm:$0xf]
        %v7918 = vld [vmem:[%s7902 + $0x3c] sm:$0xf]
        %v7919 = vld [vmem:[%s7902 + $0x40] sm:$0xf]
        %v7920 = vld [vmem:[%s7902 + $0x44] sm:$0xf]
        %v7921 = vld [vmem:[%s7902 + $0x48] sm:$0xf]
        %v7922 = vld [vmem:[%s7902 + $0x4c] sm:$0xf]
        %v7923 = vld [vmem:[%s7902 + $0x50] sm:$0xf]
        %v7924 = vld [vmem:[%s7902 + $0x54] sm:$0xf]
        %v7925 = vld [vmem:[%s7902 + $0x58] sm:$0xf]
        %v7926 = vld [vmem:[%s7902 + $0x5c] sm:$0xf]
        %v7927 = vld [vmem:[%s7902 + $0x60] sm:$0xf]
        %v7928 = vld [vmem:[%s7902 + $0x64] sm:$0xf]
        %v7929 = vld [vmem:[%s7902 + $0x68] sm:$0xf]
        %v7930 = vld [vmem:[%s7902 + $0x6c] sm:$0xf]
        %v7931 = vld [vmem:[%s7902 + $0x70] sm:$0xf]
        %v7932 = vld [vmem:[%s7902 + $0x74] sm:$0xf]
        %v7933 = vld [vmem:[%s7902 + $0x78] sm:$0xf]
        %v7934 = vld [vmem:[%s7902 + $0x7c] sm:$0x3]
        %v7967 = vunpack.c.l.b16 %v7903
        %v7968 = vunpack.c.l.b16 %v7904
        %v7969 = vunpack.c.l.b16 %v7905
        %v7970 = vunpack.c.l.b16 %v7906
        %v7971 = vunpack.c.l.b16 %v7907
        %v7972 = vunpack.c.l.b16 %v7908
        %v7973 = vunpack.c.l.b16 %v7909
        %v7974 = vunpack.c.l.b16 %v7910
        %v7975 = vunpack.c.l.b16 %v7911
        %v7976 = vunpack.c.l.b16 %v7912
        %v7977 = vunpack.c.l.b16 %v7913
        %v7978 = vunpack.c.l.b16 %v7914
        %v7979 = vunpack.c.l.b16 %v7915
        %v7980 = vunpack.c.l.b16 %v7916
        %v7981 = vunpack.c.l.b16 %v7917
        %v7982 = vunpack.c.l.b16 %v7918
        %v7983 = vunpack.c.l.b16 %v7919
        %v7984 = vunpack.c.l.b16 %v7920
        %v7985 = vunpack.c.l.b16 %v7921
        %v7986 = vunpack.c.l.b16 %v7922
        %v7987 = vunpack.c.l.b16 %v7923
        %v7988 = vunpack.c.l.b16 %v7924
        %v7989 = vunpack.c.l.b16 %v7925
        %v7990 = vunpack.c.l.b16 %v7926
        %v7991 = vunpack.c.l.b16 %v7927
        %v7992 = vunpack.c.l.b16 %v7928
        %v7993 = vunpack.c.l.b16 %v7929
        %v7994 = vunpack.c.l.b16 %v7930
        %v7995 = vunpack.c.l.b16 %v7931
        %v7996 = vunpack.c.l.b16 %v7932
        %v7997 = vunpack.c.l.b16 %v7933
        %v7998 = vunpack.c.l.b16 %v7934
        %v7999 = vpack.c.b16 %v7968, %v7967
        %v8000 = vpack.c.b16 %v7970, %v7969
        %v8001 = vpack.c.b16 %v7972, %v7971
        %v8002 = vpack.c.b16 %v7974, %v7973
        %v8003 = vpack.c.b16 %v7976, %v7975
        %v8004 = vpack.c.b16 %v7978, %v7977
        %v8005 = vpack.c.b16 %v7980, %v7979
        %v8006 = vpack.c.b16 %v7982, %v7981
        %v8007 = vpack.c.b16 %v7984, %v7983
        %v8008 = vpack.c.b16 %v7986, %v7985
        %v8009 = vpack.c.b16 %v7988, %v7987
        %v8010 = vpack.c.b16 %v7990, %v7989
        %v8011 = vpack.c.b16 %v7992, %v7991
        %v8012 = vpack.c.b16 %v7994, %v7993
        %v8013 = vpack.c.b16 %v7996, %v7995
        %v8014 = vpack.c.b16 %v7998, %v7997
        %v8031 = vsel %vm851, %v8014, 0
        %8033 = vmatpush.bf16.msra.mxu0 %v8006
        %8034 = vmatpush.bf16.msra.mxu0 %v8005
        %8035 = vmatpush.bf16.msra.mxu0 %v8004
        %8036 = vmatpush.bf16.msra.mxu0 %v8003
        %8037 = vmatpush.bf16.msra.mxu0 %v8002
        %8038 = vmatpush.bf16.msra.mxu0 %v8001
        %8039 = vmatpush.bf16.msra.mxu0 %v8000
        %8040 = vmatpush.bf16.msra.mxu0 %v7999
        %8041 = vmatmul.bf16.gmra.mxu0 %v7724
        %v8042 = vpop.f32.mrf.mxu0
        %v8043 = vadd.f32 0.0, %v8042
        %v8044 = vpop.f32.mrf.mxu0
        %v8045 = vadd.f32 0.0, %v8044
        %8046 = vmatmul.bf16.gmra.mxu0 %v7726
        %v8047 = vpop.f32.mrf.mxu0
        %v8048 = vadd.f32 0.0, %v8047
        %v8049 = vpop.f32.mrf.mxu0
        %v8050 = vadd.f32 0.0, %v8049
        %8051 = vdwg.mxu0
        %8052 = vmatpush.bf16.msra.mxu0 %v8031
        %8053 = vmatpush.bf16.msra.mxu0 %v8013
        %8054 = vmatpush.bf16.msra.mxu0 %v8012
        %8055 = vmatpush.bf16.msra.mxu0 %v8011
        %8056 = vmatpush.bf16.msra.mxu0 %v8010
        %8057 = vmatpush.bf16.msra.mxu0 %v8009
        %8058 = vmatpush.bf16.msra.mxu0 %v8008
        %8059 = vmatpush.bf16.msra.mxu0 %v8007
        %8060 = vmatmul.bf16.gmra.mxu0 %v7856
        %v8061 = vpop.f32.mrf.mxu0
        %v8062 = vadd.f32 %v8043, %v8061
        %v8063 = vpop.f32.mrf.mxu0
        %v8064 = vadd.f32 %v8045, %v8063
        %8065 = vmatmul.bf16.gmra.mxu0 %v7859
        %v8066 = vpop.f32.mrf.mxu0
        %v8067 = vadd.f32 %v8048, %v8066
        %v8068 = vpop.f32.mrf.mxu0
        %v8069 = vadd.f32 %v8050, %v8068
        %8070 = vdwg.mxu0
        %v8071 = vmax.f32 %v7893, %v8062
        %v8072 = vmax.f32 %v7895, %v8064
        %v8073 = vmax.f32 %v7898, %v8067
        %v8074 = vmax.f32 %v7900, %v8069
        %s8075 = scalar_lea.vmem %s6, 256
        %v8076 = vld [vmem:[%s8075] sm:$0xf]
        %v8077 = vld [vmem:[%s8075 + $0x4] sm:$0xf]
        %v8078 = vld [vmem:[%s8075 + $0x8] sm:$0xf]
        %v8079 = vld [vmem:[%s8075 + $0xc] sm:$0xf]
        %v8080 = vld [vmem:[%s8075 + $0x10] sm:$0xf]
        %v8081 = vld [vmem:[%s8075 + $0x14] sm:$0xf]
        %v8082 = vld [vmem:[%s8075 + $0x18] sm:$0xf]
        %v8083 = vld [vmem:[%s8075 + $0x1c] sm:$0xf]
        %v8084 = vld [vmem:[%s8075 + $0x20] sm:$0xf]
        %v8085 = vld [vmem:[%s8075 + $0x24] sm:$0xf]
        %v8086 = vld [vmem:[%s8075 + $0x28] sm:$0xf]
        %v8087 = vld [vmem:[%s8075 + $0x2c] sm:$0xf]
        %v8088 = vld [vmem:[%s8075 + $0x30] sm:$0xf]
        %v8089 = vld [vmem:[%s8075 + $0x34] sm:$0xf]
        %v8090 = vld [vmem:[%s8075 + $0x38] sm:$0xf]
        %v8091 = vld [vmem:[%s8075 + $0x3c] sm:$0xf]
        %v8092 = vld [vmem:[%s8075 + $0x40] sm:$0xf]
        %v8093 = vld [vmem:[%s8075 + $0x44] sm:$0xf]
        %v8094 = vld [vmem:[%s8075 + $0x48] sm:$0xf]
        %v8095 = vld [vmem:[%s8075 + $0x4c] sm:$0xf]
        %v8096 = vld [vmem:[%s8075 + $0x50] sm:$0xf]
        %v8097 = vld [vmem:[%s8075 + $0x54] sm:$0xf]
        %v8098 = vld [vmem:[%s8075 + $0x58] sm:$0xf]
        %v8099 = vld [vmem:[%s8075 + $0x5c] sm:$0xf]
        %v8100 = vld [vmem:[%s8075 + $0x60] sm:$0xf]
        %v8101 = vld [vmem:[%s8075 + $0x64] sm:$0xf]
        %v8102 = vld [vmem:[%s8075 + $0x68] sm:$0xf]
        %v8103 = vld [vmem:[%s8075 + $0x6c] sm:$0xf]
        %v8104 = vld [vmem:[%s8075 + $0x70] sm:$0xf]
        %v8105 = vld [vmem:[%s8075 + $0x74] sm:$0xf]
        %v8106 = vld [vmem:[%s8075 + $0x78] sm:$0xf]
        %v8107 = vld [vmem:[%s8075 + $0x7c] sm:$0x3]
        %v8140 = vunpack.c.l.b16 %v8076
        %v8141 = vunpack.c.l.b16 %v8077
        %v8142 = vunpack.c.l.b16 %v8078
        %v8143 = vunpack.c.l.b16 %v8079
        %v8144 = vunpack.c.l.b16 %v8080
        %v8145 = vunpack.c.l.b16 %v8081
        %v8146 = vunpack.c.l.b16 %v8082
        %v8147 = vunpack.c.l.b16 %v8083
        %v8148 = vunpack.c.l.b16 %v8084
        %v8149 = vunpack.c.l.b16 %v8085
        %v8150 = vunpack.c.l.b16 %v8086
        %v8151 = vunpack.c.l.b16 %v8087
        %v8152 = vunpack.c.l.b16 %v8088
        %v8153 = vunpack.c.l.b16 %v8089
        %v8154 = vunpack.c.l.b16 %v8090
        %v8155 = vunpack.c.l.b16 %v8091
        %v8156 = vunpack.c.l.b16 %v8092
        %v8157 = vunpack.c.l.b16 %v8093
        %v8158 = vunpack.c.l.b16 %v8094
        %v8159 = vunpack.c.l.b16 %v8095
        %v8160 = vunpack.c.l.b16 %v8096
        %v8161 = vunpack.c.l.b16 %v8097
        %v8162 = vunpack.c.l.b16 %v8098
        %v8163 = vunpack.c.l.b16 %v8099
        %v8164 = vunpack.c.l.b16 %v8100
        %v8165 = vunpack.c.l.b16 %v8101
        %v8166 = vunpack.c.l.b16 %v8102
        %v8167 = vunpack.c.l.b16 %v8103
        %v8168 = vunpack.c.l.b16 %v8104
        %v8169 = vunpack.c.l.b16 %v8105
        %v8170 = vunpack.c.l.b16 %v8106
        %v8171 = vunpack.c.l.b16 %v8107
        %v8172 = vpack.c.b16 %v8141, %v8140
        %v8173 = vpack.c.b16 %v8143, %v8142
        %v8174 = vpack.c.b16 %v8145, %v8144
        %v8175 = vpack.c.b16 %v8147, %v8146
        %v8176 = vpack.c.b16 %v8149, %v8148
        %v8177 = vpack.c.b16 %v8151, %v8150
        %v8178 = vpack.c.b16 %v8153, %v8152
        %v8179 = vpack.c.b16 %v8155, %v8154
        %v8180 = vpack.c.b16 %v8157, %v8156
        %v8181 = vpack.c.b16 %v8159, %v8158
        %v8182 = vpack.c.b16 %v8161, %v8160
        %v8183 = vpack.c.b16 %v8163, %v8162
        %v8184 = vpack.c.b16 %v8165, %v8164
        %v8185 = vpack.c.b16 %v8167, %v8166
        %v8186 = vpack.c.b16 %v8169, %v8168
        %v8187 = vpack.c.b16 %v8171, %v8170
        %v8204 = vsel %vm851, %v8187, 0
        %8206 = vmatpush.bf16.msra.mxu0 %v8179
        %8207 = vmatpush.bf16.msra.mxu0 %v8178
        %8208 = vmatpush.bf16.msra.mxu0 %v8177
        %8209 = vmatpush.bf16.msra.mxu0 %v8176
        %8210 = vmatpush.bf16.msra.mxu0 %v8175
        %8211 = vmatpush.bf16.msra.mxu0 %v8174
        %8212 = vmatpush.bf16.msra.mxu0 %v8173
        %8213 = vmatpush.bf16.msra.mxu0 %v8172
        %8214 = vmatmul.bf16.gmra.mxu0 %v7724
        %v8215 = vpop.f32.mrf.mxu0
        %v8216 = vadd.f32 0.0, %v8215
        %v8217 = vpop.f32.mrf.mxu0
        %v8218 = vadd.f32 0.0, %v8217
        %8219 = vmatmul.bf16.gmra.mxu0 %v7726
        %v8220 = vpop.f32.mrf.mxu0
        %v8221 = vadd.f32 0.0, %v8220
        %v8222 = vpop.f32.mrf.mxu0
        %v8223 = vadd.f32 0.0, %v8222
        %8224 = vdwg.mxu0
        %8225 = vmatpush.bf16.msra.mxu0 %v8204
        %8226 = vmatpush.bf16.msra.mxu0 %v8186
        %8227 = vmatpush.bf16.msra.mxu0 %v8185
        %8228 = vmatpush.bf16.msra.mxu0 %v8184
        %8229 = vmatpush.bf16.msra.mxu0 %v8183
        %8230 = vmatpush.bf16.msra.mxu0 %v8182
        %8231 = vmatpush.bf16.msra.mxu0 %v8181
        %8232 = vmatpush.bf16.msra.mxu0 %v8180
        %8233 = vmatmul.bf16.gmra.mxu0 %v7856
        %v8234 = vpop.f32.mrf.mxu0
        %v8235 = vadd.f32 %v8216, %v8234
        %v8236 = vpop.f32.mrf.mxu0
        %v8237 = vadd.f32 %v8218, %v8236
        %8238 = vmatmul.bf16.gmra.mxu0 %v7859
        %v8239 = vpop.f32.mrf.mxu0
        %v8240 = vadd.f32 %v8221, %v8239
        %v8241 = vpop.f32.mrf.mxu0
        %v8242 = vadd.f32 %v8223, %v8241
        %8243 = vdwg.mxu0
        %v8244 = vmax.f32 %v8071, %v8235
        %v8245 = vmax.f32 %v8072, %v8237
        %v8246 = vmax.f32 %v8073, %v8240
        %v8247 = vmax.f32 %v8074, %v8242
        %s8248 = scalar_lea.vmem %s6, 384
        %v8249 = vld [vmem:[%s8248] sm:$0xf]
        %v8250 = vld [vmem:[%s8248 + $0x4] sm:$0xf]
        %v8251 = vld [vmem:[%s8248 + $0x8] sm:$0xf]
        %v8252 = vld [vmem:[%s8248 + $0xc] sm:$0xf]
        %v8253 = vld [vmem:[%s8248 + $0x10] sm:$0xf]
        %v8254 = vld [vmem:[%s8248 + $0x14] sm:$0xf]
        %v8255 = vld [vmem:[%s8248 + $0x18] sm:$0xf]
        %v8256 = vld [vmem:[%s8248 + $0x1c] sm:$0xf]
        %v8257 = vld [vmem:[%s8248 + $0x20] sm:$0xf]
        %v8258 = vld [vmem:[%s8248 + $0x24] sm:$0xf]
        %v8259 = vld [vmem:[%s8248 + $0x28] sm:$0xf]
        %v8260 = vld [vmem:[%s8248 + $0x2c] sm:$0xf]
        %v8261 = vld [vmem:[%s8248 + $0x30] sm:$0xf]
        %v8262 = vld [vmem:[%s8248 + $0x34] sm:$0xf]
        %v8263 = vld [vmem:[%s8248 + $0x38] sm:$0xf]
        %v8264 = vld [vmem:[%s8248 + $0x3c] sm:$0xf]
        %v8265 = vld [vmem:[%s8248 + $0x40] sm:$0xf]
        %v8266 = vld [vmem:[%s8248 + $0x44] sm:$0xf]
        %v8267 = vld [vmem:[%s8248 + $0x48] sm:$0xf]
        %v8268 = vld [vmem:[%s8248 + $0x4c] sm:$0xf]
        %v8269 = vld [vmem:[%s8248 + $0x50] sm:$0xf]
        %v8270 = vld [vmem:[%s8248 + $0x54] sm:$0xf]
        %v8271 = vld [vmem:[%s8248 + $0x58] sm:$0xf]
        %v8272 = vld [vmem:[%s8248 + $0x5c] sm:$0xf]
        %v8273 = vld [vmem:[%s8248 + $0x60] sm:$0xf]
        %v8274 = vld [vmem:[%s8248 + $0x64] sm:$0xf]
        %v8275 = vld [vmem:[%s8248 + $0x68] sm:$0xf]
        %v8276 = vld [vmem:[%s8248 + $0x6c] sm:$0xf]
        %v8277 = vld [vmem:[%s8248 + $0x70] sm:$0xf]
        %v8278 = vld [vmem:[%s8248 + $0x74] sm:$0xf]
        %v8279 = vld [vmem:[%s8248 + $0x78] sm:$0xf]
        %v8280 = vld [vmem:[%s8248 + $0x7c] sm:$0x3]
        %v8313 = vunpack.c.l.b16 %v8249
        %v8314 = vunpack.c.l.b16 %v8250
        %v8315 = vunpack.c.l.b16 %v8251
        %v8316 = vunpack.c.l.b16 %v8252
        %v8317 = vunpack.c.l.b16 %v8253
        %v8318 = vunpack.c.l.b16 %v8254
        %v8319 = vunpack.c.l.b16 %v8255
        %v8320 = vunpack.c.l.b16 %v8256
        %v8321 = vunpack.c.l.b16 %v8257
        %v8322 = vunpack.c.l.b16 %v8258
        %v8323 = vunpack.c.l.b16 %v8259
        %v8324 = vunpack.c.l.b16 %v8260
        %v8325 = vunpack.c.l.b16 %v8261
        %v8326 = vunpack.c.l.b16 %v8262
        %v8327 = vunpack.c.l.b16 %v8263
        %v8328 = vunpack.c.l.b16 %v8264
        %v8329 = vunpack.c.l.b16 %v8265
        %v8330 = vunpack.c.l.b16 %v8266
        %v8331 = vunpack.c.l.b16 %v8267
        %v8332 = vunpack.c.l.b16 %v8268
        %v8333 = vunpack.c.l.b16 %v8269
        %v8334 = vunpack.c.l.b16 %v8270
        %v8335 = vunpack.c.l.b16 %v8271
        %v8336 = vunpack.c.l.b16 %v8272
        %v8337 = vunpack.c.l.b16 %v8273
        %v8338 = vunpack.c.l.b16 %v8274
        %v8339 = vunpack.c.l.b16 %v8275
        %v8340 = vunpack.c.l.b16 %v8276
        %v8341 = vunpack.c.l.b16 %v8277
        %v8342 = vunpack.c.l.b16 %v8278
        %v8343 = vunpack.c.l.b16 %v8279
        %v8344 = vunpack.c.l.b16 %v8280
        %v8345 = vpack.c.b16 %v8314, %v8313
        %v8346 = vpack.c.b16 %v8316, %v8315
        %v8347 = vpack.c.b16 %v8318, %v8317
        %v8348 = vpack.c.b16 %v8320, %v8319
        %v8349 = vpack.c.b16 %v8322, %v8321
        %v8350 = vpack.c.b16 %v8324, %v8323
        %v8351 = vpack.c.b16 %v8326, %v8325
        %v8352 = vpack.c.b16 %v8328, %v8327
        %v8353 = vpack.c.b16 %v8330, %v8329
        %v8354 = vpack.c.b16 %v8332, %v8331
        %v8355 = vpack.c.b16 %v8334, %v8333
        %v8356 = vpack.c.b16 %v8336, %v8335
        %v8357 = vpack.c.b16 %v8338, %v8337
        %v8358 = vpack.c.b16 %v8340, %v8339
        %v8359 = vpack.c.b16 %v8342, %v8341
        %v8360 = vpack.c.b16 %v8344, %v8343
        %v8377 = vsel %vm851, %v8360, 0
        %8379 = vmatpush.bf16.msra.mxu0 %v8352
        %8380 = vmatpush.bf16.msra.mxu0 %v8351
        %8381 = vmatpush.bf16.msra.mxu0 %v8350
        %8382 = vmatpush.bf16.msra.mxu0 %v8349
        %8383 = vmatpush.bf16.msra.mxu0 %v8348
        %8384 = vmatpush.bf16.msra.mxu0 %v8347
        %8385 = vmatpush.bf16.msra.mxu0 %v8346
        %8386 = vmatpush.bf16.msra.mxu0 %v8345
        %8387 = vmatmul.bf16.gmra.mxu0 %v7724
        %v8388 = vpop.f32.mrf.mxu0
        %v8389 = vadd.f32 0.0, %v8388
        %v8390 = vpop.f32.mrf.mxu0
        %v8391 = vadd.f32 0.0, %v8390
        %8392 = vmatmul.bf16.gmra.mxu0 %v7726
        %v8393 = vpop.f32.mrf.mxu0
        %v8394 = vadd.f32 0.0, %v8393
        %v8395 = vpop.f32.mrf.mxu0
        %v8396 = vadd.f32 0.0, %v8395
        %8397 = vdwg.mxu0
        %8398 = vmatpush.bf16.msra.mxu0 %v8377
        %8399 = vmatpush.bf16.msra.mxu0 %v8359
        %8400 = vmatpush.bf16.msra.mxu0 %v8358
        %8401 = vmatpush.bf16.msra.mxu0 %v8357
        %8402 = vmatpush.bf16.msra.mxu0 %v8356
        %8403 = vmatpush.bf16.msra.mxu0 %v8355
        %8404 = vmatpush.bf16.msra.mxu0 %v8354
        %8405 = vmatpush.bf16.msra.mxu0 %v8353
        %8406 = vmatmul.bf16.gmra.mxu0 %v7856
        %v8407 = vpop.f32.mrf.mxu0
        %v8408 = vadd.f32 %v8389, %v8407
        %v8409 = vpop.f32.mrf.mxu0
        %v8410 = vadd.f32 %v8391, %v8409
        %8411 = vmatmul.bf16.gmra.mxu0 %v7859
        %v8412 = vpop.f32.mrf.mxu0
        %v8413 = vadd.f32 %v8394, %v8412
        %v8414 = vpop.f32.mrf.mxu0
        %v8415 = vadd.f32 %v8396, %v8414
        %8416 = vdwg.mxu0
        %v8417 = vmax.f32 %v8244, %v8408
        %v8418 = vmax.f32 %v8245, %v8410
        %v8419 = vmax.f32 %v8246, %v8413
        %v8420 = vmax.f32 %v8247, %v8415
        %v8421 = vld [vmem:[%s8] sm:$0x1]
        %v8422 = vpack.c.bf16 %v8417, %v8417
        %v8423 = vld [vmem:[%s7] sm:$0xf]
        %v8424 = vld [vmem:[%s7 + $0x4] sm:$0xf]
        %v8425 = vld [vmem:[%s7 + $0x8] sm:$0xf]
        %v8426 = vld [vmem:[%s7 + $0xc] sm:$0xf]
        %v8427 = vld [vmem:[%s7 + $0x10] sm:$0xf]
        %v8428 = vld [vmem:[%s7 + $0x14] sm:$0xf]
        %v8429 = vld [vmem:[%s7 + $0x18] sm:$0x1]
        %v8437 = vunpack.c.l.b16 %v8423
        %v8438 = vunpack.c.l.b16 %v8424
        %v8439 = vunpack.c.l.b16 %v8425
        %v8440 = vunpack.c.l.b16 %v8426
        %v8441 = vunpack.c.l.b16 %v8427
        %v8442 = vunpack.c.l.b16 %v8428
        %v8443 = vunpack.c.l.b16 %v8429
        %v8444 = vpack.c.b16 %v8438, %v8437
        %v8445 = vpack.c.b16 %v8440, %v8439
        %v8446 = vpack.c.b16 %v8442, %v8441
        %v8447 = vpack.c.b16 %v8443, %v8443
        %vm8451 = vcmask 400384
        %v8453 = vsel %vm8451, %v8422, 0
        %v8455 = vsel 0, 4294967295, 65535
        %v8456 = vsel %vm811, %v8455, 0
        %v8458 = vand.u32 %v8447, %v8456
        %8460 = vmatpush.bf16.msra.mxu0 0
        %8461 = vmatpush.bf16.msra.mxu0 0
        %8462 = vmatpush.bf16.msra.mxu0 0
        %8463 = vmatpush.bf16.msra.mxu0 0
        %8464 = vmatpush.bf16.msra.mxu0 %v8458
        %8465 = vmatpush.bf16.msra.mxu0 %v8446
        %8466 = vmatpush.bf16.msra.mxu0 %v8445
        %8467 = vmatpush.bf16.msra.mxu0 %v8444
        %8468 = vmatmul.bf16.gmra.mxu0 %v8453
        %v8469 = vpop.f32.mrf.mxu0
        %v8470 = vadd.f32 0.0, %v8469
        %v8471 = vpop.f32.mrf.mxu0
        %8472 = vdwg.mxu0
        %v8473 = vadd.f32 %v8421, %v8470
        %s8474 = scalar_lea.vmem %s7, 28
        %v8475 = vld [vmem:[%s8474] sm:$0xf]
        %v8476 = vld [vmem:[%s8474 + $0x4] sm:$0xf]
        %v8477 = vld [vmem:[%s8474 + $0x8] sm:$0xf]
        %v8478 = vld [vmem:[%s8474 + $0xc] sm:$0xf]
        %v8479 = vld [vmem:[%s8474 + $0x10] sm:$0xf]
        %v8480 = vld [vmem:[%s8474 + $0x14] sm:$0xf]
        %v8481 = vld [vmem:[%s8474 + $0x18] sm:$0x1]
        %v8482 = vshrl.u32 %v8422, 16
        %v8491 = vunpack.c.l.b16 %v8475
        %v8492 = vunpack.c.l.b16 %v8476
        %v8493 = vunpack.c.l.b16 %v8477
        %v8494 = vunpack.c.l.b16 %v8478
        %v8495 = vunpack.c.l.b16 %v8479
        %v8496 = vunpack.c.l.b16 %v8480
        %v8497 = vunpack.c.l.b16 %v8481
        %v8498 = vpack.c.b16 %v8492, %v8491
        %v8499 = vpack.c.b16 %v8494, %v8493
        %v8500 = vpack.c.b16 %v8496, %v8495
        %v8501 = vpack.c.b16 %v8497, %v8497
        %v8506 = vsel %vm8451, %v8482, 0
        %v8509 = vand.u32 %v8501, %v8456
        %8511 = vmatpush.bf16.msra.mxu0 0
        %8512 = vmatpush.bf16.msra.mxu0 0
        %8513 = vmatpush.bf16.msra.mxu0 0
        %8514 = vmatpush.bf16.msra.mxu0 0
        %8515 = vmatpush.bf16.msra.mxu0 %v8509
        %8516 = vmatpush.bf16.msra.mxu0 %v8500
        %8517 = vmatpush.bf16.msra.mxu0 %v8499
        %8518 = vmatpush.bf16.msra.mxu0 %v8498
        %8519 = vmatmul.bf16.gmra.mxu0 %v8506
        %v8520 = vpop.f32.mrf.mxu0
        %v8521 = vadd.f32 0.0, %v8520
        %v8522 = vpop.f32.mrf.mxu0
        %8523 = vdwg.mxu0
        %v8524 = vadd.f32 %v8473, %v8521
        %s8525 = scalar_lea.vmem %s7, 56
        %v8526 = vld [vmem:[%s8525] sm:$0xf]
        %v8527 = vld [vmem:[%s8525 + $0x4] sm:$0xf]
        %v8528 = vld [vmem:[%s8525 + $0x8] sm:$0xf]
        %v8529 = vld [vmem:[%s8525 + $0xc] sm:$0xf]
        %v8530 = vld [vmem:[%s8525 + $0x10] sm:$0xf]
        %v8531 = vld [vmem:[%s8525 + $0x14] sm:$0xf]
        %v8532 = vld [vmem:[%s8525 + $0x18] sm:$0x1]
        %v8534 = vrot.slane %v8422, 1
        %v8542 = vunpack.c.l.b16 %v8526
        %v8543 = vunpack.c.l.b16 %v8527
        %v8544 = vunpack.c.l.b16 %v8528
        %v8545 = vunpack.c.l.b16 %v8529
        %v8546 = vunpack.c.l.b16 %v8530
        %v8547 = vunpack.c.l.b16 %v8531
        %v8548 = vunpack.c.l.b16 %v8532
        %v8549 = vpack.c.b16 %v8543, %v8542
        %v8550 = vpack.c.b16 %v8545, %v8544
        %v8551 = vpack.c.b16 %v8547, %v8546
        %v8552 = vpack.c.b16 %v8548, %v8548
        %v8557 = vsel %vm8451, %v8534, 0
        %v8560 = vand.u32 %v8552, %v8456
        %8562 = vmatpush.bf16.msra.mxu0 0
        %8563 = vmatpush.bf16.msra.mxu0 0
        %8564 = vmatpush.bf16.msra.mxu0 0
        %8565 = vmatpush.bf16.msra.mxu0 0
        %8566 = vmatpush.bf16.msra.mxu0 %v8560
        %8567 = vmatpush.bf16.msra.mxu0 %v8551
        %8568 = vmatpush.bf16.msra.mxu0 %v8550
        %8569 = vmatpush.bf16.msra.mxu0 %v8549
        %8570 = vmatmul.bf16.gmra.mxu0 %v8557
        %v8571 = vpop.f32.mrf.mxu0
        %v8572 = vadd.f32 0.0, %v8571
        %v8573 = vpop.f32.mrf.mxu0
        %8574 = vdwg.mxu0
        %v8575 = vadd.f32 %v8524, %v8572
        %s8576 = scalar_lea.vmem %s7, 84
        %v8577 = vld [vmem:[%s8576] sm:$0xf]
        %v8578 = vld [vmem:[%s8576 + $0x4] sm:$0xf]
        %v8579 = vld [vmem:[%s8576 + $0x8] sm:$0xf]
        %v8580 = vld [vmem:[%s8576 + $0xc] sm:$0xf]
        %v8581 = vld [vmem:[%s8576 + $0x10] sm:$0xf]
        %v8582 = vld [vmem:[%s8576 + $0x14] sm:$0xf]
        %v8583 = vld [vmem:[%s8576 + $0x18] sm:$0x1]
        %v8584 = vrot.slane %v8482, 1
        %v8592 = vunpack.c.l.b16 %v8577
        %v8593 = vunpack.c.l.b16 %v8578
        %v8594 = vunpack.c.l.b16 %v8579
        %v8595 = vunpack.c.l.b16 %v8580
        %v8596 = vunpack.c.l.b16 %v8581
        %v8597 = vunpack.c.l.b16 %v8582
        %v8598 = vunpack.c.l.b16 %v8583
        %v8599 = vpack.c.b16 %v8593, %v8592
        %v8600 = vpack.c.b16 %v8595, %v8594
        %v8601 = vpack.c.b16 %v8597, %v8596
        %v8602 = vpack.c.b16 %v8598, %v8598
        %v8607 = vsel %vm8451, %v8584, 0
        %v8610 = vand.u32 %v8602, %v8456
        %8612 = vmatpush.bf16.msra.mxu0 0
        %8613 = vmatpush.bf16.msra.mxu0 0
        %8614 = vmatpush.bf16.msra.mxu0 0
        %8615 = vmatpush.bf16.msra.mxu0 0
        %8616 = vmatpush.bf16.msra.mxu0 %v8610
        %8617 = vmatpush.bf16.msra.mxu0 %v8601
        %8618 = vmatpush.bf16.msra.mxu0 %v8600
        %8619 = vmatpush.bf16.msra.mxu0 %v8599
        %8620 = vmatmul.bf16.gmra.mxu0 %v8607
        %v8621 = vpop.f32.mrf.mxu0
        %v8622 = vadd.f32 0.0, %v8621
        %v8623 = vpop.f32.mrf.mxu0
        %8624 = vdwg.mxu0
        %v8625 = vadd.f32 %v8575, %v8622
        %s8626 = scalar_lea.vmem %s7, 112
        %v8627 = vld [vmem:[%s8626] sm:$0xf]
        %v8628 = vld [vmem:[%s8626 + $0x4] sm:$0xf]
        %v8629 = vld [vmem:[%s8626 + $0x8] sm:$0xf]
        %v8630 = vld [vmem:[%s8626 + $0xc] sm:$0xf]
        %v8631 = vld [vmem:[%s8626 + $0x10] sm:$0xf]
        %v8632 = vld [vmem:[%s8626 + $0x14] sm:$0xf]
        %v8633 = vld [vmem:[%s8626 + $0x18] sm:$0x1]
        %v8634 = vrot.slane %v8422, 2
        %v8642 = vunpack.c.l.b16 %v8627
        %v8643 = vunpack.c.l.b16 %v8628
        %v8644 = vunpack.c.l.b16 %v8629
        %v8645 = vunpack.c.l.b16 %v8630
        %v8646 = vunpack.c.l.b16 %v8631
        %v8647 = vunpack.c.l.b16 %v8632
        %v8648 = vunpack.c.l.b16 %v8633
        %v8649 = vpack.c.b16 %v8643, %v8642
        %v8650 = vpack.c.b16 %v8645, %v8644
        %v8651 = vpack.c.b16 %v8647, %v8646
        %v8652 = vpack.c.b16 %v8648, %v8648
        %v8657 = vsel %vm8451, %v8634, 0
        %v8660 = vand.u32 %v8652, %v8456
        %8662 = vmatpush.bf16.msra.mxu0 0
        %8663 = vmatpush.bf16.msra.mxu0 0
        %8664 = vmatpush.bf16.msra.mxu0 0
        %8665 = vmatpush.bf16.msra.mxu0 0
        %8666 = vmatpush.bf16.msra.mxu0 %v8660
        %8667 = vmatpush.bf16.msra.mxu0 %v8651
        %8668 = vmatpush.bf16.msra.mxu0 %v8650
        %8669 = vmatpush.bf16.msra.mxu0 %v8649
        %8670 = vmatmul.bf16.gmra.mxu0 %v8657
        %v8671 = vpop.f32.mrf.mxu0
        %v8672 = vadd.f32 0.0, %v8671
        %v8673 = vpop.f32.mrf.mxu0
        %8674 = vdwg.mxu0
        %v8675 = vadd.f32 %v8625, %v8672
        %s8676 = scalar_lea.vmem %s7, 140
        %v8677 = vld [vmem:[%s8676] sm:$0xf]
        %v8678 = vld [vmem:[%s8676 + $0x4] sm:$0xf]
        %v8679 = vld [vmem:[%s8676 + $0x8] sm:$0xf]
        %v8680 = vld [vmem:[%s8676 + $0xc] sm:$0xf]
        %v8681 = vld [vmem:[%s8676 + $0x10] sm:$0xf]
        %v8682 = vld [vmem:[%s8676 + $0x14] sm:$0xf]
        %v8683 = vld [vmem:[%s8676 + $0x18] sm:$0x1]
        %v8684 = vrot.slane %v8482, 2
        %v8692 = vunpack.c.l.b16 %v8677
        %v8693 = vunpack.c.l.b16 %v8678
        %v8694 = vunpack.c.l.b16 %v8679
        %v8695 = vunpack.c.l.b16 %v8680
        %v8696 = vunpack.c.l.b16 %v8681
        %v8697 = vunpack.c.l.b16 %v8682
        %v8698 = vunpack.c.l.b16 %v8683
        %v8699 = vpack.c.b16 %v8693, %v8692
        %v8700 = vpack.c.b16 %v8695, %v8694
        %v8701 = vpack.c.b16 %v8697, %v8696
        %v8702 = vpack.c.b16 %v8698, %v8698
        %v8707 = vsel %vm8451, %v8684, 0
        %v8710 = vand.u32 %v8702, %v8456
        %8712 = vmatpush.bf16.msra.mxu0 0
        %8713 = vmatpush.bf16.msra.mxu0 0
        %8714 = vmatpush.bf16.msra.mxu0 0
        %8715 = vmatpush.bf16.msra.mxu0 0
        %8716 = vmatpush.bf16.msra.mxu0 %v8710
        %8717 = vmatpush.bf16.msra.mxu0 %v8701
        %8718 = vmatpush.bf16.msra.mxu0 %v8700
        %8719 = vmatpush.bf16.msra.mxu0 %v8699
        %8720 = vmatmul.bf16.gmra.mxu0 %v8707
        %v8721 = vpop.f32.mrf.mxu0
        %v8722 = vadd.f32 0.0, %v8721
        %v8723 = vpop.f32.mrf.mxu0
        %8724 = vdwg.mxu0
        %v8725 = vadd.f32 %v8675, %v8722
        %s8726 = scalar_lea.vmem %s7, 168
        %v8727 = vld [vmem:[%s8726] sm:$0xf]
        %v8728 = vld [vmem:[%s8726 + $0x4] sm:$0xf]
        %v8729 = vld [vmem:[%s8726 + $0x8] sm:$0xf]
        %v8730 = vld [vmem:[%s8726 + $0xc] sm:$0xf]
        %v8731 = vld [vmem:[%s8726 + $0x10] sm:$0xf]
        %v8732 = vld [vmem:[%s8726 + $0x14] sm:$0xf]
        %v8733 = vld [vmem:[%s8726 + $0x18] sm:$0x1]
        %v8734 = vrot.slane %v8422, 3
        %v8742 = vunpack.c.l.b16 %v8727
        %v8743 = vunpack.c.l.b16 %v8728
        %v8744 = vunpack.c.l.b16 %v8729
        %v8745 = vunpack.c.l.b16 %v8730
        %v8746 = vunpack.c.l.b16 %v8731
        %v8747 = vunpack.c.l.b16 %v8732
        %v8748 = vunpack.c.l.b16 %v8733
        %v8749 = vpack.c.b16 %v8743, %v8742
        %v8750 = vpack.c.b16 %v8745, %v8744
        %v8751 = vpack.c.b16 %v8747, %v8746
        %v8752 = vpack.c.b16 %v8748, %v8748
        %v8757 = vsel %vm8451, %v8734, 0
        %v8760 = vand.u32 %v8752, %v8456
        %8762 = vmatpush.bf16.msra.mxu0 0
        %8763 = vmatpush.bf16.msra.mxu0 0
        %8764 = vmatpush.bf16.msra.mxu0 0
        %8765 = vmatpush.bf16.msra.mxu0 0
        %8766 = vmatpush.bf16.msra.mxu0 %v8760
        %8767 = vmatpush.bf16.msra.mxu0 %v8751
        %8768 = vmatpush.bf16.msra.mxu0 %v8750
        %8769 = vmatpush.bf16.msra.mxu0 %v8749
        %8770 = vmatmul.bf16.gmra.mxu0 %v8757
        %v8771 = vpop.f32.mrf.mxu0
        %v8772 = vadd.f32 0.0, %v8771
        %v8773 = vpop.f32.mrf.mxu0
        %8774 = vdwg.mxu0
        %v8775 = vadd.f32 %v8725, %v8772
        %s8776 = scalar_lea.vmem %s7, 196
        %v8777 = vld [vmem:[%s8776] sm:$0xf]
        %v8778 = vld [vmem:[%s8776 + $0x4] sm:$0xf]
        %v8779 = vld [vmem:[%s8776 + $0x8] sm:$0xf]
        %v8780 = vld [vmem:[%s8776 + $0xc] sm:$0xf]
        %v8781 = vld [vmem:[%s8776 + $0x10] sm:$0xf]
        %v8782 = vld [vmem:[%s8776 + $0x14] sm:$0xf]
        %v8783 = vld [vmem:[%s8776 + $0x18] sm:$0x1]
        %v8784 = vrot.slane %v8482, 3
        %v8792 = vunpack.c.l.b16 %v8777
        %v8793 = vunpack.c.l.b16 %v8778
        %v8794 = vunpack.c.l.b16 %v8779
        %v8795 = vunpack.c.l.b16 %v8780
        %v8796 = vunpack.c.l.b16 %v8781
        %v8797 = vunpack.c.l.b16 %v8782
        %v8798 = vunpack.c.l.b16 %v8783
        %v8799 = vpack.c.b16 %v8793, %v8792
        %v8800 = vpack.c.b16 %v8795, %v8794
        %v8801 = vpack.c.b16 %v8797, %v8796
        %v8802 = vpack.c.b16 %v8798, %v8798
        %v8807 = vsel %vm8451, %v8784, 0
        %v8810 = vand.u32 %v8802, %v8456
        %8812 = vmatpush.bf16.msra.mxu0 0
        %8813 = vmatpush.bf16.msra.mxu0 0
        %8814 = vmatpush.bf16.msra.mxu0 0
        %8815 = vmatpush.bf16.msra.mxu0 0
        %8816 = vmatpush.bf16.msra.mxu0 %v8810
        %8817 = vmatpush.bf16.msra.mxu0 %v8801
        %8818 = vmatpush.bf16.msra.mxu0 %v8800
        %8819 = vmatpush.bf16.msra.mxu0 %v8799
        %8820 = vmatmul.bf16.gmra.mxu0 %v8807
        %v8821 = vpop.f32.mrf.mxu0
        %v8822 = vadd.f32 0.0, %v8821
        %v8823 = vpop.f32.mrf.mxu0
        %8824 = vdwg.mxu0
        %v8825 = vadd.f32 %v8775, %v8822
        %v8826 = vpack.c.bf16 %v8418, %v8418
        %s8827 = scalar_lea.vmem %s7, 224
        %v8828 = vld [vmem:[%s8827] sm:$0xf]
        %v8829 = vld [vmem:[%s8827 + $0x4] sm:$0xf]
        %v8830 = vld [vmem:[%s8827 + $0x8] sm:$0xf]
        %v8831 = vld [vmem:[%s8827 + $0xc] sm:$0xf]
        %v8832 = vld [vmem:[%s8827 + $0x10] sm:$0xf]
        %v8833 = vld [vmem:[%s8827 + $0x14] sm:$0xf]
        %v8834 = vld [vmem:[%s8827 + $0x18] sm:$0x1]
        %v8842 = vunpack.c.l.b16 %v8828
        %v8843 = vunpack.c.l.b16 %v8829
        %v8844 = vunpack.c.l.b16 %v8830
        %v8845 = vunpack.c.l.b16 %v8831
        %v8846 = vunpack.c.l.b16 %v8832
        %v8847 = vunpack.c.l.b16 %v8833
        %v8848 = vunpack.c.l.b16 %v8834
        %v8849 = vpack.c.b16 %v8843, %v8842
        %v8850 = vpack.c.b16 %v8845, %v8844
        %v8851 = vpack.c.b16 %v8847, %v8846
        %v8852 = vpack.c.b16 %v8848, %v8848
        %v8857 = vsel %vm8451, %v8826, 0
        %v8860 = vand.u32 %v8852, %v8456
        %8862 = vmatpush.bf16.msra.mxu0 0
        %8863 = vmatpush.bf16.msra.mxu0 0
        %8864 = vmatpush.bf16.msra.mxu0 0
        %8865 = vmatpush.bf16.msra.mxu0 0
        %8866 = vmatpush.bf16.msra.mxu0 %v8860
        %8867 = vmatpush.bf16.msra.mxu0 %v8851
        %8868 = vmatpush.bf16.msra.mxu0 %v8850
        %8869 = vmatpush.bf16.msra.mxu0 %v8849
        %8870 = vmatmul.bf16.gmra.mxu0 %v8857
        %v8871 = vpop.f32.mrf.mxu0
        %v8872 = vadd.f32 0.0, %v8871
        %v8873 = vpop.f32.mrf.mxu0
        %8874 = vdwg.mxu0
        %v8875 = vadd.f32 %v8825, %v8872
        %s8876 = scalar_lea.vmem %s7, 252
        %v8877 = vld [vmem:[%s8876] sm:$0xf]
        %v8878 = vld [vmem:[%s8876 + $0x4] sm:$0xf]
        %v8879 = vld [vmem:[%s8876 + $0x8] sm:$0xf]
        %v8880 = vld [vmem:[%s8876 + $0xc] sm:$0xf]
        %v8881 = vld [vmem:[%s8876 + $0x10] sm:$0xf]
        %v8882 = vld [vmem:[%s8876 + $0x14] sm:$0xf]
        %v8883 = vld [vmem:[%s8876 + $0x18] sm:$0x1]
        %v8884 = vshrl.u32 %v8826, 16
        %v8893 = vunpack.c.l.b16 %v8877
        %v8894 = vunpack.c.l.b16 %v8878
        %v8895 = vunpack.c.l.b16 %v8879
        %v8896 = vunpack.c.l.b16 %v8880
        %v8897 = vunpack.c.l.b16 %v8881
        %v8898 = vunpack.c.l.b16 %v8882
        %v8899 = vunpack.c.l.b16 %v8883
        %v8900 = vpack.c.b16 %v8894, %v8893
        %v8901 = vpack.c.b16 %v8896, %v8895
        %v8902 = vpack.c.b16 %v8898, %v8897
        %v8903 = vpack.c.b16 %v8899, %v8899
        %v8908 = vsel %vm8451, %v8884, 0
        %v8911 = vand.u32 %v8903, %v8456
        %8913 = vmatpush.bf16.msra.mxu0 0
        %8914 = vmatpush.bf16.msra.mxu0 0
        %8915 = vmatpush.bf16.msra.mxu0 0
        %8916 = vmatpush.bf16.msra.mxu0 0
        %8917 = vmatpush.bf16.msra.mxu0 %v8911
        %8918 = vmatpush.bf16.msra.mxu0 %v8902
        %8919 = vmatpush.bf16.msra.mxu0 %v8901
        %8920 = vmatpush.bf16.msra.mxu0 %v8900
        %8921 = vmatmul.bf16.gmra.mxu0 %v8908
        %v8922 = vpop.f32.mrf.mxu0
        %v8923 = vadd.f32 0.0, %v8922
        %v8924 = vpop.f32.mrf.mxu0
        %8925 = vdwg.mxu0
        %v8926 = vadd.f32 %v8875, %v8923
        %s8927 = scalar_lea.vmem %s7, 280
        %v8928 = vld [vmem:[%s8927] sm:$0xf]
        %v8929 = vld [vmem:[%s8927 + $0x4] sm:$0xf]
        %v8930 = vld [vmem:[%s8927 + $0x8] sm:$0xf]
        %v8931 = vld [vmem:[%s8927 + $0xc] sm:$0xf]
        %v8932 = vld [vmem:[%s8927 + $0x10] sm:$0xf]
        %v8933 = vld [vmem:[%s8927 + $0x14] sm:$0xf]
        %v8934 = vld [vmem:[%s8927 + $0x18] sm:$0x1]
        %v8936 = vrot.slane %v8826, 1
        %v8944 = vunpack.c.l.b16 %v8928
        %v8945 = vunpack.c.l.b16 %v8929
        %v8946 = vunpack.c.l.b16 %v8930
        %v8947 = vunpack.c.l.b16 %v8931
        %v8948 = vunpack.c.l.b16 %v8932
        %v8949 = vunpack.c.l.b16 %v8933
        %v8950 = vunpack.c.l.b16 %v8934
        %v8951 = vpack.c.b16 %v8945, %v8944
        %v8952 = vpack.c.b16 %v8947, %v8946
        %v8953 = vpack.c.b16 %v8949, %v8948
        %v8954 = vpack.c.b16 %v8950, %v8950
        %v8959 = vsel %vm8451, %v8936, 0
        %v8962 = vand.u32 %v8954, %v8456
        %8964 = vmatpush.bf16.msra.mxu0 0
        %8965 = vmatpush.bf16.msra.mxu0 0
        %8966 = vmatpush.bf16.msra.mxu0 0
        %8967 = vmatpush.bf16.msra.mxu0 0
        %8968 = vmatpush.bf16.msra.mxu0 %v8962
        %8969 = vmatpush.bf16.msra.mxu0 %v8953
        %8970 = vmatpush.bf16.msra.mxu0 %v8952
        %8971 = vmatpush.bf16.msra.mxu0 %v8951
        %8972 = vmatmul.bf16.gmra.mxu0 %v8959
        %v8973 = vpop.f32.mrf.mxu0
        %v8974 = vadd.f32 0.0, %v8973
        %v8975 = vpop.f32.mrf.mxu0
        %8976 = vdwg.mxu0
        %v8977 = vadd.f32 %v8926, %v8974
        %s8978 = scalar_lea.vmem %s7, 308
        %v8979 = vld [vmem:[%s8978] sm:$0xf]
        %v8980 = vld [vmem:[%s8978 + $0x4] sm:$0xf]
        %v8981 = vld [vmem:[%s8978 + $0x8] sm:$0xf]
        %v8982 = vld [vmem:[%s8978 + $0xc] sm:$0xf]
        %v8983 = vld [vmem:[%s8978 + $0x10] sm:$0xf]
        %v8984 = vld [vmem:[%s8978 + $0x14] sm:$0xf]
        %v8985 = vld [vmem:[%s8978 + $0x18] sm:$0x1]
        %v8986 = vrot.slane %v8884, 1
        %v8994 = vunpack.c.l.b16 %v8979
        %v8995 = vunpack.c.l.b16 %v8980
        %v8996 = vunpack.c.l.b16 %v8981
        %v8997 = vunpack.c.l.b16 %v8982
        %v8998 = vunpack.c.l.b16 %v8983
        %v8999 = vunpack.c.l.b16 %v8984
        %v9000 = vunpack.c.l.b16 %v8985
        %v9001 = vpack.c.b16 %v8995, %v8994
        %v9002 = vpack.c.b16 %v8997, %v8996
        %v9003 = vpack.c.b16 %v8999, %v8998
        %v9004 = vpack.c.b16 %v9000, %v9000
        %v9009 = vsel %vm8451, %v8986, 0
        %v9012 = vand.u32 %v9004, %v8456
        %9014 = vmatpush.bf16.msra.mxu0 0
        %9015 = vmatpush.bf16.msra.mxu0 0
        %9016 = vmatpush.bf16.msra.mxu0 0
        %9017 = vmatpush.bf16.msra.mxu0 0
        %9018 = vmatpush.bf16.msra.mxu0 %v9012
        %9019 = vmatpush.bf16.msra.mxu0 %v9003
        %9020 = vmatpush.bf16.msra.mxu0 %v9002
        %9021 = vmatpush.bf16.msra.mxu0 %v9001
        %9022 = vmatmul.bf16.gmra.mxu0 %v9009
        %v9023 = vpop.f32.mrf.mxu0
        %v9024 = vadd.f32 0.0, %v9023
        %v9025 = vpop.f32.mrf.mxu0
        %9026 = vdwg.mxu0
        %v9027 = vadd.f32 %v8977, %v9024
        %s9028 = scalar_lea.vmem %s7, 336
        %v9029 = vld [vmem:[%s9028] sm:$0xf]
        %v9030 = vld [vmem:[%s9028 + $0x4] sm:$0xf]
        %v9031 = vld [vmem:[%s9028 + $0x8] sm:$0xf]
        %v9032 = vld [vmem:[%s9028 + $0xc] sm:$0xf]
        %v9033 = vld [vmem:[%s9028 + $0x10] sm:$0xf]
        %v9034 = vld [vmem:[%s9028 + $0x14] sm:$0xf]
        %v9035 = vld [vmem:[%s9028 + $0x18] sm:$0x1]
        %v9036 = vrot.slane %v8826, 2
        %v9044 = vunpack.c.l.b16 %v9029
        %v9045 = vunpack.c.l.b16 %v9030
        %v9046 = vunpack.c.l.b16 %v9031
        %v9047 = vunpack.c.l.b16 %v9032
        %v9048 = vunpack.c.l.b16 %v9033
        %v9049 = vunpack.c.l.b16 %v9034
        %v9050 = vunpack.c.l.b16 %v9035
        %v9051 = vpack.c.b16 %v9045, %v9044
        %v9052 = vpack.c.b16 %v9047, %v9046
        %v9053 = vpack.c.b16 %v9049, %v9048
        %v9054 = vpack.c.b16 %v9050, %v9050
        %v9059 = vsel %vm8451, %v9036, 0
        %v9062 = vand.u32 %v9054, %v8456
        %9064 = vmatpush.bf16.msra.mxu0 0
        %9065 = vmatpush.bf16.msra.mxu0 0
        %9066 = vmatpush.bf16.msra.mxu0 0
        %9067 = vmatpush.bf16.msra.mxu0 0
        %9068 = vmatpush.bf16.msra.mxu0 %v9062
        %9069 = vmatpush.bf16.msra.mxu0 %v9053
        %9070 = vmatpush.bf16.msra.mxu0 %v9052
        %9071 = vmatpush.bf16.msra.mxu0 %v9051
        %9072 = vmatmul.bf16.gmra.mxu0 %v9059
        %v9073 = vpop.f32.mrf.mxu0
        %v9074 = vadd.f32 0.0, %v9073
        %v9075 = vpop.f32.mrf.mxu0
        %9076 = vdwg.mxu0
        %v9077 = vadd.f32 %v9027, %v9074
        %s9078 = scalar_lea.vmem %s7, 364
        %v9079 = vld [vmem:[%s9078] sm:$0xf]
        %v9080 = vld [vmem:[%s9078 + $0x4] sm:$0xf]
        %v9081 = vld [vmem:[%s9078 + $0x8] sm:$0xf]
        %v9082 = vld [vmem:[%s9078 + $0xc] sm:$0xf]
        %v9083 = vld [vmem:[%s9078 + $0x10] sm:$0xf]
        %v9084 = vld [vmem:[%s9078 + $0x14] sm:$0xf]
        %v9085 = vld [vmem:[%s9078 + $0x18] sm:$0x1]
        %v9086 = vrot.slane %v8884, 2
        %v9094 = vunpack.c.l.b16 %v9079
        %v9095 = vunpack.c.l.b16 %v9080
        %v9096 = vunpack.c.l.b16 %v9081
        %v9097 = vunpack.c.l.b16 %v9082
        %v9098 = vunpack.c.l.b16 %v9083
        %v9099 = vunpack.c.l.b16 %v9084
        %v9100 = vunpack.c.l.b16 %v9085
        %v9101 = vpack.c.b16 %v9095, %v9094
        %v9102 = vpack.c.b16 %v9097, %v9096
        %v9103 = vpack.c.b16 %v9099, %v9098
        %v9104 = vpack.c.b16 %v9100, %v9100
        %v9109 = vsel %vm8451, %v9086, 0
        %v9112 = vand.u32 %v9104, %v8456
        %9114 = vmatpush.bf16.msra.mxu0 0
        %9115 = vmatpush.bf16.msra.mxu0 0
        %9116 = vmatpush.bf16.msra.mxu0 0
        %9117 = vmatpush.bf16.msra.mxu0 0
        %9118 = vmatpush.bf16.msra.mxu0 %v9112
        %9119 = vmatpush.bf16.msra.mxu0 %v9103
        %9120 = vmatpush.bf16.msra.mxu0 %v9102
        %9121 = vmatpush.bf16.msra.mxu0 %v9101
        %9122 = vmatmul.bf16.gmra.mxu0 %v9109
        %v9123 = vpop.f32.mrf.mxu0
        %v9124 = vadd.f32 0.0, %v9123
        %v9125 = vpop.f32.mrf.mxu0
        %9126 = vdwg.mxu0
        %v9127 = vadd.f32 %v9077, %v9124
        %s9128 = scalar_lea.vmem %s7, 392
        %v9129 = vld [vmem:[%s9128] sm:$0xf]
        %v9130 = vld [vmem:[%s9128 + $0x4] sm:$0xf]
        %v9131 = vld [vmem:[%s9128 + $0x8] sm:$0xf]
        %v9132 = vld [vmem:[%s9128 + $0xc] sm:$0xf]
        %v9133 = vld [vmem:[%s9128 + $0x10] sm:$0xf]
        %v9134 = vld [vmem:[%s9128 + $0x14] sm:$0xf]
        %v9135 = vld [vmem:[%s9128 + $0x18] sm:$0x1]
        %v9136 = vrot.slane %v8826, 3
        %v9144 = vunpack.c.l.b16 %v9129
        %v9145 = vunpack.c.l.b16 %v9130
        %v9146 = vunpack.c.l.b16 %v9131
        %v9147 = vunpack.c.l.b16 %v9132
        %v9148 = vunpack.c.l.b16 %v9133
        %v9149 = vunpack.c.l.b16 %v9134
        %v9150 = vunpack.c.l.b16 %v9135
        %v9151 = vpack.c.b16 %v9145, %v9144
        %v9152 = vpack.c.b16 %v9147, %v9146
        %v9153 = vpack.c.b16 %v9149, %v9148
        %v9154 = vpack.c.b16 %v9150, %v9150
        %v9159 = vsel %vm8451, %v9136, 0
        %v9162 = vand.u32 %v9154, %v8456
        %9164 = vmatpush.bf16.msra.mxu0 0
        %9165 = vmatpush.bf16.msra.mxu0 0
        %9166 = vmatpush.bf16.msra.mxu0 0
        %9167 = vmatpush.bf16.msra.mxu0 0
        %9168 = vmatpush.bf16.msra.mxu0 %v9162
        %9169 = vmatpush.bf16.msra.mxu0 %v9153
        %9170 = vmatpush.bf16.msra.mxu0 %v9152
        %9171 = vmatpush.bf16.msra.mxu0 %v9151
        %9172 = vmatmul.bf16.gmra.mxu0 %v9159
        %v9173 = vpop.f32.mrf.mxu0
        %v9174 = vadd.f32 0.0, %v9173
        %v9175 = vpop.f32.mrf.mxu0
        %9176 = vdwg.mxu0
        %v9177 = vadd.f32 %v9127, %v9174
        %s9178 = scalar_lea.vmem %s7, 420
        %v9179 = vld [vmem:[%s9178] sm:$0xf]
        %v9180 = vld [vmem:[%s9178 + $0x4] sm:$0xf]
        %v9181 = vld [vmem:[%s9178 + $0x8] sm:$0xf]
        %v9182 = vld [vmem:[%s9178 + $0xc] sm:$0xf]
        %v9183 = vld [vmem:[%s9178 + $0x10] sm:$0xf]
        %v9184 = vld [vmem:[%s9178 + $0x14] sm:$0xf]
        %v9185 = vld [vmem:[%s9178 + $0x18] sm:$0x1]
        %v9186 = vrot.slane %v8884, 3
        %v9194 = vunpack.c.l.b16 %v9179
        %v9195 = vunpack.c.l.b16 %v9180
        %v9196 = vunpack.c.l.b16 %v9181
        %v9197 = vunpack.c.l.b16 %v9182
        %v9198 = vunpack.c.l.b16 %v9183
        %v9199 = vunpack.c.l.b16 %v9184
        %v9200 = vunpack.c.l.b16 %v9185
        %v9201 = vpack.c.b16 %v9195, %v9194
        %v9202 = vpack.c.b16 %v9197, %v9196
        %v9203 = vpack.c.b16 %v9199, %v9198
        %v9204 = vpack.c.b16 %v9200, %v9200
        %v9209 = vsel %vm8451, %v9186, 0
        %v9212 = vand.u32 %v9204, %v8456
        %9214 = vmatpush.bf16.msra.mxu0 0
        %9215 = vmatpush.bf16.msra.mxu0 0
        %9216 = vmatpush.bf16.msra.mxu0 0
        %9217 = vmatpush.bf16.msra.mxu0 0
        %9218 = vmatpush.bf16.msra.mxu0 %v9212
        %9219 = vmatpush.bf16.msra.mxu0 %v9203
        %9220 = vmatpush.bf16.msra.mxu0 %v9202
        %9221 = vmatpush.bf16.msra.mxu0 %v9201
        %9222 = vmatmul.bf16.gmra.mxu0 %v9209
        %v9223 = vpop.f32.mrf.mxu0
        %v9224 = vadd.f32 0.0, %v9223
        %v9225 = vpop.f32.mrf.mxu0
        %9226 = vdwg.mxu0
        %v9227 = vadd.f32 %v9177, %v9224
        %v9228 = vpack.c.bf16 %v8419, %v8419
        %s9229 = scalar_lea.vmem %s7, 448
        %v9230 = vld [vmem:[%s9229] sm:$0xf]
        %v9231 = vld [vmem:[%s9229 + $0x4] sm:$0xf]
        %v9232 = vld [vmem:[%s9229 + $0x8] sm:$0xf]
        %v9233 = vld [vmem:[%s9229 + $0xc] sm:$0xf]
        %v9234 = vld [vmem:[%s9229 + $0x10] sm:$0xf]
        %v9235 = vld [vmem:[%s9229 + $0x14] sm:$0xf]
        %v9236 = vld [vmem:[%s9229 + $0x18] sm:$0x1]
        %v9244 = vunpack.c.l.b16 %v9230
        %v9245 = vunpack.c.l.b16 %v9231
        %v9246 = vunpack.c.l.b16 %v9232
        %v9247 = vunpack.c.l.b16 %v9233
        %v9248 = vunpack.c.l.b16 %v9234
        %v9249 = vunpack.c.l.b16 %v9235
        %v9250 = vunpack.c.l.b16 %v9236
        %v9251 = vpack.c.b16 %v9245, %v9244
        %v9252 = vpack.c.b16 %v9247, %v9246
        %v9253 = vpack.c.b16 %v9249, %v9248
        %v9254 = vpack.c.b16 %v9250, %v9250
        %v9259 = vsel %vm8451, %v9228, 0
        %v9262 = vand.u32 %v9254, %v8456
        %9264 = vmatpush.bf16.msra.mxu0 0
        %9265 = vmatpush.bf16.msra.mxu0 0
        %9266 = vmatpush.bf16.msra.mxu0 0
        %9267 = vmatpush.bf16.msra.mxu0 0
        %9268 = vmatpush.bf16.msra.mxu0 %v9262
        %9269 = vmatpush.bf16.msra.mxu0 %v9253
        %9270 = vmatpush.bf16.msra.mxu0 %v9252
        %9271 = vmatpush.bf16.msra.mxu0 %v9251
        %9272 = vmatmul.bf16.gmra.mxu0 %v9259
        %v9273 = vpop.f32.mrf.mxu0
        %v9274 = vadd.f32 0.0, %v9273
        %v9275 = vpop.f32.mrf.mxu0
        %9276 = vdwg.mxu0
        %v9277 = vadd.f32 %v9227, %v9274
        %s9278 = scalar_lea.vmem %s7, 476
        %v9279 = vld [vmem:[%s9278] sm:$0xf]
        %v9280 = vld [vmem:[%s9278 + $0x4] sm:$0xf]
        %v9281 = vld [vmem:[%s9278 + $0x8] sm:$0xf]
        %v9282 = vld [vmem:[%s9278 + $0xc] sm:$0xf]
        %v9283 = vld [vmem:[%s9278 + $0x10] sm:$0xf]
        %v9284 = vld [vmem:[%s9278 + $0x14] sm:$0xf]
        %v9285 = vld [vmem:[%s9278 + $0x18] sm:$0x1]
        %v9286 = vshrl.u32 %v9228, 16
        %v9295 = vunpack.c.l.b16 %v9279
        %v9296 = vunpack.c.l.b16 %v9280
        %v9297 = vunpack.c.l.b16 %v9281
        %v9298 = vunpack.c.l.b16 %v9282
        %v9299 = vunpack.c.l.b16 %v9283
        %v9300 = vunpack.c.l.b16 %v9284
        %v9301 = vunpack.c.l.b16 %v9285
        %v9302 = vpack.c.b16 %v9296, %v9295
        %v9303 = vpack.c.b16 %v9298, %v9297
        %v9304 = vpack.c.b16 %v9300, %v9299
        %v9305 = vpack.c.b16 %v9301, %v9301
        %v9310 = vsel %vm8451, %v9286, 0
        %v9313 = vand.u32 %v9305, %v8456
        %9315 = vmatpush.bf16.msra.mxu0 0
        %9316 = vmatpush.bf16.msra.mxu0 0
        %9317 = vmatpush.bf16.msra.mxu0 0
        %9318 = vmatpush.bf16.msra.mxu0 0
        %9319 = vmatpush.bf16.msra.mxu0 %v9313
        %9320 = vmatpush.bf16.msra.mxu0 %v9304
        %9321 = vmatpush.bf16.msra.mxu0 %v9303
        %9322 = vmatpush.bf16.msra.mxu0 %v9302
        %9323 = vmatmul.bf16.gmra.mxu0 %v9310
        %v9324 = vpop.f32.mrf.mxu0
        %v9325 = vadd.f32 0.0, %v9324
        %v9326 = vpop.f32.mrf.mxu0
        %9327 = vdwg.mxu0
        %v9328 = vadd.f32 %v9277, %v9325
        %s9329 = scalar_lea.vmem %s7, 504
        %v9330 = vld [vmem:[%s9329] sm:$0xf]
        %v9331 = vld [vmem:[%s9329 + $0x4] sm:$0xf]
        %v9332 = vld [vmem:[%s9329 + $0x8] sm:$0xf]
        %v9333 = vld [vmem:[%s9329 + $0xc] sm:$0xf]
        %v9334 = vld [vmem:[%s9329 + $0x10] sm:$0xf]
        %v9335 = vld [vmem:[%s9329 + $0x14] sm:$0xf]
        %v9336 = vld [vmem:[%s9329 + $0x18] sm:$0x1]
        %v9338 = vrot.slane %v9228, 1
        %v9346 = vunpack.c.l.b16 %v9330
        %v9347 = vunpack.c.l.b16 %v9331
        %v9348 = vunpack.c.l.b16 %v9332
        %v9349 = vunpack.c.l.b16 %v9333
        %v9350 = vunpack.c.l.b16 %v9334
        %v9351 = vunpack.c.l.b16 %v9335
        %v9352 = vunpack.c.l.b16 %v9336
        %v9353 = vpack.c.b16 %v9347, %v9346
        %v9354 = vpack.c.b16 %v9349, %v9348
        %v9355 = vpack.c.b16 %v9351, %v9350
        %v9356 = vpack.c.b16 %v9352, %v9352
        %v9361 = vsel %vm8451, %v9338, 0
        %v9364 = vand.u32 %v9356, %v8456
        %9366 = vmatpush.bf16.msra.mxu0 0
        %9367 = vmatpush.bf16.msra.mxu0 0
        %9368 = vmatpush.bf16.msra.mxu0 0
        %9369 = vmatpush.bf16.msra.mxu0 0
        %9370 = vmatpush.bf16.msra.mxu0 %v9364
        %9371 = vmatpush.bf16.msra.mxu0 %v9355
        %9372 = vmatpush.bf16.msra.mxu0 %v9354
        %9373 = vmatpush.bf16.msra.mxu0 %v9353
        %9374 = vmatmul.bf16.gmra.mxu0 %v9361
        %v9375 = vpop.f32.mrf.mxu0
        %v9376 = vadd.f32 0.0, %v9375
        %v9377 = vpop.f32.mrf.mxu0
        %9378 = vdwg.mxu0
        %v9379 = vadd.f32 %v9328, %v9376
        %s9380 = scalar_lea.vmem %s7, 532
        %v9381 = vld [vmem:[%s9380] sm:$0xf]
        %v9382 = vld [vmem:[%s9380 + $0x4] sm:$0xf]
        %v9383 = vld [vmem:[%s9380 + $0x8] sm:$0xf]
        %v9384 = vld [vmem:[%s9380 + $0xc] sm:$0xf]
        %v9385 = vld [vmem:[%s9380 + $0x10] sm:$0xf]
        %v9386 = vld [vmem:[%s9380 + $0x14] sm:$0xf]
        %v9387 = vld [vmem:[%s9380 + $0x18] sm:$0x1]
        %v9388 = vrot.slane %v9286, 1
        %v9396 = vunpack.c.l.b16 %v9381
        %v9397 = vunpack.c.l.b16 %v9382
        %v9398 = vunpack.c.l.b16 %v9383
        %v9399 = vunpack.c.l.b16 %v9384
        %v9400 = vunpack.c.l.b16 %v9385
        %v9401 = vunpack.c.l.b16 %v9386
        %v9402 = vunpack.c.l.b16 %v9387
        %v9403 = vpack.c.b16 %v9397, %v9396
        %v9404 = vpack.c.b16 %v9399, %v9398
        %v9405 = vpack.c.b16 %v9401, %v9400
        %v9406 = vpack.c.b16 %v9402, %v9402
        %v9411 = vsel %vm8451, %v9388, 0
        %v9414 = vand.u32 %v9406, %v8456
        %9416 = vmatpush.bf16.msra.mxu0 0
        %9417 = vmatpush.bf16.msra.mxu0 0
        %9418 = vmatpush.bf16.msra.mxu0 0
        %9419 = vmatpush.bf16.msra.mxu0 0
        %9420 = vmatpush.bf16.msra.mxu0 %v9414
        %9421 = vmatpush.bf16.msra.mxu0 %v9405
        %9422 = vmatpush.bf16.msra.mxu0 %v9404
        %9423 = vmatpush.bf16.msra.mxu0 %v9403
        %9424 = vmatmul.bf16.gmra.mxu0 %v9411
        %v9425 = vpop.f32.mrf.mxu0
        %v9426 = vadd.f32 0.0, %v9425
        %v9427 = vpop.f32.mrf.mxu0
        %9428 = vdwg.mxu0
        %v9429 = vadd.f32 %v9379, %v9426
        %s9430 = scalar_lea.vmem %s7, 560
        %v9431 = vld [vmem:[%s9430] sm:$0xf]
        %v9432 = vld [vmem:[%s9430 + $0x4] sm:$0xf]
        %v9433 = vld [vmem:[%s9430 + $0x8] sm:$0xf]
        %v9434 = vld [vmem:[%s9430 + $0xc] sm:$0xf]
        %v9435 = vld [vmem:[%s9430 + $0x10] sm:$0xf]
        %v9436 = vld [vmem:[%s9430 + $0x14] sm:$0xf]
        %v9437 = vld [vmem:[%s9430 + $0x18] sm:$0x1]
        %v9438 = vrot.slane %v9228, 2
        %v9446 = vunpack.c.l.b16 %v9431
        %v9447 = vunpack.c.l.b16 %v9432
        %v9448 = vunpack.c.l.b16 %v9433
        %v9449 = vunpack.c.l.b16 %v9434
        %v9450 = vunpack.c.l.b16 %v9435
        %v9451 = vunpack.c.l.b16 %v9436
        %v9452 = vunpack.c.l.b16 %v9437
        %v9453 = vpack.c.b16 %v9447, %v9446
        %v9454 = vpack.c.b16 %v9449, %v9448
        %v9455 = vpack.c.b16 %v9451, %v9450
        %v9456 = vpack.c.b16 %v9452, %v9452
        %v9461 = vsel %vm8451, %v9438, 0
        %v9464 = vand.u32 %v9456, %v8456
        %9466 = vmatpush.bf16.msra.mxu0 0
        %9467 = vmatpush.bf16.msra.mxu0 0
        %9468 = vmatpush.bf16.msra.mxu0 0
        %9469 = vmatpush.bf16.msra.mxu0 0
        %9470 = vmatpush.bf16.msra.mxu0 %v9464
        %9471 = vmatpush.bf16.msra.mxu0 %v9455
        %9472 = vmatpush.bf16.msra.mxu0 %v9454
        %9473 = vmatpush.bf16.msra.mxu0 %v9453
        %9474 = vmatmul.bf16.gmra.mxu0 %v9461
        %v9475 = vpop.f32.mrf.mxu0
        %v9476 = vadd.f32 0.0, %v9475
        %v9477 = vpop.f32.mrf.mxu0
        %9478 = vdwg.mxu0
        %v9479 = vadd.f32 %v9429, %v9476
        %s9480 = scalar_lea.vmem %s7, 588
        %v9481 = vld [vmem:[%s9480] sm:$0xf]
        %v9482 = vld [vmem:[%s9480 + $0x4] sm:$0xf]
        %v9483 = vld [vmem:[%s9480 + $0x8] sm:$0xf]
        %v9484 = vld [vmem:[%s9480 + $0xc] sm:$0xf]
        %v9485 = vld [vmem:[%s9480 + $0x10] sm:$0xf]
        %v9486 = vld [vmem:[%s9480 + $0x14] sm:$0xf]
        %v9487 = vld [vmem:[%s9480 + $0x18] sm:$0x1]
        %v9488 = vrot.slane %v9286, 2
        %v9496 = vunpack.c.l.b16 %v9481
        %v9497 = vunpack.c.l.b16 %v9482
        %v9498 = vunpack.c.l.b16 %v9483
        %v9499 = vunpack.c.l.b16 %v9484
        %v9500 = vunpack.c.l.b16 %v9485
        %v9501 = vunpack.c.l.b16 %v9486
        %v9502 = vunpack.c.l.b16 %v9487
        %v9503 = vpack.c.b16 %v9497, %v9496
        %v9504 = vpack.c.b16 %v9499, %v9498
        %v9505 = vpack.c.b16 %v9501, %v9500
        %v9506 = vpack.c.b16 %v9502, %v9502
        %v9511 = vsel %vm8451, %v9488, 0
        %v9514 = vand.u32 %v9506, %v8456
        %9516 = vmatpush.bf16.msra.mxu0 0
        %9517 = vmatpush.bf16.msra.mxu0 0
        %9518 = vmatpush.bf16.msra.mxu0 0
        %9519 = vmatpush.bf16.msra.mxu0 0
        %9520 = vmatpush.bf16.msra.mxu0 %v9514
        %9521 = vmatpush.bf16.msra.mxu0 %v9505
        %9522 = vmatpush.bf16.msra.mxu0 %v9504
        %9523 = vmatpush.bf16.msra.mxu0 %v9503
        %9524 = vmatmul.bf16.gmra.mxu0 %v9511
        %v9525 = vpop.f32.mrf.mxu0
        %v9526 = vadd.f32 0.0, %v9525
        %v9527 = vpop.f32.mrf.mxu0
        %9528 = vdwg.mxu0
        %v9529 = vadd.f32 %v9479, %v9526
        %s9530 = scalar_lea.vmem %s7, 616
        %v9531 = vld [vmem:[%s9530] sm:$0xf]
        %v9532 = vld [vmem:[%s9530 + $0x4] sm:$0xf]
        %v9533 = vld [vmem:[%s9530 + $0x8] sm:$0xf]
        %v9534 = vld [vmem:[%s9530 + $0xc] sm:$0xf]
        %v9535 = vld [vmem:[%s9530 + $0x10] sm:$0xf]
        %v9536 = vld [vmem:[%s9530 + $0x14] sm:$0xf]
        %v9537 = vld [vmem:[%s9530 + $0x18] sm:$0x1]
        %v9538 = vrot.slane %v9228, 3
        %v9546 = vunpack.c.l.b16 %v9531
        %v9547 = vunpack.c.l.b16 %v9532
        %v9548 = vunpack.c.l.b16 %v9533
        %v9549 = vunpack.c.l.b16 %v9534
        %v9550 = vunpack.c.l.b16 %v9535
        %v9551 = vunpack.c.l.b16 %v9536
        %v9552 = vunpack.c.l.b16 %v9537
        %v9553 = vpack.c.b16 %v9547, %v9546
        %v9554 = vpack.c.b16 %v9549, %v9548
        %v9555 = vpack.c.b16 %v9551, %v9550
        %v9556 = vpack.c.b16 %v9552, %v9552
        %v9561 = vsel %vm8451, %v9538, 0
        %v9564 = vand.u32 %v9556, %v8456
        %9566 = vmatpush.bf16.msra.mxu0 0
        %9567 = vmatpush.bf16.msra.mxu0 0
        %9568 = vmatpush.bf16.msra.mxu0 0
        %9569 = vmatpush.bf16.msra.mxu0 0
        %9570 = vmatpush.bf16.msra.mxu0 %v9564
        %9571 = vmatpush.bf16.msra.mxu0 %v9555
        %9572 = vmatpush.bf16.msra.mxu0 %v9554
        %9573 = vmatpush.bf16.msra.mxu0 %v9553
        %9574 = vmatmul.bf16.gmra.mxu0 %v9561
        %v9575 = vpop.f32.mrf.mxu0
        %v9576 = vadd.f32 0.0, %v9575
        %v9577 = vpop.f32.mrf.mxu0
        %9578 = vdwg.mxu0
        %v9579 = vadd.f32 %v9529, %v9576
        %s9580 = scalar_lea.vmem %s7, 644
        %v9581 = vld [vmem:[%s9580] sm:$0xf]
        %v9582 = vld [vmem:[%s9580 + $0x4] sm:$0xf]
        %v9583 = vld [vmem:[%s9580 + $0x8] sm:$0xf]
        %v9584 = vld [vmem:[%s9580 + $0xc] sm:$0xf]
        %v9585 = vld [vmem:[%s9580 + $0x10] sm:$0xf]
        %v9586 = vld [vmem:[%s9580 + $0x14] sm:$0xf]
        %v9587 = vld [vmem:[%s9580 + $0x18] sm:$0x1]
        %v9588 = vrot.slane %v9286, 3
        %v9596 = vunpack.c.l.b16 %v9581
        %v9597 = vunpack.c.l.b16 %v9582
        %v9598 = vunpack.c.l.b16 %v9583
        %v9599 = vunpack.c.l.b16 %v9584
        %v9600 = vunpack.c.l.b16 %v9585
        %v9601 = vunpack.c.l.b16 %v9586
        %v9602 = vunpack.c.l.b16 %v9587
        %v9603 = vpack.c.b16 %v9597, %v9596
        %v9604 = vpack.c.b16 %v9599, %v9598
        %v9605 = vpack.c.b16 %v9601, %v9600
        %v9606 = vpack.c.b16 %v9602, %v9602
        %v9611 = vsel %vm8451, %v9588, 0
        %v9614 = vand.u32 %v9606, %v8456
        %9616 = vmatpush.bf16.msra.mxu0 0
        %9617 = vmatpush.bf16.msra.mxu0 0
        %9618 = vmatpush.bf16.msra.mxu0 0
        %9619 = vmatpush.bf16.msra.mxu0 0
        %9620 = vmatpush.bf16.msra.mxu0 %v9614
        %9621 = vmatpush.bf16.msra.mxu0 %v9605
        %9622 = vmatpush.bf16.msra.mxu0 %v9604
        %9623 = vmatpush.bf16.msra.mxu0 %v9603
        %9624 = vmatmul.bf16.gmra.mxu0 %v9611
        %v9625 = vpop.f32.mrf.mxu0
        %v9626 = vadd.f32 0.0, %v9625
        %v9627 = vpop.f32.mrf.mxu0
        %9628 = vdwg.mxu0
        %v9629 = vadd.f32 %v9579, %v9626
        %v9630 = vpack.c.bf16 %v8420, %v8420
        %s9631 = scalar_lea.vmem %s7, 672
        %v9632 = vld [vmem:[%s9631] sm:$0xf]
        %v9633 = vld [vmem:[%s9631 + $0x4] sm:$0xf]
        %v9634 = vld [vmem:[%s9631 + $0x8] sm:$0xf]
        %v9635 = vld [vmem:[%s9631 + $0xc] sm:$0xf]
        %v9636 = vld [vmem:[%s9631 + $0x10] sm:$0xf]
        %v9637 = vld [vmem:[%s9631 + $0x14] sm:$0xf]
        %v9638 = vld [vmem:[%s9631 + $0x18] sm:$0x1]
        %v9646 = vunpack.c.l.b16 %v9632
        %v9647 = vunpack.c.l.b16 %v9633
        %v9648 = vunpack.c.l.b16 %v9634
        %v9649 = vunpack.c.l.b16 %v9635
        %v9650 = vunpack.c.l.b16 %v9636
        %v9651 = vunpack.c.l.b16 %v9637
        %v9652 = vunpack.c.l.b16 %v9638
        %v9653 = vpack.c.b16 %v9647, %v9646
        %v9654 = vpack.c.b16 %v9649, %v9648
        %v9655 = vpack.c.b16 %v9651, %v9650
        %v9656 = vpack.c.b16 %v9652, %v9652
        %v9661 = vsel %vm8451, %v9630, 0
        %v9664 = vand.u32 %v9656, %v8456
        %9666 = vmatpush.bf16.msra.mxu0 0
        %9667 = vmatpush.bf16.msra.mxu0 0
        %9668 = vmatpush.bf16.msra.mxu0 0
        %9669 = vmatpush.bf16.msra.mxu0 0
        %9670 = vmatpush.bf16.msra.mxu0 %v9664
        %9671 = vmatpush.bf16.msra.mxu0 %v9655
        %9672 = vmatpush.bf16.msra.mxu0 %v9654
        %9673 = vmatpush.bf16.msra.mxu0 %v9653
        %9674 = vmatmul.bf16.gmra.mxu0 %v9661
        %v9675 = vpop.f32.mrf.mxu0
        %v9676 = vadd.f32 0.0, %v9675
        %v9677 = vpop.f32.mrf.mxu0
        %9678 = vdwg.mxu0
        %v9679 = vadd.f32 %v9629, %v9676
        %s9680 = scalar_lea.vmem %s7, 700
        %v9681 = vld [vmem:[%s9680] sm:$0xf]
        %v9682 = vld [vmem:[%s9680 + $0x4] sm:$0xf]
        %v9683 = vld [vmem:[%s9680 + $0x8] sm:$0xf]
        %v9684 = vld [vmem:[%s9680 + $0xc] sm:$0xf]
        %v9685 = vld [vmem:[%s9680 + $0x10] sm:$0xf]
        %v9686 = vld [vmem:[%s9680 + $0x14] sm:$0xf]
        %v9687 = vld [vmem:[%s9680 + $0x18] sm:$0x1]
        %v9688 = vshrl.u32 %v9630, 16
        %v9697 = vunpack.c.l.b16 %v9681
        %v9698 = vunpack.c.l.b16 %v9682
        %v9699 = vunpack.c.l.b16 %v9683
        %v9700 = vunpack.c.l.b16 %v9684
        %v9701 = vunpack.c.l.b16 %v9685
        %v9702 = vunpack.c.l.b16 %v9686
        %v9703 = vunpack.c.l.b16 %v9687
        %v9704 = vpack.c.b16 %v9698, %v9697
        %v9705 = vpack.c.b16 %v9700, %v9699
        %v9706 = vpack.c.b16 %v9702, %v9701
        %v9707 = vpack.c.b16 %v9703, %v9703
        %v9712 = vsel %vm8451, %v9688, 0
        %v9715 = vand.u32 %v9707, %v8456
        %9717 = vmatpush.bf16.msra.mxu0 0
        %9718 = vmatpush.bf16.msra.mxu0 0
        %9719 = vmatpush.bf16.msra.mxu0 0
        %9720 = vmatpush.bf16.msra.mxu0 0
        %9721 = vmatpush.bf16.msra.mxu0 %v9715
        %9722 = vmatpush.bf16.msra.mxu0 %v9706
        %9723 = vmatpush.bf16.msra.mxu0 %v9705
        %9724 = vmatpush.bf16.msra.mxu0 %v9704
        %9725 = vmatmul.bf16.gmra.mxu0 %v9712
        %v9726 = vpop.f32.mrf.mxu0
        %v9727 = vadd.f32 0.0, %v9726
        %v9728 = vpop.f32.mrf.mxu0
        %9729 = vdwg.mxu0
        %v9730 = vadd.f32 %v9679, %v9727
        %s9731 = scalar_lea.vmem %s7, 728
        %v9732 = vld [vmem:[%s9731] sm:$0xf]
        %v9733 = vld [vmem:[%s9731 + $0x4] sm:$0xf]
        %v9734 = vld [vmem:[%s9731 + $0x8] sm:$0xf]
        %v9735 = vld [vmem:[%s9731 + $0xc] sm:$0xf]
        %v9736 = vld [vmem:[%s9731 + $0x10] sm:$0xf]
        %v9737 = vld [vmem:[%s9731 + $0x14] sm:$0xf]
        %v9738 = vld [vmem:[%s9731 + $0x18] sm:$0x1]
        %v9740 = vrot.slane %v9630, 1
        %v9748 = vunpack.c.l.b16 %v9732
        %v9749 = vunpack.c.l.b16 %v9733
        %v9750 = vunpack.c.l.b16 %v9734
        %v9751 = vunpack.c.l.b16 %v9735
        %v9752 = vunpack.c.l.b16 %v9736
        %v9753 = vunpack.c.l.b16 %v9737
        %v9754 = vunpack.c.l.b16 %v9738
        %v9755 = vpack.c.b16 %v9749, %v9748
        %v9756 = vpack.c.b16 %v9751, %v9750
        %v9757 = vpack.c.b16 %v9753, %v9752
        %v9758 = vpack.c.b16 %v9754, %v9754
        %v9763 = vsel %vm8451, %v9740, 0
        %v9766 = vand.u32 %v9758, %v8456
        %9768 = vmatpush.bf16.msra.mxu0 0
        %9769 = vmatpush.bf16.msra.mxu0 0
        %9770 = vmatpush.bf16.msra.mxu0 0
        %9771 = vmatpush.bf16.msra.mxu0 0
        %9772 = vmatpush.bf16.msra.mxu0 %v9766
        %9773 = vmatpush.bf16.msra.mxu0 %v9757
        %9774 = vmatpush.bf16.msra.mxu0 %v9756
        %9775 = vmatpush.bf16.msra.mxu0 %v9755
        %9776 = vmatmul.bf16.gmra.mxu0 %v9763
        %v9777 = vpop.f32.mrf.mxu0
        %v9778 = vadd.f32 0.0, %v9777
        %v9779 = vpop.f32.mrf.mxu0
        %9780 = vdwg.mxu0
        %v9781 = vadd.f32 %v9730, %v9778
        %s9782 = scalar_lea.vmem %s7, 756
        %v9783 = vld [vmem:[%s9782] sm:$0xf]
        %v9784 = vld [vmem:[%s9782 + $0x4] sm:$0xf]
        %v9785 = vld [vmem:[%s9782 + $0x8] sm:$0xf]
        %v9786 = vld [vmem:[%s9782 + $0xc] sm:$0xf]
        %v9787 = vld [vmem:[%s9782 + $0x10] sm:$0xf]
        %v9788 = vld [vmem:[%s9782 + $0x14] sm:$0xf]
        %v9789 = vld [vmem:[%s9782 + $0x18] sm:$0x1]
        %v9790 = vrot.slane %v9688, 1
        %v9798 = vunpack.c.l.b16 %v9783
        %v9799 = vunpack.c.l.b16 %v9784
        %v9800 = vunpack.c.l.b16 %v9785
        %v9801 = vunpack.c.l.b16 %v9786
        %v9802 = vunpack.c.l.b16 %v9787
        %v9803 = vunpack.c.l.b16 %v9788
        %v9804 = vunpack.c.l.b16 %v9789
        %v9805 = vpack.c.b16 %v9799, %v9798
        %v9806 = vpack.c.b16 %v9801, %v9800
        %v9807 = vpack.c.b16 %v9803, %v9802
        %v9808 = vpack.c.b16 %v9804, %v9804
        %v9813 = vsel %vm8451, %v9790, 0
        %v9816 = vand.u32 %v9808, %v8456
        %9818 = vmatpush.bf16.msra.mxu0 0
        %9819 = vmatpush.bf16.msra.mxu0 0
        %9820 = vmatpush.bf16.msra.mxu0 0
        %9821 = vmatpush.bf16.msra.mxu0 0
        %9822 = vmatpush.bf16.msra.mxu0 %v9816
        %9823 = vmatpush.bf16.msra.mxu0 %v9807
        %9824 = vmatpush.bf16.msra.mxu0 %v9806
        %9825 = vmatpush.bf16.msra.mxu0 %v9805
        %9826 = vmatmul.bf16.gmra.mxu0 %v9813
        %v9827 = vpop.f32.mrf.mxu0
        %v9828 = vadd.f32 0.0, %v9827
        %v9829 = vpop.f32.mrf.mxu0
        %9830 = vdwg.mxu0
        %v9831 = vadd.f32 %v9781, %v9828
        %s9832 = scalar_lea.vmem %s7, 784
        %v9833 = vld [vmem:[%s9832] sm:$0xf]
        %v9834 = vld [vmem:[%s9832 + $0x4] sm:$0xf]
        %v9835 = vld [vmem:[%s9832 + $0x8] sm:$0xf]
        %v9836 = vld [vmem:[%s9832 + $0xc] sm:$0xf]
        %v9837 = vld [vmem:[%s9832 + $0x10] sm:$0xf]
        %v9838 = vld [vmem:[%s9832 + $0x14] sm:$0xf]
        %v9839 = vld [vmem:[%s9832 + $0x18] sm:$0x1]
        %v9840 = vrot.slane %v9630, 2
        %v9848 = vunpack.c.l.b16 %v9833
        %v9849 = vunpack.c.l.b16 %v9834
        %v9850 = vunpack.c.l.b16 %v9835
        %v9851 = vunpack.c.l.b16 %v9836
        %v9852 = vunpack.c.l.b16 %v9837
        %v9853 = vunpack.c.l.b16 %v9838
        %v9854 = vunpack.c.l.b16 %v9839
        %v9855 = vpack.c.b16 %v9849, %v9848
        %v9856 = vpack.c.b16 %v9851, %v9850
        %v9857 = vpack.c.b16 %v9853, %v9852
        %v9858 = vpack.c.b16 %v9854, %v9854
        %v9863 = vsel %vm8451, %v9840, 0
        %v9866 = vand.u32 %v9858, %v8456
        %9868 = vmatpush.bf16.msra.mxu0 0
        %9869 = vmatpush.bf16.msra.mxu0 0
        %9870 = vmatpush.bf16.msra.mxu0 0
        %9871 = vmatpush.bf16.msra.mxu0 0
        %9872 = vmatpush.bf16.msra.mxu0 %v9866
        %9873 = vmatpush.bf16.msra.mxu0 %v9857
        %9874 = vmatpush.bf16.msra.mxu0 %v9856
        %9875 = vmatpush.bf16.msra.mxu0 %v9855
        %9876 = vmatmul.bf16.gmra.mxu0 %v9863
        %v9877 = vpop.f32.mrf.mxu0
        %v9878 = vadd.f32 0.0, %v9877
        %v9879 = vpop.f32.mrf.mxu0
        %9880 = vdwg.mxu0
        %v9881 = vadd.f32 %v9831, %v9878
        %s9882 = scalar_lea.vmem %s7, 812
        %v9883 = vld [vmem:[%s9882] sm:$0xf]
        %v9884 = vld [vmem:[%s9882 + $0x4] sm:$0xf]
        %v9885 = vld [vmem:[%s9882 + $0x8] sm:$0xf]
        %v9886 = vld [vmem:[%s9882 + $0xc] sm:$0xf]
        %v9887 = vld [vmem:[%s9882 + $0x10] sm:$0xf]
        %v9888 = vld [vmem:[%s9882 + $0x14] sm:$0xf]
        %v9889 = vld [vmem:[%s9882 + $0x18] sm:$0x1]
        %v9890 = vrot.slane %v9688, 2
        %v9898 = vunpack.c.l.b16 %v9883
        %v9899 = vunpack.c.l.b16 %v9884
        %v9900 = vunpack.c.l.b16 %v9885
        %v9901 = vunpack.c.l.b16 %v9886
        %v9902 = vunpack.c.l.b16 %v9887
        %v9903 = vunpack.c.l.b16 %v9888
        %v9904 = vunpack.c.l.b16 %v9889
        %v9905 = vpack.c.b16 %v9899, %v9898
        %v9906 = vpack.c.b16 %v9901, %v9900
        %v9907 = vpack.c.b16 %v9903, %v9902
        %v9908 = vpack.c.b16 %v9904, %v9904
        %v9913 = vsel %vm8451, %v9890, 0
        %v9916 = vand.u32 %v9908, %v8456
        %9918 = vmatpush.bf16.msra.mxu0 0
        %9919 = vmatpush.bf16.msra.mxu0 0
        %9920 = vmatpush.bf16.msra.mxu0 0
        %9921 = vmatpush.bf16.msra.mxu0 0
        %9922 = vmatpush.bf16.msra.mxu0 %v9916
        %9923 = vmatpush.bf16.msra.mxu0 %v9907
        %9924 = vmatpush.bf16.msra.mxu0 %v9906
        %9925 = vmatpush.bf16.msra.mxu0 %v9905
        %9926 = vmatmul.bf16.gmra.mxu0 %v9913
        %v9927 = vpop.f32.mrf.mxu0
        %v9928 = vadd.f32 0.0, %v9927
        %v9929 = vpop.f32.mrf.mxu0
        %9930 = vdwg.mxu0
        %v9931 = vadd.f32 %v9881, %v9928
        %s9932 = scalar_lea.vmem %s7, 840
        %v9933 = vld [vmem:[%s9932] sm:$0xf]
        %v9934 = vld [vmem:[%s9932 + $0x4] sm:$0xf]
        %v9935 = vld [vmem:[%s9932 + $0x8] sm:$0xf]
        %v9936 = vld [vmem:[%s9932 + $0xc] sm:$0xf]
        %v9937 = vld [vmem:[%s9932 + $0x10] sm:$0xf]
        %v9938 = vld [vmem:[%s9932 + $0x14] sm:$0xf]
        %v9939 = vld [vmem:[%s9932 + $0x18] sm:$0x1]
        %v9940 = vrot.slane %v9630, 3
        %v9948 = vunpack.c.l.b16 %v9933
        %v9949 = vunpack.c.l.b16 %v9934
        %v9950 = vunpack.c.l.b16 %v9935
        %v9951 = vunpack.c.l.b16 %v9936
        %v9952 = vunpack.c.l.b16 %v9937
        %v9953 = vunpack.c.l.b16 %v9938
        %v9954 = vunpack.c.l.b16 %v9939
        %v9955 = vpack.c.b16 %v9949, %v9948
        %v9956 = vpack.c.b16 %v9951, %v9950
        %v9957 = vpack.c.b16 %v9953, %v9952
        %v9958 = vpack.c.b16 %v9954, %v9954
        %v9963 = vsel %vm8451, %v9940, 0
        %v9966 = vand.u32 %v9958, %v8456
        %9968 = vmatpush.bf16.msra.mxu0 0
        %9969 = vmatpush.bf16.msra.mxu0 0
        %9970 = vmatpush.bf16.msra.mxu0 0
        %9971 = vmatpush.bf16.msra.mxu0 0
        %9972 = vmatpush.bf16.msra.mxu0 %v9966
        %9973 = vmatpush.bf16.msra.mxu0 %v9957
        %9974 = vmatpush.bf16.msra.mxu0 %v9956
        %9975 = vmatpush.bf16.msra.mxu0 %v9955
        %9976 = vmatmul.bf16.gmra.mxu0 %v9963
        %v9977 = vpop.f32.mrf.mxu0
        %v9978 = vadd.f32 0.0, %v9977
        %v9979 = vpop.f32.mrf.mxu0
        %9980 = vdwg.mxu0
        %v9981 = vadd.f32 %v9931, %v9978
        %s9982 = scalar_lea.vmem %s7, 868
        %v9983 = vld [vmem:[%s9982] sm:$0xf]
        %v9984 = vld [vmem:[%s9982 + $0x4] sm:$0xf]
        %v9985 = vld [vmem:[%s9982 + $0x8] sm:$0xf]
        %v9986 = vld [vmem:[%s9982 + $0xc] sm:$0xf]
        %v9987 = vld [vmem:[%s9982 + $0x10] sm:$0xf]
        %v9988 = vld [vmem:[%s9982 + $0x14] sm:$0xf]
        %v9989 = vld [vmem:[%s9982 + $0x18] sm:$0x1]
        %v9990 = vrot.slane %v9688, 3
        %v9998 = vunpack.c.l.b16 %v9983
        %v9999 = vunpack.c.l.b16 %v9984
        %v10000 = vunpack.c.l.b16 %v9985
        %v10001 = vunpack.c.l.b16 %v9986
        %v10002 = vunpack.c.l.b16 %v9987
        %v10003 = vunpack.c.l.b16 %v9988
        %v10004 = vunpack.c.l.b16 %v9989
        %v10005 = vpack.c.b16 %v9999, %v9998
        %v10006 = vpack.c.b16 %v10001, %v10000
        %v10007 = vpack.c.b16 %v10003, %v10002
        %v10008 = vpack.c.b16 %v10004, %v10004
        %v10013 = vsel %vm8451, %v9990, 0
        %v10016 = vand.u32 %v10008, %v8456
        %10018 = vmatpush.bf16.msra.mxu0 0
        %10019 = vmatpush.bf16.msra.mxu0 0
        %10020 = vmatpush.bf16.msra.mxu0 0
        %10021 = vmatpush.bf16.msra.mxu0 0
        %10022 = vmatpush.bf16.msra.mxu0 %v10016
        %10023 = vmatpush.bf16.msra.mxu0 %v10007
        %10024 = vmatpush.bf16.msra.mxu0 %v10006
        %10025 = vmatpush.bf16.msra.mxu0 %v10005
        %10026 = vmatmul.bf16.gmra.mxu0 %v10013
        %v10027 = vpop.f32.mrf.mxu0
        %v10028 = vadd.f32 0.0, %v10027
        %v10029 = vpop.f32.mrf.mxu0
        %10030 = vdwg.mxu0
        %v10031 = vadd.f32 %v9981, %v10028
        %10032 = vst [vmem:[%s322] sm:$0x1] %v10031
        %s10033 = sand.u32 %s225, 1
        %s10034 = scalar_lea.sflag [#allocation3], %s10033
        %s10035 = sand.u32 %s225, 1
        %s10036 = scalar_lea.vmem [#allocation2], %s10035
        // Predicated region
        $region57: #{cnn_forward.1} parent=55 // pred_check
          %p10037 = pneg %p235
        $region58: #{cnn_forward.1} parent=55 // pred_check_branch
          %10039 = sbr.rel (%p10037) target = $region60
        $region59: #{cnn_forward.1} parent=55 // pred_region
          %10041 = vsyncadd %s10034, 0
          %s10042 = scalar_lea.hbm %s9, %s23
          %s10044 = sshll.u32 %s10036, 4
          %s10045 = int_to_ptr.vmem [resolvable:$true] %s10044
          %s10046 = sshll.u32 %s10042, 4
          %s10047 = int_to_ptr.hbm [resolvable:$true] %s10046
          %10049 = dma.vmem_to_hbm [thread:$0]  %s10045, 16, %s10047, %s10034
        $region60: #{cnn_forward.1} parent=55 // pred_fallthru
          _
      $region56: #{cnn_forward.1} parent=5 // pred_fallthru
        _
      %p10050 = scmp.le.s32.totalorder 2, %s18
      // Predicated region
      $region61: #{cnn_forward.1} parent=5 // pred_check
        %p10051 = pneg %p10050
      $region62: #{cnn_forward.1} parent=5 // pred_check_branch
        %10053 = sbr.rel (%p10051) target = $region64
      $region63: #{cnn_forward.1} parent=5 // pred_region
        %s10054 = ssub.s32 %s18, 2
        // Predicated region
        $region65: #{cnn_forward.1} parent=63 // pred_check
          %p10055 = pneg %p241
        $region66: #{cnn_forward.1} parent=63 // pred_check_branch
          %10057 = sbr.rel (%p10055) target = $region68
        $region67: #{cnn_forward.1} parent=63 // pred_region
          %s10058 = sand.u32 %s226, 1
          %s10059 = scalar_lea.sflag [#allocation3], %s10058
          %s10060 = sand.u32 %s226, 1
          %s10061 = scalar_lea.vmem [#allocation2], %s10060
          %10063 = dma.done %s10059, 16
        $region68: #{cnn_forward.1} parent=63 // pred_fallthru
          _
      $region64: #{cnn_forward.1} parent=5 // pred_fallthru
        _
    $region6: #{cnn_forward.1} parent=1 // loop_footer
      %s22 = sadd.s32 1, %s18
    $region7: #{cnn_forward.1} parent=1 // loop_footer_branch
      %17 = sbr.rel target = $region3
    $region8: #{cnn_forward.1} parent=1 // loop_exit
      _
    %10064 = vsyncpa [#allocation3], 1
    %s10065 = scalar_lea.sflag [#allocation3], 1
    %10066 = vsyncpa %s10065, 1

</llo_original>
